<compile_context>
chip_gen: v5e
topology: v5e:2x2
jax: 0.10.0
libtpu: 0.0.40
codegen_flags: <defaults>
</compile_context>

<pallas_src>
import jax
import jax.numpy as jnp
from jax.experimental import pallas as pl
from jax.experimental.pallas import tpu as pltpu

EPS = 1e-5
CP = 128  # padded channel lanes (real channel counts here are <= 128)


# ---------------------------------------------------------------------------
# helpers
# ---------------------------------------------------------------------------
def _tile_m(m):
    for t in (512, 256, 128, 64, 32, 16, 8):
        if m % t == 0:
            return t
    return m


def _pad_vec(v):
    return jnp.pad(v.astype(jnp.float32), (0, CP - v.shape[0]))


def _pad_cols(w):
    return jnp.pad(w, ((0, 0), (0, CP - w.shape[1])))


def im2col_stride2(x):
    # (N, Cin, D, H, W) -> (N*Do*Ho*Wo, Cin*8); k=2/s=2 is non-overlapping so
    # this is a pure reshape/transpose (no read amplification).
    n, c, d, h, w = x.shape
    do, ho, wo = d // 2, h // 2, w // 2
    xr = x.reshape(n, c, do, 2, ho, 2, wo, 2)
    xr = jnp.transpose(xr, (0, 2, 4, 6, 1, 3, 5, 7))
    return xr.reshape(n * do * ho * wo, c * 8)


def _pack_down_weight(w):
    co, ci = w.shape[0], w.shape[1]
    wk = w.reshape(co, ci * 8).T                # (K, Cout)
    return _pad_cols(wk).astype(jnp.bfloat16)   # (K, CP)


def _pack_lu_weight(w):
    co, ci = w.shape[0], w.shape[1]
    wt = jnp.transpose(w, (2, 3, 4, 1, 0)).reshape(5, 25, ci, co)
    wt = jnp.pad(wt, ((0, 0), (0, 0), (0, CP - ci), (0, CP - co)))
    return wt.astype(jnp.bfloat16)              # (5, 25, CP, CP)


# ---------------------------------------------------------------------------
# Pallas kernels
# ---------------------------------------------------------------------------
def _conv_mm_stats_kernel(p_ref, w_ref, b_ref, y_ref, ps_ref):
    # bf16 MXU matmul, f32 accumulate; also emit per-tile sum / sum-of-squares.
    y = jnp.dot(p_ref[...], w_ref[...], preferred_element_type=jnp.float32)
    y = y + b_ref[...]
    y_ref[...] = y
    s1 = jnp.sum(y, axis=0, keepdims=True)
    s2 = jnp.sum(y * y, axis=0, keepdims=True)
    ps_ref[...] = jnp.concatenate([s1, s2], axis=0)


def _luconv_stats_kernel(a_ref, w_ref, b_ref, y_ref, ps_ref, acc_ref):
    # Grid = (n, d_out, kd).  a_ref is one padded depth slice (H+4, W+4, CP);
    # accumulate 25 (kh, kw) taps per kd into a VMEM scratch accumulator.
    kd = pl.program_id(2)
    hp, wp, _ = a_ref.shape
    ho, wo = hp - 4, wp - 4

    @pl.when(kd == 0)
    def _():
        acc_ref[...] = jnp.zeros_like(acc_ref)

    acc = acc_ref[...]
    for kh in range(5):
        for kw in range(5):
            lhs = a_ref[kh:kh + ho, kw:kw + wo, :]
            lhs = lhs.reshape(ho * wo, CP).astype(jnp.bfloat16)
            acc = acc + jnp.dot(lhs, w_ref[kh * 5 + kw],
                                preferred_element_type=jnp.float32)
    acc_ref[...] = acc

    @pl.when(kd == pl.num_programs(2) - 1)
    def _():
        y = acc_ref[...] + b_ref[...]
        y_ref[...] = y
        s1 = jnp.sum(y, axis=0, keepdims=True)
        s2 = jnp.sum(y * y, axis=0, keepdims=True)
        ps_ref[...] = jnp.concatenate([s1, s2], axis=0)


def _bn_elu_kernel(y_ref, sc_ref, sh_ref, o_ref):
    z = y_ref[...] * sc_ref[...] + sh_ref[...]
    o_ref[...] = jnp.where(z > 0, z, jnp.exp(z) - 1.0)


def _bn_elu_add_kernel(y_ref, sc_ref, sh_ref, r_ref, o_ref):
    # normalize+affine+ELU fused with the residual add + final ELU.
    z = y_ref[...] * sc_ref[...] + sh_ref[...]
    t = jnp.where(z > 0, z, jnp.exp(z) - 1.0)
    u = t + r_ref[...]
    o_ref[...] = jnp.where(u > 0, u, jnp.exp(u) - 1.0)


def _add_elu_kernel(a_ref, b_ref, o_ref):
    u = a_ref[...] + b_ref[...]
    o_ref[...] = jnp.where(u > 0, u, jnp.exp(u) - 1.0)


# ---------------------------------------------------------------------------
# pallas_call wrappers
# ---------------------------------------------------------------------------
def conv_matmul_stats(patches, w_p, b_p):
    m, k = patches.shape
    tm = _tile_m(m)
    nt = m // tm
    y, ps = pl.pallas_call(
        _conv_mm_stats_kernel,
        out_shape=(jax.ShapeDtypeStruct((m, CP), jnp.float32),
                   jax.ShapeDtypeStruct((nt, 2, CP), jnp.float32)),
        grid=(nt,),
        in_specs=[pl.BlockSpec((tm, k), lambda i: (i, 0)),
                  pl.BlockSpec((k, CP), lambda i: (0, 0)),
                  pl.BlockSpec((1, CP), lambda i: (0, 0))],
        out_specs=(pl.BlockSpec((tm, CP), lambda i: (i, 0)),
                   pl.BlockSpec((None, 2, CP), lambda i: (i, 0, 0))),
        compiler_params=pltpu.CompilerParams(
            dimension_semantics=("parallel",)),
    )(patches, w_p, b_p.reshape(1, CP))
    s = jnp.sum(ps, axis=0)
    return y, s[0], s[1]


def luconv_stats(ap, w_taps, b_p):
    # ap: (N, D+4, H+4, W+4, CP) f32 channels-last, spatially zero-padded.
    n, dp, hp, wp, _ = ap.shape
    do, ho, wo = dp - 4, hp - 4, wp - 4
    y, ps = pl.pallas_call(
        _luconv_stats_kernel,
        out_shape=(jax.ShapeDtypeStruct((n, do, ho * wo, CP), jnp.float32),
                   jax.ShapeDtypeStruct((n, do, 2, CP), jnp.float32)),
        grid=(n, do, 5),
        in_specs=[
            pl.BlockSpec((None, None, hp, wp, CP),
                         lambda ni, di, kd: (ni, di + kd, 0, 0, 0)),
            pl.BlockSpec((None, 25, CP, CP),
                         lambda ni, di, kd: (kd, 0, 0, 0)),
            pl.BlockSpec((1, CP), lambda ni, di, kd: (0, 0)),
        ],
        out_specs=(
            pl.BlockSpec((None, None, ho * wo, CP),
                         lambda ni, di, kd: (ni, di, 0, 0)),
            pl.BlockSpec((None, None, 2, CP),
                         lambda ni, di, kd: (ni, di, 0, 0)),
        ),
        scratch_shapes=[pltpu.VMEM((ho * wo, CP), jnp.float32)],
        compiler_params=pltpu.CompilerParams(
            dimension_semantics=("parallel", "parallel", "arbitrary")),
    )(ap, w_taps, b_p.reshape(1, CP))
    s = jnp.sum(ps, axis=(0, 1))
    return y.reshape(n * do * ho * wo, CP), s[0], s[1]


def bn_scale_shift(s1, s2, m, gamma_p, beta_p):
    mean = s1 / m
    var = jnp.maximum(s2 / m - mean * mean, 0.0)     # biased variance
    scale = gamma_p * jax.lax.rsqrt(var + EPS)
    shift = beta_p - mean * scale
    return scale.reshape(1, CP), shift.reshape(1, CP)


def bn_elu(y, scale, shift):
    m = y.shape[0]
    tm = _tile_m(m)
    return pl.pallas_call(
        _bn_elu_kernel,
        out_shape=jax.ShapeDtypeStruct((m, CP), jnp.float32),
        grid=(m // tm,),
        in_specs=[pl.BlockSpec((tm, CP), lambda i: (i, 0)),
                  pl.BlockSpec((1, CP), lambda i: (0, 0)),
                  pl.BlockSpec((1, CP), lambda i: (0, 0))],
        out_specs=pl.BlockSpec((tm, CP), lambda i: (i, 0)),
        compiler_params=pltpu.CompilerParams(
            dimension_semantics=("parallel",)),
    )(y, scale, shift)


def bn_elu_add(y, scale, shift, res):
    m = y.shape[0]
    tm = _tile_m(m)
    return pl.pallas_call(
        _bn_elu_add_kernel,
        out_shape=jax.ShapeDtypeStruct((m, CP), jnp.float32),
        grid=(m // tm,),
        in_specs=[pl.BlockSpec((tm, CP), lambda i: (i, 0)),
                  pl.BlockSpec((1, CP), lambda i: (0, 0)),
                  pl.BlockSpec((1, CP), lambda i: (0, 0)),
                  pl.BlockSpec((tm, CP), lambda i: (i, 0))],
        out_specs=pl.BlockSpec((tm, CP), lambda i: (i, 0)),
        compiler_params=pltpu.CompilerParams(
            dimension_semantics=("parallel",)),
    )(y, scale, shift, res)


def add_elu(a, b):
    m = a.shape[0]
    tm = _tile_m(m)
    return pl.pallas_call(
        _add_elu_kernel,
        out_shape=jax.ShapeDtypeStruct((m, CP), jnp.float32),
        grid=(m // tm,),
        in_specs=[pl.BlockSpec((tm, CP), lambda i: (i, 0)),
                  pl.BlockSpec((tm, CP), lambda i: (i, 0))],
        out_specs=pl.BlockSpec((tm, CP), lambda i: (i, 0)),
        compiler_params=pltpu.CompilerParams(
            dimension_semantics=("parallel",)),
    )(a, b)


# ---------------------------------------------------------------------------
# DownTransition forward
# ---------------------------------------------------------------------------
def down_transition_forward(x, params, n_convs):
    n, cin, d, h, w = x.shape
    c = 2 * cin
    assert c <= CP, "channel padding assumes <=128 output channels"
    do, ho, wo = d // 2, h // 2, w // 2
    m = n * do * ho * wo

    # down_conv (k=2, s=2) + bias + batch stats (gridded matmul, bf16 MXU)
    patches = im2col_stride2(x).astype(jnp.bfloat16)
    y, s1, s2 = conv_matmul_stats(patches,
                                  _pack_down_weight(params["down_w"]),
                                  _pad_vec(params["down_b"]))
    sc, sh = bn_scale_shift(s1, s2, m,
                            _pad_vec(params["down_gamma"]),
                            _pad_vec(params["down_beta"]))
    down_act = bn_elu(y, sc, sh)          # relu1(bn1(down_conv(x)))
    out = down_act                        # do1 = passthrough (dropout=False)

    # LUConv stack: 5x5x5 conv + BN + ELU, residual fused into the last one
    for i in range(n_convs):
        a5 = out.reshape(n, do, ho, wo, CP)
        ap = jnp.pad(a5, ((0, 0), (2, 2), (2, 2), (2, 2), (0, 0)))
        y, s1, s2 = luconv_stats(ap, _pack_lu_weight(params[f"lu{i}_w"]),
                                 _pad_vec(params[f"lu{i}_b"]))
        sc, sh = bn_scale_shift(s1, s2, m,
                                _pad_vec(params[f"lu{i}_gamma"]),
                                _pad_vec(params[f"lu{i}_beta"]))
        if i == n_convs - 1:
            out = bn_elu_add(y, sc, sh, down_act)   # fused relu2(out + down)
        else:
            out = bn_elu(y, sc, sh)

    if n_convs == 0:
        out = add_elu(down_act, down_act)           # relu2(down + down)

    out5 = out.reshape(n, do, ho, wo, CP)[..., :c]  # drop padded channels
    return jnp.transpose(out5, (0, 4, 1, 2, 3))     # back to NCDHW


# ---------------------------------------------------------------------------
# Pure-JAX reference (f32) for validation
# ---------------------------------------------------------------------------
def reference_forward(x, params, n_convs):
    def elu(v):
        return jnp.where(v > 0, v, jnp.exp(v) - 1.0)

    def bn(v, g, b):
        mean = jnp.mean(v, axis=(0, 2, 3, 4), keepdims=True)
        var = jnp.var(v, axis=(0, 2, 3, 4), keepdims=True)  # biased
        return (g.reshape(1, -1, 1, 1, 1) * (v - mean) / jnp.sqrt(var + EPS)
                + b.reshape(1, -1, 1, 1, 1))

    dn = ('NCDHW', 'OIDHW', 'NCDHW')
    y = jax.lax.conv_general_dilated(x, params["down_w"], (2, 2, 2), 'VALID',
                                     dimension_numbers=dn)
    y = y + params["down_b"].reshape(1, -1, 1, 1, 1)
    down = elu(bn(y, params["down_gamma"], params["down_beta"]))
    out = down
    for i in range(n_convs):
        y = jax.lax.conv_general_dilated(out, params[f"lu{i}_w"], (1, 1, 1),
                                         [(2, 2), (2, 2), (2, 2)],
                                         dimension_numbers=dn)
        y = y + params[f"lu{i}_b"].reshape(1, -1, 1, 1, 1)
        out = elu(bn(y, params[f"lu{i}_gamma"], params[f"lu{i}_beta"]))
    return elu(out + down)


# ---------------------------------------------------------------------------
if __name__ == "__main__":
    N, IN_CH, D, H, W = 2, 4, 16, 16, 16
    N_CONVS = 1                 # DownTransition(inChans=4, nConvs=1, elu=True)
    OUT_CH = 2 * IN_CH

    key = jax.random.PRNGKey(0)
    keys = jax.random.split(key, 16)

    params = {
        "down_w": jax.random.normal(keys[0], (OUT_CH, IN_CH, 2, 2, 2),
                                    jnp.float32) * (2.0 / (IN_CH * 8)) ** 0.5,
        "down_b": 0.01 * jax.random.normal(keys[1], (OUT_CH,), jnp.float32),
        "down_gamma": 1.0 + 0.1 * jax.random.normal(keys[2], (OUT_CH,), jnp.float32),
        "down_beta": 0.1 * jax.random.normal(keys[3], (OUT_CH,), jnp.float32),
    }
    for i in range(N_CONVS):
        params[f"lu{i}_w"] = (jax.random.normal(keys[4 + 4 * i],
                                                (OUT_CH, OUT_CH, 5, 5, 5),
                                                jnp.float32)
                              * (2.0 / (OUT_CH * 125)) ** 0.5)
        params[f"lu{i}_b"] = 0.01 * jax.random.normal(keys[5 + 4 * i], (OUT_CH,),
                                                      jnp.float32)
        params[f"lu{i}_gamma"] = 1.0 + 0.1 * jax.random.normal(keys[6 + 4 * i],
                                                               (OUT_CH,), jnp.float32)
        params[f"lu{i}_beta"] = 0.1 * jax.random.normal(keys[7 + 4 * i], (OUT_CH,),
                                                        jnp.float32)

    x = jax.random.normal(keys[15], (N, IN_CH, D, H, W), jnp.float32)

    out = jax.jit(lambda xx: down_transition_forward(xx, params, N_CONVS))(x)
    out = jax.block_until_ready(out)

    ref = jax.jit(lambda xx: reference_forward(xx, params, N_CONVS))(x)
    ref = jax.block_until_ready(ref)

    assert out.shape == (N, OUT_CH, D // 2, H // 2, W // 2), out.shape
    # bf16 MXU operands with f32 accumulation vs. f32 reference -> 2e-2 tol.
    max_err = float(jnp.max(jnp.abs(out - ref)))
    assert jnp.allclose(out, ref, rtol=2e-2, atol=2e-2), max_err

    print("KERNEL_OK")
</pallas_src>

<mosaic_0001>
module attributes {stable_mosaic.version = 11 : i64} {
  func.func @_conv_mm_stats_kernel(%arg0: i32, %arg1: memref<512x32xbf16, #tpu.memory_space<vmem>>, %arg2: memref<32x128xbf16, #tpu.memory_space<vmem>>, %arg3: memref<1x128xf32, #tpu.memory_space<vmem>>, %arg4: memref<512x128xf32, #tpu.memory_space<vmem>>, %arg5: memref<1x2x128xf32, #tpu.memory_space<vmem>>) attributes {dimension_semantics = [#tpu.dimension_semantics<parallel>], iteration_bounds = array<i64: 2>, scalar_prefetch = 0 : i64, scratch_operands = 0 : i64, tpu.core_type = #tpu.core_type<tc>, window_params = [{transform_indices = @transform_0, window_bounds = array<i64: 512, 32>}, {pipeline_mode = #tpu.pipeline_mode<synchronous>, transform_indices = @transform_1, window_bounds = array<i64: 32, 128>}, {pipeline_mode = #tpu.pipeline_mode<synchronous>, transform_indices = @transform_2, window_bounds = array<i64: 1, 128>}, {transform_indices = @transform_3, window_bounds = array<i64: 512, 128>}, {transform_indices = @transform_4, window_bounds = array<i64: 1, 2, 128>}]} {
    %c0 = arith.constant 0 : index
    %c0_0 = arith.constant 0 : index
    %0 = vector.load %arg1[%c0, %c0_0] : memref<512x32xbf16, #tpu.memory_space<vmem>>, vector<512x32xbf16>
    %c0_1 = arith.constant 0 : index
    %c0_2 = arith.constant 0 : index
    %1 = vector.load %arg2[%c0_1, %c0_2] : memref<32x128xbf16, #tpu.memory_space<vmem>>, vector<32x128xbf16>
    %cst = arith.constant dense<0.000000e+00> : vector<512x128xf32>
    %2 = tpu.matmul %0, %1, %cst {dimension_numbers = #tpu.dot_dimension_numbers<[1], [0], [0], [1], [0, 0, 1, 1], [], []>} : vector<512x32xbf16>, vector<32x128xbf16>, vector<512x128xf32> -> vector<512x128xf32>
    %c0_3 = arith.constant 0 : index
    %c0_4 = arith.constant 0 : index
    %3 = vector.load %arg3[%c0_3, %c0_4] : memref<1x128xf32, #tpu.memory_space<vmem>>, vector<1x128xf32>
    %4 = vector.broadcast %3 : vector<1x128xf32> to vector<512x128xf32>
    %5 = arith.addf %2, %4 : vector<512x128xf32>
    %c0_5 = arith.constant 0 : index
    %c0_6 = arith.constant 0 : index
    %6 = vector.load %arg4[%c0_5, %c0_6] : memref<512x128xf32, #tpu.memory_space<vmem>>, vector<512x128xf32>
    tpu.vector_store %arg4[%c0_5, %c0_6], %5 {strides = array<i32>} : memref<512x128xf32, #tpu.memory_space<vmem>>, vector<512x128xf32>,
    %cst_7 = arith.constant dense<0.000000e+00> : vector<128xf32>
    %7 = vector.multi_reduction <add>, %5, %cst_7 [0] : vector<512x128xf32> to vector<128xf32>
    %8 = vector.shape_cast %7 : vector<128xf32> to vector<1x128xf32>
    %9 = arith.mulf %5, %5 : vector<512x128xf32>
    %cst_8 = arith.constant dense<0.000000e+00> : vector<128xf32>
    %10 = vector.multi_reduction <add>, %9, %cst_8 [0] : vector<512x128xf32> to vector<128xf32>
    %11 = vector.shape_cast %10 : vector<128xf32> to vector<1x128xf32>
    %12 = tpu.concatenate %8, %11 in 0 : vector<1x128xf32>, vector<1x128xf32> -> vector<2x128xf32>
    %c0_9 = arith.constant 0 : index
    %c0_10 = arith.constant 0 : index
    %c0_11 = arith.constant 0 : index
    %13 = vector.load %arg5[%c0_9, %c0_10, %c0_11] : memref<1x2x128xf32, #tpu.memory_space<vmem>>, vector<1x2x128xf32>
    %14 = vector.shape_cast %13 : vector<1x2x128xf32> to vector<2x128xf32>
    %15 = vector.shape_cast %12 : vector<2x128xf32> to vector<1x2x128xf32>
    tpu.vector_store %arg5[%c0_9, %c0_10, %c0_11], %15 {strides = array<i32>} : memref<1x2x128xf32, #tpu.memory_space<vmem>>, vector<1x2x128xf32>,
    return
  }
  func.func @transform_0(%arg0: i32) -> (i32, i32) {
    %c0_i32 = arith.constant 0 : i32
    %c0_i32_0 = arith.constant 0 : i32
    return %arg0, %c0_i32 : i32, i32
  }
  func.func @transform_1(%arg0: i32) -> (i32, i32) {
    %c0_i32 = arith.constant 0 : i32
    %c0_i32_0 = arith.constant 0 : i32
    %c0_i32_1 = arith.constant 0 : i32
    return %c0_i32, %c0_i32_0 : i32, i32
  }
  func.func @transform_2(%arg0: i32) -> (i32, i32) {
    %c0_i32 = arith.constant 0 : i32
    %c0_i32_0 = arith.constant 0 : i32
    %c0_i32_1 = arith.constant 0 : i32
    return %c0_i32, %c0_i32_0 : i32, i32
  }
  func.func @transform_3(%arg0: i32) -> (i32, i32) {
    %c0_i32 = arith.constant 0 : i32
    %c0_i32_0 = arith.constant 0 : i32
    return %arg0, %c0_i32 : i32, i32
  }
  func.func @transform_4(%arg0: i32) -> (i32, i32, i32) {
    %c0_i32 = arith.constant 0 : i32
    %c0_i32_0 = arith.constant 0 : i32
    %c0_i32_1 = arith.constant 0 : i32
    return %arg0, %c0_i32, %c0_i32_0 : i32, i32, i32
  }
}

module attributes {stable_mosaic.version = 11 : i64} {
  func.func @_bn_elu_kernel(%arg0: i32, %arg1: memref<512x128xf32, #tpu.memory_space<vmem>>, %arg2: memref<1x128xf32, #tpu.memory_space<vmem>>, %arg3: memref<1x128xf32, #tpu.memory_space<vmem>>, %arg4: memref<512x128xf32, #tpu.memory_space<vmem>>) attributes {dimension_semantics = [#tpu.dimension_semantics<parallel>], iteration_bounds = array<i64: 2>, scalar_prefetch = 0 : i64, scratch_operands = 0 : i64, tpu.core_type = #tpu.core_type<tc>, window_params = [{transform_indices = @transform_0, window_bounds = array<i64: 512, 128>}, {pipeline_mode = #tpu.pipeline_mode<synchronous>, transform_indices = @transform_1, window_bounds = array<i64: 1, 128>}, {pipeline_mode = #tpu.pipeline_mode<synchronous>, transform_indices = @transform_2, window_bounds = array<i64: 1, 128>}, {transform_indices = @transform_3, window_bounds = array<i64: 512, 128>}]} {
    %c0 = arith.constant 0 : index
    %c0_0 = arith.constant 0 : index
    %0 = vector.load %arg1[%c0, %c0_0] : memref<512x128xf32, #tpu.memory_space<vmem>>, vector<512x128xf32>
    %c0_1 = arith.constant 0 : index
    %c0_2 = arith.constant 0 : index
    %1 = vector.load %arg2[%c0_1, %c0_2] : memref<1x128xf32, #tpu.memory_space<vmem>>, vector<1x128xf32>
    %2 = vector.broadcast %1 : vector<1x128xf32> to vector<512x128xf32>
    %3 = arith.mulf %0, %2 : vector<512x128xf32>
    %c0_3 = arith.constant 0 : index
    %c0_4 = arith.constant 0 : index
    %4 = vector.load %arg3[%c0_3, %c0_4] : memref<1x128xf32, #tpu.memory_space<vmem>>, vector<1x128xf32>
    %5 = vector.broadcast %4 : vector<1x128xf32> to vector<512x128xf32>
    %6 = arith.addf %3, %5 : vector<512x128xf32>
    %cst = arith.constant 0.000000e+00 : f32
    %7 = vector.broadcast %cst : f32 to vector<512x128xf32>
    %8 = arith.cmpf ogt, %6, %7 : vector<512x128xf32>
    %9 = math.exp %6 : vector<512x128xf32>
    %cst_5 = arith.constant 1.000000e+00 : f32
    %10 = vector.broadcast %cst_5 : f32 to vector<512x128xf32>
    %11 = arith.subf %9, %10 : vector<512x128xf32>
    %12 = arith.select %8, %6, %11 : vector<512x128xi1>, vector<512x128xf32>
    %c0_6 = arith.constant 0 : index
    %c0_7 = arith.constant 0 : index
    %13 = vector.load %arg4[%c0_6, %c0_7] : memref<512x128xf32, #tpu.memory_space<vmem>>, vector<512x128xf32>
    tpu.vector_store %arg4[%c0_6, %c0_7], %12 {strides = array<i32>} : memref<512x128xf32, #tpu.memory_space<vmem>>, vector<512x128xf32>,
    return
  }
  func.func @transform_0(%arg0: i32) -> (i32, i32) {
    %c0_i32 = arith.constant 0 : i32
    %c0_i32_0 = arith.constant 0 : i32
    return %arg0, %c0_i32 : i32, i32
  }
  func.func @transform_1(%arg0: i32) -> (i32, i32) {
    %c0_i32 = arith.constant 0 : i32
    %c0_i32_0 = arith.constant 0 : i32
    %c0_i32_1 = arith.constant 0 : i32
    return %c0_i32, %c0_i32_0 : i32, i32
  }
  func.func @transform_2(%arg0: i32) -> (i32, i32) {
    %c0_i32 = arith.constant 0 : i32
    %c0_i32_0 = arith.constant 0 : i32
    %c0_i32_1 = arith.constant 0 : i32
    return %c0_i32, %c0_i32_0 : i32, i32
  }
  func.func @transform_3(%arg0: i32) -> (i32, i32) {
    %c0_i32 = arith.constant 0 : i32
    %c0_i32_0 = arith.constant 0 : i32
    return %arg0, %c0_i32 : i32, i32
  }
}

module attributes {stable_mosaic.version = 11 : i64} {
  func.func @_luconv_stats_kernel(%arg0: i32, %arg1: i32, %arg2: i32, %arg3: memref<1x1x12x12x128xf32, #tpu.memory_space<vmem>>, %arg4: memref<1x25x128x128xbf16, #tpu.memory_space<vmem>>, %arg5: memref<1x128xf32, #tpu.memory_space<vmem>>, %arg6: memref<1x1x64x128xf32, #tpu.memory_space<vmem>>, %arg7: memref<1x1x2x128xf32, #tpu.memory_space<vmem>>, %arg8: memref<64x128xf32, #tpu.memory_space<vmem>>) attributes {dimension_semantics = [#tpu.dimension_semantics<parallel>, #tpu.dimension_semantics<parallel>, #tpu.dimension_semantics<arbitrary>], iteration_bounds = array<i64: 2, 8, 5>, scalar_prefetch = 0 : i64, scratch_operands = 1 : i64, tpu.core_type = #tpu.core_type<tc>, window_params = [{transform_indices = @transform_0, window_bounds = array<i64: 1, 1, 12, 12, 128>}, {transform_indices = @transform_1, window_bounds = array<i64: 1, 25, 128, 128>}, {pipeline_mode = #tpu.pipeline_mode<synchronous>, transform_indices = @transform_2, window_bounds = array<i64: 1, 128>}, {transform_indices = @transform_3, window_bounds = array<i64: 1, 1, 64, 128>}, {transform_indices = @transform_4, window_bounds = array<i64: 1, 1, 2, 128>}]} {
    %c0_i32 = arith.constant 0 : i32
    %0 = arith.cmpi eq, %arg2, %c0_i32 : i32
    %1 = arith.extui %0 : i1 to i32
    %c0_i32_0 = arith.constant 0 : i32
    %2 = arith.cmpi ne, %1, %c0_i32_0 : i32
    scf.if %2 {
      %cst_230 = arith.constant 0.000000e+00 : f32
      %208 = vector.broadcast %cst_230 : f32 to vector<64x128xf32>
      %c0_231 = arith.constant 0 : index
      %c0_232 = arith.constant 0 : index
      %209 = vector.load %arg8[%c0_231, %c0_232] : memref<64x128xf32, #tpu.memory_space<vmem>>, vector<64x128xf32>
      tpu.vector_store %arg8[%c0_231, %c0_232], %208 {strides = array<i32>} : memref<64x128xf32, #tpu.memory_space<vmem>>, vector<64x128xf32>,
    } else {
    }
    %c0 = arith.constant 0 : index
    %c0_1 = arith.constant 0 : index
    %3 = vector.load %arg8[%c0, %c0_1] : memref<64x128xf32, #tpu.memory_space<vmem>>, vector<64x128xf32>
    %c0_2 = arith.constant 0 : index
    %c0_3 = arith.constant 0 : index
    %c0_4 = arith.constant 0 : index
    %c0_5 = arith.constant 0 : index
    %c0_6 = arith.constant 0 : index
    %4 = vector.load %arg3[%c0_2, %c0_3, %c0_4, %c0_5, %c0_6] : memref<1x1x12x12x128xf32, #tpu.memory_space<vmem>>, vector<1x1x8x8x128xf32>
    %5 = vector.shape_cast %4 : vector<1x1x8x8x128xf32> to vector<8x8x128xf32>
    %6 = vector.shape_cast %5 : vector<8x8x128xf32> to vector<64x128xf32>
    %7 = arith.truncf %6 : vector<64x128xf32> to vector<64x128xbf16>
    %c0_7 = arith.constant 0 : index
    %c0_8 = arith.constant 0 : index
    %c0_9 = arith.constant 0 : index
    %c0_10 = arith.constant 0 : index
    %8 = vector.load %arg4[%c0_7, %c0_8, %c0_9, %c0_10] : memref<1x25x128x128xbf16, #tpu.memory_space<vmem>>, vector<1x1x128x128xbf16>
    %9 = vector.shape_cast %8 : vector<1x1x128x128xbf16> to vector<128x128xbf16>
    %cst = arith.constant dense<0.000000e+00> : vector<64x128xf32>
    %10 = tpu.matmul %7, %9, %cst {dimension_numbers = #tpu.dot_dimension_numbers<[1], [0], [0], [1], [0, 0, 1, 1], [], []>} : vector<64x128xbf16>, vector<128x128xbf16>, vector<64x128xf32> -> vector<64x128xf32>
    %11 = arith.addf %3, %10 : vector<64x128xf32>
    %c0_11 = arith.constant 0 : index
    %c0_12 = arith.constant 0 : index
    %c0_13 = arith.constant 0 : index
    %c1 = arith.constant 1 : index
    %c0_14 = arith.constant 0 : index
    %12 = vector.load %arg3[%c0_11, %c0_12, %c0_13, %c1, %c0_14] : memref<1x1x12x12x128xf32, #tpu.memory_space<vmem>>, vector<1x1x8x8x128xf32>
    %13 = vector.shape_cast %12 : vector<1x1x8x8x128xf32> to vector<8x8x128xf32>
    %14 = vector.shape_cast %13 : vector<8x8x128xf32> to vector<64x128xf32>
    %15 = arith.truncf %14 : vector<64x128xf32> to vector<64x128xbf16>
    %c0_15 = arith.constant 0 : index
    %c1_16 = arith.constant 1 : index
    %c0_17 = arith.constant 0 : index
    %c0_18 = arith.constant 0 : index
    %16 = vector.load %arg4[%c0_15, %c1_16, %c0_17, %c0_18] : memref<1x25x128x128xbf16, #tpu.memory_space<vmem>>, vector<1x1x128x128xbf16>
    %17 = vector.shape_cast %16 : vector<1x1x128x128xbf16> to vector<128x128xbf16>
    %cst_19 = arith.constant dense<0.000000e+00> : vector<64x128xf32>
    %18 = tpu.matmul %15, %17, %cst_19 {dimension_numbers = #tpu.dot_dimension_numbers<[1], [0], [0], [1], [0, 0, 1, 1], [], []>} : vector<64x128xbf16>, vector<128x128xbf16>, vector<64x128xf32> -> vector<64x128xf32>
    %19 = arith.addf %11, %18 : vector<64x128xf32>
    %c0_20 = arith.constant 0 : index
    %c0_21 = arith.constant 0 : index
    %c0_22 = arith.constant 0 : index
    %c2 = arith.constant 2 : index
    %c0_23 = arith.constant 0 : index
    %20 = vector.load %arg3[%c0_20, %c0_21, %c0_22, %c2, %c0_23] : memref<1x1x12x12x128xf32, #tpu.memory_space<vmem>>, vector<1x1x8x8x128xf32>
    %21 = vector.shape_cast %20 : vector<1x1x8x8x128xf32> to vector<8x8x128xf32>
    %22 = vector.shape_cast %21 : vector<8x8x128xf32> to vector<64x128xf32>
    %23 = arith.truncf %22 : vector<64x128xf32> to vector<64x128xbf16>
    %c0_24 = arith.constant 0 : index
    %c2_25 = arith.constant 2 : index
    %c0_26 = arith.constant 0 : index
    %c0_27 = arith.constant 0 : index
    %24 = vector.load %arg4[%c0_24, %c2_25, %c0_26, %c0_27] : memref<1x25x128x128xbf16, #tpu.memory_space<vmem>>, vector<1x1x128x128xbf16>
    %25 = vector.shape_cast %24 : vector<1x1x128x128xbf16> to vector<128x128xbf16>
    %cst_28 = arith.constant dense<0.000000e+00> : vector<64x128xf32>
    %26 = tpu.matmul %23, %25, %cst_28 {dimension_numbers = #tpu.dot_dimension_numbers<[1], [0], [0], [1], [0, 0, 1, 1], [], []>} : vector<64x128xbf16>, vector<128x128xbf16>, vector<64x128xf32> -> vector<64x128xf32>
    %27 = arith.addf %19, %26 : vector<64x128xf32>
    %c0_29 = arith.constant 0 : index
    %c0_30 = arith.constant 0 : index
    %c0_31 = arith.constant 0 : index
    %c3 = arith.constant 3 : index
    %c0_32 = arith.constant 0 : index
    %28 = vector.load %arg3[%c0_29, %c0_30, %c0_31, %c3, %c0_32] : memref<1x1x12x12x128xf32, #tpu.memory_space<vmem>>, vector<1x1x8x8x128xf32>
    %29 = vector.shape_cast %28 : vector<1x1x8x8x128xf32> to vector<8x8x128xf32>
    %30 = vector.shape_cast %29 : vector<8x8x128xf32> to vector<64x128xf32>
    %31 = arith.truncf %30 : vector<64x128xf32> to vector<64x128xbf16>
    %c0_33 = arith.constant 0 : index
    %c3_34 = arith.constant 3 : index
    %c0_35 = arith.constant 0 : index
    %c0_36 = arith.constant 0 : index
    %32 = vector.load %arg4[%c0_33, %c3_34, %c0_35, %c0_36] : memref<1x25x128x128xbf16, #tpu.memory_space<vmem>>, vector<1x1x128x128xbf16>
    %33 = vector.shape_cast %32 : vector<1x1x128x128xbf16> to vector<128x128xbf16>
    %cst_37 = arith.constant dense<0.000000e+00> : vector<64x128xf32>
    %34 = tpu.matmul %31, %33, %cst_37 {dimension_numbers = #tpu.dot_dimension_numbers<[1], [0], [0], [1], [0, 0, 1, 1], [], []>} : vector<64x128xbf16>, vector<128x128xbf16>, vector<64x128xf32> -> vector<64x128xf32>
    %35 = arith.addf %27, %34 : vector<64x128xf32>
    %c0_38 = arith.constant 0 : index
    %c0_39 = arith.constant 0 : index
    %c0_40 = arith.constant 0 : index
    %c4 = arith.constant 4 : index
    %c0_41 = arith.constant 0 : index
    %36 = vector.load %arg3[%c0_38, %c0_39, %c0_40, %c4, %c0_41] : memref<1x1x12x12x128xf32, #tpu.memory_space<vmem>>, vector<1x1x8x8x128xf32>
    %37 = vector.shape_cast %36 : vector<1x1x8x8x128xf32> to vector<8x8x128xf32>
    %38 = vector.shape_cast %37 : vector<8x8x128xf32> to vector<64x128xf32>
    %39 = arith.truncf %38 : vector<64x128xf32> to vector<64x128xbf16>
    %c0_42 = arith.constant 0 : index
    %c4_43 = arith.constant 4 : index
    %c0_44 = arith.constant 0 : index
    %c0_45 = arith.constant 0 : index
    %40 = vector.load %arg4[%c0_42, %c4_43, %c0_44, %c0_45] : memref<1x25x128x128xbf16, #tpu.memory_space<vmem>>, vector<1x1x128x128xbf16>
    %41 = vector.shape_cast %40 : vector<1x1x128x128xbf16> to vector<128x128xbf16>
    %cst_46 = arith.constant dense<0.000000e+00> : vector<64x128xf32>
    %42 = tpu.matmul %39, %41, %cst_46 {dimension_numbers = #tpu.dot_dimension_numbers<[1], [0], [0], [1], [0, 0, 1, 1], [], []>} : vector<64x128xbf16>, vector<128x128xbf16>, vector<64x128xf32> -> vector<64x128xf32>
    %43 = arith.addf %35, %42 : vector<64x128xf32>
    %c0_47 = arith.constant 0 : index
    %c0_48 = arith.constant 0 : index
    %c1_49 = arith.constant 1 : index
    %c0_50 = arith.constant 0 : index
    %c0_51 = arith.constant 0 : index
    %44 = vector.load %arg3[%c0_47, %c0_48, %c1_49, %c0_50, %c0_51] : memref<1x1x12x12x128xf32, #tpu.memory_space<vmem>>, vector<1x1x8x8x128xf32>
    %45 = vector.shape_cast %44 : vector<1x1x8x8x128xf32> to vector<8x8x128xf32>
    %46 = vector.shape_cast %45 : vector<8x8x128xf32> to vector<64x128xf32>
    %47 = arith.truncf %46 : vector<64x128xf32> to vector<64x128xbf16>
    %c0_52 = arith.constant 0 : index
    %c5 = arith.constant 5 : index
    %c0_53 = arith.constant 0 : index
    %c0_54 = arith.constant 0 : index
    %48 = vector.load %arg4[%c0_52, %c5, %c0_53, %c0_54] : memref<1x25x128x128xbf16, #tpu.memory_space<vmem>>, vector<1x1x128x128xbf16>
    %49 = vector.shape_cast %48 : vector<1x1x128x128xbf16> to vector<128x128xbf16>
    %cst_55 = arith.constant dense<0.000000e+00> : vector<64x128xf32>
    %50 = tpu.matmul %47, %49, %cst_55 {dimension_numbers = #tpu.dot_dimension_numbers<[1], [0], [0], [1], [0, 0, 1, 1], [], []>} : vector<64x128xbf16>, vector<128x128xbf16>, vector<64x128xf32> -> vector<64x128xf32>
    %51 = arith.addf %43, %50 : vector<64x128xf32>
    %c0_56 = arith.constant 0 : index
    %c0_57 = arith.constant 0 : index
    %c1_58 = arith.constant 1 : index
    %c1_59 = arith.constant 1 : index
    %c0_60 = arith.constant 0 : index
    %52 = vector.load %arg3[%c0_56, %c0_57, %c1_58, %c1_59, %c0_60] : memref<1x1x12x12x128xf32, #tpu.memory_space<vmem>>, vector<1x1x8x8x128xf32>
    %53 = vector.shape_cast %52 : vector<1x1x8x8x128xf32> to vector<8x8x128xf32>
    %54 = vector.shape_cast %53 : vector<8x8x128xf32> to vector<64x128xf32>
    %55 = arith.truncf %54 : vector<64x128xf32> to vector<64x128xbf16>
    %c0_61 = arith.constant 0 : index
    %c6 = arith.constant 6 : index
    %c0_62 = arith.constant 0 : index
    %c0_63 = arith.constant 0 : index
    %56 = vector.load %arg4[%c0_61, %c6, %c0_62, %c0_63] : memref<1x25x128x128xbf16, #tpu.memory_space<vmem>>, vector<1x1x128x128xbf16>
    %57 = vector.shape_cast %56 : vector<1x1x128x128xbf16> to vector<128x128xbf16>
    %cst_64 = arith.constant dense<0.000000e+00> : vector<64x128xf32>
    %58 = tpu.matmul %55, %57, %cst_64 {dimension_numbers = #tpu.dot_dimension_numbers<[1], [0], [0], [1], [0, 0, 1, 1], [], []>} : vector<64x128xbf16>, vector<128x128xbf16>, vector<64x128xf32> -> vector<64x128xf32>
    %59 = arith.addf %51, %58 : vector<64x128xf32>
    %c0_65 = arith.constant 0 : index
    %c0_66 = arith.constant 0 : index
    %c1_67 = arith.constant 1 : index
    %c2_68 = arith.constant 2 : index
    %c0_69 = arith.constant 0 : index
    %60 = vector.load %arg3[%c0_65, %c0_66, %c1_67, %c2_68, %c0_69] : memref<1x1x12x12x128xf32, #tpu.memory_space<vmem>>, vector<1x1x8x8x128xf32>
    %61 = vector.shape_cast %60 : vector<1x1x8x8x128xf32> to vector<8x8x128xf32>
    %62 = vector.shape_cast %61 : vector<8x8x128xf32> to vector<64x128xf32>
    %63 = arith.truncf %62 : vector<64x128xf32> to vector<64x128xbf16>
    %c0_70 = arith.constant 0 : index
    %c7 = arith.constant 7 : index
    %c0_71 = arith.constant 0 : index
    %c0_72 = arith.constant 0 : index
    %64 = vector.load %arg4[%c0_70, %c7, %c0_71, %c0_72] : memref<1x25x128x128xbf16, #tpu.memory_space<vmem>>, vector<1x1x128x128xbf16>
    %65 = vector.shape_cast %64 : vector<1x1x128x128xbf16> to vector<128x128xbf16>
    %cst_73 = arith.constant dense<0.000000e+00> : vector<64x128xf32>
    %66 = tpu.matmul %63, %65, %cst_73 {dimension_numbers = #tpu.dot_dimension_numbers<[1], [0], [0], [1], [0, 0, 1, 1], [], []>} : vector<64x128xbf16>, vector<128x128xbf16>, vector<64x128xf32> -> vector<64x128xf32>
    %67 = arith.addf %59, %66 : vector<64x128xf32>
    %c0_74 = arith.constant 0 : index
    %c0_75 = arith.constant 0 : index
    %c1_76 = arith.constant 1 : index
    %c3_77 = arith.constant 3 : index
    %c0_78 = arith.constant 0 : index
    %68 = vector.load %arg3[%c0_74, %c0_75, %c1_76, %c3_77, %c0_78] : memref<1x1x12x12x128xf32, #tpu.memory_space<vmem>>, vector<1x1x8x8x128xf32>
    %69 = vector.shape_cast %68 : vector<1x1x8x8x128xf32> to vector<8x8x128xf32>
    %70 = vector.shape_cast %69 : vector<8x8x128xf32> to vector<64x128xf32>
    %71 = arith.truncf %70 : vector<64x128xf32> to vector<64x128xbf16>
    %c0_79 = arith.constant 0 : index
    %c8 = arith.constant 8 : index
    %c0_80 = arith.constant 0 : index
    %c0_81 = arith.constant 0 : index
    %72 = vector.load %arg4[%c0_79, %c8, %c0_80, %c0_81] : memref<1x25x128x128xbf16, #tpu.memory_space<vmem>>, vector<1x1x128x128xbf16>
    %73 = vector.shape_cast %72 : vector<1x1x128x128xbf16> to vector<128x128xbf16>
    %cst_82 = arith.constant dense<0.000000e+00> : vector<64x128xf32>
    %74 = tpu.matmul %71, %73, %cst_82 {dimension_numbers = #tpu.dot_dimension_numbers<[1], [0], [0], [1], [0, 0, 1, 1], [], []>} : vector<64x128xbf16>, vector<128x128xbf16>, vector<64x128xf32> -> vector<64x128xf32>
    %75 = arith.addf %67, %74 : vector<64x128xf32>
    %c0_83 = arith.constant 0 : index
    %c0_84 = arith.constant 0 : index
    %c1_85 = arith.constant 1 : index
    %c4_86 = arith.constant 4 : index
    %c0_87 = arith.constant 0 : index
    %76 = vector.load %arg3[%c0_83, %c0_84, %c1_85, %c4_86, %c0_87] : memref<1x1x12x12x128xf32, #tpu.memory_space<vmem>>, vector<1x1x8x8x128xf32>
    %77 = vector.shape_cast %76 : vector<1x1x8x8x128xf32> to vector<8x8x128xf32>
    %78 = vector.shape_cast %77 : vector<8x8x128xf32> to vector<64x128xf32>
    %79 = arith.truncf %78 : vector<64x128xf32> to vector<64x128xbf16>
    %c0_88 = arith.constant 0 : index
    %c9 = arith.constant 9 : index
    %c0_89 = arith.constant 0 : index
    %c0_90 = arith.constant 0 : index
    %80 = vector.load %arg4[%c0_88, %c9, %c0_89, %c0_90] : memref<1x25x128x128xbf16, #tpu.memory_space<vmem>>, vector<1x1x128x128xbf16>
    %81 = vector.shape_cast %80 : vector<1x1x128x128xbf16> to vector<128x128xbf16>
    %cst_91 = arith.constant dense<0.000000e+00> : vector<64x128xf32>
    %82 = tpu.matmul %79, %81, %cst_91 {dimension_numbers = #tpu.dot_dimension_numbers<[1], [0], [0], [1], [0, 0, 1, 1], [], []>} : vector<64x128xbf16>, vector<128x128xbf16>, vector<64x128xf32> -> vector<64x128xf32>
    %83 = arith.addf %75, %82 : vector<64x128xf32>
    %c0_92 = arith.constant 0 : index
    %c0_93 = arith.constant 0 : index
    %c2_94 = arith.constant 2 : index
    %c0_95 = arith.constant 0 : index
    %c0_96 = arith.constant 0 : index
    %84 = vector.load %arg3[%c0_92, %c0_93, %c2_94, %c0_95, %c0_96] : memref<1x1x12x12x128xf32, #tpu.memory_space<vmem>>, vector<1x1x8x8x128xf32>
    %85 = vector.shape_cast %84 : vector<1x1x8x8x128xf32> to vector<8x8x128xf32>
    %86 = vector.shape_cast %85 : vector<8x8x128xf32> to vector<64x128xf32>
    %87 = arith.truncf %86 : vector<64x128xf32> to vector<64x128xbf16>
    %c0_97 = arith.constant 0 : index
    %c10 = arith.constant 10 : index
    %c0_98 = arith.constant 0 : index
    %c0_99 = arith.constant 0 : index
    %88 = vector.load %arg4[%c0_97, %c10, %c0_98, %c0_99] : memref<1x25x128x128xbf16, #tpu.memory_space<vmem>>, vector<1x1x128x128xbf16>
    %89 = vector.shape_cast %88 : vector<1x1x128x128xbf16> to vector<128x128xbf16>
    %cst_100 = arith.constant dense<0.000000e+00> : vector<64x128xf32>
    %90 = tpu.matmul %87, %89, %cst_100 {dimension_numbers = #tpu.dot_dimension_numbers<[1], [0], [0], [1], [0, 0, 1, 1], [], []>} : vector<64x128xbf16>, vector<128x128xbf16>, vector<64x128xf32> -> vector<64x128xf32>
    %91 = arith.addf %83, %90 : vector<64x128xf32>
    %c0_101 = arith.constant 0 : index
    %c0_102 = arith.constant 0 : index
    %c2_103 = arith.constant 2 : index
    %c1_104 = arith.constant 1 : index
    %c0_105 = arith.constant 0 : index
    %92 = vector.load %arg3[%c0_101, %c0_102, %c2_103, %c1_104, %c0_105] : memref<1x1x12x12x128xf32, #tpu.memory_space<vmem>>, vector<1x1x8x8x128xf32>
    %93 = vector.shape_cast %92 : vector<1x1x8x8x128xf32> to vector<8x8x128xf32>
    %94 = vector.shape_cast %93 : vector<8x8x128xf32> to vector<64x128xf32>
    %95 = arith.truncf %94 : vector<64x128xf32> to vector<64x128xbf16>
    %c0_106 = arith.constant 0 : index
    %c11 = arith.constant 11 : index
    %c0_107 = arith.constant 0 : index
    %c0_108 = arith.constant 0 : index
    %96 = vector.load %arg4[%c0_106, %c11, %c0_107, %c0_108] : memref<1x25x128x128xbf16, #tpu.memory_space<vmem>>, vector<1x1x128x128xbf16>
    %97 = vector.shape_cast %96 : vector<1x1x128x128xbf16> to vector<128x128xbf16>
    %cst_109 = arith.constant dense<0.000000e+00> : vector<64x128xf32>
    %98 = tpu.matmul %95, %97, %cst_109 {dimension_numbers = #tpu.dot_dimension_numbers<[1], [0], [0], [1], [0, 0, 1, 1], [], []>} : vector<64x128xbf16>, vector<128x128xbf16>, vector<64x128xf32> -> vector<64x128xf32>
    %99 = arith.addf %91, %98 : vector<64x128xf32>
    %c0_110 = arith.constant 0 : index
    %c0_111 = arith.constant 0 : index
    %c2_112 = arith.constant 2 : index
    %c2_113 = arith.constant 2 : index
    %c0_114 = arith.constant 0 : index
    %100 = vector.load %arg3[%c0_110, %c0_111, %c2_112, %c2_113, %c0_114] : memref<1x1x12x12x128xf32, #tpu.memory_space<vmem>>, vector<1x1x8x8x128xf32>
    %101 = vector.shape_cast %100 : vector<1x1x8x8x128xf32> to vector<8x8x128xf32>
    %102 = vector.shape_cast %101 : vector<8x8x128xf32> to vector<64x128xf32>
    %103 = arith.truncf %102 : vector<64x128xf32> to vector<64x128xbf16>
    %c0_115 = arith.constant 0 : index
    %c12 = arith.constant 12 : index
    %c0_116 = arith.constant 0 : index
    %c0_117 = arith.constant 0 : index
    %104 = vector.load %arg4[%c0_115, %c12, %c0_116, %c0_117] : memref<1x25x128x128xbf16, #tpu.memory_space<vmem>>, vector<1x1x128x128xbf16>
    %105 = vector.shape_cast %104 : vector<1x1x128x128xbf16> to vector<128x128xbf16>
    %cst_118 = arith.constant dense<0.000000e+00> : vector<64x128xf32>
    %106 = tpu.matmul %103, %105, %cst_118 {dimension_numbers = #tpu.dot_dimension_numbers<[1], [0], [0], [1], [0, 0, 1, 1], [], []>} : vector<64x128xbf16>, vector<128x128xbf16>, vector<64x128xf32> -> vector<64x128xf32>
    %107 = arith.addf %99, %106 : vector<64x128xf32>
    %c0_119 = arith.constant 0 : index
    %c0_120 = arith.constant 0 : index
    %c2_121 = arith.constant 2 : index
    %c3_122 = arith.constant 3 : index
    %c0_123 = arith.constant 0 : index
    %108 = vector.load %arg3[%c0_119, %c0_120, %c2_121, %c3_122, %c0_123] : memref<1x1x12x12x128xf32, #tpu.memory_space<vmem>>, vector<1x1x8x8x128xf32>
    %109 = vector.shape_cast %108 : vector<1x1x8x8x128xf32> to vector<8x8x128xf32>
    %110 = vector.shape_cast %109 : vector<8x8x128xf32> to vector<64x128xf32>
    %111 = arith.truncf %110 : vector<64x128xf32> to vector<64x128xbf16>
    %c0_124 = arith.constant 0 : index
    %c13 = arith.constant 13 : index
    %c0_125 = arith.constant 0 : index
    %c0_126 = arith.constant 0 : index
    %112 = vector.load %arg4[%c0_124, %c13, %c0_125, %c0_126] : memref<1x25x128x128xbf16, #tpu.memory_space<vmem>>, vector<1x1x128x128xbf16>
    %113 = vector.shape_cast %112 : vector<1x1x128x128xbf16> to vector<128x128xbf16>
    %cst_127 = arith.constant dense<0.000000e+00> : vector<64x128xf32>
    %114 = tpu.matmul %111, %113, %cst_127 {dimension_numbers = #tpu.dot_dimension_numbers<[1], [0], [0], [1], [0, 0, 1, 1], [], []>} : vector<64x128xbf16>, vector<128x128xbf16>, vector<64x128xf32> -> vector<64x128xf32>
    %115 = arith.addf %107, %114 : vector<64x128xf32>
    %c0_128 = arith.constant 0 : index
    %c0_129 = arith.constant 0 : index
    %c2_130 = arith.constant 2 : index
    %c4_131 = arith.constant 4 : index
    %c0_132 = arith.constant 0 : index
    %116 = vector.load %arg3[%c0_128, %c0_129, %c2_130, %c4_131, %c0_132] : memref<1x1x12x12x128xf32, #tpu.memory_space<vmem>>, vector<1x1x8x8x128xf32>
    %117 = vector.shape_cast %116 : vector<1x1x8x8x128xf32> to vector<8x8x128xf32>
    %118 = vector.shape_cast %117 : vector<8x8x128xf32> to vector<64x128xf32>
    %119 = arith.truncf %118 : vector<64x128xf32> to vector<64x128xbf16>
    %c0_133 = arith.constant 0 : index
    %c14 = arith.constant 14 : index
    %c0_134 = arith.constant 0 : index
    %c0_135 = arith.constant 0 : index
    %120 = vector.load %arg4[%c0_133, %c14, %c0_134, %c0_135] : memref<1x25x128x128xbf16, #tpu.memory_space<vmem>>, vector<1x1x128x128xbf16>
    %121 = vector.shape_cast %120 : vector<1x1x128x128xbf16> to vector<128x128xbf16>
    %cst_136 = arith.constant dense<0.000000e+00> : vector<64x128xf32>
    %122 = tpu.matmul %119, %121, %cst_136 {dimension_numbers = #tpu.dot_dimension_numbers<[1], [0], [0], [1], [0, 0, 1, 1], [], []>} : vector<64x128xbf16>, vector<128x128xbf16>, vector<64x128xf32> -> vector<64x128xf32>
    %123 = arith.addf %115, %122 : vector<64x128xf32>
    %c0_137 = arith.constant 0 : index
    %c0_138 = arith.constant 0 : index
    %c3_139 = arith.constant 3 : index
    %c0_140 = arith.constant 0 : index
    %c0_141 = arith.constant 0 : index
    %124 = vector.load %arg3[%c0_137, %c0_138, %c3_139, %c0_140, %c0_141] : memref<1x1x12x12x128xf32, #tpu.memory_space<vmem>>, vector<1x1x8x8x128xf32>
    %125 = vector.shape_cast %124 : vector<1x1x8x8x128xf32> to vector<8x8x128xf32>
    %126 = vector.shape_cast %125 : vector<8x8x128xf32> to vector<64x128xf32>
    %127 = arith.truncf %126 : vector<64x128xf32> to vector<64x128xbf16>
    %c0_142 = arith.constant 0 : index
    %c15 = arith.constant 15 : index
    %c0_143 = arith.constant 0 : index
    %c0_144 = arith.constant 0 : index
    %128 = vector.load %arg4[%c0_142, %c15, %c0_143, %c0_144] : memref<1x25x128x128xbf16, #tpu.memory_space<vmem>>, vector<1x1x128x128xbf16>
    %129 = vector.shape_cast %128 : vector<1x1x128x128xbf16> to vector<128x128xbf16>
    %cst_145 = arith.constant dense<0.000000e+00> : vector<64x128xf32>
    %130 = tpu.matmul %127, %129, %cst_145 {dimension_numbers = #tpu.dot_dimension_numbers<[1], [0], [0], [1], [0, 0, 1, 1], [], []>} : vector<64x128xbf16>, vector<128x128xbf16>, vector<64x128xf32> -> vector<64x128xf32>
    %131 = arith.addf %123, %130 : vector<64x128xf32>
    %c0_146 = arith.constant 0 : index
    %c0_147 = arith.constant 0 : index
    %c3_148 = arith.constant 3 : index
    %c1_149 = arith.constant 1 : index
    %c0_150 = arith.constant 0 : index
    %132 = vector.load %arg3[%c0_146, %c0_147, %c3_148, %c1_149, %c0_150] : memref<1x1x12x12x128xf32, #tpu.memory_space<vmem>>, vector<1x1x8x8x128xf32>
    %133 = vector.shape_cast %132 : vector<1x1x8x8x128xf32> to vector<8x8x128xf32>
    %134 = vector.shape_cast %133 : vector<8x8x128xf32> to vector<64x128xf32>
    %135 = arith.truncf %134 : vector<64x128xf32> to vector<64x128xbf16>
    %c0_151 = arith.constant 0 : index
    %c16 = arith.constant 16 : index
    %c0_152 = arith.constant 0 : index
    %c0_153 = arith.constant 0 : index
    %136 = vector.load %arg4[%c0_151, %c16, %c0_152, %c0_153] : memref<1x25x128x128xbf16, #tpu.memory_space<vmem>>, vector<1x1x128x128xbf16>
    %137 = vector.shape_cast %136 : vector<1x1x128x128xbf16> to vector<128x128xbf16>
    %cst_154 = arith.constant dense<0.000000e+00> : vector<64x128xf32>
    %138 = tpu.matmul %135, %137, %cst_154 {dimension_numbers = #tpu.dot_dimension_numbers<[1], [0], [0], [1], [0, 0, 1, 1], [], []>} : vector<64x128xbf16>, vector<128x128xbf16>, vector<64x128xf32> -> vector<64x128xf32>
    %139 = arith.addf %131, %138 : vector<64x128xf32>
    %c0_155 = arith.constant 0 : index
    %c0_156 = arith.constant 0 : index
    %c3_157 = arith.constant 3 : index
    %c2_158 = arith.constant 2 : index
    %c0_159 = arith.constant 0 : index
    %140 = vector.load %arg3[%c0_155, %c0_156, %c3_157, %c2_158, %c0_159] : memref<1x1x12x12x128xf32, #tpu.memory_space<vmem>>, vector<1x1x8x8x128xf32>
    %141 = vector.shape_cast %140 : vector<1x1x8x8x128xf32> to vector<8x8x128xf32>
    %142 = vector.shape_cast %141 : vector<8x8x128xf32> to vector<64x128xf32>
    %143 = arith.truncf %142 : vector<64x128xf32> to vector<64x128xbf16>
    %c0_160 = arith.constant 0 : index
    %c17 = arith.constant 17 : index
    %c0_161 = arith.constant 0 : index
    %c0_162 = arith.constant 0 : index
    %144 = vector.load %arg4[%c0_160, %c17, %c0_161, %c0_162] : memref<1x25x128x128xbf16, #tpu.memory_space<vmem>>, vector<1x1x128x128xbf16>
    %145 = vector.shape_cast %144 : vector<1x1x128x128xbf16> to vector<128x128xbf16>
    %cst_163 = arith.constant dense<0.000000e+00> : vector<64x128xf32>
    %146 = tpu.matmul %143, %145, %cst_163 {dimension_numbers = #tpu.dot_dimension_numbers<[1], [0], [0], [1], [0, 0, 1, 1], [], []>} : vector<64x128xbf16>, vector<128x128xbf16>, vector<64x128xf32> -> vector<64x128xf32>
    %147 = arith.addf %139, %146 : vector<64x128xf32>
    %c0_164 = arith.constant 0 : index
    %c0_165 = arith.constant 0 : index
    %c3_166 = arith.constant 3 : index
    %c3_167 = arith.constant 3 : index
    %c0_168 = arith.constant 0 : index
    %148 = vector.load %arg3[%c0_164, %c0_165, %c3_166, %c3_167, %c0_168] : memref<1x1x12x12x128xf32, #tpu.memory_space<vmem>>, vector<1x1x8x8x128xf32>
    %149 = vector.shape_cast %148 : vector<1x1x8x8x128xf32> to vector<8x8x128xf32>
    %150 = vector.shape_cast %149 : vector<8x8x128xf32> to vector<64x128xf32>
    %151 = arith.truncf %150 : vector<64x128xf32> to vector<64x128xbf16>
    %c0_169 = arith.constant 0 : index
    %c18 = arith.constant 18 : index
    %c0_170 = arith.constant 0 : index
    %c0_171 = arith.constant 0 : index
    %152 = vector.load %arg4[%c0_169, %c18, %c0_170, %c0_171] : memref<1x25x128x128xbf16, #tpu.memory_space<vmem>>, vector<1x1x128x128xbf16>
    %153 = vector.shape_cast %152 : vector<1x1x128x128xbf16> to vector<128x128xbf16>
    %cst_172 = arith.constant dense<0.000000e+00> : vector<64x128xf32>
    %154 = tpu.matmul %151, %153, %cst_172 {dimension_numbers = #tpu.dot_dimension_numbers<[1], [0], [0], [1], [0, 0, 1, 1], [], []>} : vector<64x128xbf16>, vector<128x128xbf16>, vector<64x128xf32> -> vector<64x128xf32>
    %155 = arith.addf %147, %154 : vector<64x128xf32>
    %c0_173 = arith.constant 0 : index
    %c0_174 = arith.constant 0 : index
    %c3_175 = arith.constant 3 : index
    %c4_176 = arith.constant 4 : index
    %c0_177 = arith.constant 0 : index
    %156 = vector.load %arg3[%c0_173, %c0_174, %c3_175, %c4_176, %c0_177] : memref<1x1x12x12x128xf32, #tpu.memory_space<vmem>>, vector<1x1x8x8x128xf32>
    %157 = vector.shape_cast %156 : vector<1x1x8x8x128xf32> to vector<8x8x128xf32>
    %158 = vector.shape_cast %157 : vector<8x8x128xf32> to vector<64x128xf32>
    %159 = arith.truncf %158 : vector<64x128xf32> to vector<64x128xbf16>
    %c0_178 = arith.constant 0 : index
    %c19 = arith.constant 19 : index
    %c0_179 = arith.constant 0 : index
    %c0_180 = arith.constant 0 : index
    %160 = vector.load %arg4[%c0_178, %c19, %c0_179, %c0_180] : memref<1x25x128x128xbf16, #tpu.memory_space<vmem>>, vector<1x1x128x128xbf16>
    %161 = vector.shape_cast %160 : vector<1x1x128x128xbf16> to vector<128x128xbf16>
    %cst_181 = arith.constant dense<0.000000e+00> : vector<64x128xf32>
    %162 = tpu.matmul %159, %161, %cst_181 {dimension_numbers = #tpu.dot_dimension_numbers<[1], [0], [0], [1], [0, 0, 1, 1], [], []>} : vector<64x128xbf16>, vector<128x128xbf16>, vector<64x128xf32> -> vector<64x128xf32>
    %163 = arith.addf %155, %162 : vector<64x128xf32>
    %c0_182 = arith.constant 0 : index
    %c0_183 = arith.constant 0 : index
    %c4_184 = arith.constant 4 : index
    %c0_185 = arith.constant 0 : index
    %c0_186 = arith.constant 0 : index
    %164 = vector.load %arg3[%c0_182, %c0_183, %c4_184, %c0_185, %c0_186] : memref<1x1x12x12x128xf32, #tpu.memory_space<vmem>>, vector<1x1x8x8x128xf32>
    %165 = vector.shape_cast %164 : vector<1x1x8x8x128xf32> to vector<8x8x128xf32>
    %166 = vector.shape_cast %165 : vector<8x8x128xf32> to vector<64x128xf32>
    %167 = arith.truncf %166 : vector<64x128xf32> to vector<64x128xbf16>
    %c0_187 = arith.constant 0 : index
    %c20 = arith.constant 20 : index
    %c0_188 = arith.constant 0 : index
    %c0_189 = arith.constant 0 : index
    %168 = vector.load %arg4[%c0_187, %c20, %c0_188, %c0_189] : memref<1x25x128x128xbf16, #tpu.memory_space<vmem>>, vector<1x1x128x128xbf16>
    %169 = vector.shape_cast %168 : vector<1x1x128x128xbf16> to vector<128x128xbf16>
    %cst_190 = arith.constant dense<0.000000e+00> : vector<64x128xf32>
    %170 = tpu.matmul %167, %169, %cst_190 {dimension_numbers = #tpu.dot_dimension_numbers<[1], [0], [0], [1], [0, 0, 1, 1], [], []>} : vector<64x128xbf16>, vector<128x128xbf16>, vector<64x128xf32> -> vector<64x128xf32>
    %171 = arith.addf %163, %170 : vector<64x128xf32>
    %c0_191 = arith.constant 0 : index
    %c0_192 = arith.constant 0 : index
    %c4_193 = arith.constant 4 : index
    %c1_194 = arith.constant 1 : index
    %c0_195 = arith.constant 0 : index
    %172 = vector.load %arg3[%c0_191, %c0_192, %c4_193, %c1_194, %c0_195] : memref<1x1x12x12x128xf32, #tpu.memory_space<vmem>>, vector<1x1x8x8x128xf32>
    %173 = vector.shape_cast %172 : vector<1x1x8x8x128xf32> to vector<8x8x128xf32>
    %174 = vector.shape_cast %173 : vector<8x8x128xf32> to vector<64x128xf32>
    %175 = arith.truncf %174 : vector<64x128xf32> to vector<64x128xbf16>
    %c0_196 = arith.constant 0 : index
    %c21 = arith.constant 21 : index
    %c0_197 = arith.constant 0 : index
    %c0_198 = arith.constant 0 : index
    %176 = vector.load %arg4[%c0_196, %c21, %c0_197, %c0_198] : memref<1x25x128x128xbf16, #tpu.memory_space<vmem>>, vector<1x1x128x128xbf16>
    %177 = vector.shape_cast %176 : vector<1x1x128x128xbf16> to vector<128x128xbf16>
    %cst_199 = arith.constant dense<0.000000e+00> : vector<64x128xf32>
    %178 = tpu.matmul %175, %177, %cst_199 {dimension_numbers = #tpu.dot_dimension_numbers<[1], [0], [0], [1], [0, 0, 1, 1], [], []>} : vector<64x128xbf16>, vector<128x128xbf16>, vector<64x128xf32> -> vector<64x128xf32>
    %179 = arith.addf %171, %178 : vector<64x128xf32>
    %c0_200 = arith.constant 0 : index
    %c0_201 = arith.constant 0 : index
    %c4_202 = arith.constant 4 : index
    %c2_203 = arith.constant 2 : index
    %c0_204 = arith.constant 0 : index
    %180 = vector.load %arg3[%c0_200, %c0_201, %c4_202, %c2_203, %c0_204] : memref<1x1x12x12x128xf32, #tpu.memory_space<vmem>>, vector<1x1x8x8x128xf32>
    %181 = vector.shape_cast %180 : vector<1x1x8x8x128xf32> to vector<8x8x128xf32>
    %182 = vector.shape_cast %181 : vector<8x8x128xf32> to vector<64x128xf32>
    %183 = arith.truncf %182 : vector<64x128xf32> to vector<64x128xbf16>
    %c0_205 = arith.constant 0 : index
    %c22 = arith.constant 22 : index
    %c0_206 = arith.constant 0 : index
    %c0_207 = arith.constant 0 : index
    %184 = vector.load %arg4[%c0_205, %c22, %c0_206, %c0_207] : memref<1x25x128x128xbf16, #tpu.memory_space<vmem>>, vector<1x1x128x128xbf16>
    %185 = vector.shape_cast %184 : vector<1x1x128x128xbf16> to vector<128x128xbf16>
    %cst_208 = arith.constant dense<0.000000e+00> : vector<64x128xf32>
    %186 = tpu.matmul %183, %185, %cst_208 {dimension_numbers = #tpu.dot_dimension_numbers<[1], [0], [0], [1], [0, 0, 1, 1], [], []>} : vector<64x128xbf16>, vector<128x128xbf16>, vector<64x128xf32> -> vector<64x128xf32>
    %187 = arith.addf %179, %186 : vector<64x128xf32>
    %c0_209 = arith.constant 0 : index
    %c0_210 = arith.constant 0 : index
    %c4_211 = arith.constant 4 : index
    %c3_212 = arith.constant 3 : index
    %c0_213 = arith.constant 0 : index
    %188 = vector.load %arg3[%c0_209, %c0_210, %c4_211, %c3_212, %c0_213] : memref<1x1x12x12x128xf32, #tpu.memory_space<vmem>>, vector<1x1x8x8x128xf32>
    %189 = vector.shape_cast %188 : vector<1x1x8x8x128xf32> to vector<8x8x128xf32>
    %190 = vector.shape_cast %189 : vector<8x8x128xf32> to vector<64x128xf32>
    %191 = arith.truncf %190 : vector<64x128xf32> to vector<64x128xbf16>
    %c0_214 = arith.constant 0 : index
    %c23 = arith.constant 23 : index
    %c0_215 = arith.constant 0 : index
    %c0_216 = arith.constant 0 : index
    %192 = vector.load %arg4[%c0_214, %c23, %c0_215, %c0_216] : memref<1x25x128x128xbf16, #tpu.memory_space<vmem>>, vector<1x1x128x128xbf16>
    %193 = vector.shape_cast %192 : vector<1x1x128x128xbf16> to vector<128x128xbf16>
    %cst_217 = arith.constant dense<0.000000e+00> : vector<64x128xf32>
    %194 = tpu.matmul %191, %193, %cst_217 {dimension_numbers = #tpu.dot_dimension_numbers<[1], [0], [0], [1], [0, 0, 1, 1], [], []>} : vector<64x128xbf16>, vector<128x128xbf16>, vector<64x128xf32> -> vector<64x128xf32>
    %195 = arith.addf %187, %194 : vector<64x128xf32>
    %c0_218 = arith.constant 0 : index
    %c0_219 = arith.constant 0 : index
    %c4_220 = arith.constant 4 : index
    %c4_221 = arith.constant 4 : index
    %c0_222 = arith.constant 0 : index
    %196 = vector.load %arg3[%c0_218, %c0_219, %c4_220, %c4_221, %c0_222] : memref<1x1x12x12x128xf32, #tpu.memory_space<vmem>>, vector<1x1x8x8x128xf32>
    %197 = vector.shape_cast %196 : vector<1x1x8x8x128xf32> to vector<8x8x128xf32>
    %198 = vector.shape_cast %197 : vector<8x8x128xf32> to vector<64x128xf32>
    %199 = arith.truncf %198 : vector<64x128xf32> to vector<64x128xbf16>
    %c0_223 = arith.constant 0 : index
    %c24 = arith.constant 24 : index
    %c0_224 = arith.constant 0 : index
    %c0_225 = arith.constant 0 : index
    %200 = vector.load %arg4[%c0_223, %c24, %c0_224, %c0_225] : memref<1x25x128x128xbf16, #tpu.memory_space<vmem>>, vector<1x1x128x128xbf16>
    %201 = vector.shape_cast %200 : vector<1x1x128x128xbf16> to vector<128x128xbf16>
    %cst_226 = arith.constant dense<0.000000e+00> : vector<64x128xf32>
    %202 = tpu.matmul %199, %201, %cst_226 {dimension_numbers = #tpu.dot_dimension_numbers<[1], [0], [0], [1], [0, 0, 1, 1], [], []>} : vector<64x128xbf16>, vector<128x128xbf16>, vector<64x128xf32> -> vector<64x128xf32>
    %203 = arith.addf %195, %202 : vector<64x128xf32>
    %c0_227 = arith.constant 0 : index
    %c0_228 = arith.constant 0 : index
    %204 = vector.load %arg8[%c0_227, %c0_228] : memref<64x128xf32, #tpu.memory_space<vmem>>, vector<64x128xf32>
    tpu.vector_store %arg8[%c0_227, %c0_228], %203 {strides = array<i32>} : memref<64x128xf32, #tpu.memory_space<vmem>>, vector<64x128xf32>,
    %c4_i32 = arith.constant 4 : i32
    %205 = arith.cmpi eq, %arg2, %c4_i32 : i32
    %206 = arith.extui %205 : i1 to i32
    %c0_i32_229 = arith.constant 0 : i32
    %207 = arith.cmpi ne, %206, %c0_i32_229 : i32
    scf.if %207 {
      %c0_230 = arith.constant 0 : index
      %c0_231 = arith.constant 0 : index
      %208 = vector.load %arg8[%c0_230, %c0_231] : memref<64x128xf32, #tpu.memory_space<vmem>>, vector<64x128xf32>
      %c0_232 = arith.constant 0 : index
      %c0_233 = arith.constant 0 : index
      %209 = vector.load %arg5[%c0_232, %c0_233] : memref<1x128xf32, #tpu.memory_space<vmem>>, vector<1x128xf32>
      %210 = vector.broadcast %209 : vector<1x128xf32> to vector<64x128xf32>
      %211 = arith.addf %208, %210 : vector<64x128xf32>
      %c0_234 = arith.constant 0 : index
      %c0_235 = arith.constant 0 : index
      %c0_236 = arith.constant 0 : index
      %c0_237 = arith.constant 0 : index
      %212 = vector.load %arg6[%c0_234, %c0_235, %c0_236, %c0_237] : memref<1x1x64x128xf32, #tpu.memory_space<vmem>>, vector<1x1x64x128xf32>
      %213 = vector.shape_cast %212 : vector<1x1x64x128xf32> to vector<64x128xf32>
      %214 = vector.shape_cast %211 : vector<64x128xf32> to vector<1x1x64x128xf32>
      tpu.vector_store %arg6[%c0_234, %c0_235, %c0_236, %c0_237], %214 {strides = array<i32>} : memref<1x1x64x128xf32, #tpu.memory_space<vmem>>, vector<1x1x64x128xf32>,
      %cst_238 = arith.constant dense<0.000000e+00> : vector<128xf32>
      %215 = vector.multi_reduction <add>, %211, %cst_238 [0] : vector<64x128xf32> to vector<128xf32>
      %216 = vector.shape_cast %215 : vector<128xf32> to vector<1x128xf32>
      %217 = arith.mulf %211, %211 : vector<64x128xf32>
      %cst_239 = arith.constant dense<0.000000e+00> : vector<128xf32>
      %218 = vector.multi_reduction <add>, %217, %cst_239 [0] : vector<64x128xf32> to vector<128xf32>
      %219 = vector.shape_cast %218 : vector<128xf32> to vector<1x128xf32>
      %220 = tpu.concatenate %216, %219 in 0 : vector<1x128xf32>, vector<1x128xf32> -> vector<2x128xf32>
      %c0_240 = arith.constant 0 : index
      %c0_241 = arith.constant 0 : index
      %c0_242 = arith.constant 0 : index
      %c0_243 = arith.constant 0 : index
      %221 = vector.load %arg7[%c0_240, %c0_241, %c0_242, %c0_243] : memref<1x1x2x128xf32, #tpu.memory_space<vmem>>, vector<1x1x2x128xf32>
      %222 = vector.shape_cast %221 : vector<1x1x2x128xf32> to vector<2x128xf32>
      %223 = vector.shape_cast %220 : vector<2x128xf32> to vector<1x1x2x128xf32>
      tpu.vector_store %arg7[%c0_240, %c0_241, %c0_242, %c0_243], %223 {strides = array<i32>} : memref<1x1x2x128xf32, #tpu.memory_space<vmem>>, vector<1x1x2x128xf32>,
    } else {
    }
    return
  }
  func.func @transform_0(%arg0: i32, %arg1: i32, %arg2: i32) -> (i32, i32, i32, i32, i32) {
    %0 = arith.addi %arg1, %arg2 : i32
    %c0_i32 = arith.constant 0 : i32
    %c0_i32_0 = arith.constant 0 : i32
    %c0_i32_1 = arith.constant 0 : i32
    %c0_i32_2 = arith.constant 0 : i32
    return %arg0, %0, %c0_i32, %c0_i32_0, %c0_i32_1 : i32, i32, i32, i32, i32
  }
  func.func @transform_1(%arg0: i32, %arg1: i32, %arg2: i32) -> (i32, i32, i32, i32) {
    %c0_i32 = arith.constant 0 : i32
    %c0_i32_0 = arith.constant 0 : i32
    %c0_i32_1 = arith.constant 0 : i32
    %c0_i32_2 = arith.constant 0 : i32
    return %arg2, %c0_i32, %c0_i32_0, %c0_i32_1 : i32, i32, i32, i32
  }
  func.func @transform_2(%arg0: i32, %arg1: i32, %arg2: i32) -> (i32, i32) {
    %c0_i32 = arith.constant 0 : i32
    %c0_i32_0 = arith.constant 0 : i32
    %c0_i32_1 = arith.constant 0 : i32
    return %c0_i32, %c0_i32_0 : i32, i32
  }
  func.func @transform_3(%arg0: i32, %arg1: i32, %arg2: i32) -> (i32, i32, i32, i32) {
    %c0_i32 = arith.constant 0 : i32
    %c0_i32_0 = arith.constant 0 : i32
    %c0_i32_1 = arith.constant 0 : i32
    return %arg0, %arg1, %c0_i32, %c0_i32_0 : i32, i32, i32, i32
  }
  func.func @transform_4(%arg0: i32, %arg1: i32, %arg2: i32) -> (i32, i32, i32, i32) {
    %c0_i32 = arith.constant 0 : i32
    %c0_i32_0 = arith.constant 0 : i32
    %c0_i32_1 = arith.constant 0 : i32
    return %arg0, %arg1, %c0_i32, %c0_i32_0 : i32, i32, i32, i32
  }
}

module attributes {stable_mosaic.version = 11 : i64} {
  func.func @_bn_elu_add_kernel(%arg0: i32, %arg1: memref<512x128xf32, #tpu.memory_space<vmem>>, %arg2: memref<1x128xf32, #tpu.memory_space<vmem>>, %arg3: memref<1x128xf32, #tpu.memory_space<vmem>>, %arg4: memref<512x128xf32, #tpu.memory_space<vmem>>, %arg5: memref<512x128xf32, #tpu.memory_space<vmem>>) attributes {dimension_semantics = [#tpu.dimension_semantics<parallel>], iteration_bounds = array<i64: 2>, scalar_prefetch = 0 : i64, scratch_operands = 0 : i64, tpu.core_type = #tpu.core_type<tc>, window_params = [{transform_indices = @transform_0, window_bounds = array<i64: 512, 128>}, {pipeline_mode = #tpu.pipeline_mode<synchronous>, transform_indices = @transform_1, window_bounds = array<i64: 1, 128>}, {pipeline_mode = #tpu.pipeline_mode<synchronous>, transform_indices = @transform_2, window_bounds = array<i64: 1, 128>}, {transform_indices = @transform_3, window_bounds = array<i64: 512, 128>}, {transform_indices = @transform_4, window_bounds = array<i64: 512, 128>}]} {
    %c0 = arith.constant 0 : index
    %c0_0 = arith.constant 0 : index
    %0 = vector.load %arg1[%c0, %c0_0] : memref<512x128xf32, #tpu.memory_space<vmem>>, vector<512x128xf32>
    %c0_1 = arith.constant 0 : index
    %c0_2 = arith.constant 0 : index
    %1 = vector.load %arg2[%c0_1, %c0_2] : memref<1x128xf32, #tpu.memory_space<vmem>>, vector<1x128xf32>
    %2 = vector.broadcast %1 : vector<1x128xf32> to vector<512x128xf32>
    %3 = arith.mulf %0, %2 : vector<512x128xf32>
    %c0_3 = arith.constant 0 : index
    %c0_4 = arith.constant 0 : index
    %4 = vector.load %arg3[%c0_3, %c0_4] : memref<1x128xf32, #tpu.memory_space<vmem>>, vector<1x128xf32>
    %5 = vector.broadcast %4 : vector<1x128xf32> to vector<512x128xf32>
    %6 = arith.addf %3, %5 : vector<512x128xf32>
    %cst = arith.constant 0.000000e+00 : f32
    %7 = vector.broadcast %cst : f32 to vector<512x128xf32>
    %8 = arith.cmpf ogt, %6, %7 : vector<512x128xf32>
    %9 = math.exp %6 : vector<512x128xf32>
    %cst_5 = arith.constant 1.000000e+00 : f32
    %10 = vector.broadcast %cst_5 : f32 to vector<512x128xf32>
    %11 = arith.subf %9, %10 : vector<512x128xf32>
    %12 = arith.select %8, %6, %11 : vector<512x128xi1>, vector<512x128xf32>
    %c0_6 = arith.constant 0 : index
    %c0_7 = arith.constant 0 : index
    %13 = vector.load %arg4[%c0_6, %c0_7] : memref<512x128xf32, #tpu.memory_space<vmem>>, vector<512x128xf32>
    %14 = arith.addf %12, %13 : vector<512x128xf32>
    %cst_8 = arith.constant 0.000000e+00 : f32
    %15 = vector.broadcast %cst_8 : f32 to vector<512x128xf32>
    %16 = arith.cmpf ogt, %14, %15 : vector<512x128xf32>
    %17 = math.exp %14 : vector<512x128xf32>
    %cst_9 = arith.constant 1.000000e+00 : f32
    %18 = vector.broadcast %cst_9 : f32 to vector<512x128xf32>
    %19 = arith.subf %17, %18 : vector<512x128xf32>
    %20 = arith.select %16, %14, %19 : vector<512x128xi1>, vector<512x128xf32>
    %c0_10 = arith.constant 0 : index
    %c0_11 = arith.constant 0 : index
    %21 = vector.load %arg5[%c0_10, %c0_11] : memref<512x128xf32, #tpu.memory_space<vmem>>, vector<512x128xf32>
    tpu.vector_store %arg5[%c0_10, %c0_11], %20 {strides = array<i32>} : memref<512x128xf32, #tpu.memory_space<vmem>>, vector<512x128xf32>,
    return
  }
  func.func @transform_0(%arg0: i32) -> (i32, i32) {
    %c0_i32 = arith.constant 0 : i32
    %c0_i32_0 = arith.constant 0 : i32
    return %arg0, %c0_i32 : i32, i32
  }
  func.func @transform_1(%arg0: i32) -> (i32, i32) {
    %c0_i32 = arith.constant 0 : i32
    %c0_i32_0 = arith.constant 0 : i32
    %c0_i32_1 = arith.constant 0 : i32
    return %c0_i32, %c0_i32_0 : i32, i32
  }
  func.func @transform_2(%arg0: i32) -> (i32, i32) {
    %c0_i32 = arith.constant 0 : i32
    %c0_i32_0 = arith.constant 0 : i32
    %c0_i32_1 = arith.constant 0 : i32
    return %c0_i32, %c0_i32_0 : i32, i32
  }
  func.func @transform_3(%arg0: i32) -> (i32, i32) {
    %c0_i32 = arith.constant 0 : i32
    %c0_i32_0 = arith.constant 0 : i32
    return %arg0, %c0_i32 : i32, i32
  }
  func.func @transform_4(%arg0: i32) -> (i32, i32) {
    %c0_i32 = arith.constant 0 : i32
    %c0_i32_0 = arith.constant 0 : i32
    return %arg0, %c0_i32 : i32, i32
  }
}

</mosaic_0001>

<llo_original>
// kernel: _lambda_.5
$region0: #{_lambda_.5}
  #allocation0 [shape = 'u32[]', space=smem, size = 0x4, offset = 0x4, fixed_abs, tag = 'smem constant byte address 0x4 - core index']
  #allocation1 [shape = 'u32[72,128]{1,0:T(1,128)}', space=vmem, size = 0x9000, scoped, tag = 'internal scratch']
  %s0 = inlined_call_operand.vmem [shape: f32[1024,128], index: 0, kind: input, shape index: {}]
  %s1 = inlined_call_operand.vmem [shape: f32[1,128], index: 1, kind: input, shape index: {}]
  %s2 = inlined_call_operand.vmem [shape: f32[1,128], index: 2, kind: input, shape index: {}]
  %s3 = inlined_call_operand.vmem [shape: f32[1024,128], index: 3, kind: output, shape index: {}]
  %s4 = sld [smem:[#allocation0]]
  $region45: #{_lambda_.5} parent=0
    _
  %s6 = ssub.s32 1, %s4
  %s7 = scalar_select 0, %s6, %s4
  loop: start=0, step=1, limit=4
  $region2: #{_lambda_.5} parent=0 // loop_pre_header
    _
  $region3: #{_lambda_.5} parent=0 // loop_header
    %s9 = sphi 0, %s13
    %p10 = scmp.ge.s32.totalorder %s9, 4
    %s19 = sphi 0, %s21
    %s22 = sphi 0, %s19
    %s23 = sphi 0, %s22
    %s39 = sphi 0, %s23
    %s43 = sphi 0, %s43
    %s45 = sphi 0, %s43
    %s46 = sphi 0, %s45
    %s60 = sphi 0, %s46
    %s64 = sphi 0, %s64
    %s66 = sphi 0, %s64
    %s67 = sphi 0, %s66
    %s81 = sphi 0, %s67
    %s87 = sphi 0, %s89
    %s90 = sphi 0, %s87
    %s91 = sphi 0, %s90
    %s107 = sphi 0, %s91
  $region4: #{_lambda_.5} parent=0 // loop_header_branch
    %12 = sbr.rel (%p10) target = $region8
  $region5: #{_lambda_.5} parent=0 // loop_body
    %s14 = ssub.s32 %s9, 1
    %s15 = ssub.s32 %s9, 2
    %s16 = sadd.s32 %s9, 1
    %s17 = ssub.s32 %s9, %s16
    %p18 = scmp.eq.s32.totalorder %s17, 0
    %s20 = sadd.s32 %s19, 1
    %s21 = scalar_select %p18, %s19, %s20
    %p24 = pneg %p18
    %p25 = scmp.eq.s32.totalorder %s9, 1
    %p26 = por %p24, %p25
    %p27 = scmp.ne.s32.totalorder %s19, %s22
    %p28 = scmp.eq.s32.totalorder %s9, 0
    %p29 = por %p27, %p28
    %p30 = scmp.ne.s32.totalorder %s19, %s22
    %p31 = scmp.eq.s32.totalorder %s14, 1
    %p32 = por %p30, %p31
    %p33 = scmp.ne.s32.totalorder %s22, %s23
    %p34 = scmp.eq.s32.totalorder %s14, 0
    %p35 = por %p33, %p34
    %p36 = scmp.ne.s32.totalorder %s22, %s23
    %p37 = scmp.eq.s32.totalorder %s15, 1
    %p38 = por %p36, %p37
    %p40 = scmp.ne.s32.totalorder %s23, %s39
    %p41 = scmp.eq.s32.totalorder %s15, 0
    %p42 = por %p40, %p41
    %s44 = sadd.s32 %s43, 1
    %p47 = scmp.eq.s32.totalorder %s9, 1
    %p48 = scmp.ne.s32.totalorder %s43, %s45
    %p49 = scmp.eq.s32.totalorder %s9, 0
    %p50 = por %p48, %p49
    %p51 = scmp.ne.s32.totalorder %s43, %s45
    %p52 = scmp.eq.s32.totalorder %s14, 1
    %p53 = por %p51, %p52
    %p54 = scmp.ne.s32.totalorder %s45, %s46
    %p55 = scmp.eq.s32.totalorder %s14, 0
    %p56 = por %p54, %p55
    %p57 = scmp.ne.s32.totalorder %s45, %s46
    %p58 = scmp.eq.s32.totalorder %s15, 1
    %p59 = por %p57, %p58
    %p61 = scmp.ne.s32.totalorder %s46, %s60
    %p62 = scmp.eq.s32.totalorder %s15, 0
    %p63 = por %p61, %p62
    %s65 = sadd.s32 %s64, 1
    %p68 = scmp.eq.s32.totalorder %s9, 1
    %p69 = scmp.ne.s32.totalorder %s64, %s66
    %p70 = scmp.eq.s32.totalorder %s9, 0
    %p71 = por %p69, %p70
    %p72 = scmp.ne.s32.totalorder %s64, %s66
    %p73 = scmp.eq.s32.totalorder %s14, 1
    %p74 = por %p72, %p73
    %p75 = scmp.ne.s32.totalorder %s66, %s67
    %p76 = scmp.eq.s32.totalorder %s14, 0
    %p77 = por %p75, %p76
    %p78 = scmp.ne.s32.totalorder %s66, %s67
    %p79 = scmp.eq.s32.totalorder %s15, 1
    %p80 = por %p78, %p79
    %p82 = scmp.ne.s32.totalorder %s67, %s81
    %p83 = scmp.eq.s32.totalorder %s15, 0
    %p84 = por %p82, %p83
    %s85 = ssub.s32 %s9, %s16
    %p86 = scmp.eq.s32.totalorder %s85, 0
    %s88 = sadd.s32 %s87, 1
    %s89 = scalar_select %p86, %s87, %s88
    %p92 = pneg %p86
    %p93 = scmp.eq.s32.totalorder %s9, 1
    %p94 = por %p92, %p93
    %p95 = scmp.ne.s32.totalorder %s87, %s90
    %p96 = scmp.eq.s32.totalorder %s9, 0
    %p97 = por %p95, %p96
    %p98 = scmp.ne.s32.totalorder %s87, %s90
    %p99 = scmp.eq.s32.totalorder %s14, 1
    %p100 = por %p98, %p99
    %p101 = scmp.ne.s32.totalorder %s90, %s91
    %p102 = scmp.eq.s32.totalorder %s14, 0
    %p103 = por %p101, %p102
    %p104 = scmp.ne.s32.totalorder %s90, %s91
    %p105 = scmp.eq.s32.totalorder %s15, 1
    %p106 = por %p104, %p105
    %p108 = scmp.ne.s32.totalorder %s91, %s107
    %p109 = scmp.eq.s32.totalorder %s15, 0
    %p110 = por %p108, %p109
    %p111 = scmp.le.s32.totalorder 1, %s9
    %p112 = scmp.lt.s32.totalorder %s9, 3
    %p113 = pnand %p111, %p112
    %p114 = pneg %p113
    // Predicated region
    $region9: #{_lambda_.5} parent=5 // pred_check
      _
    $region10: #{_lambda_.5} parent=5 // pred_check_branch
      %116 = sbr.rel (%p113) target = $region12
    $region11: #{_lambda_.5} parent=5 // pred_region
      %s117 = ssub.s32 %s9, 1
      // Predicated region
      $region13: #{_lambda_.5} parent=11 // pred_check
        %p118 = pneg %p56
      $region14: #{_lambda_.5} parent=11 // pred_check_branch
        %120 = sbr.rel (%p118) target = $region16
      $region15: #{_lambda_.5} parent=11 // pred_region
        _
      $region16: #{_lambda_.5} parent=11 // pred_fallthru
        _
      // Predicated region
      $region17: #{_lambda_.5} parent=11 // pred_check
        %p121 = pneg %p77
      $region18: #{_lambda_.5} parent=11 // pred_check_branch
        %123 = sbr.rel (%p121) target = $region20
      $region19: #{_lambda_.5} parent=11 // pred_region
        _
      $region20: #{_lambda_.5} parent=11 // pred_fallthru
        _
    $region12: #{_lambda_.5} parent=5 // pred_fallthru
      _
    %p124 = scmp.lt.s32.totalorder %s9, 2
    // Predicated region
    $region21: #{_lambda_.5} parent=5 // pred_check
      %p125 = pneg %p124
    $region22: #{_lambda_.5} parent=5 // pred_check_branch
      %127 = sbr.rel (%p125) target = $region24
    $region23: #{_lambda_.5} parent=5 // pred_region
      // Predicated region
      $region25: #{_lambda_.5} parent=23 // pred_check
        %p128 = pneg %p29
      $region26: #{_lambda_.5} parent=23 // pred_check_branch
        %130 = sbr.rel (%p128) target = $region28
      $region27: #{_lambda_.5} parent=23 // pred_region
        %s131 = smul.u32 64, %s9
        %p132 = scmp.lt.s32.totalorder %s131, 127
        %s133 = scalar_select %p132, %s131, 127
        %s134 = smul.addr %s133, 8
        %s135 = scalar_lea.vmem %s0, %s134
        %s136 = smul.u32 64, %s9
      $region28: #{_lambda_.5} parent=23 // pred_fallthru
        _
    $region24: #{_lambda_.5} parent=5 // pred_fallthru
      _
    %p137 = scmp.le.s32.totalorder 1, %s9
    %p138 = scmp.lt.s32.totalorder %s9, 3
    %p139 = pnand %p137, %p138
    %p140 = pneg %p139
    // Predicated region
    $region29: #{_lambda_.5} parent=5 // pred_check
      _
    $region30: #{_lambda_.5} parent=5 // pred_check_branch
      %142 = sbr.rel (%p139) target = $region32
    $region31: #{_lambda_.5} parent=5 // pred_region
      %s143 = ssub.s32 %s9, 1
      %s144 = smul.u32 64, %s14
      %p145 = scmp.lt.s32.totalorder %s144, 127
      %s146 = scalar_select %p145, %s144, 127
      %s147 = smul.addr %s146, 8
      %s148 = scalar_lea.vmem %s0, %s147
      %p149 = pneg %p35
      %p150 = pneg %p32
      %p151 = pneg %p56
      %p152 = pneg %p53
      %p153 = pneg %p77
      %p154 = pneg %p74
      %p155 = pneg %p103
      %p156 = pneg %p100
      %s157 = smul.u32 64, %s14
      %p158 = scmp.lt.s32.totalorder %s157, 127
      %s159 = scalar_select %p158, %s157, 127
      %s160 = smul.addr %s159, 8
      %s161 = scalar_lea.vmem %s3, %s160
      %s162 = smul.u32 64, %s14
      %p163 = scmp.lt.s32.totalorder %s162, 127
      %s164 = scalar_select %p163, %s162, 127
      %s165 = smul.addr %s164, 8
      %s166 = scalar_lea.vmem %s0, %s165
      %s167 = smul.u32 64, %s14
      %s168 = smul.u32 64, %s14
      %p169 = scmp.lt.s32.totalorder %s168, 127
      %s170 = scalar_select %p169, %s168, 127
      %s171 = smul.addr %s170, 8
      %s172 = scalar_lea.vmem %s3, %s171
      %s173 = smul.u32 64, %s14
      %v174 = vld [vmem:[%s166] sm:$0xff]
      %v175 = vld [vmem:[%s166 + $0x8] sm:$0xff]
      %v176 = vld [vmem:[%s166 + $0x10] sm:$0xff]
      %v177 = vld [vmem:[%s166 + $0x18] sm:$0xff]
      %v178 = vld [vmem:[%s166 + $0x20] sm:$0xff]
      %v179 = vld [vmem:[%s166 + $0x28] sm:$0xff]
      %v180 = vld [vmem:[%s166 + $0x30] sm:$0xff]
      %v181 = vld [vmem:[%s166 + $0x38] sm:$0xff]
      %v182 = vld [vmem:[%s166 + $0x40] sm:$0xff]
      %v183 = vld [vmem:[%s166 + $0x48] sm:$0xff]
      %v184 = vld [vmem:[%s166 + $0x50] sm:$0xff]
      %v185 = vld [vmem:[%s166 + $0x58] sm:$0xff]
      %v186 = vld [vmem:[%s166 + $0x60] sm:$0xff]
      %v187 = vld [vmem:[%s166 + $0x68] sm:$0xff]
      %v188 = vld [vmem:[%s166 + $0x70] sm:$0xff]
      %v189 = vld [vmem:[%s166 + $0x78] sm:$0xff]
      %v190 = vld [vmem:[%s166 + $0x80] sm:$0xff]
      %v191 = vld [vmem:[%s166 + $0x88] sm:$0xff]
      %v192 = vld [vmem:[%s166 + $0x90] sm:$0xff]
      %v193 = vld [vmem:[%s166 + $0x98] sm:$0xff]
      %v194 = vld [vmem:[%s166 + $0xa0] sm:$0xff]
      %v195 = vld [vmem:[%s166 + $0xa8] sm:$0xff]
      %v196 = vld [vmem:[%s166 + $0xb0] sm:$0xff]
      %v197 = vld [vmem:[%s166 + $0xb8] sm:$0xff]
      %v198 = vld [vmem:[%s166 + $0xc0] sm:$0xff]
      %v199 = vld [vmem:[%s166 + $0xc8] sm:$0xff]
      %v200 = vld [vmem:[%s166 + $0xd0] sm:$0xff]
      %v201 = vld [vmem:[%s166 + $0xd8] sm:$0xff]
      %v202 = vld [vmem:[%s166 + $0xe0] sm:$0xff]
      %v203 = vld [vmem:[%s166 + $0xe8] sm:$0xff]
      %v204 = vld [vmem:[%s166 + $0xf0] sm:$0xff]
      %v205 = vld [vmem:[%s166 + $0xf8] sm:$0xff]
      %v206 = vld [vmem:[%s166 + $0x100] sm:$0xff]
      %v207 = vld [vmem:[%s166 + $0x108] sm:$0xff]
      %v208 = vld [vmem:[%s166 + $0x110] sm:$0xff]
      %v209 = vld [vmem:[%s166 + $0x118] sm:$0xff]
      %v210 = vld [vmem:[%s166 + $0x120] sm:$0xff]
      %v211 = vld [vmem:[%s166 + $0x128] sm:$0xff]
      %v212 = vld [vmem:[%s166 + $0x130] sm:$0xff]
      %v213 = vld [vmem:[%s166 + $0x138] sm:$0xff]
      %v214 = vld [vmem:[%s166 + $0x140] sm:$0xff]
      %v215 = vld [vmem:[%s166 + $0x148] sm:$0xff]
      %v216 = vld [vmem:[%s166 + $0x150] sm:$0xff]
      %v217 = vld [vmem:[%s166 + $0x158] sm:$0xff]
      %v218 = vld [vmem:[%s166 + $0x160] sm:$0xff]
      %v219 = vld [vmem:[%s166 + $0x168] sm:$0xff]
      %v220 = vld [vmem:[%s166 + $0x170] sm:$0xff]
      %v221 = vld [vmem:[%s166 + $0x178] sm:$0xff]
      %v222 = vld [vmem:[%s166 + $0x180] sm:$0xff]
      %v223 = vld [vmem:[%s166 + $0x188] sm:$0xff]
      %v224 = vld [vmem:[%s166 + $0x190] sm:$0xff]
      %v225 = vld [vmem:[%s166 + $0x198] sm:$0xff]
      %v226 = vld [vmem:[%s166 + $0x1a0] sm:$0xff]
      %v227 = vld [vmem:[%s166 + $0x1a8] sm:$0xff]
      %v228 = vld [vmem:[%s166 + $0x1b0] sm:$0xff]
      %v229 = vld [vmem:[%s166 + $0x1b8] sm:$0xff]
      %v230 = vld [vmem:[%s166 + $0x1c0] sm:$0xff]
      %v231 = vld [vmem:[%s166 + $0x1c8] sm:$0xff]
      %v232 = vld [vmem:[%s166 + $0x1d0] sm:$0xff]
      %v233 = vld [vmem:[%s166 + $0x1d8] sm:$0xff]
      %v234 = vld [vmem:[%s166 + $0x1e0] sm:$0xff]
      %v235 = vld [vmem:[%s166 + $0x1e8] sm:$0xff]
      %v236 = vld [vmem:[%s166 + $0x1f0] sm:$0xff]
      %v237 = vld [vmem:[%s166 + $0x1f8] sm:$0xff]
      %v238 = vld [vmem:[%s1] sm:$0x1]
      %v240 = vperm.slane %v238, 0
      %v242 = vmul.f32 %v174, %v240
      %v243 = vmul.f32 %v175, %v240
      %v244 = vmul.f32 %v176, %v240
      %v245 = vmul.f32 %v177, %v240
      %v246 = vmul.f32 %v178, %v240
      %v247 = vmul.f32 %v179, %v240
      %v248 = vmul.f32 %v180, %v240
      %v249 = vmul.f32 %v181, %v240
      %v250 = vmul.f32 %v182, %v240
      %v251 = vmul.f32 %v183, %v240
      %v252 = vmul.f32 %v184, %v240
      %v253 = vmul.f32 %v185, %v240
      %v254 = vmul.f32 %v186, %v240
      %v255 = vmul.f32 %v187, %v240
      %v256 = vmul.f32 %v188, %v240
      %v257 = vmul.f32 %v189, %v240
      %v258 = vmul.f32 %v190, %v240
      %v259 = vmul.f32 %v191, %v240
      %v260 = vmul.f32 %v192, %v240
      %v261 = vmul.f32 %v193, %v240
      %v262 = vmul.f32 %v194, %v240
      %v263 = vmul.f32 %v195, %v240
      %v264 = vmul.f32 %v196, %v240
      %v265 = vmul.f32 %v197, %v240
      %v266 = vmul.f32 %v198, %v240
      %v267 = vmul.f32 %v199, %v240
      %v268 = vmul.f32 %v200, %v240
      %v269 = vmul.f32 %v201, %v240
      %v270 = vmul.f32 %v202, %v240
      %v271 = vmul.f32 %v203, %v240
      %v272 = vmul.f32 %v204, %v240
      %v273 = vmul.f32 %v205, %v240
      %v274 = vmul.f32 %v206, %v240
      %v275 = vmul.f32 %v207, %v240
      %v276 = vmul.f32 %v208, %v240
      %v277 = vmul.f32 %v209, %v240
      %v278 = vmul.f32 %v210, %v240
      %v279 = vmul.f32 %v211, %v240
      %v280 = vmul.f32 %v212, %v240
      %v281 = vmul.f32 %v213, %v240
      %v282 = vmul.f32 %v214, %v240
      %v283 = vmul.f32 %v215, %v240
      %v284 = vmul.f32 %v216, %v240
      %v285 = vmul.f32 %v217, %v240
      %v286 = vmul.f32 %v218, %v240
      %v287 = vmul.f32 %v219, %v240
      %v288 = vmul.f32 %v220, %v240
      %v289 = vmul.f32 %v221, %v240
      %v290 = vmul.f32 %v222, %v240
      %v291 = vmul.f32 %v223, %v240
      %v292 = vmul.f32 %v224, %v240
      %v293 = vmul.f32 %v225, %v240
      %v294 = vmul.f32 %v226, %v240
      %v295 = vmul.f32 %v227, %v240
      %v296 = vmul.f32 %v228, %v240
      %v297 = vmul.f32 %v229, %v240
      %v298 = vmul.f32 %v230, %v240
      %v299 = vmul.f32 %v231, %v240
      %v300 = vmul.f32 %v232, %v240
      %v301 = vmul.f32 %v233, %v240
      %v302 = vmul.f32 %v234, %v240
      %v303 = vmul.f32 %v235, %v240
      %v304 = vmul.f32 %v236, %v240
      %v305 = vmul.f32 %v237, %v240
      %v306 = vld [vmem:[%s2] sm:$0x1]
      %v308 = vperm.slane %v306, 0
      %v310 = vadd.f32 %v242, %v308
      %v311 = vadd.f32 %v243, %v308
      %v312 = vadd.f32 %v244, %v308
      %v313 = vadd.f32 %v245, %v308
      %v314 = vadd.f32 %v246, %v308
      %v315 = vadd.f32 %v247, %v308
      %v316 = vadd.f32 %v248, %v308
      %v317 = vadd.f32 %v249, %v308
      %v318 = vadd.f32 %v250, %v308
      %v319 = vadd.f32 %v251, %v308
      %v320 = vadd.f32 %v252, %v308
      %v321 = vadd.f32 %v253, %v308
      %v322 = vadd.f32 %v254, %v308
      %v323 = vadd.f32 %v255, %v308
      %v324 = vadd.f32 %v256, %v308
      %v325 = vadd.f32 %v257, %v308
      %v326 = vadd.f32 %v258, %v308
      %v327 = vadd.f32 %v259, %v308
      %v328 = vadd.f32 %v260, %v308
      %v329 = vadd.f32 %v261, %v308
      %v330 = vadd.f32 %v262, %v308
      %v331 = vadd.f32 %v263, %v308
      %v332 = vadd.f32 %v264, %v308
      %v333 = vadd.f32 %v265, %v308
      %v334 = vadd.f32 %v266, %v308
      %v335 = vadd.f32 %v267, %v308
      %v336 = vadd.f32 %v268, %v308
      %v337 = vadd.f32 %v269, %v308
      %v338 = vadd.f32 %v270, %v308
      %v339 = vadd.f32 %v271, %v308
      %v340 = vadd.f32 %v272, %v308
      %v341 = vadd.f32 %v273, %v308
      %v342 = vadd.f32 %v274, %v308
      %v343 = vadd.f32 %v275, %v308
      %v344 = vadd.f32 %v276, %v308
      %v345 = vadd.f32 %v277, %v308
      %v346 = vadd.f32 %v278, %v308
      %v347 = vadd.f32 %v279, %v308
      %v348 = vadd.f32 %v280, %v308
      %v349 = vadd.f32 %v281, %v308
      %v350 = vadd.f32 %v282, %v308
      %v351 = vadd.f32 %v283, %v308
      %v352 = vadd.f32 %v284, %v308
      %v353 = vadd.f32 %v285, %v308
      %v354 = vadd.f32 %v286, %v308
      %v355 = vadd.f32 %v287, %v308
      %v356 = vadd.f32 %v288, %v308
      %v357 = vadd.f32 %v289, %v308
      %v358 = vadd.f32 %v290, %v308
      %v359 = vadd.f32 %v291, %v308
      %v360 = vadd.f32 %v292, %v308
      %v361 = vadd.f32 %v293, %v308
      %v362 = vadd.f32 %v294, %v308
      %v363 = vadd.f32 %v295, %v308
      %v364 = vadd.f32 %v296, %v308
      %v365 = vadd.f32 %v297, %v308
      %v366 = vadd.f32 %v298, %v308
      %v367 = vadd.f32 %v299, %v308
      %v368 = vadd.f32 %v300, %v308
      %v369 = vadd.f32 %v301, %v308
      %v370 = vadd.f32 %v302, %v308
      %v371 = vadd.f32 %v303, %v308
      %v372 = vadd.f32 %v304, %v308
      %v373 = vadd.f32 %v305, %v308
      %vm374 = vcmp.gt.f32.partialorder %v310, 0.0
      %vm375 = vcmp.gt.f32.partialorder %v311, 0.0
      %vm376 = vcmp.gt.f32.partialorder %v312, 0.0
      %vm377 = vcmp.gt.f32.partialorder %v313, 0.0
      %vm378 = vcmp.gt.f32.partialorder %v314, 0.0
      %vm379 = vcmp.gt.f32.partialorder %v315, 0.0
      %vm380 = vcmp.gt.f32.partialorder %v316, 0.0
      %vm381 = vcmp.gt.f32.partialorder %v317, 0.0
      %vm382 = vcmp.gt.f32.partialorder %v318, 0.0
      %vm383 = vcmp.gt.f32.partialorder %v319, 0.0
      %vm384 = vcmp.gt.f32.partialorder %v320, 0.0
      %vm385 = vcmp.gt.f32.partialorder %v321, 0.0
      %vm386 = vcmp.gt.f32.partialorder %v322, 0.0
      %vm387 = vcmp.gt.f32.partialorder %v323, 0.0
      %vm388 = vcmp.gt.f32.partialorder %v324, 0.0
      %vm389 = vcmp.gt.f32.partialorder %v325, 0.0
      %vm390 = vcmp.gt.f32.partialorder %v326, 0.0
      %vm391 = vcmp.gt.f32.partialorder %v327, 0.0
      %vm392 = vcmp.gt.f32.partialorder %v328, 0.0
      %vm393 = vcmp.gt.f32.partialorder %v329, 0.0
      %vm394 = vcmp.gt.f32.partialorder %v330, 0.0
      %vm395 = vcmp.gt.f32.partialorder %v331, 0.0
      %vm396 = vcmp.gt.f32.partialorder %v332, 0.0
      %vm397 = vcmp.gt.f32.partialorder %v333, 0.0
      %vm398 = vcmp.gt.f32.partialorder %v334, 0.0
      %vm399 = vcmp.gt.f32.partialorder %v335, 0.0
      %vm400 = vcmp.gt.f32.partialorder %v336, 0.0
      %vm401 = vcmp.gt.f32.partialorder %v337, 0.0
      %vm402 = vcmp.gt.f32.partialorder %v338, 0.0
      %vm403 = vcmp.gt.f32.partialorder %v339, 0.0
      %vm404 = vcmp.gt.f32.partialorder %v340, 0.0
      %vm405 = vcmp.gt.f32.partialorder %v341, 0.0
      %vm406 = vcmp.gt.f32.partialorder %v342, 0.0
      %vm407 = vcmp.gt.f32.partialorder %v343, 0.0
      %vm408 = vcmp.gt.f32.partialorder %v344, 0.0
      %vm409 = vcmp.gt.f32.partialorder %v345, 0.0
      %vm410 = vcmp.gt.f32.partialorder %v346, 0.0
      %vm411 = vcmp.gt.f32.partialorder %v347, 0.0
      %vm412 = vcmp.gt.f32.partialorder %v348, 0.0
      %vm413 = vcmp.gt.f32.partialorder %v349, 0.0
      %vm414 = vcmp.gt.f32.partialorder %v350, 0.0
      %vm415 = vcmp.gt.f32.partialorder %v351, 0.0
      %vm416 = vcmp.gt.f32.partialorder %v352, 0.0
      %vm417 = vcmp.gt.f32.partialorder %v353, 0.0
      %vm418 = vcmp.gt.f32.partialorder %v354, 0.0
      %vm419 = vcmp.gt.f32.partialorder %v355, 0.0
      %vm420 = vcmp.gt.f32.partialorder %v356, 0.0
      %vm421 = vcmp.gt.f32.partialorder %v357, 0.0
      %vm422 = vcmp.gt.f32.partialorder %v358, 0.0
      %vm423 = vcmp.gt.f32.partialorder %v359, 0.0
      %vm424 = vcmp.gt.f32.partialorder %v360, 0.0
      %vm425 = vcmp.gt.f32.partialorder %v361, 0.0
      %vm426 = vcmp.gt.f32.partialorder %v362, 0.0
      %vm427 = vcmp.gt.f32.partialorder %v363, 0.0
      %vm428 = vcmp.gt.f32.partialorder %v364, 0.0
      %vm429 = vcmp.gt.f32.partialorder %v365, 0.0
      %vm430 = vcmp.gt.f32.partialorder %v366, 0.0
      %vm431 = vcmp.gt.f32.partialorder %v367, 0.0
      %vm432 = vcmp.gt.f32.partialorder %v368, 0.0
      %vm433 = vcmp.gt.f32.partialorder %v369, 0.0
      %vm434 = vcmp.gt.f32.partialorder %v370, 0.0
      %vm435 = vcmp.gt.f32.partialorder %v371, 0.0
      %vm436 = vcmp.gt.f32.partialorder %v372, 0.0
      %vm437 = vcmp.gt.f32.partialorder %v373, 0.0
      %v438 = vmul.f32 %v310, 1.442695
      %v439 = vpow.pop %v438
      %v440 = vmul.f32 %v311, 1.442695
      %v441 = vpow.pop %v440
      %v442 = vmul.f32 %v312, 1.442695
      %v443 = vpow.pop %v442
      %v444 = vmul.f32 %v313, 1.442695
      %v445 = vpow.pop %v444
      %v446 = vmul.f32 %v314, 1.442695
      %v447 = vpow.pop %v446
      %v448 = vmul.f32 %v315, 1.442695
      %v449 = vpow.pop %v448
      %v450 = vmul.f32 %v316, 1.442695
      %v451 = vpow.pop %v450
      %v452 = vmul.f32 %v317, 1.442695
      %v453 = vpow.pop %v452
      %v454 = vmul.f32 %v318, 1.442695
      %v455 = vpow.pop %v454
      %v456 = vmul.f32 %v319, 1.442695
      %v457 = vpow.pop %v456
      %v458 = vmul.f32 %v320, 1.442695
      %v459 = vpow.pop %v458
      %v460 = vmul.f32 %v321, 1.442695
      %v461 = vpow.pop %v460
      %v462 = vmul.f32 %v322, 1.442695
      %v463 = vpow.pop %v462
      %v464 = vmul.f32 %v323, 1.442695
      %v465 = vpow.pop %v464
      %v466 = vmul.f32 %v324, 1.442695
      %v467 = vpow.pop %v466
      %v468 = vmul.f32 %v325, 1.442695
      %v469 = vpow.pop %v468
      %v470 = vmul.f32 %v326, 1.442695
      %v471 = vpow.pop %v470
      %v472 = vmul.f32 %v327, 1.442695
      %v473 = vpow.pop %v472
      %v474 = vmul.f32 %v328, 1.442695
      %v475 = vpow.pop %v474
      %v476 = vmul.f32 %v329, 1.442695
      %v477 = vpow.pop %v476
      %v478 = vmul.f32 %v330, 1.442695
      %v479 = vpow.pop %v478
      %v480 = vmul.f32 %v331, 1.442695
      %v481 = vpow.pop %v480
      %v482 = vmul.f32 %v332, 1.442695
      %v483 = vpow.pop %v482
      %v484 = vmul.f32 %v333, 1.442695
      %v485 = vpow.pop %v484
      %v486 = vmul.f32 %v334, 1.442695
      %v487 = vpow.pop %v486
      %v488 = vmul.f32 %v335, 1.442695
      %v489 = vpow.pop %v488
      %v490 = vmul.f32 %v336, 1.442695
      %v491 = vpow.pop %v490
      %v492 = vmul.f32 %v337, 1.442695
      %v493 = vpow.pop %v492
      %v494 = vmul.f32 %v338, 1.442695
      %v495 = vpow.pop %v494
      %v496 = vmul.f32 %v339, 1.442695
      %v497 = vpow.pop %v496
      %v498 = vmul.f32 %v340, 1.442695
      %v499 = vpow.pop %v498
      %v500 = vmul.f32 %v341, 1.442695
      %v501 = vpow.pop %v500
      %v502 = vmul.f32 %v342, 1.442695
      %v503 = vpow.pop %v502
      %v504 = vmul.f32 %v343, 1.442695
      %v505 = vpow.pop %v504
      %v506 = vmul.f32 %v344, 1.442695
      %v507 = vpow.pop %v506
      %v508 = vmul.f32 %v345, 1.442695
      %v509 = vpow.pop %v508
      %v510 = vmul.f32 %v346, 1.442695
      %v511 = vpow.pop %v510
      %v512 = vmul.f32 %v347, 1.442695
      %v513 = vpow.pop %v512
      %v514 = vmul.f32 %v348, 1.442695
      %v515 = vpow.pop %v514
      %v516 = vmul.f32 %v349, 1.442695
      %v517 = vpow.pop %v516
      %v518 = vmul.f32 %v350, 1.442695
      %v519 = vpow.pop %v518
      %v520 = vmul.f32 %v351, 1.442695
      %v521 = vpow.pop %v520
      %v522 = vmul.f32 %v352, 1.442695
      %v523 = vpow.pop %v522
      %v524 = vmul.f32 %v353, 1.442695
      %v525 = vpow.pop %v524
      %v526 = vmul.f32 %v354, 1.442695
      %v527 = vpow.pop %v526
      %v528 = vmul.f32 %v355, 1.442695
      %v529 = vpow.pop %v528
      %v530 = vmul.f32 %v356, 1.442695
      %v531 = vpow.pop %v530
      %v532 = vmul.f32 %v357, 1.442695
      %v533 = vpow.pop %v532
      %v534 = vmul.f32 %v358, 1.442695
      %v535 = vpow.pop %v534
      %v536 = vmul.f32 %v359, 1.442695
      %v537 = vpow.pop %v536
      %v538 = vmul.f32 %v360, 1.442695
      %v539 = vpow.pop %v538
      %v540 = vmul.f32 %v361, 1.442695
      %v541 = vpow.pop %v540
      %v542 = vmul.f32 %v362, 1.442695
      %v543 = vpow.pop %v542
      %v544 = vmul.f32 %v363, 1.442695
      %v545 = vpow.pop %v544
      %v546 = vmul.f32 %v364, 1.442695
      %v547 = vpow.pop %v546
      %v548 = vmul.f32 %v365, 1.442695
      %v549 = vpow.pop %v548
      %v550 = vmul.f32 %v366, 1.442695
      %v551 = vpow.pop %v550
      %v552 = vmul.f32 %v367, 1.442695
      %v553 = vpow.pop %v552
      %v554 = vmul.f32 %v368, 1.442695
      %v555 = vpow.pop %v554
      %v556 = vmul.f32 %v369, 1.442695
      %v557 = vpow.pop %v556
      %v558 = vmul.f32 %v370, 1.442695
      %v559 = vpow.pop %v558
      %v560 = vmul.f32 %v371, 1.442695
      %v561 = vpow.pop %v560
      %v562 = vmul.f32 %v372, 1.442695
      %v563 = vpow.pop %v562
      %v564 = vmul.f32 %v373, 1.442695
      %v565 = vpow.pop %v564
      %v566 = vsub.f32 %v439, 1.0
      %v567 = vsub.f32 %v441, 1.0
      %v568 = vsub.f32 %v443, 1.0
      %v569 = vsub.f32 %v445, 1.0
      %v570 = vsub.f32 %v447, 1.0
      %v571 = vsub.f32 %v449, 1.0
      %v572 = vsub.f32 %v451, 1.0
      %v573 = vsub.f32 %v453, 1.0
      %v574 = vsub.f32 %v455, 1.0
      %v575 = vsub.f32 %v457, 1.0
      %v576 = vsub.f32 %v459, 1.0
      %v577 = vsub.f32 %v461, 1.0
      %v578 = vsub.f32 %v463, 1.0
      %v579 = vsub.f32 %v465, 1.0
      %v580 = vsub.f32 %v467, 1.0
      %v581 = vsub.f32 %v469, 1.0
      %v582 = vsub.f32 %v471, 1.0
      %v583 = vsub.f32 %v473, 1.0
      %v584 = vsub.f32 %v475, 1.0
      %v585 = vsub.f32 %v477, 1.0
      %v586 = vsub.f32 %v479, 1.0
      %v587 = vsub.f32 %v481, 1.0
      %v588 = vsub.f32 %v483, 1.0
      %v589 = vsub.f32 %v485, 1.0
      %v590 = vsub.f32 %v487, 1.0
      %v591 = vsub.f32 %v489, 1.0
      %v592 = vsub.f32 %v491, 1.0
      %v593 = vsub.f32 %v493, 1.0
      %v594 = vsub.f32 %v495, 1.0
      %v595 = vsub.f32 %v497, 1.0
      %v596 = vsub.f32 %v499, 1.0
      %v597 = vsub.f32 %v501, 1.0
      %v598 = vsub.f32 %v503, 1.0
      %v599 = vsub.f32 %v505, 1.0
      %v600 = vsub.f32 %v507, 1.0
      %v601 = vsub.f32 %v509, 1.0
      %v602 = vsub.f32 %v511, 1.0
      %v603 = vsub.f32 %v513, 1.0
      %v604 = vsub.f32 %v515, 1.0
      %v605 = vsub.f32 %v517, 1.0
      %v606 = vsub.f32 %v519, 1.0
      %v607 = vsub.f32 %v521, 1.0
      %v608 = vsub.f32 %v523, 1.0
      %v609 = vsub.f32 %v525, 1.0
      %v610 = vsub.f32 %v527, 1.0
      %v611 = vsub.f32 %v529, 1.0
      %v612 = vsub.f32 %v531, 1.0
      %v613 = vsub.f32 %v533, 1.0
      %v614 = vsub.f32 %v535, 1.0
      %v615 = vsub.f32 %v537, 1.0
      %v616 = vsub.f32 %v539, 1.0
      %v617 = vsub.f32 %v541, 1.0
      %v618 = vsub.f32 %v543, 1.0
      %v619 = vsub.f32 %v545, 1.0
      %v620 = vsub.f32 %v547, 1.0
      %v621 = vsub.f32 %v549, 1.0
      %v622 = vsub.f32 %v551, 1.0
      %v623 = vsub.f32 %v553, 1.0
      %v624 = vsub.f32 %v555, 1.0
      %v625 = vsub.f32 %v557, 1.0
      %v626 = vsub.f32 %v559, 1.0
      %v627 = vsub.f32 %v561, 1.0
      %v628 = vsub.f32 %v563, 1.0
      %v629 = vsub.f32 %v565, 1.0
      %v630 = vsel %vm374, %v310, %v566
      %v631 = vsel %vm375, %v311, %v567
      %v632 = vsel %vm376, %v312, %v568
      %v633 = vsel %vm377, %v313, %v569
      %v634 = vsel %vm378, %v314, %v570
      %v635 = vsel %vm379, %v315, %v571
      %v636 = vsel %vm380, %v316, %v572
      %v637 = vsel %vm381, %v317, %v573
      %v638 = vsel %vm382, %v318, %v574
      %v639 = vsel %vm383, %v319, %v575
      %v640 = vsel %vm384, %v320, %v576
      %v641 = vsel %vm385, %v321, %v577
      %v642 = vsel %vm386, %v322, %v578
      %v643 = vsel %vm387, %v323, %v579
      %v644 = vsel %vm388, %v324, %v580
      %v645 = vsel %vm389, %v325, %v581
      %v646 = vsel %vm390, %v326, %v582
      %v647 = vsel %vm391, %v327, %v583
      %v648 = vsel %vm392, %v328, %v584
      %v649 = vsel %vm393, %v329, %v585
      %v650 = vsel %vm394, %v330, %v586
      %v651 = vsel %vm395, %v331, %v587
      %v652 = vsel %vm396, %v332, %v588
      %v653 = vsel %vm397, %v333, %v589
      %v654 = vsel %vm398, %v334, %v590
      %v655 = vsel %vm399, %v335, %v591
      %v656 = vsel %vm400, %v336, %v592
      %v657 = vsel %vm401, %v337, %v593
      %v658 = vsel %vm402, %v338, %v594
      %v659 = vsel %vm403, %v339, %v595
      %v660 = vsel %vm404, %v340, %v596
      %v661 = vsel %vm405, %v341, %v597
      %v662 = vsel %vm406, %v342, %v598
      %v663 = vsel %vm407, %v343, %v599
      %v664 = vsel %vm408, %v344, %v600
      %v665 = vsel %vm409, %v345, %v601
      %v666 = vsel %vm410, %v346, %v602
      %v667 = vsel %vm411, %v347, %v603
      %v668 = vsel %vm412, %v348, %v604
      %v669 = vsel %vm413, %v349, %v605
      %v670 = vsel %vm414, %v350, %v606
      %v671 = vsel %vm415, %v351, %v607
      %v672 = vsel %vm416, %v352, %v608
      %v673 = vsel %vm417, %v353, %v609
      %v674 = vsel %vm418, %v354, %v610
      %v675 = vsel %vm419, %v355, %v611
      %v676 = vsel %vm420, %v356, %v612
      %v677 = vsel %vm421, %v357, %v613
      %v678 = vsel %vm422, %v358, %v614
      %v679 = vsel %vm423, %v359, %v615
      %v680 = vsel %vm424, %v360, %v616
      %v681 = vsel %vm425, %v361, %v617
      %v682 = vsel %vm426, %v362, %v618
      %v683 = vsel %vm427, %v363, %v619
      %v684 = vsel %vm428, %v364, %v620
      %v685 = vsel %vm429, %v365, %v621
      %v686 = vsel %vm430, %v366, %v622
      %v687 = vsel %vm431, %v367, %v623
      %v688 = vsel %vm432, %v368, %v624
      %v689 = vsel %vm433, %v369, %v625
      %v690 = vsel %vm434, %v370, %v626
      %v691 = vsel %vm435, %v371, %v627
      %v692 = vsel %vm436, %v372, %v628
      %v693 = vsel %vm437, %v373, %v629
      %694 = vst [vmem:[%s172] sm:$0xff] %v630
      %695 = vst [vmem:[%s172 + $0x8] sm:$0xff] %v631
      %696 = vst [vmem:[%s172 + $0x10] sm:$0xff] %v632
      %697 = vst [vmem:[%s172 + $0x18] sm:$0xff] %v633
      %698 = vst [vmem:[%s172 + $0x20] sm:$0xff] %v634
      %699 = vst [vmem:[%s172 + $0x28] sm:$0xff] %v635
      %700 = vst [vmem:[%s172 + $0x30] sm:$0xff] %v636
      %701 = vst [vmem:[%s172 + $0x38] sm:$0xff] %v637
      %702 = vst [vmem:[%s172 + $0x40] sm:$0xff] %v638
      %703 = vst [vmem:[%s172 + $0x48] sm:$0xff] %v639
      %704 = vst [vmem:[%s172 + $0x50] sm:$0xff] %v640
      %705 = vst [vmem:[%s172 + $0x58] sm:$0xff] %v641
      %706 = vst [vmem:[%s172 + $0x60] sm:$0xff] %v642
      %707 = vst [vmem:[%s172 + $0x68] sm:$0xff] %v643
      %708 = vst [vmem:[%s172 + $0x70] sm:$0xff] %v644
      %709 = vst [vmem:[%s172 + $0x78] sm:$0xff] %v645
      %710 = vst [vmem:[%s172 + $0x80] sm:$0xff] %v646
      %711 = vst [vmem:[%s172 + $0x88] sm:$0xff] %v647
      %712 = vst [vmem:[%s172 + $0x90] sm:$0xff] %v648
      %713 = vst [vmem:[%s172 + $0x98] sm:$0xff] %v649
      %714 = vst [vmem:[%s172 + $0xa0] sm:$0xff] %v650
      %715 = vst [vmem:[%s172 + $0xa8] sm:$0xff] %v651
      %716 = vst [vmem:[%s172 + $0xb0] sm:$0xff] %v652
      %717 = vst [vmem:[%s172 + $0xb8] sm:$0xff] %v653
      %718 = vst [vmem:[%s172 + $0xc0] sm:$0xff] %v654
      %719 = vst [vmem:[%s172 + $0xc8] sm:$0xff] %v655
      %720 = vst [vmem:[%s172 + $0xd0] sm:$0xff] %v656
      %721 = vst [vmem:[%s172 + $0xd8] sm:$0xff] %v657
      %722 = vst [vmem:[%s172 + $0xe0] sm:$0xff] %v658
      %723 = vst [vmem:[%s172 + $0xe8] sm:$0xff] %v659
      %724 = vst [vmem:[%s172 + $0xf0] sm:$0xff] %v660
      %725 = vst [vmem:[%s172 + $0xf8] sm:$0xff] %v661
      %726 = vst [vmem:[%s172 + $0x100] sm:$0xff] %v662
      %727 = vst [vmem:[%s172 + $0x108] sm:$0xff] %v663
      %728 = vst [vmem:[%s172 + $0x110] sm:$0xff] %v664
      %729 = vst [vmem:[%s172 + $0x118] sm:$0xff] %v665
      %730 = vst [vmem:[%s172 + $0x120] sm:$0xff] %v666
      %731 = vst [vmem:[%s172 + $0x128] sm:$0xff] %v667
      %732 = vst [vmem:[%s172 + $0x130] sm:$0xff] %v668
      %733 = vst [vmem:[%s172 + $0x138] sm:$0xff] %v669
      %734 = vst [vmem:[%s172 + $0x140] sm:$0xff] %v670
      %735 = vst [vmem:[%s172 + $0x148] sm:$0xff] %v671
      %736 = vst [vmem:[%s172 + $0x150] sm:$0xff] %v672
      %737 = vst [vmem:[%s172 + $0x158] sm:$0xff] %v673
      %738 = vst [vmem:[%s172 + $0x160] sm:$0xff] %v674
      %739 = vst [vmem:[%s172 + $0x168] sm:$0xff] %v675
      %740 = vst [vmem:[%s172 + $0x170] sm:$0xff] %v676
      %741 = vst [vmem:[%s172 + $0x178] sm:$0xff] %v677
      %742 = vst [vmem:[%s172 + $0x180] sm:$0xff] %v678
      %743 = vst [vmem:[%s172 + $0x188] sm:$0xff] %v679
      %744 = vst [vmem:[%s172 + $0x190] sm:$0xff] %v680
      %745 = vst [vmem:[%s172 + $0x198] sm:$0xff] %v681
      %746 = vst [vmem:[%s172 + $0x1a0] sm:$0xff] %v682
      %747 = vst [vmem:[%s172 + $0x1a8] sm:$0xff] %v683
      %748 = vst [vmem:[%s172 + $0x1b0] sm:$0xff] %v684
      %749 = vst [vmem:[%s172 + $0x1b8] sm:$0xff] %v685
      %750 = vst [vmem:[%s172 + $0x1c0] sm:$0xff] %v686
      %751 = vst [vmem:[%s172 + $0x1c8] sm:$0xff] %v687
      %752 = vst [vmem:[%s172 + $0x1d0] sm:$0xff] %v688
      %753 = vst [vmem:[%s172 + $0x1d8] sm:$0xff] %v689
      %754 = vst [vmem:[%s172 + $0x1e0] sm:$0xff] %v690
      %755 = vst [vmem:[%s172 + $0x1e8] sm:$0xff] %v691
      %756 = vst [vmem:[%s172 + $0x1f0] sm:$0xff] %v692
      %757 = vst [vmem:[%s172 + $0x1f8] sm:$0xff] %v693
      %s758 = smul.u32 64, %s14
      %p759 = scmp.lt.s32.totalorder %s758, 127
      %s760 = scalar_select %p759, %s758, 127
      %s761 = smul.addr %s760, 8
      %s762 = scalar_lea.vmem %s3, %s761
      // Predicated region
      $region33: #{_lambda_.5} parent=31 // pred_check
        %p763 = pneg %p100
      $region34: #{_lambda_.5} parent=31 // pred_check_branch
        %765 = sbr.rel (%p763) target = $region36
      $region35: #{_lambda_.5} parent=31 // pred_region
        %s766 = smul.u32 64, %s14
      $region36: #{_lambda_.5} parent=31 // pred_fallthru
        _
    $region32: #{_lambda_.5} parent=5 // pred_fallthru
      _
    %p767 = scmp.le.s32.totalorder 2, %s9
    // Predicated region
    $region37: #{_lambda_.5} parent=5 // pred_check
      %p768 = pneg %p767
    $region38: #{_lambda_.5} parent=5 // pred_check_branch
      %770 = sbr.rel (%p768) target = $region40
    $region39: #{_lambda_.5} parent=5 // pred_region
      %s771 = ssub.s32 %s9, 2
      // Predicated region
      $region41: #{_lambda_.5} parent=39 // pred_check
        %p772 = pneg %p106
      $region42: #{_lambda_.5} parent=39 // pred_check_branch
        %774 = sbr.rel (%p772) target = $region44
      $region43: #{_lambda_.5} parent=39 // pred_region
        %s775 = smul.u32 64, %s15
        %p776 = scmp.lt.s32.totalorder %s775, 127
        %s777 = scalar_select %p776, %s775, 127
        %s778 = smul.addr %s777, 8
        %s779 = scalar_lea.vmem %s3, %s778
      $region44: #{_lambda_.5} parent=39 // pred_fallthru
        _
    $region40: #{_lambda_.5} parent=5 // pred_fallthru
      _
  $region6: #{_lambda_.5} parent=0 // loop_footer
    %s13 = sadd.s32 1, %s9
  $region7: #{_lambda_.5} parent=0 // loop_footer_branch
    %8 = sbr.rel target = $region3
  $region8: #{_lambda_.5} parent=0 // loop_exit
    _

// kernel: _lambda_.4
$region0: #{_lambda_.4}
  #allocation0 [shape = 'u32[]', space=smem, size = 0x4, offset = 0x4, fixed_abs, tag = 'smem constant byte address 0x4 - core index']
  #allocation1 [shape = 'u32[72,128]{1,0:T(1,128)}', space=vmem, size = 0x9000, scoped, tag = 'internal scratch']
  %s0 = inlined_call_operand.vmem [shape: bf16[1024,32], index: 0, kind: input, shape index: {}]
  %s1 = inlined_call_operand.vmem [shape: bf16[32,128], index: 1, kind: input, shape index: {}]
  %s2 = inlined_call_operand.vmem [shape: f32[1,128], index: 2, kind: input, shape index: {}]
  %s3 = inlined_call_operand.vmem [shape: f32[1024,128], index: 3, kind: output, shape index: {0}]
  %s4 = inlined_call_operand.vmem [shape: f32[2,2,128], index: 4, kind: output, shape index: {1}]
  %5 = xla_tuple %s3, %s4
  %s6 = sld [smem:[#allocation0]]
  $region53: #{_lambda_.4} parent=0
    _
  %s8 = ssub.s32 1, %s6
  %s9 = scalar_select 0, %s8, %s6
  loop: start=0, step=1, limit=4
  $region2: #{_lambda_.4} parent=0 // loop_pre_header
    _
  $region3: #{_lambda_.4} parent=0 // loop_header
    %s11 = sphi 0, %s15
    %p12 = scmp.ge.s32.totalorder %s11, 4
    %s21 = sphi 0, %s23
    %s24 = sphi 0, %s21
    %s25 = sphi 0, %s24
    %s41 = sphi 0, %s25
    %s45 = sphi 0, %s45
    %s47 = sphi 0, %s45
    %s48 = sphi 0, %s47
    %s62 = sphi 0, %s48
    %s66 = sphi 0, %s66
    %s68 = sphi 0, %s66
    %s69 = sphi 0, %s68
    %s83 = sphi 0, %s69
    %s89 = sphi 0, %s91
    %s92 = sphi 0, %s89
    %s93 = sphi 0, %s92
    %s109 = sphi 0, %s93
    %s115 = sphi 0, %s117
    %s118 = sphi 0, %s115
    %s119 = sphi 0, %s118
    %s135 = sphi 0, %s119
  $region4: #{_lambda_.4} parent=0 // loop_header_branch
    %14 = sbr.rel (%p12) target = $region8
  $region5: #{_lambda_.4} parent=0 // loop_body
    %s16 = ssub.s32 %s11, 1
    %s17 = ssub.s32 %s11, 2
    %s18 = sadd.s32 %s11, 1
    %s19 = ssub.s32 %s11, %s18
    %p20 = scmp.eq.s32.totalorder %s19, 0
    %s22 = sadd.s32 %s21, 1
    %s23 = scalar_select %p20, %s21, %s22
    %p26 = pneg %p20
    %p27 = scmp.eq.s32.totalorder %s11, 1
    %p28 = por %p26, %p27
    %p29 = scmp.ne.s32.totalorder %s21, %s24
    %p30 = scmp.eq.s32.totalorder %s11, 0
    %p31 = por %p29, %p30
    %p32 = scmp.ne.s32.totalorder %s21, %s24
    %p33 = scmp.eq.s32.totalorder %s16, 1
    %p34 = por %p32, %p33
    %p35 = scmp.ne.s32.totalorder %s24, %s25
    %p36 = scmp.eq.s32.totalorder %s16, 0
    %p37 = por %p35, %p36
    %p38 = scmp.ne.s32.totalorder %s24, %s25
    %p39 = scmp.eq.s32.totalorder %s17, 1
    %p40 = por %p38, %p39
    %p42 = scmp.ne.s32.totalorder %s25, %s41
    %p43 = scmp.eq.s32.totalorder %s17, 0
    %p44 = por %p42, %p43
    %s46 = sadd.s32 %s45, 1
    %p49 = scmp.eq.s32.totalorder %s11, 1
    %p50 = scmp.ne.s32.totalorder %s45, %s47
    %p51 = scmp.eq.s32.totalorder %s11, 0
    %p52 = por %p50, %p51
    %p53 = scmp.ne.s32.totalorder %s45, %s47
    %p54 = scmp.eq.s32.totalorder %s16, 1
    %p55 = por %p53, %p54
    %p56 = scmp.ne.s32.totalorder %s47, %s48
    %p57 = scmp.eq.s32.totalorder %s16, 0
    %p58 = por %p56, %p57
    %p59 = scmp.ne.s32.totalorder %s47, %s48
    %p60 = scmp.eq.s32.totalorder %s17, 1
    %p61 = por %p59, %p60
    %p63 = scmp.ne.s32.totalorder %s48, %s62
    %p64 = scmp.eq.s32.totalorder %s17, 0
    %p65 = por %p63, %p64
    %s67 = sadd.s32 %s66, 1
    %p70 = scmp.eq.s32.totalorder %s11, 1
    %p71 = scmp.ne.s32.totalorder %s66, %s68
    %p72 = scmp.eq.s32.totalorder %s11, 0
    %p73 = por %p71, %p72
    %p74 = scmp.ne.s32.totalorder %s66, %s68
    %p75 = scmp.eq.s32.totalorder %s16, 1
    %p76 = por %p74, %p75
    %p77 = scmp.ne.s32.totalorder %s68, %s69
    %p78 = scmp.eq.s32.totalorder %s16, 0
    %p79 = por %p77, %p78
    %p80 = scmp.ne.s32.totalorder %s68, %s69
    %p81 = scmp.eq.s32.totalorder %s17, 1
    %p82 = por %p80, %p81
    %p84 = scmp.ne.s32.totalorder %s69, %s83
    %p85 = scmp.eq.s32.totalorder %s17, 0
    %p86 = por %p84, %p85
    %s87 = ssub.s32 %s11, %s18
    %p88 = scmp.eq.s32.totalorder %s87, 0
    %s90 = sadd.s32 %s89, 1
    %s91 = scalar_select %p88, %s89, %s90
    %p94 = pneg %p88
    %p95 = scmp.eq.s32.totalorder %s11, 1
    %p96 = por %p94, %p95
    %p97 = scmp.ne.s32.totalorder %s89, %s92
    %p98 = scmp.eq.s32.totalorder %s11, 0
    %p99 = por %p97, %p98
    %p100 = scmp.ne.s32.totalorder %s89, %s92
    %p101 = scmp.eq.s32.totalorder %s16, 1
    %p102 = por %p100, %p101
    %p103 = scmp.ne.s32.totalorder %s92, %s93
    %p104 = scmp.eq.s32.totalorder %s16, 0
    %p105 = por %p103, %p104
    %p106 = scmp.ne.s32.totalorder %s92, %s93
    %p107 = scmp.eq.s32.totalorder %s17, 1
    %p108 = por %p106, %p107
    %p110 = scmp.ne.s32.totalorder %s93, %s109
    %p111 = scmp.eq.s32.totalorder %s17, 0
    %p112 = por %p110, %p111
    %s113 = ssub.s32 %s11, %s18
    %p114 = scmp.eq.s32.totalorder %s113, 0
    %s116 = sadd.s32 %s115, 1
    %s117 = scalar_select %p114, %s115, %s116
    %p120 = pneg %p114
    %p121 = scmp.eq.s32.totalorder %s11, 1
    %p122 = por %p120, %p121
    %p123 = scmp.ne.s32.totalorder %s115, %s118
    %p124 = scmp.eq.s32.totalorder %s11, 0
    %p125 = por %p123, %p124
    %p126 = scmp.ne.s32.totalorder %s115, %s118
    %p127 = scmp.eq.s32.totalorder %s16, 1
    %p128 = por %p126, %p127
    %p129 = scmp.ne.s32.totalorder %s118, %s119
    %p130 = scmp.eq.s32.totalorder %s16, 0
    %p131 = por %p129, %p130
    %p132 = scmp.ne.s32.totalorder %s118, %s119
    %p133 = scmp.eq.s32.totalorder %s17, 1
    %p134 = por %p132, %p133
    %p136 = scmp.ne.s32.totalorder %s119, %s135
    %p137 = scmp.eq.s32.totalorder %s17, 0
    %p138 = por %p136, %p137
    %p139 = scmp.le.s32.totalorder 1, %s11
    %p140 = scmp.lt.s32.totalorder %s11, 3
    %p141 = pnand %p139, %p140
    %p142 = pneg %p141
    // Predicated region
    $region9: #{_lambda_.4} parent=5 // pred_check
      _
    $region10: #{_lambda_.4} parent=5 // pred_check_branch
      %144 = sbr.rel (%p141) target = $region12
    $region11: #{_lambda_.4} parent=5 // pred_region
      %s145 = ssub.s32 %s11, 1
      // Predicated region
      $region13: #{_lambda_.4} parent=11 // pred_check
        %p146 = pneg %p58
      $region14: #{_lambda_.4} parent=11 // pred_check_branch
        %148 = sbr.rel (%p146) target = $region16
      $region15: #{_lambda_.4} parent=11 // pred_region
        _
      $region16: #{_lambda_.4} parent=11 // pred_fallthru
        _
      // Predicated region
      $region17: #{_lambda_.4} parent=11 // pred_check
        %p149 = pneg %p79
      $region18: #{_lambda_.4} parent=11 // pred_check_branch
        %151 = sbr.rel (%p149) target = $region20
      $region19: #{_lambda_.4} parent=11 // pred_region
        _
      $region20: #{_lambda_.4} parent=11 // pred_fallthru
        _
    $region12: #{_lambda_.4} parent=5 // pred_fallthru
      _
    %p152 = scmp.lt.s32.totalorder %s11, 2
    // Predicated region
    $region21: #{_lambda_.4} parent=5 // pred_check
      %p153 = pneg %p152
    $region22: #{_lambda_.4} parent=5 // pred_check_branch
      %155 = sbr.rel (%p153) target = $region24
    $region23: #{_lambda_.4} parent=5 // pred_region
      // Predicated region
      $region25: #{_lambda_.4} parent=23 // pred_check
        %p156 = pneg %p31
      $region26: #{_lambda_.4} parent=23 // pred_check_branch
        %158 = sbr.rel (%p156) target = $region28
      $region27: #{_lambda_.4} parent=23 // pred_region
        %s159 = smul.u32 64, %s11
        %p160 = scmp.lt.s32.totalorder %s159, 127
        %s161 = scalar_select %p160, %s159, 127
        %s162 = smul.addr %s161, 4
        %s163 = scalar_lea.vmem %s0, %s162
        %s164 = smul.u32 64, %s11
      $region28: #{_lambda_.4} parent=23 // pred_fallthru
        _
    $region24: #{_lambda_.4} parent=5 // pred_fallthru
      _
    %p165 = scmp.le.s32.totalorder 1, %s11
    %p166 = scmp.lt.s32.totalorder %s11, 3
    %p167 = pnand %p165, %p166
    %p168 = pneg %p167
    // Predicated region
    $region29: #{_lambda_.4} parent=5 // pred_check
      _
    $region30: #{_lambda_.4} parent=5 // pred_check_branch
      %170 = sbr.rel (%p167) target = $region32
    $region31: #{_lambda_.4} parent=5 // pred_region
      %s171 = ssub.s32 %s11, 1
      %s172 = smul.u32 64, %s16
      %p173 = scmp.lt.s32.totalorder %s172, 127
      %s174 = scalar_select %p173, %s172, 127
      %s175 = smul.addr %s174, 4
      %s176 = scalar_lea.vmem %s0, %s175
      %p177 = pneg %p37
      %p178 = pneg %p34
      %p179 = pneg %p58
      %p180 = pneg %p55
      %p181 = pneg %p79
      %p182 = pneg %p76
      %p183 = pneg %p105
      %p184 = pneg %p102
      %s185 = smul.u32 64, %s16
      %p186 = scmp.lt.s32.totalorder %s185, 127
      %s187 = scalar_select %p186, %s185, 127
      %s188 = smul.addr %s187, 8
      %s189 = scalar_lea.vmem %s3, %s188
      %p190 = pneg %p131
      %p191 = pneg %p128
      %p192 = scmp.lt.s32.totalorder %s16, 1
      %s193 = scalar_select %p192, %s16, 1
      %s194 = smul.addr %s193, 2
      %s195 = scalar_lea.vmem %s4, %s194
      %s196 = smul.u32 64, %s16
      %p197 = scmp.lt.s32.totalorder %s196, 127
      %s198 = scalar_select %p197, %s196, 127
      %s199 = smul.addr %s198, 4
      %s200 = scalar_lea.vmem %s0, %s199
      %s201 = smul.u32 64, %s16
      %s202 = smul.u32 64, %s16
      %p203 = scmp.lt.s32.totalorder %s202, 127
      %s204 = scalar_select %p203, %s202, 127
      %s205 = smul.addr %s204, 8
      %s206 = scalar_lea.vmem %s3, %s205
      %s207 = smul.u32 64, %s16
      %p208 = scmp.lt.s32.totalorder %s16, 1
      %s209 = scalar_select %p208, %s16, 1
      %s210 = smul.addr %s209, 2
      %s211 = scalar_lea.vmem %s4, %s210
      %v213 = vld [vmem:[%s200] sm:$0xf]
      %v214 = vld [vmem:[%s200 + $0x4] sm:$0xf]
      %v215 = vld [vmem:[%s200 + $0x8] sm:$0xf]
      %v216 = vld [vmem:[%s200 + $0xc] sm:$0xf]
      %v217 = vld [vmem:[%s200 + $0x10] sm:$0xf]
      %v218 = vld [vmem:[%s200 + $0x14] sm:$0xf]
      %v219 = vld [vmem:[%s200 + $0x18] sm:$0xf]
      %v220 = vld [vmem:[%s200 + $0x1c] sm:$0xf]
      %v221 = vld [vmem:[%s200 + $0x20] sm:$0xf]
      %v222 = vld [vmem:[%s200 + $0x24] sm:$0xf]
      %v223 = vld [vmem:[%s200 + $0x28] sm:$0xf]
      %v224 = vld [vmem:[%s200 + $0x2c] sm:$0xf]
      %v225 = vld [vmem:[%s200 + $0x30] sm:$0xf]
      %v226 = vld [vmem:[%s200 + $0x34] sm:$0xf]
      %v227 = vld [vmem:[%s200 + $0x38] sm:$0xf]
      %v228 = vld [vmem:[%s200 + $0x3c] sm:$0xf]
      %v229 = vld [vmem:[%s200 + $0x40] sm:$0xf]
      %v230 = vld [vmem:[%s200 + $0x44] sm:$0xf]
      %v231 = vld [vmem:[%s200 + $0x48] sm:$0xf]
      %v232 = vld [vmem:[%s200 + $0x4c] sm:$0xf]
      %v233 = vld [vmem:[%s200 + $0x50] sm:$0xf]
      %v234 = vld [vmem:[%s200 + $0x54] sm:$0xf]
      %v235 = vld [vmem:[%s200 + $0x58] sm:$0xf]
      %v236 = vld [vmem:[%s200 + $0x5c] sm:$0xf]
      %v237 = vld [vmem:[%s200 + $0x60] sm:$0xf]
      %v238 = vld [vmem:[%s200 + $0x64] sm:$0xf]
      %v239 = vld [vmem:[%s200 + $0x68] sm:$0xf]
      %v240 = vld [vmem:[%s200 + $0x6c] sm:$0xf]
      %v241 = vld [vmem:[%s200 + $0x70] sm:$0xf]
      %v242 = vld [vmem:[%s200 + $0x74] sm:$0xf]
      %v243 = vld [vmem:[%s200 + $0x78] sm:$0xf]
      %v244 = vld [vmem:[%s200 + $0x7c] sm:$0xf]
      %v245 = vld [vmem:[%s200 + $0x80] sm:$0xf]
      %v246 = vld [vmem:[%s200 + $0x84] sm:$0xf]
      %v247 = vld [vmem:[%s200 + $0x88] sm:$0xf]
      %v248 = vld [vmem:[%s200 + $0x8c] sm:$0xf]
      %v249 = vld [vmem:[%s200 + $0x90] sm:$0xf]
      %v250 = vld [vmem:[%s200 + $0x94] sm:$0xf]
      %v251 = vld [vmem:[%s200 + $0x98] sm:$0xf]
      %v252 = vld [vmem:[%s200 + $0x9c] sm:$0xf]
      %v253 = vld [vmem:[%s200 + $0xa0] sm:$0xf]
      %v254 = vld [vmem:[%s200 + $0xa4] sm:$0xf]
      %v255 = vld [vmem:[%s200 + $0xa8] sm:$0xf]
      %v256 = vld [vmem:[%s200 + $0xac] sm:$0xf]
      %v257 = vld [vmem:[%s200 + $0xb0] sm:$0xf]
      %v258 = vld [vmem:[%s200 + $0xb4] sm:$0xf]
      %v259 = vld [vmem:[%s200 + $0xb8] sm:$0xf]
      %v260 = vld [vmem:[%s200 + $0xbc] sm:$0xf]
      %v261 = vld [vmem:[%s200 + $0xc0] sm:$0xf]
      %v262 = vld [vmem:[%s200 + $0xc4] sm:$0xf]
      %v263 = vld [vmem:[%s200 + $0xc8] sm:$0xf]
      %v264 = vld [vmem:[%s200 + $0xcc] sm:$0xf]
      %v265 = vld [vmem:[%s200 + $0xd0] sm:$0xf]
      %v266 = vld [vmem:[%s200 + $0xd4] sm:$0xf]
      %v267 = vld [vmem:[%s200 + $0xd8] sm:$0xf]
      %v268 = vld [vmem:[%s200 + $0xdc] sm:$0xf]
      %v269 = vld [vmem:[%s200 + $0xe0] sm:$0xf]
      %v270 = vld [vmem:[%s200 + $0xe4] sm:$0xf]
      %v271 = vld [vmem:[%s200 + $0xe8] sm:$0xf]
      %v272 = vld [vmem:[%s200 + $0xec] sm:$0xf]
      %v273 = vld [vmem:[%s200 + $0xf0] sm:$0xf]
      %v274 = vld [vmem:[%s200 + $0xf4] sm:$0xf]
      %v275 = vld [vmem:[%s200 + $0xf8] sm:$0xf]
      %v276 = vld [vmem:[%s200 + $0xfc] sm:$0xf]
      %v277 = vld [vmem:[%s1] sm:$0xf]
      %v278 = vld [vmem:[%s1 + $0x4] sm:$0xf]
      %v279 = vld [vmem:[%s1 + $0x8] sm:$0xf]
      %v280 = vld [vmem:[%s1 + $0xc] sm:$0xf]
      %v281 = vld [vmem:[%s2] sm:$0x1]
      %v283 = vperm.slane %v281, 0
      %v349 = vunpack.c.l.b16 %v213
      %v350 = vunpack.c.l.b16 %v214
      %v351 = vunpack.c.l.b16 %v215
      %v352 = vunpack.c.l.b16 %v216
      %v353 = vunpack.c.l.b16 %v217
      %v354 = vunpack.c.l.b16 %v218
      %v355 = vunpack.c.l.b16 %v219
      %v356 = vunpack.c.l.b16 %v220
      %v357 = vunpack.c.l.b16 %v221
      %v358 = vunpack.c.l.b16 %v222
      %v359 = vunpack.c.l.b16 %v223
      %v360 = vunpack.c.l.b16 %v224
      %v361 = vunpack.c.l.b16 %v225
      %v362 = vunpack.c.l.b16 %v226
      %v363 = vunpack.c.l.b16 %v227
      %v364 = vunpack.c.l.b16 %v228
      %v365 = vunpack.c.l.b16 %v229
      %v366 = vunpack.c.l.b16 %v230
      %v367 = vunpack.c.l.b16 %v231
      %v368 = vunpack.c.l.b16 %v232
      %v369 = vunpack.c.l.b16 %v233
      %v370 = vunpack.c.l.b16 %v234
      %v371 = vunpack.c.l.b16 %v235
      %v372 = vunpack.c.l.b16 %v236
      %v373 = vunpack.c.l.b16 %v237
      %v374 = vunpack.c.l.b16 %v238
      %v375 = vunpack.c.l.b16 %v239
      %v376 = vunpack.c.l.b16 %v240
      %v377 = vunpack.c.l.b16 %v241
      %v378 = vunpack.c.l.b16 %v242
      %v379 = vunpack.c.l.b16 %v243
      %v380 = vunpack.c.l.b16 %v244
      %v381 = vunpack.c.l.b16 %v245
      %v382 = vunpack.c.l.b16 %v246
      %v383 = vunpack.c.l.b16 %v247
      %v384 = vunpack.c.l.b16 %v248
      %v385 = vunpack.c.l.b16 %v249
      %v386 = vunpack.c.l.b16 %v250
      %v387 = vunpack.c.l.b16 %v251
      %v388 = vunpack.c.l.b16 %v252
      %v389 = vunpack.c.l.b16 %v253
      %v390 = vunpack.c.l.b16 %v254
      %v391 = vunpack.c.l.b16 %v255
      %v392 = vunpack.c.l.b16 %v256
      %v393 = vunpack.c.l.b16 %v257
      %v394 = vunpack.c.l.b16 %v258
      %v395 = vunpack.c.l.b16 %v259
      %v396 = vunpack.c.l.b16 %v260
      %v397 = vunpack.c.l.b16 %v261
      %v398 = vunpack.c.l.b16 %v262
      %v399 = vunpack.c.l.b16 %v263
      %v400 = vunpack.c.l.b16 %v264
      %v401 = vunpack.c.l.b16 %v265
      %v402 = vunpack.c.l.b16 %v266
      %v403 = vunpack.c.l.b16 %v267
      %v404 = vunpack.c.l.b16 %v268
      %v405 = vunpack.c.l.b16 %v269
      %v406 = vunpack.c.l.b16 %v270
      %v407 = vunpack.c.l.b16 %v271
      %v408 = vunpack.c.l.b16 %v272
      %v409 = vunpack.c.l.b16 %v273
      %v410 = vunpack.c.l.b16 %v274
      %v411 = vunpack.c.l.b16 %v275
      %v412 = vunpack.c.l.b16 %v276
      %v413 = vpack.c.b16 %v350, %v349
      %v414 = vpack.c.b16 %v352, %v351
      %v415 = vpack.c.b16 %v354, %v353
      %v416 = vpack.c.b16 %v356, %v355
      %v417 = vpack.c.b16 %v358, %v357
      %v418 = vpack.c.b16 %v360, %v359
      %v419 = vpack.c.b16 %v362, %v361
      %v420 = vpack.c.b16 %v364, %v363
      %v421 = vpack.c.b16 %v366, %v365
      %v422 = vpack.c.b16 %v368, %v367
      %v423 = vpack.c.b16 %v370, %v369
      %v424 = vpack.c.b16 %v372, %v371
      %v425 = vpack.c.b16 %v374, %v373
      %v426 = vpack.c.b16 %v376, %v375
      %v427 = vpack.c.b16 %v378, %v377
      %v428 = vpack.c.b16 %v380, %v379
      %v429 = vpack.c.b16 %v382, %v381
      %v430 = vpack.c.b16 %v384, %v383
      %v431 = vpack.c.b16 %v386, %v385
      %v432 = vpack.c.b16 %v388, %v387
      %v433 = vpack.c.b16 %v390, %v389
      %v434 = vpack.c.b16 %v392, %v391
      %v435 = vpack.c.b16 %v394, %v393
      %v436 = vpack.c.b16 %v396, %v395
      %v437 = vpack.c.b16 %v398, %v397
      %v438 = vpack.c.b16 %v400, %v399
      %v439 = vpack.c.b16 %v402, %v401
      %v440 = vpack.c.b16 %v404, %v403
      %v441 = vpack.c.b16 %v406, %v405
      %v442 = vpack.c.b16 %v408, %v407
      %v443 = vpack.c.b16 %v410, %v409
      %v444 = vpack.c.b16 %v412, %v411
      %v449 = vunpack.c.l.b16 %v277
      %v450 = vunpack.c.l.b16 %v278
      %v451 = vunpack.c.l.b16 %v279
      %v452 = vunpack.c.l.b16 %v280
      %v453 = vpack.c.b16 %v450, %v449
      %v454 = vpack.c.b16 %v452, %v451
      %vm457 = vcmask 261120
      %v459 = vsel %vm457, %v413, 0
      %v462 = vsel %vm457, %v414, 0
      %v465 = vsel %vm457, %v415, 0
      %v468 = vsel %vm457, %v416, 0
      %v471 = vsel %vm457, %v417, 0
      %v474 = vsel %vm457, %v418, 0
      %v477 = vsel %vm457, %v419, 0
      %v480 = vsel %vm457, %v420, 0
      %v483 = vsel %vm457, %v421, 0
      %v486 = vsel %vm457, %v422, 0
      %v489 = vsel %vm457, %v423, 0
      %v492 = vsel %vm457, %v424, 0
      %v495 = vsel %vm457, %v425, 0
      %v498 = vsel %vm457, %v426, 0
      %v501 = vsel %vm457, %v427, 0
      %v504 = vsel %vm457, %v428, 0
      %v507 = vsel %vm457, %v429, 0
      %v510 = vsel %vm457, %v430, 0
      %v513 = vsel %vm457, %v431, 0
      %v516 = vsel %vm457, %v432, 0
      %v519 = vsel %vm457, %v433, 0
      %v522 = vsel %vm457, %v434, 0
      %v525 = vsel %vm457, %v435, 0
      %v528 = vsel %vm457, %v436, 0
      %v531 = vsel %vm457, %v437, 0
      %v534 = vsel %vm457, %v438, 0
      %v537 = vsel %vm457, %v439, 0
      %v540 = vsel %vm457, %v440, 0
      %v543 = vsel %vm457, %v441, 0
      %v546 = vsel %vm457, %v442, 0
      %v549 = vsel %vm457, %v443, 0
      %v552 = vsel %vm457, %v444, 0
      %554 = vmatpush.bf16.msra.mxu0 0
      %555 = vmatpush.bf16.msra.mxu0 0
      %556 = vmatpush.bf16.msra.mxu0 0
      %557 = vmatpush.bf16.msra.mxu0 0
      %558 = vmatpush.bf16.msra.mxu0 0
      %559 = vmatpush.bf16.msra.mxu0 0
      %560 = vmatpush.bf16.msra.mxu0 %v454
      %561 = vmatpush.bf16.msra.mxu0 %v453
      %562 = vmatmul.bf16.gmra.mxu0 %v459
      %v563 = vpop.f32.mrf.mxu0
      %v564 = vadd.f32 %v283, %v563
      %v565 = vpop.f32.mrf.mxu0
      %v566 = vadd.f32 %v283, %v565
      %567 = vmatmul.bf16.gmra.mxu0 %v462
      %v568 = vpop.f32.mrf.mxu0
      %v569 = vadd.f32 %v283, %v568
      %v570 = vpop.f32.mrf.mxu0
      %v571 = vadd.f32 %v283, %v570
      %572 = vmatmul.bf16.gmra.mxu0 %v465
      %v573 = vpop.f32.mrf.mxu0
      %v574 = vadd.f32 %v283, %v573
      %v575 = vpop.f32.mrf.mxu0
      %v576 = vadd.f32 %v283, %v575
      %577 = vmatmul.bf16.gmra.mxu0 %v468
      %v578 = vpop.f32.mrf.mxu0
      %v579 = vadd.f32 %v283, %v578
      %v580 = vpop.f32.mrf.mxu0
      %v581 = vadd.f32 %v283, %v580
      %582 = vmatmul.bf16.gmra.mxu0 %v471
      %v583 = vpop.f32.mrf.mxu0
      %v584 = vadd.f32 %v283, %v583
      %v585 = vpop.f32.mrf.mxu0
      %v586 = vadd.f32 %v283, %v585
      %587 = vmatmul.bf16.gmra.mxu0 %v474
      %v588 = vpop.f32.mrf.mxu0
      %v589 = vadd.f32 %v283, %v588
      %v590 = vpop.f32.mrf.mxu0
      %v591 = vadd.f32 %v283, %v590
      %592 = vmatmul.bf16.gmra.mxu0 %v477
      %v593 = vpop.f32.mrf.mxu0
      %v594 = vadd.f32 %v283, %v593
      %v595 = vpop.f32.mrf.mxu0
      %v596 = vadd.f32 %v283, %v595
      %597 = vmatmul.bf16.gmra.mxu0 %v480
      %v598 = vpop.f32.mrf.mxu0
      %v599 = vadd.f32 %v283, %v598
      %v600 = vpop.f32.mrf.mxu0
      %v601 = vadd.f32 %v283, %v600
      %602 = vmatmul.bf16.gmra.mxu0 %v483
      %v603 = vpop.f32.mrf.mxu0
      %v604 = vadd.f32 %v283, %v603
      %v605 = vpop.f32.mrf.mxu0
      %v606 = vadd.f32 %v283, %v605
      %607 = vmatmul.bf16.gmra.mxu0 %v486
      %v608 = vpop.f32.mrf.mxu0
      %v609 = vadd.f32 %v283, %v608
      %v610 = vpop.f32.mrf.mxu0
      %v611 = vadd.f32 %v283, %v610
      %612 = vmatmul.bf16.gmra.mxu0 %v489
      %v613 = vpop.f32.mrf.mxu0
      %v614 = vadd.f32 %v283, %v613
      %v615 = vpop.f32.mrf.mxu0
      %v616 = vadd.f32 %v283, %v615
      %617 = vmatmul.bf16.gmra.mxu0 %v492
      %v618 = vpop.f32.mrf.mxu0
      %v619 = vadd.f32 %v283, %v618
      %v620 = vpop.f32.mrf.mxu0
      %v621 = vadd.f32 %v283, %v620
      %622 = vmatmul.bf16.gmra.mxu0 %v495
      %v623 = vpop.f32.mrf.mxu0
      %v624 = vadd.f32 %v283, %v623
      %v625 = vpop.f32.mrf.mxu0
      %v626 = vadd.f32 %v283, %v625
      %627 = vmatmul.bf16.gmra.mxu0 %v498
      %v628 = vpop.f32.mrf.mxu0
      %v629 = vadd.f32 %v283, %v628
      %v630 = vpop.f32.mrf.mxu0
      %v631 = vadd.f32 %v283, %v630
      %632 = vmatmul.bf16.gmra.mxu0 %v501
      %v633 = vpop.f32.mrf.mxu0
      %v634 = vadd.f32 %v283, %v633
      %v635 = vpop.f32.mrf.mxu0
      %v636 = vadd.f32 %v283, %v635
      %637 = vmatmul.bf16.gmra.mxu0 %v504
      %v638 = vpop.f32.mrf.mxu0
      %v639 = vadd.f32 %v283, %v638
      %v640 = vpop.f32.mrf.mxu0
      %v641 = vadd.f32 %v283, %v640
      %642 = vmatmul.bf16.gmra.mxu0 %v507
      %v643 = vpop.f32.mrf.mxu0
      %v644 = vadd.f32 %v283, %v643
      %v645 = vpop.f32.mrf.mxu0
      %v646 = vadd.f32 %v283, %v645
      %647 = vmatmul.bf16.gmra.mxu0 %v510
      %v648 = vpop.f32.mrf.mxu0
      %v649 = vadd.f32 %v283, %v648
      %v650 = vpop.f32.mrf.mxu0
      %v651 = vadd.f32 %v283, %v650
      %652 = vmatmul.bf16.gmra.mxu0 %v513
      %v653 = vpop.f32.mrf.mxu0
      %v654 = vadd.f32 %v283, %v653
      %v655 = vpop.f32.mrf.mxu0
      %v656 = vadd.f32 %v283, %v655
      %657 = vmatmul.bf16.gmra.mxu0 %v516
      %v658 = vpop.f32.mrf.mxu0
      %v659 = vadd.f32 %v283, %v658
      %v660 = vpop.f32.mrf.mxu0
      %v661 = vadd.f32 %v283, %v660
      %662 = vmatmul.bf16.gmra.mxu0 %v519
      %v663 = vpop.f32.mrf.mxu0
      %v664 = vadd.f32 %v283, %v663
      %v665 = vpop.f32.mrf.mxu0
      %v666 = vadd.f32 %v283, %v665
      %667 = vmatmul.bf16.gmra.mxu0 %v522
      %v668 = vpop.f32.mrf.mxu0
      %v669 = vadd.f32 %v283, %v668
      %v670 = vpop.f32.mrf.mxu0
      %v671 = vadd.f32 %v283, %v670
      %672 = vmatmul.bf16.gmra.mxu0 %v525
      %v673 = vpop.f32.mrf.mxu0
      %v674 = vadd.f32 %v283, %v673
      %v675 = vpop.f32.mrf.mxu0
      %v676 = vadd.f32 %v283, %v675
      %677 = vmatmul.bf16.gmra.mxu0 %v528
      %v678 = vpop.f32.mrf.mxu0
      %v679 = vadd.f32 %v283, %v678
      %v680 = vpop.f32.mrf.mxu0
      %v681 = vadd.f32 %v283, %v680
      %682 = vmatmul.bf16.gmra.mxu0 %v531
      %v683 = vpop.f32.mrf.mxu0
      %v684 = vadd.f32 %v283, %v683
      %v685 = vpop.f32.mrf.mxu0
      %v686 = vadd.f32 %v283, %v685
      %687 = vmatmul.bf16.gmra.mxu0 %v534
      %v688 = vpop.f32.mrf.mxu0
      %v689 = vadd.f32 %v283, %v688
      %v690 = vpop.f32.mrf.mxu0
      %v691 = vadd.f32 %v283, %v690
      %692 = vmatmul.bf16.gmra.mxu0 %v537
      %v693 = vpop.f32.mrf.mxu0
      %v694 = vadd.f32 %v283, %v693
      %v695 = vpop.f32.mrf.mxu0
      %v696 = vadd.f32 %v283, %v695
      %697 = vmatmul.bf16.gmra.mxu0 %v540
      %v698 = vpop.f32.mrf.mxu0
      %v699 = vadd.f32 %v283, %v698
      %v700 = vpop.f32.mrf.mxu0
      %v701 = vadd.f32 %v283, %v700
      %702 = vmatmul.bf16.gmra.mxu0 %v543
      %v703 = vpop.f32.mrf.mxu0
      %v704 = vadd.f32 %v283, %v703
      %v705 = vpop.f32.mrf.mxu0
      %v706 = vadd.f32 %v283, %v705
      %707 = vmatmul.bf16.gmra.mxu0 %v546
      %v708 = vpop.f32.mrf.mxu0
      %v709 = vadd.f32 %v283, %v708
      %v710 = vpop.f32.mrf.mxu0
      %v711 = vadd.f32 %v283, %v710
      %712 = vmatmul.bf16.gmra.mxu0 %v549
      %v713 = vpop.f32.mrf.mxu0
      %v714 = vadd.f32 %v283, %v713
      %v715 = vpop.f32.mrf.mxu0
      %v716 = vadd.f32 %v283, %v715
      %717 = vmatmul.bf16.gmra.mxu0 %v552
      %v718 = vpop.f32.mrf.mxu0
      %v719 = vadd.f32 %v283, %v718
      %v720 = vpop.f32.mrf.mxu0
      %v721 = vadd.f32 %v283, %v720
      %722 = vdwg.mxu0
      %723 = vst [vmem:[%s206] sm:$0xff] %v564
      %724 = vst [vmem:[%s206 + $0x8] sm:$0xff] %v566
      %725 = vst [vmem:[%s206 + $0x10] sm:$0xff] %v569
      %726 = vst [vmem:[%s206 + $0x18] sm:$0xff] %v571
      %727 = vst [vmem:[%s206 + $0x20] sm:$0xff] %v574
      %728 = vst [vmem:[%s206 + $0x28] sm:$0xff] %v576
      %729 = vst [vmem:[%s206 + $0x30] sm:$0xff] %v579
      %730 = vst [vmem:[%s206 + $0x38] sm:$0xff] %v581
      %731 = vst [vmem:[%s206 + $0x40] sm:$0xff] %v584
      %732 = vst [vmem:[%s206 + $0x48] sm:$0xff] %v586
      %733 = vst [vmem:[%s206 + $0x50] sm:$0xff] %v589
      %734 = vst [vmem:[%s206 + $0x58] sm:$0xff] %v591
      %735 = vst [vmem:[%s206 + $0x60] sm:$0xff] %v594
      %736 = vst [vmem:[%s206 + $0x68] sm:$0xff] %v596
      %737 = vst [vmem:[%s206 + $0x70] sm:$0xff] %v599
      %738 = vst [vmem:[%s206 + $0x78] sm:$0xff] %v601
      %739 = vst [vmem:[%s206 + $0x80] sm:$0xff] %v604
      %740 = vst [vmem:[%s206 + $0x88] sm:$0xff] %v606
      %741 = vst [vmem:[%s206 + $0x90] sm:$0xff] %v609
      %742 = vst [vmem:[%s206 + $0x98] sm:$0xff] %v611
      %743 = vst [vmem:[%s206 + $0xa0] sm:$0xff] %v614
      %744 = vst [vmem:[%s206 + $0xa8] sm:$0xff] %v616
      %745 = vst [vmem:[%s206 + $0xb0] sm:$0xff] %v619
      %746 = vst [vmem:[%s206 + $0xb8] sm:$0xff] %v621
      %747 = vst [vmem:[%s206 + $0xc0] sm:$0xff] %v624
      %748 = vst [vmem:[%s206 + $0xc8] sm:$0xff] %v626
      %749 = vst [vmem:[%s206 + $0xd0] sm:$0xff] %v629
      %750 = vst [vmem:[%s206 + $0xd8] sm:$0xff] %v631
      %751 = vst [vmem:[%s206 + $0xe0] sm:$0xff] %v634
      %752 = vst [vmem:[%s206 + $0xe8] sm:$0xff] %v636
      %753 = vst [vmem:[%s206 + $0xf0] sm:$0xff] %v639
      %754 = vst [vmem:[%s206 + $0xf8] sm:$0xff] %v641
      %755 = vst [vmem:[%s206 + $0x100] sm:$0xff] %v644
      %756 = vst [vmem:[%s206 + $0x108] sm:$0xff] %v646
      %757 = vst [vmem:[%s206 + $0x110] sm:$0xff] %v649
      %758 = vst [vmem:[%s206 + $0x118] sm:$0xff] %v651
      %759 = vst [vmem:[%s206 + $0x120] sm:$0xff] %v654
      %760 = vst [vmem:[%s206 + $0x128] sm:$0xff] %v656
      %761 = vst [vmem:[%s206 + $0x130] sm:$0xff] %v659
      %762 = vst [vmem:[%s206 + $0x138] sm:$0xff] %v661
      %763 = vst [vmem:[%s206 + $0x140] sm:$0xff] %v664
      %764 = vst [vmem:[%s206 + $0x148] sm:$0xff] %v666
      %765 = vst [vmem:[%s206 + $0x150] sm:$0xff] %v669
      %766 = vst [vmem:[%s206 + $0x158] sm:$0xff] %v671
      %767 = vst [vmem:[%s206 + $0x160] sm:$0xff] %v674
      %768 = vst [vmem:[%s206 + $0x168] sm:$0xff] %v676
      %769 = vst [vmem:[%s206 + $0x170] sm:$0xff] %v679
      %770 = vst [vmem:[%s206 + $0x178] sm:$0xff] %v681
      %771 = vst [vmem:[%s206 + $0x180] sm:$0xff] %v684
      %772 = vst [vmem:[%s206 + $0x188] sm:$0xff] %v686
      %773 = vst [vmem:[%s206 + $0x190] sm:$0xff] %v689
      %774 = vst [vmem:[%s206 + $0x198] sm:$0xff] %v691
      %775 = vst [vmem:[%s206 + $0x1a0] sm:$0xff] %v694
      %776 = vst [vmem:[%s206 + $0x1a8] sm:$0xff] %v696
      %777 = vst [vmem:[%s206 + $0x1b0] sm:$0xff] %v699
      %778 = vst [vmem:[%s206 + $0x1b8] sm:$0xff] %v701
      %779 = vst [vmem:[%s206 + $0x1c0] sm:$0xff] %v704
      %780 = vst [vmem:[%s206 + $0x1c8] sm:$0xff] %v706
      %781 = vst [vmem:[%s206 + $0x1d0] sm:$0xff] %v709
      %782 = vst [vmem:[%s206 + $0x1d8] sm:$0xff] %v711
      %783 = vst [vmem:[%s206 + $0x1e0] sm:$0xff] %v714
      %784 = vst [vmem:[%s206 + $0x1e8] sm:$0xff] %v716
      %785 = vst [vmem:[%s206 + $0x1f0] sm:$0xff] %v719
      %786 = vst [vmem:[%s206 + $0x1f8] sm:$0xff] %v721
      %v787 = vadd.f32 %v564, %v566
      %v788 = vadd.f32 %v787, %v569
      %v789 = vadd.f32 %v788, %v571
      %v790 = vadd.f32 %v789, %v574
      %v791 = vadd.f32 %v790, %v576
      %v792 = vadd.f32 %v791, %v579
      %v793 = vadd.f32 %v792, %v581
      %v794 = vadd.f32 %v793, %v584
      %v795 = vadd.f32 %v794, %v586
      %v796 = vadd.f32 %v795, %v589
      %v797 = vadd.f32 %v796, %v591
      %v798 = vadd.f32 %v797, %v594
      %v799 = vadd.f32 %v798, %v596
      %v800 = vadd.f32 %v799, %v599
      %v801 = vadd.f32 %v800, %v601
      %v802 = vadd.f32 %v801, %v604
      %v803 = vadd.f32 %v802, %v606
      %v804 = vadd.f32 %v803, %v609
      %v805 = vadd.f32 %v804, %v611
      %v806 = vadd.f32 %v805, %v614
      %v807 = vadd.f32 %v806, %v616
      %v808 = vadd.f32 %v807, %v619
      %v809 = vadd.f32 %v808, %v621
      %v810 = vadd.f32 %v809, %v624
      %v811 = vadd.f32 %v810, %v626
      %v812 = vadd.f32 %v811, %v629
      %v813 = vadd.f32 %v812, %v631
      %v814 = vadd.f32 %v813, %v634
      %v815 = vadd.f32 %v814, %v636
      %v816 = vadd.f32 %v815, %v639
      %v817 = vadd.f32 %v816, %v641
      %v818 = vadd.f32 %v817, %v644
      %v819 = vadd.f32 %v818, %v646
      %v820 = vadd.f32 %v819, %v649
      %v821 = vadd.f32 %v820, %v651
      %v822 = vadd.f32 %v821, %v654
      %v823 = vadd.f32 %v822, %v656
      %v824 = vadd.f32 %v823, %v659
      %v825 = vadd.f32 %v824, %v661
      %v826 = vadd.f32 %v825, %v664
      %v827 = vadd.f32 %v826, %v666
      %v828 = vadd.f32 %v827, %v669
      %v829 = vadd.f32 %v828, %v671
      %v830 = vadd.f32 %v829, %v674
      %v831 = vadd.f32 %v830, %v676
      %v832 = vadd.f32 %v831, %v679
      %v833 = vadd.f32 %v832, %v681
      %v834 = vadd.f32 %v833, %v684
      %v835 = vadd.f32 %v834, %v686
      %v836 = vadd.f32 %v835, %v689
      %v837 = vadd.f32 %v836, %v691
      %v838 = vadd.f32 %v837, %v694
      %v839 = vadd.f32 %v838, %v696
      %v840 = vadd.f32 %v839, %v699
      %v841 = vadd.f32 %v840, %v701
      %v842 = vadd.f32 %v841, %v704
      %v843 = vadd.f32 %v842, %v706
      %v844 = vadd.f32 %v843, %v709
      %v845 = vadd.f32 %v844, %v711
      %v846 = vadd.f32 %v845, %v714
      %v847 = vadd.f32 %v846, %v716
      %v848 = vadd.f32 %v847, %v719
      %v849 = vadd.f32 %v848, %v721
      %v850 = vrot.slane %v849, 4
      %v851 = vadd.f32 %v849, %v850
      %v852 = vrot.slane %v851, 2
      %v853 = vadd.f32 %v851, %v852
      %v854 = vrot.slane %v853, 1
      %v855 = vadd.f32 %v853, %v854
      %v856 = vmul.f32 %v564, %v564
      %v857 = vmul.f32 %v566, %v566
      %v858 = vmul.f32 %v569, %v569
      %v859 = vmul.f32 %v571, %v571
      %v860 = vmul.f32 %v574, %v574
      %v861 = vmul.f32 %v576, %v576
      %v862 = vmul.f32 %v579, %v579
      %v863 = vmul.f32 %v581, %v581
      %v864 = vmul.f32 %v584, %v584
      %v865 = vmul.f32 %v586, %v586
      %v866 = vmul.f32 %v589, %v589
      %v867 = vmul.f32 %v591, %v591
      %v868 = vmul.f32 %v594, %v594
      %v869 = vmul.f32 %v596, %v596
      %v870 = vmul.f32 %v599, %v599
      %v871 = vmul.f32 %v601, %v601
      %v872 = vmul.f32 %v604, %v604
      %v873 = vmul.f32 %v606, %v606
      %v874 = vmul.f32 %v609, %v609
      %v875 = vmul.f32 %v611, %v611
      %v876 = vmul.f32 %v614, %v614
      %v877 = vmul.f32 %v616, %v616
      %v878 = vmul.f32 %v619, %v619
      %v879 = vmul.f32 %v621, %v621
      %v880 = vmul.f32 %v624, %v624
      %v881 = vmul.f32 %v626, %v626
      %v882 = vmul.f32 %v629, %v629
      %v883 = vmul.f32 %v631, %v631
      %v884 = vmul.f32 %v634, %v634
      %v885 = vmul.f32 %v636, %v636
      %v886 = vmul.f32 %v639, %v639
      %v887 = vmul.f32 %v641, %v641
      %v888 = vmul.f32 %v644, %v644
      %v889 = vmul.f32 %v646, %v646
      %v890 = vmul.f32 %v649, %v649
      %v891 = vmul.f32 %v651, %v651
      %v892 = vmul.f32 %v654, %v654
      %v893 = vmul.f32 %v656, %v656
      %v894 = vmul.f32 %v659, %v659
      %v895 = vmul.f32 %v661, %v661
      %v896 = vmul.f32 %v664, %v664
      %v897 = vmul.f32 %v666, %v666
      %v898 = vmul.f32 %v669, %v669
      %v899 = vmul.f32 %v671, %v671
      %v900 = vmul.f32 %v674, %v674
      %v901 = vmul.f32 %v676, %v676
      %v902 = vmul.f32 %v679, %v679
      %v903 = vmul.f32 %v681, %v681
      %v904 = vmul.f32 %v684, %v684
      %v905 = vmul.f32 %v686, %v686
      %v906 = vmul.f32 %v689, %v689
      %v907 = vmul.f32 %v691, %v691
      %v908 = vmul.f32 %v694, %v694
      %v909 = vmul.f32 %v696, %v696
      %v910 = vmul.f32 %v699, %v699
      %v911 = vmul.f32 %v701, %v701
      %v912 = vmul.f32 %v704, %v704
      %v913 = vmul.f32 %v706, %v706
      %v914 = vmul.f32 %v709, %v709
      %v915 = vmul.f32 %v711, %v711
      %v916 = vmul.f32 %v714, %v714
      %v917 = vmul.f32 %v716, %v716
      %v918 = vmul.f32 %v719, %v719
      %v919 = vmul.f32 %v721, %v721
      %v920 = vadd.f32 %v856, %v857
      %v921 = vadd.f32 %v920, %v858
      %v922 = vadd.f32 %v921, %v859
      %v923 = vadd.f32 %v922, %v860
      %v924 = vadd.f32 %v923, %v861
      %v925 = vadd.f32 %v924, %v862
      %v926 = vadd.f32 %v925, %v863
      %v927 = vadd.f32 %v926, %v864
      %v928 = vadd.f32 %v927, %v865
      %v929 = vadd.f32 %v928, %v866
      %v930 = vadd.f32 %v929, %v867
      %v931 = vadd.f32 %v930, %v868
      %v932 = vadd.f32 %v931, %v869
      %v933 = vadd.f32 %v932, %v870
      %v934 = vadd.f32 %v933, %v871
      %v935 = vadd.f32 %v934, %v872
      %v936 = vadd.f32 %v935, %v873
      %v937 = vadd.f32 %v936, %v874
      %v938 = vadd.f32 %v937, %v875
      %v939 = vadd.f32 %v938, %v876
      %v940 = vadd.f32 %v939, %v877
      %v941 = vadd.f32 %v940, %v878
      %v942 = vadd.f32 %v941, %v879
      %v943 = vadd.f32 %v942, %v880
      %v944 = vadd.f32 %v943, %v881
      %v945 = vadd.f32 %v944, %v882
      %v946 = vadd.f32 %v945, %v883
      %v947 = vadd.f32 %v946, %v884
      %v948 = vadd.f32 %v947, %v885
      %v949 = vadd.f32 %v948, %v886
      %v950 = vadd.f32 %v949, %v887
      %v951 = vadd.f32 %v950, %v888
      %v952 = vadd.f32 %v951, %v889
      %v953 = vadd.f32 %v952, %v890
      %v954 = vadd.f32 %v953, %v891
      %v955 = vadd.f32 %v954, %v892
      %v956 = vadd.f32 %v955, %v893
      %v957 = vadd.f32 %v956, %v894
      %v958 = vadd.f32 %v957, %v895
      %v959 = vadd.f32 %v958, %v896
      %v960 = vadd.f32 %v959, %v897
      %v961 = vadd.f32 %v960, %v898
      %v962 = vadd.f32 %v961, %v899
      %v963 = vadd.f32 %v962, %v900
      %v964 = vadd.f32 %v963, %v901
      %v965 = vadd.f32 %v964, %v902
      %v966 = vadd.f32 %v965, %v903
      %v967 = vadd.f32 %v966, %v904
      %v968 = vadd.f32 %v967, %v905
      %v969 = vadd.f32 %v968, %v906
      %v970 = vadd.f32 %v969, %v907
      %v971 = vadd.f32 %v970, %v908
      %v972 = vadd.f32 %v971, %v909
      %v973 = vadd.f32 %v972, %v910
      %v974 = vadd.f32 %v973, %v911
      %v975 = vadd.f32 %v974, %v912
      %v976 = vadd.f32 %v975, %v913
      %v977 = vadd.f32 %v976, %v914
      %v978 = vadd.f32 %v977, %v915
      %v979 = vadd.f32 %v978, %v916
      %v980 = vadd.f32 %v979, %v917
      %v981 = vadd.f32 %v980, %v918
      %v982 = vadd.f32 %v981, %v919
      %v983 = vrot.slane %v982, 4
      %v984 = vadd.f32 %v982, %v983
      %v985 = vrot.slane %v984, 2
      %v986 = vadd.f32 %v984, %v985
      %v987 = vrot.slane %v986, 1
      %v988 = vadd.f32 %v986, %v987
      %vm989 = vcmask 1040384
      %v990 = vsel %vm989, %v855, %v988
      %991 = vst [vmem:[%s211] sm:$0x3] %v990
      %s992 = smul.u32 64, %s16
      %p993 = scmp.lt.s32.totalorder %s992, 127
      %s994 = scalar_select %p993, %s992, 127
      %s995 = smul.addr %s994, 8
      %s996 = scalar_lea.vmem %s3, %s995
      %p997 = scmp.lt.s32.totalorder %s16, 1
      %s998 = scalar_select %p997, %s16, 1
      %s999 = smul.addr %s998, 2
      %s1000 = scalar_lea.vmem %s4, %s999
      // Predicated region
      $region33: #{_lambda_.4} parent=31 // pred_check
        %p1001 = pneg %p102
      $region34: #{_lambda_.4} parent=31 // pred_check_branch
        %1003 = sbr.rel (%p1001) target = $region36
      $region35: #{_lambda_.4} parent=31 // pred_region
        %s1004 = smul.u32 64, %s16
      $region36: #{_lambda_.4} parent=31 // pred_fallthru
        _
      // Predicated region
      $region37: #{_lambda_.4} parent=31 // pred_check
        %p1005 = pneg %p128
      $region38: #{_lambda_.4} parent=31 // pred_check_branch
        %1007 = sbr.rel (%p1005) target = $region40
      $region39: #{_lambda_.4} parent=31 // pred_region
        _
      $region40: #{_lambda_.4} parent=31 // pred_fallthru
        _
    $region32: #{_lambda_.4} parent=5 // pred_fallthru
      _
    %p1008 = scmp.le.s32.totalorder 2, %s11
    // Predicated region
    $region41: #{_lambda_.4} parent=5 // pred_check
      %p1009 = pneg %p1008
    $region42: #{_lambda_.4} parent=5 // pred_check_branch
      %1011 = sbr.rel (%p1009) target = $region44
    $region43: #{_lambda_.4} parent=5 // pred_region
      %s1012 = ssub.s32 %s11, 2
      // Predicated region
      $region45: #{_lambda_.4} parent=43 // pred_check
        %p1013 = pneg %p108
      $region46: #{_lambda_.4} parent=43 // pred_check_branch
        %1015 = sbr.rel (%p1013) target = $region48
      $region47: #{_lambda_.4} parent=43 // pred_region
        %s1016 = smul.u32 64, %s17
        %p1017 = scmp.lt.s32.totalorder %s1016, 127
        %s1018 = scalar_select %p1017, %s1016, 127
        %s1019 = smul.addr %s1018, 8
        %s1020 = scalar_lea.vmem %s3, %s1019
      $region48: #{_lambda_.4} parent=43 // pred_fallthru
        _
      // Predicated region
      $region49: #{_lambda_.4} parent=43 // pred_check
        %p1021 = pneg %p134
      $region50: #{_lambda_.4} parent=43 // pred_check_branch
        %1023 = sbr.rel (%p1021) target = $region52
      $region51: #{_lambda_.4} parent=43 // pred_region
        %p1024 = scmp.lt.s32.totalorder %s17, 1
        %s1025 = scalar_select %p1024, %s17, 1
        %s1026 = smul.addr %s1025, 2
        %s1027 = scalar_lea.vmem %s4, %s1026
      $region52: #{_lambda_.4} parent=43 // pred_fallthru
        _
    $region44: #{_lambda_.4} parent=5 // pred_fallthru
      _
  $region6: #{_lambda_.4} parent=0 // loop_footer
    %s15 = sadd.s32 1, %s11
  $region7: #{_lambda_.4} parent=0 // loop_footer_branch
    %10 = sbr.rel target = $region3
  $region8: #{_lambda_.4} parent=0 // loop_exit
    _

// kernel: _lambda_.7
$region0: #{_lambda_.7}
  #allocation0 [shape = 'u32[]', space=smem, size = 0x4, offset = 0x4, fixed_abs, tag = 'smem constant byte address 0x4 - core index']
  #allocation1 [shape = 'u32[72,128]{1,0:T(1,128)}', space=vmem, size = 0x9000, scoped, tag = 'internal scratch']
  %s0 = inlined_call_operand.vmem [shape: f32[1024,128], index: 0, kind: input, shape index: {}]
  %s1 = inlined_call_operand.vmem [shape: f32[1,128], index: 1, kind: input, shape index: {}]
  %s2 = inlined_call_operand.vmem [shape: f32[1,128], index: 2, kind: input, shape index: {}]
  %s3 = inlined_call_operand.vmem [shape: f32[1024,128], index: 3, kind: input, shape index: {}]
  %s4 = inlined_call_operand.vmem [shape: f32[1024,128], index: 4, kind: output, shape index: {}]
  %s5 = sld [smem:[#allocation0]]
  $region49: #{_lambda_.7} parent=0
    _
  %s7 = ssub.s32 1, %s5
  %s8 = scalar_select 0, %s7, %s5
  loop: start=0, step=1, limit=4
  $region2: #{_lambda_.7} parent=0 // loop_pre_header
    _
  $region3: #{_lambda_.7} parent=0 // loop_header
    %s10 = sphi 0, %s14
    %p11 = scmp.ge.s32.totalorder %s10, 4
    %s20 = sphi 0, %s22
    %s23 = sphi 0, %s20
    %s24 = sphi 0, %s23
    %s40 = sphi 0, %s24
    %s44 = sphi 0, %s44
    %s46 = sphi 0, %s44
    %s47 = sphi 0, %s46
    %s61 = sphi 0, %s47
    %s65 = sphi 0, %s65
    %s67 = sphi 0, %s65
    %s68 = sphi 0, %s67
    %s82 = sphi 0, %s68
    %s88 = sphi 0, %s90
    %s91 = sphi 0, %s88
    %s92 = sphi 0, %s91
    %s108 = sphi 0, %s92
    %s114 = sphi 0, %s116
    %s117 = sphi 0, %s114
    %s118 = sphi 0, %s117
    %s134 = sphi 0, %s118
  $region4: #{_lambda_.7} parent=0 // loop_header_branch
    %13 = sbr.rel (%p11) target = $region8
  $region5: #{_lambda_.7} parent=0 // loop_body
    %s15 = ssub.s32 %s10, 1
    %s16 = ssub.s32 %s10, 2
    %s17 = sadd.s32 %s10, 1
    %s18 = ssub.s32 %s10, %s17
    %p19 = scmp.eq.s32.totalorder %s18, 0
    %s21 = sadd.s32 %s20, 1
    %s22 = scalar_select %p19, %s20, %s21
    %p25 = pneg %p19
    %p26 = scmp.eq.s32.totalorder %s10, 1
    %p27 = por %p25, %p26
    %p28 = scmp.ne.s32.totalorder %s20, %s23
    %p29 = scmp.eq.s32.totalorder %s10, 0
    %p30 = por %p28, %p29
    %p31 = scmp.ne.s32.totalorder %s20, %s23
    %p32 = scmp.eq.s32.totalorder %s15, 1
    %p33 = por %p31, %p32
    %p34 = scmp.ne.s32.totalorder %s23, %s24
    %p35 = scmp.eq.s32.totalorder %s15, 0
    %p36 = por %p34, %p35
    %p37 = scmp.ne.s32.totalorder %s23, %s24
    %p38 = scmp.eq.s32.totalorder %s16, 1
    %p39 = por %p37, %p38
    %p41 = scmp.ne.s32.totalorder %s24, %s40
    %p42 = scmp.eq.s32.totalorder %s16, 0
    %p43 = por %p41, %p42
    %s45 = sadd.s32 %s44, 1
    %p48 = scmp.eq.s32.totalorder %s10, 1
    %p49 = scmp.ne.s32.totalorder %s44, %s46
    %p50 = scmp.eq.s32.totalorder %s10, 0
    %p51 = por %p49, %p50
    %p52 = scmp.ne.s32.totalorder %s44, %s46
    %p53 = scmp.eq.s32.totalorder %s15, 1
    %p54 = por %p52, %p53
    %p55 = scmp.ne.s32.totalorder %s46, %s47
    %p56 = scmp.eq.s32.totalorder %s15, 0
    %p57 = por %p55, %p56
    %p58 = scmp.ne.s32.totalorder %s46, %s47
    %p59 = scmp.eq.s32.totalorder %s16, 1
    %p60 = por %p58, %p59
    %p62 = scmp.ne.s32.totalorder %s47, %s61
    %p63 = scmp.eq.s32.totalorder %s16, 0
    %p64 = por %p62, %p63
    %s66 = sadd.s32 %s65, 1
    %p69 = scmp.eq.s32.totalorder %s10, 1
    %p70 = scmp.ne.s32.totalorder %s65, %s67
    %p71 = scmp.eq.s32.totalorder %s10, 0
    %p72 = por %p70, %p71
    %p73 = scmp.ne.s32.totalorder %s65, %s67
    %p74 = scmp.eq.s32.totalorder %s15, 1
    %p75 = por %p73, %p74
    %p76 = scmp.ne.s32.totalorder %s67, %s68
    %p77 = scmp.eq.s32.totalorder %s15, 0
    %p78 = por %p76, %p77
    %p79 = scmp.ne.s32.totalorder %s67, %s68
    %p80 = scmp.eq.s32.totalorder %s16, 1
    %p81 = por %p79, %p80
    %p83 = scmp.ne.s32.totalorder %s68, %s82
    %p84 = scmp.eq.s32.totalorder %s16, 0
    %p85 = por %p83, %p84
    %s86 = ssub.s32 %s10, %s17
    %p87 = scmp.eq.s32.totalorder %s86, 0
    %s89 = sadd.s32 %s88, 1
    %s90 = scalar_select %p87, %s88, %s89
    %p93 = pneg %p87
    %p94 = scmp.eq.s32.totalorder %s10, 1
    %p95 = por %p93, %p94
    %p96 = scmp.ne.s32.totalorder %s88, %s91
    %p97 = scmp.eq.s32.totalorder %s10, 0
    %p98 = por %p96, %p97
    %p99 = scmp.ne.s32.totalorder %s88, %s91
    %p100 = scmp.eq.s32.totalorder %s15, 1
    %p101 = por %p99, %p100
    %p102 = scmp.ne.s32.totalorder %s91, %s92
    %p103 = scmp.eq.s32.totalorder %s15, 0
    %p104 = por %p102, %p103
    %p105 = scmp.ne.s32.totalorder %s91, %s92
    %p106 = scmp.eq.s32.totalorder %s16, 1
    %p107 = por %p105, %p106
    %p109 = scmp.ne.s32.totalorder %s92, %s108
    %p110 = scmp.eq.s32.totalorder %s16, 0
    %p111 = por %p109, %p110
    %s112 = ssub.s32 %s10, %s17
    %p113 = scmp.eq.s32.totalorder %s112, 0
    %s115 = sadd.s32 %s114, 1
    %s116 = scalar_select %p113, %s114, %s115
    %p119 = pneg %p113
    %p120 = scmp.eq.s32.totalorder %s10, 1
    %p121 = por %p119, %p120
    %p122 = scmp.ne.s32.totalorder %s114, %s117
    %p123 = scmp.eq.s32.totalorder %s10, 0
    %p124 = por %p122, %p123
    %p125 = scmp.ne.s32.totalorder %s114, %s117
    %p126 = scmp.eq.s32.totalorder %s15, 1
    %p127 = por %p125, %p126
    %p128 = scmp.ne.s32.totalorder %s117, %s118
    %p129 = scmp.eq.s32.totalorder %s15, 0
    %p130 = por %p128, %p129
    %p131 = scmp.ne.s32.totalorder %s117, %s118
    %p132 = scmp.eq.s32.totalorder %s16, 1
    %p133 = por %p131, %p132
    %p135 = scmp.ne.s32.totalorder %s118, %s134
    %p136 = scmp.eq.s32.totalorder %s16, 0
    %p137 = por %p135, %p136
    %p138 = scmp.le.s32.totalorder 1, %s10
    %p139 = scmp.lt.s32.totalorder %s10, 3
    %p140 = pnand %p138, %p139
    %p141 = pneg %p140
    // Predicated region
    $region9: #{_lambda_.7} parent=5 // pred_check
      _
    $region10: #{_lambda_.7} parent=5 // pred_check_branch
      %143 = sbr.rel (%p140) target = $region12
    $region11: #{_lambda_.7} parent=5 // pred_region
      %s144 = ssub.s32 %s10, 1
      // Predicated region
      $region13: #{_lambda_.7} parent=11 // pred_check
        %p145 = pneg %p57
      $region14: #{_lambda_.7} parent=11 // pred_check_branch
        %147 = sbr.rel (%p145) target = $region16
      $region15: #{_lambda_.7} parent=11 // pred_region
        _
      $region16: #{_lambda_.7} parent=11 // pred_fallthru
        _
      // Predicated region
      $region17: #{_lambda_.7} parent=11 // pred_check
        %p148 = pneg %p78
      $region18: #{_lambda_.7} parent=11 // pred_check_branch
        %150 = sbr.rel (%p148) target = $region20
      $region19: #{_lambda_.7} parent=11 // pred_region
        _
      $region20: #{_lambda_.7} parent=11 // pred_fallthru
        _
    $region12: #{_lambda_.7} parent=5 // pred_fallthru
      _
    %p151 = scmp.lt.s32.totalorder %s10, 2
    // Predicated region
    $region21: #{_lambda_.7} parent=5 // pred_check
      %p152 = pneg %p151
    $region22: #{_lambda_.7} parent=5 // pred_check_branch
      %154 = sbr.rel (%p152) target = $region24
    $region23: #{_lambda_.7} parent=5 // pred_region
      // Predicated region
      $region25: #{_lambda_.7} parent=23 // pred_check
        %p155 = pneg %p30
      $region26: #{_lambda_.7} parent=23 // pred_check_branch
        %157 = sbr.rel (%p155) target = $region28
      $region27: #{_lambda_.7} parent=23 // pred_region
        %s158 = smul.u32 64, %s10
        %p159 = scmp.lt.s32.totalorder %s158, 127
        %s160 = scalar_select %p159, %s158, 127
        %s161 = smul.addr %s160, 8
        %s162 = scalar_lea.vmem %s0, %s161
        %s163 = smul.u32 64, %s10
      $region28: #{_lambda_.7} parent=23 // pred_fallthru
        _
      // Predicated region
      $region29: #{_lambda_.7} parent=23 // pred_check
        %p164 = pneg %p98
      $region30: #{_lambda_.7} parent=23 // pred_check_branch
        %166 = sbr.rel (%p164) target = $region32
      $region31: #{_lambda_.7} parent=23 // pred_region
        %s167 = smul.u32 64, %s10
        %p168 = scmp.lt.s32.totalorder %s167, 127
        %s169 = scalar_select %p168, %s167, 127
        %s170 = smul.addr %s169, 8
        %s171 = scalar_lea.vmem %s3, %s170
        %s172 = smul.u32 64, %s10
      $region32: #{_lambda_.7} parent=23 // pred_fallthru
        _
    $region24: #{_lambda_.7} parent=5 // pred_fallthru
      _
    %p173 = scmp.le.s32.totalorder 1, %s10
    %p174 = scmp.lt.s32.totalorder %s10, 3
    %p175 = pnand %p173, %p174
    %p176 = pneg %p175
    // Predicated region
    $region33: #{_lambda_.7} parent=5 // pred_check
      _
    $region34: #{_lambda_.7} parent=5 // pred_check_branch
      %178 = sbr.rel (%p175) target = $region36
    $region35: #{_lambda_.7} parent=5 // pred_region
      %s179 = ssub.s32 %s10, 1
      %s180 = smul.u32 64, %s15
      %p181 = scmp.lt.s32.totalorder %s180, 127
      %s182 = scalar_select %p181, %s180, 127
      %s183 = smul.addr %s182, 8
      %s184 = scalar_lea.vmem %s0, %s183
      %p185 = pneg %p36
      %p186 = pneg %p33
      %p187 = pneg %p57
      %p188 = pneg %p54
      %p189 = pneg %p78
      %p190 = pneg %p75
      %s191 = smul.u32 64, %s15
      %p192 = scmp.lt.s32.totalorder %s191, 127
      %s193 = scalar_select %p192, %s191, 127
      %s194 = smul.addr %s193, 8
      %s195 = scalar_lea.vmem %s3, %s194
      %p196 = pneg %p104
      %p197 = pneg %p101
      %p198 = pneg %p130
      %p199 = pneg %p127
      %s200 = smul.u32 64, %s15
      %p201 = scmp.lt.s32.totalorder %s200, 127
      %s202 = scalar_select %p201, %s200, 127
      %s203 = smul.addr %s202, 8
      %s204 = scalar_lea.vmem %s4, %s203
      %s205 = smul.u32 64, %s15
      %p206 = scmp.lt.s32.totalorder %s205, 127
      %s207 = scalar_select %p206, %s205, 127
      %s208 = smul.addr %s207, 8
      %s209 = scalar_lea.vmem %s0, %s208
      %s210 = smul.u32 64, %s15
      %s211 = smul.u32 64, %s15
      %p212 = scmp.lt.s32.totalorder %s211, 127
      %s213 = scalar_select %p212, %s211, 127
      %s214 = smul.addr %s213, 8
      %s215 = scalar_lea.vmem %s3, %s214
      %s216 = smul.u32 64, %s15
      %s217 = smul.u32 64, %s15
      %p218 = scmp.lt.s32.totalorder %s217, 127
      %s219 = scalar_select %p218, %s217, 127
      %s220 = smul.addr %s219, 8
      %s221 = scalar_lea.vmem %s4, %s220
      %s222 = smul.u32 64, %s15
      %v223 = vld [vmem:[%s209] sm:$0xff]
      %v224 = vld [vmem:[%s209 + $0x8] sm:$0xff]
      %v225 = vld [vmem:[%s209 + $0x10] sm:$0xff]
      %v226 = vld [vmem:[%s209 + $0x18] sm:$0xff]
      %v227 = vld [vmem:[%s209 + $0x20] sm:$0xff]
      %v228 = vld [vmem:[%s209 + $0x28] sm:$0xff]
      %v229 = vld [vmem:[%s209 + $0x30] sm:$0xff]
      %v230 = vld [vmem:[%s209 + $0x38] sm:$0xff]
      %v231 = vld [vmem:[%s209 + $0x40] sm:$0xff]
      %v232 = vld [vmem:[%s209 + $0x48] sm:$0xff]
      %v233 = vld [vmem:[%s209 + $0x50] sm:$0xff]
      %v234 = vld [vmem:[%s209 + $0x58] sm:$0xff]
      %v235 = vld [vmem:[%s209 + $0x60] sm:$0xff]
      %v236 = vld [vmem:[%s209 + $0x68] sm:$0xff]
      %v237 = vld [vmem:[%s209 + $0x70] sm:$0xff]
      %v238 = vld [vmem:[%s209 + $0x78] sm:$0xff]
      %v239 = vld [vmem:[%s209 + $0x80] sm:$0xff]
      %v240 = vld [vmem:[%s209 + $0x88] sm:$0xff]
      %v241 = vld [vmem:[%s209 + $0x90] sm:$0xff]
      %v242 = vld [vmem:[%s209 + $0x98] sm:$0xff]
      %v243 = vld [vmem:[%s209 + $0xa0] sm:$0xff]
      %v244 = vld [vmem:[%s209 + $0xa8] sm:$0xff]
      %v245 = vld [vmem:[%s209 + $0xb0] sm:$0xff]
      %v246 = vld [vmem:[%s209 + $0xb8] sm:$0xff]
      %v247 = vld [vmem:[%s209 + $0xc0] sm:$0xff]
      %v248 = vld [vmem:[%s209 + $0xc8] sm:$0xff]
      %v249 = vld [vmem:[%s209 + $0xd0] sm:$0xff]
      %v250 = vld [vmem:[%s209 + $0xd8] sm:$0xff]
      %v251 = vld [vmem:[%s209 + $0xe0] sm:$0xff]
      %v252 = vld [vmem:[%s209 + $0xe8] sm:$0xff]
      %v253 = vld [vmem:[%s209 + $0xf0] sm:$0xff]
      %v254 = vld [vmem:[%s209 + $0xf8] sm:$0xff]
      %v255 = vld [vmem:[%s209 + $0x100] sm:$0xff]
      %v256 = vld [vmem:[%s209 + $0x108] sm:$0xff]
      %v257 = vld [vmem:[%s209 + $0x110] sm:$0xff]
      %v258 = vld [vmem:[%s209 + $0x118] sm:$0xff]
      %v259 = vld [vmem:[%s209 + $0x120] sm:$0xff]
      %v260 = vld [vmem:[%s209 + $0x128] sm:$0xff]
      %v261 = vld [vmem:[%s209 + $0x130] sm:$0xff]
      %v262 = vld [vmem:[%s209 + $0x138] sm:$0xff]
      %v263 = vld [vmem:[%s209 + $0x140] sm:$0xff]
      %v264 = vld [vmem:[%s209 + $0x148] sm:$0xff]
      %v265 = vld [vmem:[%s209 + $0x150] sm:$0xff]
      %v266 = vld [vmem:[%s209 + $0x158] sm:$0xff]
      %v267 = vld [vmem:[%s209 + $0x160] sm:$0xff]
      %v268 = vld [vmem:[%s209 + $0x168] sm:$0xff]
      %v269 = vld [vmem:[%s209 + $0x170] sm:$0xff]
      %v270 = vld [vmem:[%s209 + $0x178] sm:$0xff]
      %v271 = vld [vmem:[%s209 + $0x180] sm:$0xff]
      %v272 = vld [vmem:[%s209 + $0x188] sm:$0xff]
      %v273 = vld [vmem:[%s209 + $0x190] sm:$0xff]
      %v274 = vld [vmem:[%s209 + $0x198] sm:$0xff]
      %v275 = vld [vmem:[%s209 + $0x1a0] sm:$0xff]
      %v276 = vld [vmem:[%s209 + $0x1a8] sm:$0xff]
      %v277 = vld [vmem:[%s209 + $0x1b0] sm:$0xff]
      %v278 = vld [vmem:[%s209 + $0x1b8] sm:$0xff]
      %v279 = vld [vmem:[%s209 + $0x1c0] sm:$0xff]
      %v280 = vld [vmem:[%s209 + $0x1c8] sm:$0xff]
      %v281 = vld [vmem:[%s209 + $0x1d0] sm:$0xff]
      %v282 = vld [vmem:[%s209 + $0x1d8] sm:$0xff]
      %v283 = vld [vmem:[%s209 + $0x1e0] sm:$0xff]
      %v284 = vld [vmem:[%s209 + $0x1e8] sm:$0xff]
      %v285 = vld [vmem:[%s209 + $0x1f0] sm:$0xff]
      %v286 = vld [vmem:[%s209 + $0x1f8] sm:$0xff]
      %v287 = vld [vmem:[%s1] sm:$0x1]
      %v289 = vperm.slane %v287, 0
      %v291 = vmul.f32 %v223, %v289
      %v292 = vmul.f32 %v224, %v289
      %v293 = vmul.f32 %v225, %v289
      %v294 = vmul.f32 %v226, %v289
      %v295 = vmul.f32 %v227, %v289
      %v296 = vmul.f32 %v228, %v289
      %v297 = vmul.f32 %v229, %v289
      %v298 = vmul.f32 %v230, %v289
      %v299 = vmul.f32 %v231, %v289
      %v300 = vmul.f32 %v232, %v289
      %v301 = vmul.f32 %v233, %v289
      %v302 = vmul.f32 %v234, %v289
      %v303 = vmul.f32 %v235, %v289
      %v304 = vmul.f32 %v236, %v289
      %v305 = vmul.f32 %v237, %v289
      %v306 = vmul.f32 %v238, %v289
      %v307 = vmul.f32 %v239, %v289
      %v308 = vmul.f32 %v240, %v289
      %v309 = vmul.f32 %v241, %v289
      %v310 = vmul.f32 %v242, %v289
      %v311 = vmul.f32 %v243, %v289
      %v312 = vmul.f32 %v244, %v289
      %v313 = vmul.f32 %v245, %v289
      %v314 = vmul.f32 %v246, %v289
      %v315 = vmul.f32 %v247, %v289
      %v316 = vmul.f32 %v248, %v289
      %v317 = vmul.f32 %v249, %v289
      %v318 = vmul.f32 %v250, %v289
      %v319 = vmul.f32 %v251, %v289
      %v320 = vmul.f32 %v252, %v289
      %v321 = vmul.f32 %v253, %v289
      %v322 = vmul.f32 %v254, %v289
      %v323 = vmul.f32 %v255, %v289
      %v324 = vmul.f32 %v256, %v289
      %v325 = vmul.f32 %v257, %v289
      %v326 = vmul.f32 %v258, %v289
      %v327 = vmul.f32 %v259, %v289
      %v328 = vmul.f32 %v260, %v289
      %v329 = vmul.f32 %v261, %v289
      %v330 = vmul.f32 %v262, %v289
      %v331 = vmul.f32 %v263, %v289
      %v332 = vmul.f32 %v264, %v289
      %v333 = vmul.f32 %v265, %v289
      %v334 = vmul.f32 %v266, %v289
      %v335 = vmul.f32 %v267, %v289
      %v336 = vmul.f32 %v268, %v289
      %v337 = vmul.f32 %v269, %v289
      %v338 = vmul.f32 %v270, %v289
      %v339 = vmul.f32 %v271, %v289
      %v340 = vmul.f32 %v272, %v289
      %v341 = vmul.f32 %v273, %v289
      %v342 = vmul.f32 %v274, %v289
      %v343 = vmul.f32 %v275, %v289
      %v344 = vmul.f32 %v276, %v289
      %v345 = vmul.f32 %v277, %v289
      %v346 = vmul.f32 %v278, %v289
      %v347 = vmul.f32 %v279, %v289
      %v348 = vmul.f32 %v280, %v289
      %v349 = vmul.f32 %v281, %v289
      %v350 = vmul.f32 %v282, %v289
      %v351 = vmul.f32 %v283, %v289
      %v352 = vmul.f32 %v284, %v289
      %v353 = vmul.f32 %v285, %v289
      %v354 = vmul.f32 %v286, %v289
      %v355 = vld [vmem:[%s2] sm:$0x1]
      %v357 = vperm.slane %v355, 0
      %v359 = vadd.f32 %v291, %v357
      %v360 = vadd.f32 %v292, %v357
      %v361 = vadd.f32 %v293, %v357
      %v362 = vadd.f32 %v294, %v357
      %v363 = vadd.f32 %v295, %v357
      %v364 = vadd.f32 %v296, %v357
      %v365 = vadd.f32 %v297, %v357
      %v366 = vadd.f32 %v298, %v357
      %v367 = vadd.f32 %v299, %v357
      %v368 = vadd.f32 %v300, %v357
      %v369 = vadd.f32 %v301, %v357
      %v370 = vadd.f32 %v302, %v357
      %v371 = vadd.f32 %v303, %v357
      %v372 = vadd.f32 %v304, %v357
      %v373 = vadd.f32 %v305, %v357
      %v374 = vadd.f32 %v306, %v357
      %v375 = vadd.f32 %v307, %v357
      %v376 = vadd.f32 %v308, %v357
      %v377 = vadd.f32 %v309, %v357
      %v378 = vadd.f32 %v310, %v357
      %v379 = vadd.f32 %v311, %v357
      %v380 = vadd.f32 %v312, %v357
      %v381 = vadd.f32 %v313, %v357
      %v382 = vadd.f32 %v314, %v357
      %v383 = vadd.f32 %v315, %v357
      %v384 = vadd.f32 %v316, %v357
      %v385 = vadd.f32 %v317, %v357
      %v386 = vadd.f32 %v318, %v357
      %v387 = vadd.f32 %v319, %v357
      %v388 = vadd.f32 %v320, %v357
      %v389 = vadd.f32 %v321, %v357
      %v390 = vadd.f32 %v322, %v357
      %v391 = vadd.f32 %v323, %v357
      %v392 = vadd.f32 %v324, %v357
      %v393 = vadd.f32 %v325, %v357
      %v394 = vadd.f32 %v326, %v357
      %v395 = vadd.f32 %v327, %v357
      %v396 = vadd.f32 %v328, %v357
      %v397 = vadd.f32 %v329, %v357
      %v398 = vadd.f32 %v330, %v357
      %v399 = vadd.f32 %v331, %v357
      %v400 = vadd.f32 %v332, %v357
      %v401 = vadd.f32 %v333, %v357
      %v402 = vadd.f32 %v334, %v357
      %v403 = vadd.f32 %v335, %v357
      %v404 = vadd.f32 %v336, %v357
      %v405 = vadd.f32 %v337, %v357
      %v406 = vadd.f32 %v338, %v357
      %v407 = vadd.f32 %v339, %v357
      %v408 = vadd.f32 %v340, %v357
      %v409 = vadd.f32 %v341, %v357
      %v410 = vadd.f32 %v342, %v357
      %v411 = vadd.f32 %v343, %v357
      %v412 = vadd.f32 %v344, %v357
      %v413 = vadd.f32 %v345, %v357
      %v414 = vadd.f32 %v346, %v357
      %v415 = vadd.f32 %v347, %v357
      %v416 = vadd.f32 %v348, %v357
      %v417 = vadd.f32 %v349, %v357
      %v418 = vadd.f32 %v350, %v357
      %v419 = vadd.f32 %v351, %v357
      %v420 = vadd.f32 %v352, %v357
      %v421 = vadd.f32 %v353, %v357
      %v422 = vadd.f32 %v354, %v357
      %vm423 = vcmp.gt.f32.partialorder %v359, 0.0
      %vm424 = vcmp.gt.f32.partialorder %v360, 0.0
      %vm425 = vcmp.gt.f32.partialorder %v361, 0.0
      %vm426 = vcmp.gt.f32.partialorder %v362, 0.0
      %vm427 = vcmp.gt.f32.partialorder %v363, 0.0
      %vm428 = vcmp.gt.f32.partialorder %v364, 0.0
      %vm429 = vcmp.gt.f32.partialorder %v365, 0.0
      %vm430 = vcmp.gt.f32.partialorder %v366, 0.0
      %vm431 = vcmp.gt.f32.partialorder %v367, 0.0
      %vm432 = vcmp.gt.f32.partialorder %v368, 0.0
      %vm433 = vcmp.gt.f32.partialorder %v369, 0.0
      %vm434 = vcmp.gt.f32.partialorder %v370, 0.0
      %vm435 = vcmp.gt.f32.partialorder %v371, 0.0
      %vm436 = vcmp.gt.f32.partialorder %v372, 0.0
      %vm437 = vcmp.gt.f32.partialorder %v373, 0.0
      %vm438 = vcmp.gt.f32.partialorder %v374, 0.0
      %vm439 = vcmp.gt.f32.partialorder %v375, 0.0
      %vm440 = vcmp.gt.f32.partialorder %v376, 0.0
      %vm441 = vcmp.gt.f32.partialorder %v377, 0.0
      %vm442 = vcmp.gt.f32.partialorder %v378, 0.0
      %vm443 = vcmp.gt.f32.partialorder %v379, 0.0
      %vm444 = vcmp.gt.f32.partialorder %v380, 0.0
      %vm445 = vcmp.gt.f32.partialorder %v381, 0.0
      %vm446 = vcmp.gt.f32.partialorder %v382, 0.0
      %vm447 = vcmp.gt.f32.partialorder %v383, 0.0
      %vm448 = vcmp.gt.f32.partialorder %v384, 0.0
      %vm449 = vcmp.gt.f32.partialorder %v385, 0.0
      %vm450 = vcmp.gt.f32.partialorder %v386, 0.0
      %vm451 = vcmp.gt.f32.partialorder %v387, 0.0
      %vm452 = vcmp.gt.f32.partialorder %v388, 0.0
      %vm453 = vcmp.gt.f32.partialorder %v389, 0.0
      %vm454 = vcmp.gt.f32.partialorder %v390, 0.0
      %vm455 = vcmp.gt.f32.partialorder %v391, 0.0
      %vm456 = vcmp.gt.f32.partialorder %v392, 0.0
      %vm457 = vcmp.gt.f32.partialorder %v393, 0.0
      %vm458 = vcmp.gt.f32.partialorder %v394, 0.0
      %vm459 = vcmp.gt.f32.partialorder %v395, 0.0
      %vm460 = vcmp.gt.f32.partialorder %v396, 0.0
      %vm461 = vcmp.gt.f32.partialorder %v397, 0.0
      %vm462 = vcmp.gt.f32.partialorder %v398, 0.0
      %vm463 = vcmp.gt.f32.partialorder %v399, 0.0
      %vm464 = vcmp.gt.f32.partialorder %v400, 0.0
      %vm465 = vcmp.gt.f32.partialorder %v401, 0.0
      %vm466 = vcmp.gt.f32.partialorder %v402, 0.0
      %vm467 = vcmp.gt.f32.partialorder %v403, 0.0
      %vm468 = vcmp.gt.f32.partialorder %v404, 0.0
      %vm469 = vcmp.gt.f32.partialorder %v405, 0.0
      %vm470 = vcmp.gt.f32.partialorder %v406, 0.0
      %vm471 = vcmp.gt.f32.partialorder %v407, 0.0
      %vm472 = vcmp.gt.f32.partialorder %v408, 0.0
      %vm473 = vcmp.gt.f32.partialorder %v409, 0.0
      %vm474 = vcmp.gt.f32.partialorder %v410, 0.0
      %vm475 = vcmp.gt.f32.partialorder %v411, 0.0
      %vm476 = vcmp.gt.f32.partialorder %v412, 0.0
      %vm477 = vcmp.gt.f32.partialorder %v413, 0.0
      %vm478 = vcmp.gt.f32.partialorder %v414, 0.0
      %vm479 = vcmp.gt.f32.partialorder %v415, 0.0
      %vm480 = vcmp.gt.f32.partialorder %v416, 0.0
      %vm481 = vcmp.gt.f32.partialorder %v417, 0.0
      %vm482 = vcmp.gt.f32.partialorder %v418, 0.0
      %vm483 = vcmp.gt.f32.partialorder %v419, 0.0
      %vm484 = vcmp.gt.f32.partialorder %v420, 0.0
      %vm485 = vcmp.gt.f32.partialorder %v421, 0.0
      %vm486 = vcmp.gt.f32.partialorder %v422, 0.0
      %v487 = vmul.f32 %v359, 1.442695
      %v488 = vpow.pop %v487
      %v489 = vmul.f32 %v360, 1.442695
      %v490 = vpow.pop %v489
      %v491 = vmul.f32 %v361, 1.442695
      %v492 = vpow.pop %v491
      %v493 = vmul.f32 %v362, 1.442695
      %v494 = vpow.pop %v493
      %v495 = vmul.f32 %v363, 1.442695
      %v496 = vpow.pop %v495
      %v497 = vmul.f32 %v364, 1.442695
      %v498 = vpow.pop %v497
      %v499 = vmul.f32 %v365, 1.442695
      %v500 = vpow.pop %v499
      %v501 = vmul.f32 %v366, 1.442695
      %v502 = vpow.pop %v501
      %v503 = vmul.f32 %v367, 1.442695
      %v504 = vpow.pop %v503
      %v505 = vmul.f32 %v368, 1.442695
      %v506 = vpow.pop %v505
      %v507 = vmul.f32 %v369, 1.442695
      %v508 = vpow.pop %v507
      %v509 = vmul.f32 %v370, 1.442695
      %v510 = vpow.pop %v509
      %v511 = vmul.f32 %v371, 1.442695
      %v512 = vpow.pop %v511
      %v513 = vmul.f32 %v372, 1.442695
      %v514 = vpow.pop %v513
      %v515 = vmul.f32 %v373, 1.442695
      %v516 = vpow.pop %v515
      %v517 = vmul.f32 %v374, 1.442695
      %v518 = vpow.pop %v517
      %v519 = vmul.f32 %v375, 1.442695
      %v520 = vpow.pop %v519
      %v521 = vmul.f32 %v376, 1.442695
      %v522 = vpow.pop %v521
      %v523 = vmul.f32 %v377, 1.442695
      %v524 = vpow.pop %v523
      %v525 = vmul.f32 %v378, 1.442695
      %v526 = vpow.pop %v525
      %v527 = vmul.f32 %v379, 1.442695
      %v528 = vpow.pop %v527
      %v529 = vmul.f32 %v380, 1.442695
      %v530 = vpow.pop %v529
      %v531 = vmul.f32 %v381, 1.442695
      %v532 = vpow.pop %v531
      %v533 = vmul.f32 %v382, 1.442695
      %v534 = vpow.pop %v533
      %v535 = vmul.f32 %v383, 1.442695
      %v536 = vpow.pop %v535
      %v537 = vmul.f32 %v384, 1.442695
      %v538 = vpow.pop %v537
      %v539 = vmul.f32 %v385, 1.442695
      %v540 = vpow.pop %v539
      %v541 = vmul.f32 %v386, 1.442695
      %v542 = vpow.pop %v541
      %v543 = vmul.f32 %v387, 1.442695
      %v544 = vpow.pop %v543
      %v545 = vmul.f32 %v388, 1.442695
      %v546 = vpow.pop %v545
      %v547 = vmul.f32 %v389, 1.442695
      %v548 = vpow.pop %v547
      %v549 = vmul.f32 %v390, 1.442695
      %v550 = vpow.pop %v549
      %v551 = vmul.f32 %v391, 1.442695
      %v552 = vpow.pop %v551
      %v553 = vmul.f32 %v392, 1.442695
      %v554 = vpow.pop %v553
      %v555 = vmul.f32 %v393, 1.442695
      %v556 = vpow.pop %v555
      %v557 = vmul.f32 %v394, 1.442695
      %v558 = vpow.pop %v557
      %v559 = vmul.f32 %v395, 1.442695
      %v560 = vpow.pop %v559
      %v561 = vmul.f32 %v396, 1.442695
      %v562 = vpow.pop %v561
      %v563 = vmul.f32 %v397, 1.442695
      %v564 = vpow.pop %v563
      %v565 = vmul.f32 %v398, 1.442695
      %v566 = vpow.pop %v565
      %v567 = vmul.f32 %v399, 1.442695
      %v568 = vpow.pop %v567
      %v569 = vmul.f32 %v400, 1.442695
      %v570 = vpow.pop %v569
      %v571 = vmul.f32 %v401, 1.442695
      %v572 = vpow.pop %v571
      %v573 = vmul.f32 %v402, 1.442695
      %v574 = vpow.pop %v573
      %v575 = vmul.f32 %v403, 1.442695
      %v576 = vpow.pop %v575
      %v577 = vmul.f32 %v404, 1.442695
      %v578 = vpow.pop %v577
      %v579 = vmul.f32 %v405, 1.442695
      %v580 = vpow.pop %v579
      %v581 = vmul.f32 %v406, 1.442695
      %v582 = vpow.pop %v581
      %v583 = vmul.f32 %v407, 1.442695
      %v584 = vpow.pop %v583
      %v585 = vmul.f32 %v408, 1.442695
      %v586 = vpow.pop %v585
      %v587 = vmul.f32 %v409, 1.442695
      %v588 = vpow.pop %v587
      %v589 = vmul.f32 %v410, 1.442695
      %v590 = vpow.pop %v589
      %v591 = vmul.f32 %v411, 1.442695
      %v592 = vpow.pop %v591
      %v593 = vmul.f32 %v412, 1.442695
      %v594 = vpow.pop %v593
      %v595 = vmul.f32 %v413, 1.442695
      %v596 = vpow.pop %v595
      %v597 = vmul.f32 %v414, 1.442695
      %v598 = vpow.pop %v597
      %v599 = vmul.f32 %v415, 1.442695
      %v600 = vpow.pop %v599
      %v601 = vmul.f32 %v416, 1.442695
      %v602 = vpow.pop %v601
      %v603 = vmul.f32 %v417, 1.442695
      %v604 = vpow.pop %v603
      %v605 = vmul.f32 %v418, 1.442695
      %v606 = vpow.pop %v605
      %v607 = vmul.f32 %v419, 1.442695
      %v608 = vpow.pop %v607
      %v609 = vmul.f32 %v420, 1.442695
      %v610 = vpow.pop %v609
      %v611 = vmul.f32 %v421, 1.442695
      %v612 = vpow.pop %v611
      %v613 = vmul.f32 %v422, 1.442695
      %v614 = vpow.pop %v613
      %v615 = vsub.f32 %v488, 1.0
      %v616 = vsub.f32 %v490, 1.0
      %v617 = vsub.f32 %v492, 1.0
      %v618 = vsub.f32 %v494, 1.0
      %v619 = vsub.f32 %v496, 1.0
      %v620 = vsub.f32 %v498, 1.0
      %v621 = vsub.f32 %v500, 1.0
      %v622 = vsub.f32 %v502, 1.0
      %v623 = vsub.f32 %v504, 1.0
      %v624 = vsub.f32 %v506, 1.0
      %v625 = vsub.f32 %v508, 1.0
      %v626 = vsub.f32 %v510, 1.0
      %v627 = vsub.f32 %v512, 1.0
      %v628 = vsub.f32 %v514, 1.0
      %v629 = vsub.f32 %v516, 1.0
      %v630 = vsub.f32 %v518, 1.0
      %v631 = vsub.f32 %v520, 1.0
      %v632 = vsub.f32 %v522, 1.0
      %v633 = vsub.f32 %v524, 1.0
      %v634 = vsub.f32 %v526, 1.0
      %v635 = vsub.f32 %v528, 1.0
      %v636 = vsub.f32 %v530, 1.0
      %v637 = vsub.f32 %v532, 1.0
      %v638 = vsub.f32 %v534, 1.0
      %v639 = vsub.f32 %v536, 1.0
      %v640 = vsub.f32 %v538, 1.0
      %v641 = vsub.f32 %v540, 1.0
      %v642 = vsub.f32 %v542, 1.0
      %v643 = vsub.f32 %v544, 1.0
      %v644 = vsub.f32 %v546, 1.0
      %v645 = vsub.f32 %v548, 1.0
      %v646 = vsub.f32 %v550, 1.0
      %v647 = vsub.f32 %v552, 1.0
      %v648 = vsub.f32 %v554, 1.0
      %v649 = vsub.f32 %v556, 1.0
      %v650 = vsub.f32 %v558, 1.0
      %v651 = vsub.f32 %v560, 1.0
      %v652 = vsub.f32 %v562, 1.0
      %v653 = vsub.f32 %v564, 1.0
      %v654 = vsub.f32 %v566, 1.0
      %v655 = vsub.f32 %v568, 1.0
      %v656 = vsub.f32 %v570, 1.0
      %v657 = vsub.f32 %v572, 1.0
      %v658 = vsub.f32 %v574, 1.0
      %v659 = vsub.f32 %v576, 1.0
      %v660 = vsub.f32 %v578, 1.0
      %v661 = vsub.f32 %v580, 1.0
      %v662 = vsub.f32 %v582, 1.0
      %v663 = vsub.f32 %v584, 1.0
      %v664 = vsub.f32 %v586, 1.0
      %v665 = vsub.f32 %v588, 1.0
      %v666 = vsub.f32 %v590, 1.0
      %v667 = vsub.f32 %v592, 1.0
      %v668 = vsub.f32 %v594, 1.0
      %v669 = vsub.f32 %v596, 1.0
      %v670 = vsub.f32 %v598, 1.0
      %v671 = vsub.f32 %v600, 1.0
      %v672 = vsub.f32 %v602, 1.0
      %v673 = vsub.f32 %v604, 1.0
      %v674 = vsub.f32 %v606, 1.0
      %v675 = vsub.f32 %v608, 1.0
      %v676 = vsub.f32 %v610, 1.0
      %v677 = vsub.f32 %v612, 1.0
      %v678 = vsub.f32 %v614, 1.0
      %v679 = vsel %vm423, %v359, %v615
      %v680 = vsel %vm424, %v360, %v616
      %v681 = vsel %vm425, %v361, %v617
      %v682 = vsel %vm426, %v362, %v618
      %v683 = vsel %vm427, %v363, %v619
      %v684 = vsel %vm428, %v364, %v620
      %v685 = vsel %vm429, %v365, %v621
      %v686 = vsel %vm430, %v366, %v622
      %v687 = vsel %vm431, %v367, %v623
      %v688 = vsel %vm432, %v368, %v624
      %v689 = vsel %vm433, %v369, %v625
      %v690 = vsel %vm434, %v370, %v626
      %v691 = vsel %vm435, %v371, %v627
      %v692 = vsel %vm436, %v372, %v628
      %v693 = vsel %vm437, %v373, %v629
      %v694 = vsel %vm438, %v374, %v630
      %v695 = vsel %vm439, %v375, %v631
      %v696 = vsel %vm440, %v376, %v632
      %v697 = vsel %vm441, %v377, %v633
      %v698 = vsel %vm442, %v378, %v634
      %v699 = vsel %vm443, %v379, %v635
      %v700 = vsel %vm444, %v380, %v636
      %v701 = vsel %vm445, %v381, %v637
      %v702 = vsel %vm446, %v382, %v638
      %v703 = vsel %vm447, %v383, %v639
      %v704 = vsel %vm448, %v384, %v640
      %v705 = vsel %vm449, %v385, %v641
      %v706 = vsel %vm450, %v386, %v642
      %v707 = vsel %vm451, %v387, %v643
      %v708 = vsel %vm452, %v388, %v644
      %v709 = vsel %vm453, %v389, %v645
      %v710 = vsel %vm454, %v390, %v646
      %v711 = vsel %vm455, %v391, %v647
      %v712 = vsel %vm456, %v392, %v648
      %v713 = vsel %vm457, %v393, %v649
      %v714 = vsel %vm458, %v394, %v650
      %v715 = vsel %vm459, %v395, %v651
      %v716 = vsel %vm460, %v396, %v652
      %v717 = vsel %vm461, %v397, %v653
      %v718 = vsel %vm462, %v398, %v654
      %v719 = vsel %vm463, %v399, %v655
      %v720 = vsel %vm464, %v400, %v656
      %v721 = vsel %vm465, %v401, %v657
      %v722 = vsel %vm466, %v402, %v658
      %v723 = vsel %vm467, %v403, %v659
      %v724 = vsel %vm468, %v404, %v660
      %v725 = vsel %vm469, %v405, %v661
      %v726 = vsel %vm470, %v406, %v662
      %v727 = vsel %vm471, %v407, %v663
      %v728 = vsel %vm472, %v408, %v664
      %v729 = vsel %vm473, %v409, %v665
      %v730 = vsel %vm474, %v410, %v666
      %v731 = vsel %vm475, %v411, %v667
      %v732 = vsel %vm476, %v412, %v668
      %v733 = vsel %vm477, %v413, %v669
      %v734 = vsel %vm478, %v414, %v670
      %v735 = vsel %vm479, %v415, %v671
      %v736 = vsel %vm480, %v416, %v672
      %v737 = vsel %vm481, %v417, %v673
      %v738 = vsel %vm482, %v418, %v674
      %v739 = vsel %vm483, %v419, %v675
      %v740 = vsel %vm484, %v420, %v676
      %v741 = vsel %vm485, %v421, %v677
      %v742 = vsel %vm486, %v422, %v678
      %v743 = vld [vmem:[%s215] sm:$0xff]
      %v744 = vld [vmem:[%s215 + $0x8] sm:$0xff]
      %v745 = vld [vmem:[%s215 + $0x10] sm:$0xff]
      %v746 = vld [vmem:[%s215 + $0x18] sm:$0xff]
      %v747 = vld [vmem:[%s215 + $0x20] sm:$0xff]
      %v748 = vld [vmem:[%s215 + $0x28] sm:$0xff]
      %v749 = vld [vmem:[%s215 + $0x30] sm:$0xff]
      %v750 = vld [vmem:[%s215 + $0x38] sm:$0xff]
      %v751 = vld [vmem:[%s215 + $0x40] sm:$0xff]
      %v752 = vld [vmem:[%s215 + $0x48] sm:$0xff]
      %v753 = vld [vmem:[%s215 + $0x50] sm:$0xff]
      %v754 = vld [vmem:[%s215 + $0x58] sm:$0xff]
      %v755 = vld [vmem:[%s215 + $0x60] sm:$0xff]
      %v756 = vld [vmem:[%s215 + $0x68] sm:$0xff]
      %v757 = vld [vmem:[%s215 + $0x70] sm:$0xff]
      %v758 = vld [vmem:[%s215 + $0x78] sm:$0xff]
      %v759 = vld [vmem:[%s215 + $0x80] sm:$0xff]
      %v760 = vld [vmem:[%s215 + $0x88] sm:$0xff]
      %v761 = vld [vmem:[%s215 + $0x90] sm:$0xff]
      %v762 = vld [vmem:[%s215 + $0x98] sm:$0xff]
      %v763 = vld [vmem:[%s215 + $0xa0] sm:$0xff]
      %v764 = vld [vmem:[%s215 + $0xa8] sm:$0xff]
      %v765 = vld [vmem:[%s215 + $0xb0] sm:$0xff]
      %v766 = vld [vmem:[%s215 + $0xb8] sm:$0xff]
      %v767 = vld [vmem:[%s215 + $0xc0] sm:$0xff]
      %v768 = vld [vmem:[%s215 + $0xc8] sm:$0xff]
      %v769 = vld [vmem:[%s215 + $0xd0] sm:$0xff]
      %v770 = vld [vmem:[%s215 + $0xd8] sm:$0xff]
      %v771 = vld [vmem:[%s215 + $0xe0] sm:$0xff]
      %v772 = vld [vmem:[%s215 + $0xe8] sm:$0xff]
      %v773 = vld [vmem:[%s215 + $0xf0] sm:$0xff]
      %v774 = vld [vmem:[%s215 + $0xf8] sm:$0xff]
      %v775 = vld [vmem:[%s215 + $0x100] sm:$0xff]
      %v776 = vld [vmem:[%s215 + $0x108] sm:$0xff]
      %v777 = vld [vmem:[%s215 + $0x110] sm:$0xff]
      %v778 = vld [vmem:[%s215 + $0x118] sm:$0xff]
      %v779 = vld [vmem:[%s215 + $0x120] sm:$0xff]
      %v780 = vld [vmem:[%s215 + $0x128] sm:$0xff]
      %v781 = vld [vmem:[%s215 + $0x130] sm:$0xff]
      %v782 = vld [vmem:[%s215 + $0x138] sm:$0xff]
      %v783 = vld [vmem:[%s215 + $0x140] sm:$0xff]
      %v784 = vld [vmem:[%s215 + $0x148] sm:$0xff]
      %v785 = vld [vmem:[%s215 + $0x150] sm:$0xff]
      %v786 = vld [vmem:[%s215 + $0x158] sm:$0xff]
      %v787 = vld [vmem:[%s215 + $0x160] sm:$0xff]
      %v788 = vld [vmem:[%s215 + $0x168] sm:$0xff]
      %v789 = vld [vmem:[%s215 + $0x170] sm:$0xff]
      %v790 = vld [vmem:[%s215 + $0x178] sm:$0xff]
      %v791 = vld [vmem:[%s215 + $0x180] sm:$0xff]
      %v792 = vld [vmem:[%s215 + $0x188] sm:$0xff]
      %v793 = vld [vmem:[%s215 + $0x190] sm:$0xff]
      %v794 = vld [vmem:[%s215 + $0x198] sm:$0xff]
      %v795 = vld [vmem:[%s215 + $0x1a0] sm:$0xff]
      %v796 = vld [vmem:[%s215 + $0x1a8] sm:$0xff]
      %v797 = vld [vmem:[%s215 + $0x1b0] sm:$0xff]
      %v798 = vld [vmem:[%s215 + $0x1b8] sm:$0xff]
      %v799 = vld [vmem:[%s215 + $0x1c0] sm:$0xff]
      %v800 = vld [vmem:[%s215 + $0x1c8] sm:$0xff]
      %v801 = vld [vmem:[%s215 + $0x1d0] sm:$0xff]
      %v802 = vld [vmem:[%s215 + $0x1d8] sm:$0xff]
      %v803 = vld [vmem:[%s215 + $0x1e0] sm:$0xff]
      %v804 = vld [vmem:[%s215 + $0x1e8] sm:$0xff]
      %v805 = vld [vmem:[%s215 + $0x1f0] sm:$0xff]
      %v806 = vld [vmem:[%s215 + $0x1f8] sm:$0xff]
      %v807 = vadd.f32 %v679, %v743
      %v808 = vadd.f32 %v680, %v744
      %v809 = vadd.f32 %v681, %v745
      %v810 = vadd.f32 %v682, %v746
      %v811 = vadd.f32 %v683, %v747
      %v812 = vadd.f32 %v684, %v748
      %v813 = vadd.f32 %v685, %v749
      %v814 = vadd.f32 %v686, %v750
      %v815 = vadd.f32 %v687, %v751
      %v816 = vadd.f32 %v688, %v752
      %v817 = vadd.f32 %v689, %v753
      %v818 = vadd.f32 %v690, %v754
      %v819 = vadd.f32 %v691, %v755
      %v820 = vadd.f32 %v692, %v756
      %v821 = vadd.f32 %v693, %v757
      %v822 = vadd.f32 %v694, %v758
      %v823 = vadd.f32 %v695, %v759
      %v824 = vadd.f32 %v696, %v760
      %v825 = vadd.f32 %v697, %v761
      %v826 = vadd.f32 %v698, %v762
      %v827 = vadd.f32 %v699, %v763
      %v828 = vadd.f32 %v700, %v764
      %v829 = vadd.f32 %v701, %v765
      %v830 = vadd.f32 %v702, %v766
      %v831 = vadd.f32 %v703, %v767
      %v832 = vadd.f32 %v704, %v768
      %v833 = vadd.f32 %v705, %v769
      %v834 = vadd.f32 %v706, %v770
      %v835 = vadd.f32 %v707, %v771
      %v836 = vadd.f32 %v708, %v772
      %v837 = vadd.f32 %v709, %v773
      %v838 = vadd.f32 %v710, %v774
      %v839 = vadd.f32 %v711, %v775
      %v840 = vadd.f32 %v712, %v776
      %v841 = vadd.f32 %v713, %v777
      %v842 = vadd.f32 %v714, %v778
      %v843 = vadd.f32 %v715, %v779
      %v844 = vadd.f32 %v716, %v780
      %v845 = vadd.f32 %v717, %v781
      %v846 = vadd.f32 %v718, %v782
      %v847 = vadd.f32 %v719, %v783
      %v848 = vadd.f32 %v720, %v784
      %v849 = vadd.f32 %v721, %v785
      %v850 = vadd.f32 %v722, %v786
      %v851 = vadd.f32 %v723, %v787
      %v852 = vadd.f32 %v724, %v788
      %v853 = vadd.f32 %v725, %v789
      %v854 = vadd.f32 %v726, %v790
      %v855 = vadd.f32 %v727, %v791
      %v856 = vadd.f32 %v728, %v792
      %v857 = vadd.f32 %v729, %v793
      %v858 = vadd.f32 %v730, %v794
      %v859 = vadd.f32 %v731, %v795
      %v860 = vadd.f32 %v732, %v796
      %v861 = vadd.f32 %v733, %v797
      %v862 = vadd.f32 %v734, %v798
      %v863 = vadd.f32 %v735, %v799
      %v864 = vadd.f32 %v736, %v800
      %v865 = vadd.f32 %v737, %v801
      %v866 = vadd.f32 %v738, %v802
      %v867 = vadd.f32 %v739, %v803
      %v868 = vadd.f32 %v740, %v804
      %v869 = vadd.f32 %v741, %v805
      %v870 = vadd.f32 %v742, %v806
      %vm871 = vcmp.gt.f32.partialorder %v807, 0.0
      %vm872 = vcmp.gt.f32.partialorder %v808, 0.0
      %vm873 = vcmp.gt.f32.partialorder %v809, 0.0
      %vm874 = vcmp.gt.f32.partialorder %v810, 0.0
      %vm875 = vcmp.gt.f32.partialorder %v811, 0.0
      %vm876 = vcmp.gt.f32.partialorder %v812, 0.0
      %vm877 = vcmp.gt.f32.partialorder %v813, 0.0
      %vm878 = vcmp.gt.f32.partialorder %v814, 0.0
      %vm879 = vcmp.gt.f32.partialorder %v815, 0.0
      %vm880 = vcmp.gt.f32.partialorder %v816, 0.0
      %vm881 = vcmp.gt.f32.partialorder %v817, 0.0
      %vm882 = vcmp.gt.f32.partialorder %v818, 0.0
      %vm883 = vcmp.gt.f32.partialorder %v819, 0.0
      %vm884 = vcmp.gt.f32.partialorder %v820, 0.0
      %vm885 = vcmp.gt.f32.partialorder %v821, 0.0
      %vm886 = vcmp.gt.f32.partialorder %v822, 0.0
      %vm887 = vcmp.gt.f32.partialorder %v823, 0.0
      %vm888 = vcmp.gt.f32.partialorder %v824, 0.0
      %vm889 = vcmp.gt.f32.partialorder %v825, 0.0
      %vm890 = vcmp.gt.f32.partialorder %v826, 0.0
      %vm891 = vcmp.gt.f32.partialorder %v827, 0.0
      %vm892 = vcmp.gt.f32.partialorder %v828, 0.0
      %vm893 = vcmp.gt.f32.partialorder %v829, 0.0
      %vm894 = vcmp.gt.f32.partialorder %v830, 0.0
      %vm895 = vcmp.gt.f32.partialorder %v831, 0.0
      %vm896 = vcmp.gt.f32.partialorder %v832, 0.0
      %vm897 = vcmp.gt.f32.partialorder %v833, 0.0
      %vm898 = vcmp.gt.f32.partialorder %v834, 0.0
      %vm899 = vcmp.gt.f32.partialorder %v835, 0.0
      %vm900 = vcmp.gt.f32.partialorder %v836, 0.0
      %vm901 = vcmp.gt.f32.partialorder %v837, 0.0
      %vm902 = vcmp.gt.f32.partialorder %v838, 0.0
      %vm903 = vcmp.gt.f32.partialorder %v839, 0.0
      %vm904 = vcmp.gt.f32.partialorder %v840, 0.0
      %vm905 = vcmp.gt.f32.partialorder %v841, 0.0
      %vm906 = vcmp.gt.f32.partialorder %v842, 0.0
      %vm907 = vcmp.gt.f32.partialorder %v843, 0.0
      %vm908 = vcmp.gt.f32.partialorder %v844, 0.0
      %vm909 = vcmp.gt.f32.partialorder %v845, 0.0
      %vm910 = vcmp.gt.f32.partialorder %v846, 0.0
      %vm911 = vcmp.gt.f32.partialorder %v847, 0.0
      %vm912 = vcmp.gt.f32.partialorder %v848, 0.0
      %vm913 = vcmp.gt.f32.partialorder %v849, 0.0
      %vm914 = vcmp.gt.f32.partialorder %v850, 0.0
      %vm915 = vcmp.gt.f32.partialorder %v851, 0.0
      %vm916 = vcmp.gt.f32.partialorder %v852, 0.0
      %vm917 = vcmp.gt.f32.partialorder %v853, 0.0
      %vm918 = vcmp.gt.f32.partialorder %v854, 0.0
      %vm919 = vcmp.gt.f32.partialorder %v855, 0.0
      %vm920 = vcmp.gt.f32.partialorder %v856, 0.0
      %vm921 = vcmp.gt.f32.partialorder %v857, 0.0
      %vm922 = vcmp.gt.f32.partialorder %v858, 0.0
      %vm923 = vcmp.gt.f32.partialorder %v859, 0.0
      %vm924 = vcmp.gt.f32.partialorder %v860, 0.0
      %vm925 = vcmp.gt.f32.partialorder %v861, 0.0
      %vm926 = vcmp.gt.f32.partialorder %v862, 0.0
      %vm927 = vcmp.gt.f32.partialorder %v863, 0.0
      %vm928 = vcmp.gt.f32.partialorder %v864, 0.0
      %vm929 = vcmp.gt.f32.partialorder %v865, 0.0
      %vm930 = vcmp.gt.f32.partialorder %v866, 0.0
      %vm931 = vcmp.gt.f32.partialorder %v867, 0.0
      %vm932 = vcmp.gt.f32.partialorder %v868, 0.0
      %vm933 = vcmp.gt.f32.partialorder %v869, 0.0
      %vm934 = vcmp.gt.f32.partialorder %v870, 0.0
      %v935 = vmul.f32 %v807, 1.442695
      %v936 = vpow.pop %v935
      %v937 = vmul.f32 %v808, 1.442695
      %v938 = vpow.pop %v937
      %v939 = vmul.f32 %v809, 1.442695
      %v940 = vpow.pop %v939
      %v941 = vmul.f32 %v810, 1.442695
      %v942 = vpow.pop %v941
      %v943 = vmul.f32 %v811, 1.442695
      %v944 = vpow.pop %v943
      %v945 = vmul.f32 %v812, 1.442695
      %v946 = vpow.pop %v945
      %v947 = vmul.f32 %v813, 1.442695
      %v948 = vpow.pop %v947
      %v949 = vmul.f32 %v814, 1.442695
      %v950 = vpow.pop %v949
      %v951 = vmul.f32 %v815, 1.442695
      %v952 = vpow.pop %v951
      %v953 = vmul.f32 %v816, 1.442695
      %v954 = vpow.pop %v953
      %v955 = vmul.f32 %v817, 1.442695
      %v956 = vpow.pop %v955
      %v957 = vmul.f32 %v818, 1.442695
      %v958 = vpow.pop %v957
      %v959 = vmul.f32 %v819, 1.442695
      %v960 = vpow.pop %v959
      %v961 = vmul.f32 %v820, 1.442695
      %v962 = vpow.pop %v961
      %v963 = vmul.f32 %v821, 1.442695
      %v964 = vpow.pop %v963
      %v965 = vmul.f32 %v822, 1.442695
      %v966 = vpow.pop %v965
      %v967 = vmul.f32 %v823, 1.442695
      %v968 = vpow.pop %v967
      %v969 = vmul.f32 %v824, 1.442695
      %v970 = vpow.pop %v969
      %v971 = vmul.f32 %v825, 1.442695
      %v972 = vpow.pop %v971
      %v973 = vmul.f32 %v826, 1.442695
      %v974 = vpow.pop %v973
      %v975 = vmul.f32 %v827, 1.442695
      %v976 = vpow.pop %v975
      %v977 = vmul.f32 %v828, 1.442695
      %v978 = vpow.pop %v977
      %v979 = vmul.f32 %v829, 1.442695
      %v980 = vpow.pop %v979
      %v981 = vmul.f32 %v830, 1.442695
      %v982 = vpow.pop %v981
      %v983 = vmul.f32 %v831, 1.442695
      %v984 = vpow.pop %v983
      %v985 = vmul.f32 %v832, 1.442695
      %v986 = vpow.pop %v985
      %v987 = vmul.f32 %v833, 1.442695
      %v988 = vpow.pop %v987
      %v989 = vmul.f32 %v834, 1.442695
      %v990 = vpow.pop %v989
      %v991 = vmul.f32 %v835, 1.442695
      %v992 = vpow.pop %v991
      %v993 = vmul.f32 %v836, 1.442695
      %v994 = vpow.pop %v993
      %v995 = vmul.f32 %v837, 1.442695
      %v996 = vpow.pop %v995
      %v997 = vmul.f32 %v838, 1.442695
      %v998 = vpow.pop %v997
      %v999 = vmul.f32 %v839, 1.442695
      %v1000 = vpow.pop %v999
      %v1001 = vmul.f32 %v840, 1.442695
      %v1002 = vpow.pop %v1001
      %v1003 = vmul.f32 %v841, 1.442695
      %v1004 = vpow.pop %v1003
      %v1005 = vmul.f32 %v842, 1.442695
      %v1006 = vpow.pop %v1005
      %v1007 = vmul.f32 %v843, 1.442695
      %v1008 = vpow.pop %v1007
      %v1009 = vmul.f32 %v844, 1.442695
      %v1010 = vpow.pop %v1009
      %v1011 = vmul.f32 %v845, 1.442695
      %v1012 = vpow.pop %v1011
      %v1013 = vmul.f32 %v846, 1.442695
      %v1014 = vpow.pop %v1013
      %v1015 = vmul.f32 %v847, 1.442695
      %v1016 = vpow.pop %v1015
      %v1017 = vmul.f32 %v848, 1.442695
      %v1018 = vpow.pop %v1017
      %v1019 = vmul.f32 %v849, 1.442695
      %v1020 = vpow.pop %v1019
      %v1021 = vmul.f32 %v850, 1.442695
      %v1022 = vpow.pop %v1021
      %v1023 = vmul.f32 %v851, 1.442695
      %v1024 = vpow.pop %v1023
      %v1025 = vmul.f32 %v852, 1.442695
      %v1026 = vpow.pop %v1025
      %v1027 = vmul.f32 %v853, 1.442695
      %v1028 = vpow.pop %v1027
      %v1029 = vmul.f32 %v854, 1.442695
      %v1030 = vpow.pop %v1029
      %v1031 = vmul.f32 %v855, 1.442695
      %v1032 = vpow.pop %v1031
      %v1033 = vmul.f32 %v856, 1.442695
      %v1034 = vpow.pop %v1033
      %v1035 = vmul.f32 %v857, 1.442695
      %v1036 = vpow.pop %v1035
      %v1037 = vmul.f32 %v858, 1.442695
      %v1038 = vpow.pop %v1037
      %v1039 = vmul.f32 %v859, 1.442695
      %v1040 = vpow.pop %v1039
      %v1041 = vmul.f32 %v860, 1.442695
      %v1042 = vpow.pop %v1041
      %v1043 = vmul.f32 %v861, 1.442695
      %v1044 = vpow.pop %v1043
      %v1045 = vmul.f32 %v862, 1.442695
      %v1046 = vpow.pop %v1045
      %v1047 = vmul.f32 %v863, 1.442695
      %v1048 = vpow.pop %v1047
      %v1049 = vmul.f32 %v864, 1.442695
      %v1050 = vpow.pop %v1049
      %v1051 = vmul.f32 %v865, 1.442695
      %v1052 = vpow.pop %v1051
      %v1053 = vmul.f32 %v866, 1.442695
      %v1054 = vpow.pop %v1053
      %v1055 = vmul.f32 %v867, 1.442695
      %v1056 = vpow.pop %v1055
      %v1057 = vmul.f32 %v868, 1.442695
      %v1058 = vpow.pop %v1057
      %v1059 = vmul.f32 %v869, 1.442695
      %v1060 = vpow.pop %v1059
      %v1061 = vmul.f32 %v870, 1.442695
      %v1062 = vpow.pop %v1061
      %v1063 = vsub.f32 %v936, 1.0
      %v1064 = vsub.f32 %v938, 1.0
      %v1065 = vsub.f32 %v940, 1.0
      %v1066 = vsub.f32 %v942, 1.0
      %v1067 = vsub.f32 %v944, 1.0
      %v1068 = vsub.f32 %v946, 1.0
      %v1069 = vsub.f32 %v948, 1.0
      %v1070 = vsub.f32 %v950, 1.0
      %v1071 = vsub.f32 %v952, 1.0
      %v1072 = vsub.f32 %v954, 1.0
      %v1073 = vsub.f32 %v956, 1.0
      %v1074 = vsub.f32 %v958, 1.0
      %v1075 = vsub.f32 %v960, 1.0
      %v1076 = vsub.f32 %v962, 1.0
      %v1077 = vsub.f32 %v964, 1.0
      %v1078 = vsub.f32 %v966, 1.0
      %v1079 = vsub.f32 %v968, 1.0
      %v1080 = vsub.f32 %v970, 1.0
      %v1081 = vsub.f32 %v972, 1.0
      %v1082 = vsub.f32 %v974, 1.0
      %v1083 = vsub.f32 %v976, 1.0
      %v1084 = vsub.f32 %v978, 1.0
      %v1085 = vsub.f32 %v980, 1.0
      %v1086 = vsub.f32 %v982, 1.0
      %v1087 = vsub.f32 %v984, 1.0
      %v1088 = vsub.f32 %v986, 1.0
      %v1089 = vsub.f32 %v988, 1.0
      %v1090 = vsub.f32 %v990, 1.0
      %v1091 = vsub.f32 %v992, 1.0
      %v1092 = vsub.f32 %v994, 1.0
      %v1093 = vsub.f32 %v996, 1.0
      %v1094 = vsub.f32 %v998, 1.0
      %v1095 = vsub.f32 %v1000, 1.0
      %v1096 = vsub.f32 %v1002, 1.0
      %v1097 = vsub.f32 %v1004, 1.0
      %v1098 = vsub.f32 %v1006, 1.0
      %v1099 = vsub.f32 %v1008, 1.0
      %v1100 = vsub.f32 %v1010, 1.0
      %v1101 = vsub.f32 %v1012, 1.0
      %v1102 = vsub.f32 %v1014, 1.0
      %v1103 = vsub.f32 %v1016, 1.0
      %v1104 = vsub.f32 %v1018, 1.0
      %v1105 = vsub.f32 %v1020, 1.0
      %v1106 = vsub.f32 %v1022, 1.0
      %v1107 = vsub.f32 %v1024, 1.0
      %v1108 = vsub.f32 %v1026, 1.0
      %v1109 = vsub.f32 %v1028, 1.0
      %v1110 = vsub.f32 %v1030, 1.0
      %v1111 = vsub.f32 %v1032, 1.0
      %v1112 = vsub.f32 %v1034, 1.0
      %v1113 = vsub.f32 %v1036, 1.0
      %v1114 = vsub.f32 %v1038, 1.0
      %v1115 = vsub.f32 %v1040, 1.0
      %v1116 = vsub.f32 %v1042, 1.0
      %v1117 = vsub.f32 %v1044, 1.0
      %v1118 = vsub.f32 %v1046, 1.0
      %v1119 = vsub.f32 %v1048, 1.0
      %v1120 = vsub.f32 %v1050, 1.0
      %v1121 = vsub.f32 %v1052, 1.0
      %v1122 = vsub.f32 %v1054, 1.0
      %v1123 = vsub.f32 %v1056, 1.0
      %v1124 = vsub.f32 %v1058, 1.0
      %v1125 = vsub.f32 %v1060, 1.0
      %v1126 = vsub.f32 %v1062, 1.0
      %v1127 = vsel %vm871, %v807, %v1063
      %v1128 = vsel %vm872, %v808, %v1064
      %v1129 = vsel %vm873, %v809, %v1065
      %v1130 = vsel %vm874, %v810, %v1066
      %v1131 = vsel %vm875, %v811, %v1067
      %v1132 = vsel %vm876, %v812, %v1068
      %v1133 = vsel %vm877, %v813, %v1069
      %v1134 = vsel %vm878, %v814, %v1070
      %v1135 = vsel %vm879, %v815, %v1071
      %v1136 = vsel %vm880, %v816, %v1072
      %v1137 = vsel %vm881, %v817, %v1073
      %v1138 = vsel %vm882, %v818, %v1074
      %v1139 = vsel %vm883, %v819, %v1075
      %v1140 = vsel %vm884, %v820, %v1076
      %v1141 = vsel %vm885, %v821, %v1077
      %v1142 = vsel %vm886, %v822, %v1078
      %v1143 = vsel %vm887, %v823, %v1079
      %v1144 = vsel %vm888, %v824, %v1080
      %v1145 = vsel %vm889, %v825, %v1081
      %v1146 = vsel %vm890, %v826, %v1082
      %v1147 = vsel %vm891, %v827, %v1083
      %v1148 = vsel %vm892, %v828, %v1084
      %v1149 = vsel %vm893, %v829, %v1085
      %v1150 = vsel %vm894, %v830, %v1086
      %v1151 = vsel %vm895, %v831, %v1087
      %v1152 = vsel %vm896, %v832, %v1088
      %v1153 = vsel %vm897, %v833, %v1089
      %v1154 = vsel %vm898, %v834, %v1090
      %v1155 = vsel %vm899, %v835, %v1091
      %v1156 = vsel %vm900, %v836, %v1092
      %v1157 = vsel %vm901, %v837, %v1093
      %v1158 = vsel %vm902, %v838, %v1094
      %v1159 = vsel %vm903, %v839, %v1095
      %v1160 = vsel %vm904, %v840, %v1096
      %v1161 = vsel %vm905, %v841, %v1097
      %v1162 = vsel %vm906, %v842, %v1098
      %v1163 = vsel %vm907, %v843, %v1099
      %v1164 = vsel %vm908, %v844, %v1100
      %v1165 = vsel %vm909, %v845, %v1101
      %v1166 = vsel %vm910, %v846, %v1102
      %v1167 = vsel %vm911, %v847, %v1103
      %v1168 = vsel %vm912, %v848, %v1104
      %v1169 = vsel %vm913, %v849, %v1105
      %v1170 = vsel %vm914, %v850, %v1106
      %v1171 = vsel %vm915, %v851, %v1107
      %v1172 = vsel %vm916, %v852, %v1108
      %v1173 = vsel %vm917, %v853, %v1109
      %v1174 = vsel %vm918, %v854, %v1110
      %v1175 = vsel %vm919, %v855, %v1111
      %v1176 = vsel %vm920, %v856, %v1112
      %v1177 = vsel %vm921, %v857, %v1113
      %v1178 = vsel %vm922, %v858, %v1114
      %v1179 = vsel %vm923, %v859, %v1115
      %v1180 = vsel %vm924, %v860, %v1116
      %v1181 = vsel %vm925, %v861, %v1117
      %v1182 = vsel %vm926, %v862, %v1118
      %v1183 = vsel %vm927, %v863, %v1119
      %v1184 = vsel %vm928, %v864, %v1120
      %v1185 = vsel %vm929, %v865, %v1121
      %v1186 = vsel %vm930, %v866, %v1122
      %v1187 = vsel %vm931, %v867, %v1123
      %v1188 = vsel %vm932, %v868, %v1124
      %v1189 = vsel %vm933, %v869, %v1125
      %v1190 = vsel %vm934, %v870, %v1126
      %1191 = vst [vmem:[%s221] sm:$0xff] %v1127
      %1192 = vst [vmem:[%s221 + $0x8] sm:$0xff] %v1128
      %1193 = vst [vmem:[%s221 + $0x10] sm:$0xff] %v1129
      %1194 = vst [vmem:[%s221 + $0x18] sm:$0xff] %v1130
      %1195 = vst [vmem:[%s221 + $0x20] sm:$0xff] %v1131
      %1196 = vst [vmem:[%s221 + $0x28] sm:$0xff] %v1132
      %1197 = vst [vmem:[%s221 + $0x30] sm:$0xff] %v1133
      %1198 = vst [vmem:[%s221 + $0x38] sm:$0xff] %v1134
      %1199 = vst [vmem:[%s221 + $0x40] sm:$0xff] %v1135
      %1200 = vst [vmem:[%s221 + $0x48] sm:$0xff] %v1136
      %1201 = vst [vmem:[%s221 + $0x50] sm:$0xff] %v1137
      %1202 = vst [vmem:[%s221 + $0x58] sm:$0xff] %v1138
      %1203 = vst [vmem:[%s221 + $0x60] sm:$0xff] %v1139
      %1204 = vst [vmem:[%s221 + $0x68] sm:$0xff] %v1140
      %1205 = vst [vmem:[%s221 + $0x70] sm:$0xff] %v1141
      %1206 = vst [vmem:[%s221 + $0x78] sm:$0xff] %v1142
      %1207 = vst [vmem:[%s221 + $0x80] sm:$0xff] %v1143
      %1208 = vst [vmem:[%s221 + $0x88] sm:$0xff] %v1144
      %1209 = vst [vmem:[%s221 + $0x90] sm:$0xff] %v1145
      %1210 = vst [vmem:[%s221 + $0x98] sm:$0xff] %v1146
      %1211 = vst [vmem:[%s221 + $0xa0] sm:$0xff] %v1147
      %1212 = vst [vmem:[%s221 + $0xa8] sm:$0xff] %v1148
      %1213 = vst [vmem:[%s221 + $0xb0] sm:$0xff] %v1149
      %1214 = vst [vmem:[%s221 + $0xb8] sm:$0xff] %v1150
      %1215 = vst [vmem:[%s221 + $0xc0] sm:$0xff] %v1151
      %1216 = vst [vmem:[%s221 + $0xc8] sm:$0xff] %v1152
      %1217 = vst [vmem:[%s221 + $0xd0] sm:$0xff] %v1153
      %1218 = vst [vmem:[%s221 + $0xd8] sm:$0xff] %v1154
      %1219 = vst [vmem:[%s221 + $0xe0] sm:$0xff] %v1155
      %1220 = vst [vmem:[%s221 + $0xe8] sm:$0xff] %v1156
      %1221 = vst [vmem:[%s221 + $0xf0] sm:$0xff] %v1157
      %1222 = vst [vmem:[%s221 + $0xf8] sm:$0xff] %v1158
      %1223 = vst [vmem:[%s221 + $0x100] sm:$0xff] %v1159
      %1224 = vst [vmem:[%s221 + $0x108] sm:$0xff] %v1160
      %1225 = vst [vmem:[%s221 + $0x110] sm:$0xff] %v1161
      %1226 = vst [vmem:[%s221 + $0x118] sm:$0xff] %v1162
      %1227 = vst [vmem:[%s221 + $0x120] sm:$0xff] %v1163
      %1228 = vst [vmem:[%s221 + $0x128] sm:$0xff] %v1164
      %1229 = vst [vmem:[%s221 + $0x130] sm:$0xff] %v1165
      %1230 = vst [vmem:[%s221 + $0x138] sm:$0xff] %v1166
      %1231 = vst [vmem:[%s221 + $0x140] sm:$0xff] %v1167
      %1232 = vst [vmem:[%s221 + $0x148] sm:$0xff] %v1168
      %1233 = vst [vmem:[%s221 + $0x150] sm:$0xff] %v1169
      %1234 = vst [vmem:[%s221 + $0x158] sm:$0xff] %v1170
      %1235 = vst [vmem:[%s221 + $0x160] sm:$0xff] %v1171
      %1236 = vst [vmem:[%s221 + $0x168] sm:$0xff] %v1172
      %1237 = vst [vmem:[%s221 + $0x170] sm:$0xff] %v1173
      %1238 = vst [vmem:[%s221 + $0x178] sm:$0xff] %v1174
      %1239 = vst [vmem:[%s221 + $0x180] sm:$0xff] %v1175
      %1240 = vst [vmem:[%s221 + $0x188] sm:$0xff] %v1176
      %1241 = vst [vmem:[%s221 + $0x190] sm:$0xff] %v1177
      %1242 = vst [vmem:[%s221 + $0x198] sm:$0xff] %v1178
      %1243 = vst [vmem:[%s221 + $0x1a0] sm:$0xff] %v1179
      %1244 = vst [vmem:[%s221 + $0x1a8] sm:$0xff] %v1180
      %1245 = vst [vmem:[%s221 + $0x1b0] sm:$0xff] %v1181
      %1246 = vst [vmem:[%s221 + $0x1b8] sm:$0xff] %v1182
      %1247 = vst [vmem:[%s221 + $0x1c0] sm:$0xff] %v1183
      %1248 = vst [vmem:[%s221 + $0x1c8] sm:$0xff] %v1184
      %1249 = vst [vmem:[%s221 + $0x1d0] sm:$0xff] %v1185
      %1250 = vst [vmem:[%s221 + $0x1d8] sm:$0xff] %v1186
      %1251 = vst [vmem:[%s221 + $0x1e0] sm:$0xff] %v1187
      %1252 = vst [vmem:[%s221 + $0x1e8] sm:$0xff] %v1188
      %1253 = vst [vmem:[%s221 + $0x1f0] sm:$0xff] %v1189
      %1254 = vst [vmem:[%s221 + $0x1f8] sm:$0xff] %v1190
      %s1255 = smul.u32 64, %s15
      %p1256 = scmp.lt.s32.totalorder %s1255, 127
      %s1257 = scalar_select %p1256, %s1255, 127
      %s1258 = smul.addr %s1257, 8
      %s1259 = scalar_lea.vmem %s4, %s1258
      // Predicated region
      $region37: #{_lambda_.7} parent=35 // pred_check
        %p1260 = pneg %p127
      $region38: #{_lambda_.7} parent=35 // pred_check_branch
        %1262 = sbr.rel (%p1260) target = $region40
      $region39: #{_lambda_.7} parent=35 // pred_region
        %s1263 = smul.u32 64, %s15
      $region40: #{_lambda_.7} parent=35 // pred_fallthru
        _
    $region36: #{_lambda_.7} parent=5 // pred_fallthru
      _
    %p1264 = scmp.le.s32.totalorder 2, %s10
    // Predicated region
    $region41: #{_lambda_.7} parent=5 // pred_check
      %p1265 = pneg %p1264
    $region42: #{_lambda_.7} parent=5 // pred_check_branch
      %1267 = sbr.rel (%p1265) target = $region44
    $region43: #{_lambda_.7} parent=5 // pred_region
      %s1268 = ssub.s32 %s10, 2
      // Predicated region
      $region45: #{_lambda_.7} parent=43 // pred_check
        %p1269 = pneg %p133
      $region46: #{_lambda_.7} parent=43 // pred_check_branch
        %1271 = sbr.rel (%p1269) target = $region48
      $region47: #{_lambda_.7} parent=43 // pred_region
        %s1272 = smul.u32 64, %s16
        %p1273 = scmp.lt.s32.totalorder %s1272, 127
        %s1274 = scalar_select %p1273, %s1272, 127
        %s1275 = smul.addr %s1274, 8
        %s1276 = scalar_lea.vmem %s4, %s1275
      $region48: #{_lambda_.7} parent=43 // pred_fallthru
        _
    $region44: #{_lambda_.7} parent=5 // pred_fallthru
      _
  $region6: #{_lambda_.7} parent=0 // loop_footer
    %s14 = sadd.s32 1, %s10
  $region7: #{_lambda_.7} parent=0 // loop_footer_branch
    %9 = sbr.rel target = $region3
  $region8: #{_lambda_.7} parent=0 // loop_exit
    _

// kernel: _lambda_.6
$region0: #{_lambda_.6}
  #allocation0 [shape = 'u32[]', space=smem, size = 0x4, offset = 0x4, fixed_abs, tag = 'smem constant byte address 0x4 - core index']
  #allocation1 [shape = 'u32[72,128]{1,0:T(1,128)}', space=vmem, size = 0x9000, scoped, tag = 'internal scratch']
  #allocation2 [shape = 'f32[64,128]{1,0:T(8,128)}', space=vmem, size = 0x8000, scoped, tag = 'scratch operand']
  %s0 = inlined_call_operand.vmem [shape: f32[2,12,12,12,128], index: 0, kind: input, shape index: {}]
  %s1 = inlined_call_operand.vmem [shape: bf16[5,25,128,128], index: 1, kind: input, shape index: {}]
  %s2 = inlined_call_operand.vmem [shape: f32[1,128], index: 2, kind: input, shape index: {}]
  %s3 = inlined_call_operand.vmem [shape: f32[2,8,64,128], index: 3, kind: output, shape index: {0}]
  %s4 = inlined_call_operand.vmem [shape: f32[2,8,2,128], index: 4, kind: output, shape index: {1}]
  %5 = xla_tuple %s3, %s4
  %s6 = sld [smem:[#allocation0]]
  $region61: #{_lambda_.6} parent=0
    _
  %s8 = ssub.s32 1, %s6
  %s9 = scalar_select 0, %s8, %s6
  loop: start=0, step=1, limit=82
  $region2: #{_lambda_.6} parent=0 // loop_pre_header
    _
  $region3: #{_lambda_.6} parent=0 // loop_header
    %s11 = sphi 0, %s15
    %p12 = scmp.ge.s32.totalorder %s11, 82
    %s18 = sphi 0, %s37
    %s19 = sphi 0, %s33
    %s20 = sphi 0, %s29
    %s21 = sphi 0, %s18
    %s22 = sphi 0, %s19
    %s23 = sphi 0, %s20
    %s24 = sphi 0, %s21
    %s25 = sphi 0, %s22
    %s26 = sphi 0, %s23
    %s44 = sphi 0, %s46
    %s47 = sphi 0, %s44
    %s48 = sphi 0, %s47
    %s64 = sphi 0, %s48
    %s70 = sphi 0, %s72
    %s73 = sphi 0, %s70
    %s74 = sphi 0, %s73
    %s90 = sphi 0, %s74
    %s94 = sphi 0, %s94
    %s96 = sphi 0, %s94
    %s97 = sphi 0, %s96
    %s111 = sphi 0, %s97
    %s119 = sphi 0, %s121
    %s122 = sphi 0, %s119
    %s123 = sphi 0, %s122
    %s139 = sphi 0, %s123
    %s147 = sphi 0, %s149
    %s150 = sphi 0, %s147
    %s151 = sphi 0, %s150
    %s167 = sphi 0, %s151
  $region4: #{_lambda_.6} parent=0 // loop_header_branch
    %14 = sbr.rel (%p12) target = $region8
  $region5: #{_lambda_.6} parent=0 // loop_body
    %s16 = ssub.s32 %s11, 1
    %s17 = ssub.s32 %s11, 2
    %s27 = sadd.s32 1, %s20
    %p28 = scmp.ge.s32.totalorder %s27, 5
    %s29 = scalar_select %p28, 0, %s27
    %s30 = sadd.s32 1, %s19
    %s31 = scalar_select %p28, %s30, %s19
    %p32 = scmp.ge.s32.totalorder %s31, 8
    %s33 = scalar_select %p32, 0, %s31
    %s34 = sadd.s32 1, %s18
    %s35 = scalar_select %p32, %s34, %s18
    %p36 = scmp.ge.s32.totalorder %s35, 2
    %s37 = scalar_select %p36, 0, %s35
    %s38 = sadd.s32 %s19, %s20
    %s39 = sadd.s32 %s33, %s29
    %s40 = ssub.s32 %s18, %s37
    %s41 = ssub.s32 %s38, %s39
    %s42 = sor.u32 %s40, %s41
    %p43 = scmp.eq.s32.totalorder %s42, 0
    %s45 = sadd.s32 %s44, 1
    %s46 = scalar_select %p43, %s44, %s45
    %p49 = pneg %p43
    %p50 = scmp.eq.s32.totalorder %s11, 79
    %p51 = por %p49, %p50
    %p52 = scmp.ne.s32.totalorder %s44, %s47
    %p53 = scmp.eq.s32.totalorder %s11, 0
    %p54 = por %p52, %p53
    %p55 = scmp.ne.s32.totalorder %s44, %s47
    %p56 = scmp.eq.s32.totalorder %s16, 79
    %p57 = por %p55, %p56
    %p58 = scmp.ne.s32.totalorder %s47, %s48
    %p59 = scmp.eq.s32.totalorder %s16, 0
    %p60 = por %p58, %p59
    %p61 = scmp.ne.s32.totalorder %s47, %s48
    %p62 = scmp.eq.s32.totalorder %s17, 79
    %p63 = por %p61, %p62
    %p65 = scmp.ne.s32.totalorder %s48, %s64
    %p66 = scmp.eq.s32.totalorder %s17, 0
    %p67 = por %p65, %p66
    %s68 = ssub.s32 %s20, %s29
    %p69 = scmp.eq.s32.totalorder %s68, 0
    %s71 = sadd.s32 %s70, 1
    %s72 = scalar_select %p69, %s70, %s71
    %p75 = pneg %p69
    %p76 = scmp.eq.s32.totalorder %s11, 79
    %p77 = por %p75, %p76
    %p78 = scmp.ne.s32.totalorder %s70, %s73
    %p79 = scmp.eq.s32.totalorder %s11, 0
    %p80 = por %p78, %p79
    %p81 = scmp.ne.s32.totalorder %s70, %s73
    %p82 = scmp.eq.s32.totalorder %s16, 79
    %p83 = por %p81, %p82
    %p84 = scmp.ne.s32.totalorder %s73, %s74
    %p85 = scmp.eq.s32.totalorder %s16, 0
    %p86 = por %p84, %p85
    %p87 = scmp.ne.s32.totalorder %s73, %s74
    %p88 = scmp.eq.s32.totalorder %s17, 79
    %p89 = por %p87, %p88
    %p91 = scmp.ne.s32.totalorder %s74, %s90
    %p92 = scmp.eq.s32.totalorder %s17, 0
    %p93 = por %p91, %p92
    %s95 = sadd.s32 %s94, 1
    %p98 = scmp.eq.s32.totalorder %s11, 79
    %p99 = scmp.ne.s32.totalorder %s94, %s96
    %p100 = scmp.eq.s32.totalorder %s11, 0
    %p101 = por %p99, %p100
    %p102 = scmp.ne.s32.totalorder %s94, %s96
    %p103 = scmp.eq.s32.totalorder %s16, 79
    %p104 = por %p102, %p103
    %p105 = scmp.ne.s32.totalorder %s96, %s97
    %p106 = scmp.eq.s32.totalorder %s16, 0
    %p107 = por %p105, %p106
    %p108 = scmp.ne.s32.totalorder %s96, %s97
    %p109 = scmp.eq.s32.totalorder %s17, 79
    %p110 = por %p108, %p109
    %p112 = scmp.ne.s32.totalorder %s97, %s111
    %p113 = scmp.eq.s32.totalorder %s17, 0
    %p114 = por %p112, %p113
    %s115 = ssub.s32 %s18, %s37
    %s116 = ssub.s32 %s19, %s33
    %s117 = sor.u32 %s115, %s116
    %p118 = scmp.eq.s32.totalorder %s117, 0
    %s120 = sadd.s32 %s119, 1
    %s121 = scalar_select %p118, %s119, %s120
    %p124 = pneg %p118
    %p125 = scmp.eq.s32.totalorder %s11, 79
    %p126 = por %p124, %p125
    %p127 = scmp.ne.s32.totalorder %s119, %s122
    %p128 = scmp.eq.s32.totalorder %s11, 0
    %p129 = por %p127, %p128
    %p130 = scmp.ne.s32.totalorder %s119, %s122
    %p131 = scmp.eq.s32.totalorder %s16, 79
    %p132 = por %p130, %p131
    %p133 = scmp.ne.s32.totalorder %s122, %s123
    %p134 = scmp.eq.s32.totalorder %s16, 0
    %p135 = por %p133, %p134
    %p136 = scmp.ne.s32.totalorder %s122, %s123
    %p137 = scmp.eq.s32.totalorder %s17, 79
    %p138 = por %p136, %p137
    %p140 = scmp.ne.s32.totalorder %s123, %s139
    %p141 = scmp.eq.s32.totalorder %s17, 0
    %p142 = por %p140, %p141
    %s143 = ssub.s32 %s18, %s37
    %s144 = ssub.s32 %s19, %s33
    %s145 = sor.u32 %s143, %s144
    %p146 = scmp.eq.s32.totalorder %s145, 0
    %s148 = sadd.s32 %s147, 1
    %s149 = scalar_select %p146, %s147, %s148
    %p152 = pneg %p146
    %p153 = scmp.eq.s32.totalorder %s11, 79
    %p154 = por %p152, %p153
    %p155 = scmp.ne.s32.totalorder %s147, %s150
    %p156 = scmp.eq.s32.totalorder %s11, 0
    %p157 = por %p155, %p156
    %p158 = scmp.ne.s32.totalorder %s147, %s150
    %p159 = scmp.eq.s32.totalorder %s16, 79
    %p160 = por %p158, %p159
    %p161 = scmp.ne.s32.totalorder %s150, %s151
    %p162 = scmp.eq.s32.totalorder %s16, 0
    %p163 = por %p161, %p162
    %p164 = scmp.ne.s32.totalorder %s150, %s151
    %p165 = scmp.eq.s32.totalorder %s17, 79
    %p166 = por %p164, %p165
    %p168 = scmp.ne.s32.totalorder %s151, %s167
    %p169 = scmp.eq.s32.totalorder %s17, 0
    %p170 = por %p168, %p169
    %p171 = scmp.le.s32.totalorder 1, %s11
    %p172 = scmp.lt.s32.totalorder %s11, 81
    %p173 = pnand %p171, %p172
    %p174 = pneg %p173
    // Predicated region
    $region9: #{_lambda_.6} parent=5 // pred_check
      _
    $region10: #{_lambda_.6} parent=5 // pred_check_branch
      %176 = sbr.rel (%p173) target = $region12
    $region11: #{_lambda_.6} parent=5 // pred_region
      %s177 = ssub.s32 %s11, 1
      // Predicated region
      $region13: #{_lambda_.6} parent=11 // pred_check
        %p178 = pneg %p107
      $region14: #{_lambda_.6} parent=11 // pred_check_branch
        %180 = sbr.rel (%p178) target = $region16
      $region15: #{_lambda_.6} parent=11 // pred_region
        _
      $region16: #{_lambda_.6} parent=11 // pred_fallthru
        _
    $region12: #{_lambda_.6} parent=5 // pred_fallthru
      _
    %p181 = scmp.lt.s32.totalorder %s11, 80
    // Predicated region
    $region17: #{_lambda_.6} parent=5 // pred_check
      %p182 = pneg %p181
    $region18: #{_lambda_.6} parent=5 // pred_check_branch
      %184 = sbr.rel (%p182) target = $region20
    $region19: #{_lambda_.6} parent=5 // pred_region
      // Predicated region
      $region21: #{_lambda_.6} parent=19 // pred_check
        %p185 = pneg %p54
      $region22: #{_lambda_.6} parent=19 // pred_check_branch
        %187 = sbr.rel (%p185) target = $region24
      $region23: #{_lambda_.6} parent=19 // pred_region
        %s188 = sadd.s32 %s19, %s20
        %p189 = scmp.lt.s32.totalorder %s18, 1
        %s190 = scalar_select %p189, %s18, 1
        %p191 = scmp.lt.s32.totalorder %s188, 11
        %s192 = scalar_select %p191, %s188, 11
        %s193 = smul.addr %s192, 24
        %s194 = smul.addr %s190, 288
        %s195 = sadd.s32 %s193, %s194
        %s196 = smul.addr %s195, 8
        %s197 = scalar_lea.vmem %s0, %s196
        %s198 = sadd.s32 %s19, %s20
      $region24: #{_lambda_.6} parent=19 // pred_fallthru
        _
      // Predicated region
      $region25: #{_lambda_.6} parent=19 // pred_check
        %p199 = pneg %p80
      $region26: #{_lambda_.6} parent=19 // pred_check_branch
        %201 = sbr.rel (%p199) target = $region28
      $region27: #{_lambda_.6} parent=19 // pred_region
        %p202 = scmp.lt.s32.totalorder %s20, 4
        %s203 = scalar_select %p202, %s20, 4
        %s204 = smul.addr %s203, 400
        %s205 = smul.addr %s204, 4
        %s206 = scalar_lea.vmem %s1, %s205
      $region28: #{_lambda_.6} parent=19 // pred_fallthru
        _
    $region20: #{_lambda_.6} parent=5 // pred_fallthru
      _
    %p207 = scmp.le.s32.totalorder 1, %s11
    %p208 = scmp.lt.s32.totalorder %s11, 81
    %p209 = pnand %p207, %p208
    %p210 = pneg %p209
    // Predicated region
    $region29: #{_lambda_.6} parent=5 // pred_check
      _
    $region30: #{_lambda_.6} parent=5 // pred_check_branch
      %212 = sbr.rel (%p209) target = $region32
    $region31: #{_lambda_.6} parent=5 // pred_region
      %s213 = ssub.s32 %s11, 1
      %s214 = sadd.s32 %s22, %s23
      %p215 = scmp.lt.s32.totalorder %s21, 1
      %s216 = scalar_select %p215, %s21, 1
      %p217 = scmp.lt.s32.totalorder %s214, 11
      %s218 = scalar_select %p217, %s214, 11
      %s219 = smul.addr %s218, 24
      %s220 = smul.addr %s216, 288
      %s221 = sadd.s32 %s219, %s220
      %s222 = smul.addr %s221, 8
      %s223 = scalar_lea.vmem %s0, %s222
      %p224 = pneg %p60
      %p225 = pneg %p57
      %p226 = scmp.lt.s32.totalorder %s23, 4
      %s227 = scalar_select %p226, %s23, 4
      %s228 = smul.addr %s227, 400
      %s229 = smul.addr %s228, 4
      %s230 = scalar_lea.vmem %s1, %s229
      %p231 = pneg %p86
      %p232 = pneg %p83
      %p233 = pneg %p107
      %p234 = pneg %p104
      %p235 = pneg %p135
      %p236 = pneg %p132
      %p237 = scmp.lt.s32.totalorder %s21, 1
      %s238 = scalar_select %p237, %s21, 1
      %p239 = scmp.lt.s32.totalorder %s22, 7
      %s240 = scalar_select %p239, %s22, 7
      %s241 = smul.addr %s240, 8
      %s242 = smul.addr %s238, 64
      %s243 = sadd.s32 %s241, %s242
      %s244 = smul.addr %s243, 8
      %s245 = scalar_lea.vmem %s3, %s244
      %p246 = pneg %p163
      %p247 = pneg %p160
      %p248 = scmp.lt.s32.totalorder %s21, 1
      %s249 = scalar_select %p248, %s21, 1
      %p250 = scmp.lt.s32.totalorder %s22, 7
      %s251 = scalar_select %p250, %s22, 7
      %s252 = smul.addr %s249, 8
      %s253 = sadd.s32 %s251, %s252
      %s254 = smul.addr %s253, 2
      %s255 = scalar_lea.vmem %s4, %s254
      %s256 = sadd.s32 %s22, %s23
      %p257 = scmp.lt.s32.totalorder %s21, 1
      %s258 = scalar_select %p257, %s21, 1
      %p259 = scmp.lt.s32.totalorder %s256, 11
      %s260 = scalar_select %p259, %s256, 11
      %s261 = smul.addr %s260, 24
      %s262 = smul.addr %s258, 288
      %s263 = sadd.s32 %s261, %s262
      %s264 = smul.addr %s263, 8
      %s265 = scalar_lea.vmem %s0, %s264
      %s266 = sadd.s32 %s22, %s23
      %p267 = scmp.lt.s32.totalorder %s23, 4
      %s268 = scalar_select %p267, %s23, 4
      %s269 = smul.addr %s268, 400
      %s270 = smul.addr %s269, 4
      %s271 = scalar_lea.vmem %s1, %s270
      %p272 = scmp.lt.s32.totalorder %s21, 1
      %s273 = scalar_select %p272, %s21, 1
      %p274 = scmp.lt.s32.totalorder %s22, 7
      %s275 = scalar_select %p274, %s22, 7
      %s276 = smul.addr %s275, 8
      %s277 = smul.addr %s273, 64
      %s278 = sadd.s32 %s276, %s277
      %s279 = smul.addr %s278, 8
      %s280 = scalar_lea.vmem %s3, %s279
      %p281 = scmp.lt.s32.totalorder %s21, 1
      %s282 = scalar_select %p281, %s21, 1
      %p283 = scmp.lt.s32.totalorder %s22, 7
      %s284 = scalar_select %p283, %s22, 7
      %s285 = smul.addr %s282, 8
      %s286 = sadd.s32 %s284, %s285
      %s287 = smul.addr %s286, 2
      %s288 = scalar_lea.vmem %s4, %s287
      %p289 = scmp.eq.s32.totalorder %s23, 0
      // Predicated region
      $region33: #{_lambda_.6} parent=31 // pred_check
        %p290 = pneg %p289
      $region34: #{_lambda_.6} parent=31 // pred_check_branch
        %292 = sbr.rel (%p290) target = $region36
      $region35: #{_lambda_.6} parent=31 // pred_region
        %293 = vst [vmem:[#allocation2] sm:$0xff] 0.0
        %294 = vst [vmem:[#allocation2 + $0x8] sm:$0xff] 0.0
        %295 = vst [vmem:[#allocation2 + $0x10] sm:$0xff] 0.0
        %296 = vst [vmem:[#allocation2 + $0x18] sm:$0xff] 0.0
        %297 = vst [vmem:[#allocation2 + $0x20] sm:$0xff] 0.0
        %298 = vst [vmem:[#allocation2 + $0x28] sm:$0xff] 0.0
        %299 = vst [vmem:[#allocation2 + $0x30] sm:$0xff] 0.0
        %300 = vst [vmem:[#allocation2 + $0x38] sm:$0xff] 0.0
      $region36: #{_lambda_.6} parent=31 // pred_fallthru
        _
      %v301 = vld [vmem:[#allocation2] sm:$0xff]
      %v302 = vld [vmem:[#allocation2 + $0x8] sm:$0xff]
      %v303 = vld [vmem:[#allocation2 + $0x10] sm:$0xff]
      %v304 = vld [vmem:[#allocation2 + $0x18] sm:$0xff]
      %v305 = vld [vmem:[#allocation2 + $0x20] sm:$0xff]
      %v306 = vld [vmem:[#allocation2 + $0x28] sm:$0xff]
      %v307 = vld [vmem:[#allocation2 + $0x30] sm:$0xff]
      %v308 = vld [vmem:[#allocation2 + $0x38] sm:$0xff]
      %v309 = vld [vmem:[%s265] sm:$0xff]
      %v310 = vld [vmem:[%s265 + $0x10] sm:$0xff]
      %v311 = vld [vmem:[%s265 + $0x20] sm:$0xff]
      %v312 = vld [vmem:[%s265 + $0x30] sm:$0xff]
      %v313 = vld [vmem:[%s265 + $0x40] sm:$0xff]
      %v314 = vld [vmem:[%s265 + $0x50] sm:$0xff]
      %v315 = vld [vmem:[%s265 + $0x60] sm:$0xff]
      %v316 = vld [vmem:[%s265 + $0x70] sm:$0xff]
      %v317 = vpack.c.bf16 %v310, %v309
      %v318 = vpack.c.bf16 %v312, %v311
      %v319 = vpack.c.bf16 %v314, %v313
      %v320 = vpack.c.bf16 %v316, %v315
      %v321 = vld [vmem:[%s271] sm:$0xf]
      %v322 = vld [vmem:[%s271 + $0x4] sm:$0xf]
      %v323 = vld [vmem:[%s271 + $0x8] sm:$0xf]
      %v324 = vld [vmem:[%s271 + $0xc] sm:$0xf]
      %v325 = vld [vmem:[%s271 + $0x10] sm:$0xf]
      %v326 = vld [vmem:[%s271 + $0x14] sm:$0xf]
      %v327 = vld [vmem:[%s271 + $0x18] sm:$0xf]
      %v328 = vld [vmem:[%s271 + $0x1c] sm:$0xf]
      %v329 = vld [vmem:[%s271 + $0x20] sm:$0xf]
      %v330 = vld [vmem:[%s271 + $0x24] sm:$0xf]
      %v331 = vld [vmem:[%s271 + $0x28] sm:$0xf]
      %v332 = vld [vmem:[%s271 + $0x2c] sm:$0xf]
      %v333 = vld [vmem:[%s271 + $0x30] sm:$0xf]
      %v334 = vld [vmem:[%s271 + $0x34] sm:$0xf]
      %v335 = vld [vmem:[%s271 + $0x38] sm:$0xf]
      %v336 = vld [vmem:[%s271 + $0x3c] sm:$0xf]
      %v353 = vunpack.c.l.b16 %v321
      %v354 = vunpack.c.l.b16 %v322
      %v355 = vunpack.c.l.b16 %v323
      %v356 = vunpack.c.l.b16 %v324
      %v357 = vunpack.c.l.b16 %v325
      %v358 = vunpack.c.l.b16 %v326
      %v359 = vunpack.c.l.b16 %v327
      %v360 = vunpack.c.l.b16 %v328
      %v361 = vunpack.c.l.b16 %v329
      %v362 = vunpack.c.l.b16 %v330
      %v363 = vunpack.c.l.b16 %v331
      %v364 = vunpack.c.l.b16 %v332
      %v365 = vunpack.c.l.b16 %v333
      %v366 = vunpack.c.l.b16 %v334
      %v367 = vunpack.c.l.b16 %v335
      %v368 = vunpack.c.l.b16 %v336
      %v369 = vpack.c.b16 %v354, %v353
      %v370 = vpack.c.b16 %v356, %v355
      %v371 = vpack.c.b16 %v358, %v357
      %v372 = vpack.c.b16 %v360, %v359
      %v373 = vpack.c.b16 %v362, %v361
      %v374 = vpack.c.b16 %v364, %v363
      %v375 = vpack.c.b16 %v366, %v365
      %v376 = vpack.c.b16 %v368, %v367
      %385 = vmatpush.bf16.msra.mxu0 %v376
      %386 = vmatpush.bf16.msra.mxu0 %v375
      %387 = vmatpush.bf16.msra.mxu0 %v374
      %388 = vmatpush.bf16.msra.mxu0 %v373
      %389 = vmatpush.bf16.msra.mxu0 %v372
      %390 = vmatpush.bf16.msra.mxu0 %v371
      %391 = vmatpush.bf16.msra.mxu0 %v370
      %392 = vmatpush.bf16.msra.mxu0 %v369
      %393 = vmatmul.bf16.gmra.mxu0 %v317
      %v394 = vpop.f32.mrf.mxu0
      %v395 = vadd.f32 0.0, %v394
      %v396 = vpop.f32.mrf.mxu0
      %v397 = vadd.f32 0.0, %v396
      %398 = vmatmul.bf16.gmra.mxu0 %v318
      %v399 = vpop.f32.mrf.mxu0
      %v400 = vadd.f32 0.0, %v399
      %v401 = vpop.f32.mrf.mxu0
      %v402 = vadd.f32 0.0, %v401
      %403 = vmatmul.bf16.gmra.mxu0 %v319
      %v404 = vpop.f32.mrf.mxu0
      %v405 = vadd.f32 0.0, %v404
      %v406 = vpop.f32.mrf.mxu0
      %v407 = vadd.f32 0.0, %v406
      %408 = vmatmul.bf16.gmra.mxu0 %v320
      %v409 = vpop.f32.mrf.mxu0
      %v410 = vadd.f32 0.0, %v409
      %v411 = vpop.f32.mrf.mxu0
      %v412 = vadd.f32 0.0, %v411
      %413 = vdwg.mxu0
      %v414 = vadd.f32 %v301, %v395
      %v415 = vadd.f32 %v302, %v397
      %v416 = vadd.f32 %v303, %v400
      %v417 = vadd.f32 %v304, %v402
      %v418 = vadd.f32 %v305, %v405
      %v419 = vadd.f32 %v306, %v407
      %v420 = vadd.f32 %v307, %v410
      %v421 = vadd.f32 %v308, %v412
      %v422 = vld [vmem:[%s265 + $0x1] sm:$0xff]
      %v423 = vld [vmem:[%s265 + $0x11] sm:$0xff]
      %v424 = vld [vmem:[%s265 + $0x21] sm:$0xff]
      %v425 = vld [vmem:[%s265 + $0x31] sm:$0xff]
      %v426 = vld [vmem:[%s265 + $0x41] sm:$0xff]
      %v427 = vld [vmem:[%s265 + $0x51] sm:$0xff]
      %v428 = vld [vmem:[%s265 + $0x61] sm:$0xff]
      %v429 = vld [vmem:[%s265 + $0x71] sm:$0xff]
      %v430 = vpack.c.bf16 %v423, %v422
      %v431 = vpack.c.bf16 %v425, %v424
      %v432 = vpack.c.bf16 %v427, %v426
      %v433 = vpack.c.bf16 %v429, %v428
      %s434 = scalar_lea.vmem %s271, 64
      %v435 = vld [vmem:[%s434] sm:$0xf]
      %v436 = vld [vmem:[%s434 + $0x4] sm:$0xf]
      %v437 = vld [vmem:[%s434 + $0x8] sm:$0xf]
      %v438 = vld [vmem:[%s434 + $0xc] sm:$0xf]
      %v439 = vld [vmem:[%s434 + $0x10] sm:$0xf]
      %v440 = vld [vmem:[%s434 + $0x14] sm:$0xf]
      %v441 = vld [vmem:[%s434 + $0x18] sm:$0xf]
      %v442 = vld [vmem:[%s434 + $0x1c] sm:$0xf]
      %v443 = vld [vmem:[%s434 + $0x20] sm:$0xf]
      %v444 = vld [vmem:[%s434 + $0x24] sm:$0xf]
      %v445 = vld [vmem:[%s434 + $0x28] sm:$0xf]
      %v446 = vld [vmem:[%s434 + $0x2c] sm:$0xf]
      %v447 = vld [vmem:[%s434 + $0x30] sm:$0xf]
      %v448 = vld [vmem:[%s434 + $0x34] sm:$0xf]
      %v449 = vld [vmem:[%s434 + $0x38] sm:$0xf]
      %v450 = vld [vmem:[%s434 + $0x3c] sm:$0xf]
      %v467 = vunpack.c.l.b16 %v435
      %v468 = vunpack.c.l.b16 %v436
      %v469 = vunpack.c.l.b16 %v437
      %v470 = vunpack.c.l.b16 %v438
      %v471 = vunpack.c.l.b16 %v439
      %v472 = vunpack.c.l.b16 %v440
      %v473 = vunpack.c.l.b16 %v441
      %v474 = vunpack.c.l.b16 %v442
      %v475 = vunpack.c.l.b16 %v443
      %v476 = vunpack.c.l.b16 %v444
      %v477 = vunpack.c.l.b16 %v445
      %v478 = vunpack.c.l.b16 %v446
      %v479 = vunpack.c.l.b16 %v447
      %v480 = vunpack.c.l.b16 %v448
      %v481 = vunpack.c.l.b16 %v449
      %v482 = vunpack.c.l.b16 %v450
      %v483 = vpack.c.b16 %v468, %v467
      %v484 = vpack.c.b16 %v470, %v469
      %v485 = vpack.c.b16 %v472, %v471
      %v486 = vpack.c.b16 %v474, %v473
      %v487 = vpack.c.b16 %v476, %v475
      %v488 = vpack.c.b16 %v478, %v477
      %v489 = vpack.c.b16 %v480, %v479
      %v490 = vpack.c.b16 %v482, %v481
      %499 = vmatpush.bf16.msra.mxu0 %v490
      %500 = vmatpush.bf16.msra.mxu0 %v489
      %501 = vmatpush.bf16.msra.mxu0 %v488
      %502 = vmatpush.bf16.msra.mxu0 %v487
      %503 = vmatpush.bf16.msra.mxu0 %v486
      %504 = vmatpush.bf16.msra.mxu0 %v485
      %505 = vmatpush.bf16.msra.mxu0 %v484
      %506 = vmatpush.bf16.msra.mxu0 %v483
      %507 = vmatmul.bf16.gmra.mxu0 %v430
      %v508 = vpop.f32.mrf.mxu0
      %v509 = vadd.f32 0.0, %v508
      %v510 = vpop.f32.mrf.mxu0
      %v511 = vadd.f32 0.0, %v510
      %512 = vmatmul.bf16.gmra.mxu0 %v431
      %v513 = vpop.f32.mrf.mxu0
      %v514 = vadd.f32 0.0, %v513
      %v515 = vpop.f32.mrf.mxu0
      %v516 = vadd.f32 0.0, %v515
      %517 = vmatmul.bf16.gmra.mxu0 %v432
      %v518 = vpop.f32.mrf.mxu0
      %v519 = vadd.f32 0.0, %v518
      %v520 = vpop.f32.mrf.mxu0
      %v521 = vadd.f32 0.0, %v520
      %522 = vmatmul.bf16.gmra.mxu0 %v433
      %v523 = vpop.f32.mrf.mxu0
      %v524 = vadd.f32 0.0, %v523
      %v525 = vpop.f32.mrf.mxu0
      %v526 = vadd.f32 0.0, %v525
      %527 = vdwg.mxu0
      %v528 = vadd.f32 %v414, %v509
      %v529 = vadd.f32 %v415, %v511
      %v530 = vadd.f32 %v416, %v514
      %v531 = vadd.f32 %v417, %v516
      %v532 = vadd.f32 %v418, %v519
      %v533 = vadd.f32 %v419, %v521
      %v534 = vadd.f32 %v420, %v524
      %v535 = vadd.f32 %v421, %v526
      %v536 = vld [vmem:[%s265 + $0x2] sm:$0xff]
      %v537 = vld [vmem:[%s265 + $0x12] sm:$0xff]
      %v538 = vld [vmem:[%s265 + $0x22] sm:$0xff]
      %v539 = vld [vmem:[%s265 + $0x32] sm:$0xff]
      %v540 = vld [vmem:[%s265 + $0x42] sm:$0xff]
      %v541 = vld [vmem:[%s265 + $0x52] sm:$0xff]
      %v542 = vld [vmem:[%s265 + $0x62] sm:$0xff]
      %v543 = vld [vmem:[%s265 + $0x72] sm:$0xff]
      %v544 = vpack.c.bf16 %v537, %v536
      %v545 = vpack.c.bf16 %v539, %v538
      %v546 = vpack.c.bf16 %v541, %v540
      %v547 = vpack.c.bf16 %v543, %v542
      %s548 = scalar_lea.vmem %s271, 128
      %v549 = vld [vmem:[%s548] sm:$0xf]
      %v550 = vld [vmem:[%s548 + $0x4] sm:$0xf]
      %v551 = vld [vmem:[%s548 + $0x8] sm:$0xf]
      %v552 = vld [vmem:[%s548 + $0xc] sm:$0xf]
      %v553 = vld [vmem:[%s548 + $0x10] sm:$0xf]
      %v554 = vld [vmem:[%s548 + $0x14] sm:$0xf]
      %v555 = vld [vmem:[%s548 + $0x18] sm:$0xf]
      %v556 = vld [vmem:[%s548 + $0x1c] sm:$0xf]
      %v557 = vld [vmem:[%s548 + $0x20] sm:$0xf]
      %v558 = vld [vmem:[%s548 + $0x24] sm:$0xf]
      %v559 = vld [vmem:[%s548 + $0x28] sm:$0xf]
      %v560 = vld [vmem:[%s548 + $0x2c] sm:$0xf]
      %v561 = vld [vmem:[%s548 + $0x30] sm:$0xf]
      %v562 = vld [vmem:[%s548 + $0x34] sm:$0xf]
      %v563 = vld [vmem:[%s548 + $0x38] sm:$0xf]
      %v564 = vld [vmem:[%s548 + $0x3c] sm:$0xf]
      %v581 = vunpack.c.l.b16 %v549
      %v582 = vunpack.c.l.b16 %v550
      %v583 = vunpack.c.l.b16 %v551
      %v584 = vunpack.c.l.b16 %v552
      %v585 = vunpack.c.l.b16 %v553
      %v586 = vunpack.c.l.b16 %v554
      %v587 = vunpack.c.l.b16 %v555
      %v588 = vunpack.c.l.b16 %v556
      %v589 = vunpack.c.l.b16 %v557
      %v590 = vunpack.c.l.b16 %v558
      %v591 = vunpack.c.l.b16 %v559
      %v592 = vunpack.c.l.b16 %v560
      %v593 = vunpack.c.l.b16 %v561
      %v594 = vunpack.c.l.b16 %v562
      %v595 = vunpack.c.l.b16 %v563
      %v596 = vunpack.c.l.b16 %v564
      %v597 = vpack.c.b16 %v582, %v581
      %v598 = vpack.c.b16 %v584, %v583
      %v599 = vpack.c.b16 %v586, %v585
      %v600 = vpack.c.b16 %v588, %v587
      %v601 = vpack.c.b16 %v590, %v589
      %v602 = vpack.c.b16 %v592, %v591
      %v603 = vpack.c.b16 %v594, %v593
      %v604 = vpack.c.b16 %v596, %v595
      %613 = vmatpush.bf16.msra.mxu0 %v604
      %614 = vmatpush.bf16.msra.mxu0 %v603
      %615 = vmatpush.bf16.msra.mxu0 %v602
      %616 = vmatpush.bf16.msra.mxu0 %v601
      %617 = vmatpush.bf16.msra.mxu0 %v600
      %618 = vmatpush.bf16.msra.mxu0 %v599
      %619 = vmatpush.bf16.msra.mxu0 %v598
      %620 = vmatpush.bf16.msra.mxu0 %v597
      %621 = vmatmul.bf16.gmra.mxu0 %v544
      %v622 = vpop.f32.mrf.mxu0
      %v623 = vadd.f32 0.0, %v622
      %v624 = vpop.f32.mrf.mxu0
      %v625 = vadd.f32 0.0, %v624
      %626 = vmatmul.bf16.gmra.mxu0 %v545
      %v627 = vpop.f32.mrf.mxu0
      %v628 = vadd.f32 0.0, %v627
      %v629 = vpop.f32.mrf.mxu0
      %v630 = vadd.f32 0.0, %v629
      %631 = vmatmul.bf16.gmra.mxu0 %v546
      %v632 = vpop.f32.mrf.mxu0
      %v633 = vadd.f32 0.0, %v632
      %v634 = vpop.f32.mrf.mxu0
      %v635 = vadd.f32 0.0, %v634
      %636 = vmatmul.bf16.gmra.mxu0 %v547
      %v637 = vpop.f32.mrf.mxu0
      %v638 = vadd.f32 0.0, %v637
      %v639 = vpop.f32.mrf.mxu0
      %v640 = vadd.f32 0.0, %v639
      %641 = vdwg.mxu0
      %v642 = vadd.f32 %v528, %v623
      %v643 = vadd.f32 %v529, %v625
      %v644 = vadd.f32 %v530, %v628
      %v645 = vadd.f32 %v531, %v630
      %v646 = vadd.f32 %v532, %v633
      %v647 = vadd.f32 %v533, %v635
      %v648 = vadd.f32 %v534, %v638
      %v649 = vadd.f32 %v535, %v640
      %v650 = vld [vmem:[%s265 + $0x3] sm:$0xff]
      %v651 = vld [vmem:[%s265 + $0x13] sm:$0xff]
      %v652 = vld [vmem:[%s265 + $0x23] sm:$0xff]
      %v653 = vld [vmem:[%s265 + $0x33] sm:$0xff]
      %v654 = vld [vmem:[%s265 + $0x43] sm:$0xff]
      %v655 = vld [vmem:[%s265 + $0x53] sm:$0xff]
      %v656 = vld [vmem:[%s265 + $0x63] sm:$0xff]
      %v657 = vld [vmem:[%s265 + $0x73] sm:$0xff]
      %v658 = vpack.c.bf16 %v651, %v650
      %v659 = vpack.c.bf16 %v653, %v652
      %v660 = vpack.c.bf16 %v655, %v654
      %v661 = vpack.c.bf16 %v657, %v656
      %s662 = scalar_lea.vmem %s271, 192
      %v663 = vld [vmem:[%s662] sm:$0xf]
      %v664 = vld [vmem:[%s662 + $0x4] sm:$0xf]
      %v665 = vld [vmem:[%s662 + $0x8] sm:$0xf]
      %v666 = vld [vmem:[%s662 + $0xc] sm:$0xf]
      %v667 = vld [vmem:[%s662 + $0x10] sm:$0xf]
      %v668 = vld [vmem:[%s662 + $0x14] sm:$0xf]
      %v669 = vld [vmem:[%s662 + $0x18] sm:$0xf]
      %v670 = vld [vmem:[%s662 + $0x1c] sm:$0xf]
      %v671 = vld [vmem:[%s662 + $0x20] sm:$0xf]
      %v672 = vld [vmem:[%s662 + $0x24] sm:$0xf]
      %v673 = vld [vmem:[%s662 + $0x28] sm:$0xf]
      %v674 = vld [vmem:[%s662 + $0x2c] sm:$0xf]
      %v675 = vld [vmem:[%s662 + $0x30] sm:$0xf]
      %v676 = vld [vmem:[%s662 + $0x34] sm:$0xf]
      %v677 = vld [vmem:[%s662 + $0x38] sm:$0xf]
      %v678 = vld [vmem:[%s662 + $0x3c] sm:$0xf]
      %v695 = vunpack.c.l.b16 %v663
      %v696 = vunpack.c.l.b16 %v664
      %v697 = vunpack.c.l.b16 %v665
      %v698 = vunpack.c.l.b16 %v666
      %v699 = vunpack.c.l.b16 %v667
      %v700 = vunpack.c.l.b16 %v668
      %v701 = vunpack.c.l.b16 %v669
      %v702 = vunpack.c.l.b16 %v670
      %v703 = vunpack.c.l.b16 %v671
      %v704 = vunpack.c.l.b16 %v672
      %v705 = vunpack.c.l.b16 %v673
      %v706 = vunpack.c.l.b16 %v674
      %v707 = vunpack.c.l.b16 %v675
      %v708 = vunpack.c.l.b16 %v676
      %v709 = vunpack.c.l.b16 %v677
      %v710 = vunpack.c.l.b16 %v678
      %v711 = vpack.c.b16 %v696, %v695
      %v712 = vpack.c.b16 %v698, %v697
      %v713 = vpack.c.b16 %v700, %v699
      %v714 = vpack.c.b16 %v702, %v701
      %v715 = vpack.c.b16 %v704, %v703
      %v716 = vpack.c.b16 %v706, %v705
      %v717 = vpack.c.b16 %v708, %v707
      %v718 = vpack.c.b16 %v710, %v709
      %727 = vmatpush.bf16.msra.mxu0 %v718
      %728 = vmatpush.bf16.msra.mxu0 %v717
      %729 = vmatpush.bf16.msra.mxu0 %v716
      %730 = vmatpush.bf16.msra.mxu0 %v715
      %731 = vmatpush.bf16.msra.mxu0 %v714
      %732 = vmatpush.bf16.msra.mxu0 %v713
      %733 = vmatpush.bf16.msra.mxu0 %v712
      %734 = vmatpush.bf16.msra.mxu0 %v711
      %735 = vmatmul.bf16.gmra.mxu0 %v658
      %v736 = vpop.f32.mrf.mxu0
      %v737 = vadd.f32 0.0, %v736
      %v738 = vpop.f32.mrf.mxu0
      %v739 = vadd.f32 0.0, %v738
      %740 = vmatmul.bf16.gmra.mxu0 %v659
      %v741 = vpop.f32.mrf.mxu0
      %v742 = vadd.f32 0.0, %v741
      %v743 = vpop.f32.mrf.mxu0
      %v744 = vadd.f32 0.0, %v743
      %745 = vmatmul.bf16.gmra.mxu0 %v660
      %v746 = vpop.f32.mrf.mxu0
      %v747 = vadd.f32 0.0, %v746
      %v748 = vpop.f32.mrf.mxu0
      %v749 = vadd.f32 0.0, %v748
      %750 = vmatmul.bf16.gmra.mxu0 %v661
      %v751 = vpop.f32.mrf.mxu0
      %v752 = vadd.f32 0.0, %v751
      %v753 = vpop.f32.mrf.mxu0
      %v754 = vadd.f32 0.0, %v753
      %755 = vdwg.mxu0
      %v756 = vadd.f32 %v642, %v737
      %v757 = vadd.f32 %v643, %v739
      %v758 = vadd.f32 %v644, %v742
      %v759 = vadd.f32 %v645, %v744
      %v760 = vadd.f32 %v646, %v747
      %v761 = vadd.f32 %v647, %v749
      %v762 = vadd.f32 %v648, %v752
      %v763 = vadd.f32 %v649, %v754
      %v764 = vld [vmem:[%s265 + $0x4] sm:$0xff]
      %v765 = vld [vmem:[%s265 + $0x14] sm:$0xff]
      %v766 = vld [vmem:[%s265 + $0x24] sm:$0xff]
      %v767 = vld [vmem:[%s265 + $0x34] sm:$0xff]
      %v768 = vld [vmem:[%s265 + $0x44] sm:$0xff]
      %v769 = vld [vmem:[%s265 + $0x54] sm:$0xff]
      %v770 = vld [vmem:[%s265 + $0x64] sm:$0xff]
      %v771 = vld [vmem:[%s265 + $0x74] sm:$0xff]
      %v772 = vpack.c.bf16 %v765, %v764
      %v773 = vpack.c.bf16 %v767, %v766
      %v774 = vpack.c.bf16 %v769, %v768
      %v775 = vpack.c.bf16 %v771, %v770
      %s776 = scalar_lea.vmem %s271, 256
      %v777 = vld [vmem:[%s776] sm:$0xf]
      %v778 = vld [vmem:[%s776 + $0x4] sm:$0xf]
      %v779 = vld [vmem:[%s776 + $0x8] sm:$0xf]
      %v780 = vld [vmem:[%s776 + $0xc] sm:$0xf]
      %v781 = vld [vmem:[%s776 + $0x10] sm:$0xf]
      %v782 = vld [vmem:[%s776 + $0x14] sm:$0xf]
      %v783 = vld [vmem:[%s776 + $0x18] sm:$0xf]
      %v784 = vld [vmem:[%s776 + $0x1c] sm:$0xf]
      %v785 = vld [vmem:[%s776 + $0x20] sm:$0xf]
      %v786 = vld [vmem:[%s776 + $0x24] sm:$0xf]
      %v787 = vld [vmem:[%s776 + $0x28] sm:$0xf]
      %v788 = vld [vmem:[%s776 + $0x2c] sm:$0xf]
      %v789 = vld [vmem:[%s776 + $0x30] sm:$0xf]
      %v790 = vld [vmem:[%s776 + $0x34] sm:$0xf]
      %v791 = vld [vmem:[%s776 + $0x38] sm:$0xf]
      %v792 = vld [vmem:[%s776 + $0x3c] sm:$0xf]
      %v809 = vunpack.c.l.b16 %v777
      %v810 = vunpack.c.l.b16 %v778
      %v811 = vunpack.c.l.b16 %v779
      %v812 = vunpack.c.l.b16 %v780
      %v813 = vunpack.c.l.b16 %v781
      %v814 = vunpack.c.l.b16 %v782
      %v815 = vunpack.c.l.b16 %v783
      %v816 = vunpack.c.l.b16 %v784
      %v817 = vunpack.c.l.b16 %v785
      %v818 = vunpack.c.l.b16 %v786
      %v819 = vunpack.c.l.b16 %v787
      %v820 = vunpack.c.l.b16 %v788
      %v821 = vunpack.c.l.b16 %v789
      %v822 = vunpack.c.l.b16 %v790
      %v823 = vunpack.c.l.b16 %v791
      %v824 = vunpack.c.l.b16 %v792
      %v825 = vpack.c.b16 %v810, %v809
      %v826 = vpack.c.b16 %v812, %v811
      %v827 = vpack.c.b16 %v814, %v813
      %v828 = vpack.c.b16 %v816, %v815
      %v829 = vpack.c.b16 %v818, %v817
      %v830 = vpack.c.b16 %v820, %v819
      %v831 = vpack.c.b16 %v822, %v821
      %v832 = vpack.c.b16 %v824, %v823
      %841 = vmatpush.bf16.msra.mxu0 %v832
      %842 = vmatpush.bf16.msra.mxu0 %v831
      %843 = vmatpush.bf16.msra.mxu0 %v830
      %844 = vmatpush.bf16.msra.mxu0 %v829
      %845 = vmatpush.bf16.msra.mxu0 %v828
      %846 = vmatpush.bf16.msra.mxu0 %v827
      %847 = vmatpush.bf16.msra.mxu0 %v826
      %848 = vmatpush.bf16.msra.mxu0 %v825
      %849 = vmatmul.bf16.gmra.mxu0 %v772
      %v850 = vpop.f32.mrf.mxu0
      %v851 = vadd.f32 0.0, %v850
      %v852 = vpop.f32.mrf.mxu0
      %v853 = vadd.f32 0.0, %v852
      %854 = vmatmul.bf16.gmra.mxu0 %v773
      %v855 = vpop.f32.mrf.mxu0
      %v856 = vadd.f32 0.0, %v855
      %v857 = vpop.f32.mrf.mxu0
      %v858 = vadd.f32 0.0, %v857
      %859 = vmatmul.bf16.gmra.mxu0 %v774
      %v860 = vpop.f32.mrf.mxu0
      %v861 = vadd.f32 0.0, %v860
      %v862 = vpop.f32.mrf.mxu0
      %v863 = vadd.f32 0.0, %v862
      %864 = vmatmul.bf16.gmra.mxu0 %v775
      %v865 = vpop.f32.mrf.mxu0
      %v866 = vadd.f32 0.0, %v865
      %v867 = vpop.f32.mrf.mxu0
      %v868 = vadd.f32 0.0, %v867
      %869 = vdwg.mxu0
      %v870 = vadd.f32 %v756, %v851
      %v871 = vadd.f32 %v757, %v853
      %v872 = vadd.f32 %v758, %v856
      %v873 = vadd.f32 %v759, %v858
      %v874 = vadd.f32 %v760, %v861
      %v875 = vadd.f32 %v761, %v863
      %v876 = vadd.f32 %v762, %v866
      %v877 = vadd.f32 %v763, %v868
      %s878 = scalar_lea.vmem %s265, 16
      %v879 = vld [vmem:[%s878] sm:$0xff]
      %v880 = vld [vmem:[%s878 + $0x10] sm:$0xff]
      %v881 = vld [vmem:[%s878 + $0x20] sm:$0xff]
      %v882 = vld [vmem:[%s878 + $0x30] sm:$0xff]
      %v883 = vld [vmem:[%s878 + $0x40] sm:$0xff]
      %v884 = vld [vmem:[%s878 + $0x50] sm:$0xff]
      %v885 = vld [vmem:[%s878 + $0x60] sm:$0xff]
      %v886 = vld [vmem:[%s878 + $0x70] sm:$0xff]
      %v887 = vpack.c.bf16 %v880, %v879
      %v888 = vpack.c.bf16 %v882, %v881
      %v889 = vpack.c.bf16 %v884, %v883
      %v890 = vpack.c.bf16 %v886, %v885
      %s891 = scalar_lea.vmem %s271, 320
      %v892 = vld [vmem:[%s891] sm:$0xf]
      %v893 = vld [vmem:[%s891 + $0x4] sm:$0xf]
      %v894 = vld [vmem:[%s891 + $0x8] sm:$0xf]
      %v895 = vld [vmem:[%s891 + $0xc] sm:$0xf]
      %v896 = vld [vmem:[%s891 + $0x10] sm:$0xf]
      %v897 = vld [vmem:[%s891 + $0x14] sm:$0xf]
      %v898 = vld [vmem:[%s891 + $0x18] sm:$0xf]
      %v899 = vld [vmem:[%s891 + $0x1c] sm:$0xf]
      %v900 = vld [vmem:[%s891 + $0x20] sm:$0xf]
      %v901 = vld [vmem:[%s891 + $0x24] sm:$0xf]
      %v902 = vld [vmem:[%s891 + $0x28] sm:$0xf]
      %v903 = vld [vmem:[%s891 + $0x2c] sm:$0xf]
      %v904 = vld [vmem:[%s891 + $0x30] sm:$0xf]
      %v905 = vld [vmem:[%s891 + $0x34] sm:$0xf]
      %v906 = vld [vmem:[%s891 + $0x38] sm:$0xf]
      %v907 = vld [vmem:[%s891 + $0x3c] sm:$0xf]
      %v924 = vunpack.c.l.b16 %v892
      %v925 = vunpack.c.l.b16 %v893
      %v926 = vunpack.c.l.b16 %v894
      %v927 = vunpack.c.l.b16 %v895
      %v928 = vunpack.c.l.b16 %v896
      %v929 = vunpack.c.l.b16 %v897
      %v930 = vunpack.c.l.b16 %v898
      %v931 = vunpack.c.l.b16 %v899
      %v932 = vunpack.c.l.b16 %v900
      %v933 = vunpack.c.l.b16 %v901
      %v934 = vunpack.c.l.b16 %v902
      %v935 = vunpack.c.l.b16 %v903
      %v936 = vunpack.c.l.b16 %v904
      %v937 = vunpack.c.l.b16 %v905
      %v938 = vunpack.c.l.b16 %v906
      %v939 = vunpack.c.l.b16 %v907
      %v940 = vpack.c.b16 %v925, %v924
      %v941 = vpack.c.b16 %v927, %v926
      %v942 = vpack.c.b16 %v929, %v928
      %v943 = vpack.c.b16 %v931, %v930
      %v944 = vpack.c.b16 %v933, %v932
      %v945 = vpack.c.b16 %v935, %v934
      %v946 = vpack.c.b16 %v937, %v936
      %v947 = vpack.c.b16 %v939, %v938
      %956 = vmatpush.bf16.msra.mxu0 %v947
      %957 = vmatpush.bf16.msra.mxu0 %v946
      %958 = vmatpush.bf16.msra.mxu0 %v945
      %959 = vmatpush.bf16.msra.mxu0 %v944
      %960 = vmatpush.bf16.msra.mxu0 %v943
      %961 = vmatpush.bf16.msra.mxu0 %v942
      %962 = vmatpush.bf16.msra.mxu0 %v941
      %963 = vmatpush.bf16.msra.mxu0 %v940
      %964 = vmatmul.bf16.gmra.mxu0 %v887
      %v965 = vpop.f32.mrf.mxu0
      %v966 = vadd.f32 0.0, %v965
      %v967 = vpop.f32.mrf.mxu0
      %v968 = vadd.f32 0.0, %v967
      %969 = vmatmul.bf16.gmra.mxu0 %v888
      %v970 = vpop.f32.mrf.mxu0
      %v971 = vadd.f32 0.0, %v970
      %v972 = vpop.f32.mrf.mxu0
      %v973 = vadd.f32 0.0, %v972
      %974 = vmatmul.bf16.gmra.mxu0 %v889
      %v975 = vpop.f32.mrf.mxu0
      %v976 = vadd.f32 0.0, %v975
      %v977 = vpop.f32.mrf.mxu0
      %v978 = vadd.f32 0.0, %v977
      %979 = vmatmul.bf16.gmra.mxu0 %v890
      %v980 = vpop.f32.mrf.mxu0
      %v981 = vadd.f32 0.0, %v980
      %v982 = vpop.f32.mrf.mxu0
      %v983 = vadd.f32 0.0, %v982
      %984 = vdwg.mxu0
      %v985 = vadd.f32 %v870, %v966
      %v986 = vadd.f32 %v871, %v968
      %v987 = vadd.f32 %v872, %v971
      %v988 = vadd.f32 %v873, %v973
      %v989 = vadd.f32 %v874, %v976
      %v990 = vadd.f32 %v875, %v978
      %v991 = vadd.f32 %v876, %v981
      %v992 = vadd.f32 %v877, %v983
      %v993 = vld [vmem:[%s878 + $0x1] sm:$0xff]
      %v994 = vld [vmem:[%s878 + $0x11] sm:$0xff]
      %v995 = vld [vmem:[%s878 + $0x21] sm:$0xff]
      %v996 = vld [vmem:[%s878 + $0x31] sm:$0xff]
      %v997 = vld [vmem:[%s878 + $0x41] sm:$0xff]
      %v998 = vld [vmem:[%s878 + $0x51] sm:$0xff]
      %v999 = vld [vmem:[%s878 + $0x61] sm:$0xff]
      %v1000 = vld [vmem:[%s878 + $0x71] sm:$0xff]
      %v1001 = vpack.c.bf16 %v994, %v993
      %v1002 = vpack.c.bf16 %v996, %v995
      %v1003 = vpack.c.bf16 %v998, %v997
      %v1004 = vpack.c.bf16 %v1000, %v999
      %s1005 = scalar_lea.vmem %s271, 384
      %v1006 = vld [vmem:[%s1005] sm:$0xf]
      %v1007 = vld [vmem:[%s1005 + $0x4] sm:$0xf]
      %v1008 = vld [vmem:[%s1005 + $0x8] sm:$0xf]
      %v1009 = vld [vmem:[%s1005 + $0xc] sm:$0xf]
      %v1010 = vld [vmem:[%s1005 + $0x10] sm:$0xf]
      %v1011 = vld [vmem:[%s1005 + $0x14] sm:$0xf]
      %v1012 = vld [vmem:[%s1005 + $0x18] sm:$0xf]
      %v1013 = vld [vmem:[%s1005 + $0x1c] sm:$0xf]
      %v1014 = vld [vmem:[%s1005 + $0x20] sm:$0xf]
      %v1015 = vld [vmem:[%s1005 + $0x24] sm:$0xf]
      %v1016 = vld [vmem:[%s1005 + $0x28] sm:$0xf]
      %v1017 = vld [vmem:[%s1005 + $0x2c] sm:$0xf]
      %v1018 = vld [vmem:[%s1005 + $0x30] sm:$0xf]
      %v1019 = vld [vmem:[%s1005 + $0x34] sm:$0xf]
      %v1020 = vld [vmem:[%s1005 + $0x38] sm:$0xf]
      %v1021 = vld [vmem:[%s1005 + $0x3c] sm:$0xf]
      %v1038 = vunpack.c.l.b16 %v1006
      %v1039 = vunpack.c.l.b16 %v1007
      %v1040 = vunpack.c.l.b16 %v1008
      %v1041 = vunpack.c.l.b16 %v1009
      %v1042 = vunpack.c.l.b16 %v1010
      %v1043 = vunpack.c.l.b16 %v1011
      %v1044 = vunpack.c.l.b16 %v1012
      %v1045 = vunpack.c.l.b16 %v1013
      %v1046 = vunpack.c.l.b16 %v1014
      %v1047 = vunpack.c.l.b16 %v1015
      %v1048 = vunpack.c.l.b16 %v1016
      %v1049 = vunpack.c.l.b16 %v1017
      %v1050 = vunpack.c.l.b16 %v1018
      %v1051 = vunpack.c.l.b16 %v1019
      %v1052 = vunpack.c.l.b16 %v1020
      %v1053 = vunpack.c.l.b16 %v1021
      %v1054 = vpack.c.b16 %v1039, %v1038
      %v1055 = vpack.c.b16 %v1041, %v1040
      %v1056 = vpack.c.b16 %v1043, %v1042
      %v1057 = vpack.c.b16 %v1045, %v1044
      %v1058 = vpack.c.b16 %v1047, %v1046
      %v1059 = vpack.c.b16 %v1049, %v1048
      %v1060 = vpack.c.b16 %v1051, %v1050
      %v1061 = vpack.c.b16 %v1053, %v1052
      %1070 = vmatpush.bf16.msra.mxu0 %v1061
      %1071 = vmatpush.bf16.msra.mxu0 %v1060
      %1072 = vmatpush.bf16.msra.mxu0 %v1059
      %1073 = vmatpush.bf16.msra.mxu0 %v1058
      %1074 = vmatpush.bf16.msra.mxu0 %v1057
      %1075 = vmatpush.bf16.msra.mxu0 %v1056
      %1076 = vmatpush.bf16.msra.mxu0 %v1055
      %1077 = vmatpush.bf16.msra.mxu0 %v1054
      %1078 = vmatmul.bf16.gmra.mxu0 %v1001
      %v1079 = vpop.f32.mrf.mxu0
      %v1080 = vadd.f32 0.0, %v1079
      %v1081 = vpop.f32.mrf.mxu0
      %v1082 = vadd.f32 0.0, %v1081
      %1083 = vmatmul.bf16.gmra.mxu0 %v1002
      %v1084 = vpop.f32.mrf.mxu0
      %v1085 = vadd.f32 0.0, %v1084
      %v1086 = vpop.f32.mrf.mxu0
      %v1087 = vadd.f32 0.0, %v1086
      %1088 = vmatmul.bf16.gmra.mxu0 %v1003
      %v1089 = vpop.f32.mrf.mxu0
      %v1090 = vadd.f32 0.0, %v1089
      %v1091 = vpop.f32.mrf.mxu0
      %v1092 = vadd.f32 0.0, %v1091
      %1093 = vmatmul.bf16.gmra.mxu0 %v1004
      %v1094 = vpop.f32.mrf.mxu0
      %v1095 = vadd.f32 0.0, %v1094
      %v1096 = vpop.f32.mrf.mxu0
      %v1097 = vadd.f32 0.0, %v1096
      %1098 = vdwg.mxu0
      %v1099 = vadd.f32 %v985, %v1080
      %v1100 = vadd.f32 %v986, %v1082
      %v1101 = vadd.f32 %v987, %v1085
      %v1102 = vadd.f32 %v988, %v1087
      %v1103 = vadd.f32 %v989, %v1090
      %v1104 = vadd.f32 %v990, %v1092
      %v1105 = vadd.f32 %v991, %v1095
      %v1106 = vadd.f32 %v992, %v1097
      %v1107 = vld [vmem:[%s878 + $0x2] sm:$0xff]
      %v1108 = vld [vmem:[%s878 + $0x12] sm:$0xff]
      %v1109 = vld [vmem:[%s878 + $0x22] sm:$0xff]
      %v1110 = vld [vmem:[%s878 + $0x32] sm:$0xff]
      %v1111 = vld [vmem:[%s878 + $0x42] sm:$0xff]
      %v1112 = vld [vmem:[%s878 + $0x52] sm:$0xff]
      %v1113 = vld [vmem:[%s878 + $0x62] sm:$0xff]
      %v1114 = vld [vmem:[%s878 + $0x72] sm:$0xff]
      %v1115 = vpack.c.bf16 %v1108, %v1107
      %v1116 = vpack.c.bf16 %v1110, %v1109
      %v1117 = vpack.c.bf16 %v1112, %v1111
      %v1118 = vpack.c.bf16 %v1114, %v1113
      %s1119 = scalar_lea.vmem %s271, 448
      %v1120 = vld [vmem:[%s1119] sm:$0xf]
      %v1121 = vld [vmem:[%s1119 + $0x4] sm:$0xf]
      %v1122 = vld [vmem:[%s1119 + $0x8] sm:$0xf]
      %v1123 = vld [vmem:[%s1119 + $0xc] sm:$0xf]
      %v1124 = vld [vmem:[%s1119 + $0x10] sm:$0xf]
      %v1125 = vld [vmem:[%s1119 + $0x14] sm:$0xf]
      %v1126 = vld [vmem:[%s1119 + $0x18] sm:$0xf]
      %v1127 = vld [vmem:[%s1119 + $0x1c] sm:$0xf]
      %v1128 = vld [vmem:[%s1119 + $0x20] sm:$0xf]
      %v1129 = vld [vmem:[%s1119 + $0x24] sm:$0xf]
      %v1130 = vld [vmem:[%s1119 + $0x28] sm:$0xf]
      %v1131 = vld [vmem:[%s1119 + $0x2c] sm:$0xf]
      %v1132 = vld [vmem:[%s1119 + $0x30] sm:$0xf]
      %v1133 = vld [vmem:[%s1119 + $0x34] sm:$0xf]
      %v1134 = vld [vmem:[%s1119 + $0x38] sm:$0xf]
      %v1135 = vld [vmem:[%s1119 + $0x3c] sm:$0xf]
      %v1152 = vunpack.c.l.b16 %v1120
      %v1153 = vunpack.c.l.b16 %v1121
      %v1154 = vunpack.c.l.b16 %v1122
      %v1155 = vunpack.c.l.b16 %v1123
      %v1156 = vunpack.c.l.b16 %v1124
      %v1157 = vunpack.c.l.b16 %v1125
      %v1158 = vunpack.c.l.b16 %v1126
      %v1159 = vunpack.c.l.b16 %v1127
      %v1160 = vunpack.c.l.b16 %v1128
      %v1161 = vunpack.c.l.b16 %v1129
      %v1162 = vunpack.c.l.b16 %v1130
      %v1163 = vunpack.c.l.b16 %v1131
      %v1164 = vunpack.c.l.b16 %v1132
      %v1165 = vunpack.c.l.b16 %v1133
      %v1166 = vunpack.c.l.b16 %v1134
      %v1167 = vunpack.c.l.b16 %v1135
      %v1168 = vpack.c.b16 %v1153, %v1152
      %v1169 = vpack.c.b16 %v1155, %v1154
      %v1170 = vpack.c.b16 %v1157, %v1156
      %v1171 = vpack.c.b16 %v1159, %v1158
      %v1172 = vpack.c.b16 %v1161, %v1160
      %v1173 = vpack.c.b16 %v1163, %v1162
      %v1174 = vpack.c.b16 %v1165, %v1164
      %v1175 = vpack.c.b16 %v1167, %v1166
      %1184 = vmatpush.bf16.msra.mxu0 %v1175
      %1185 = vmatpush.bf16.msra.mxu0 %v1174
      %1186 = vmatpush.bf16.msra.mxu0 %v1173
      %1187 = vmatpush.bf16.msra.mxu0 %v1172
      %1188 = vmatpush.bf16.msra.mxu0 %v1171
      %1189 = vmatpush.bf16.msra.mxu0 %v1170
      %1190 = vmatpush.bf16.msra.mxu0 %v1169
      %1191 = vmatpush.bf16.msra.mxu0 %v1168
      %1192 = vmatmul.bf16.gmra.mxu0 %v1115
      %v1193 = vpop.f32.mrf.mxu0
      %v1194 = vadd.f32 0.0, %v1193
      %v1195 = vpop.f32.mrf.mxu0
      %v1196 = vadd.f32 0.0, %v1195
      %1197 = vmatmul.bf16.gmra.mxu0 %v1116
      %v1198 = vpop.f32.mrf.mxu0
      %v1199 = vadd.f32 0.0, %v1198
      %v1200 = vpop.f32.mrf.mxu0
      %v1201 = vadd.f32 0.0, %v1200
      %1202 = vmatmul.bf16.gmra.mxu0 %v1117
      %v1203 = vpop.f32.mrf.mxu0
      %v1204 = vadd.f32 0.0, %v1203
      %v1205 = vpop.f32.mrf.mxu0
      %v1206 = vadd.f32 0.0, %v1205
      %1207 = vmatmul.bf16.gmra.mxu0 %v1118
      %v1208 = vpop.f32.mrf.mxu0
      %v1209 = vadd.f32 0.0, %v1208
      %v1210 = vpop.f32.mrf.mxu0
      %v1211 = vadd.f32 0.0, %v1210
      %1212 = vdwg.mxu0
      %v1213 = vadd.f32 %v1099, %v1194
      %v1214 = vadd.f32 %v1100, %v1196
      %v1215 = vadd.f32 %v1101, %v1199
      %v1216 = vadd.f32 %v1102, %v1201
      %v1217 = vadd.f32 %v1103, %v1204
      %v1218 = vadd.f32 %v1104, %v1206
      %v1219 = vadd.f32 %v1105, %v1209
      %v1220 = vadd.f32 %v1106, %v1211
      %v1221 = vld [vmem:[%s878 + $0x3] sm:$0xff]
      %v1222 = vld [vmem:[%s878 + $0x13] sm:$0xff]
      %v1223 = vld [vmem:[%s878 + $0x23] sm:$0xff]
      %v1224 = vld [vmem:[%s878 + $0x33] sm:$0xff]
      %v1225 = vld [vmem:[%s878 + $0x43] sm:$0xff]
      %v1226 = vld [vmem:[%s878 + $0x53] sm:$0xff]
      %v1227 = vld [vmem:[%s878 + $0x63] sm:$0xff]
      %v1228 = vld [vmem:[%s878 + $0x73] sm:$0xff]
      %v1229 = vpack.c.bf16 %v1222, %v1221
      %v1230 = vpack.c.bf16 %v1224, %v1223
      %v1231 = vpack.c.bf16 %v1226, %v1225
      %v1232 = vpack.c.bf16 %v1228, %v1227
      %s1233 = scalar_lea.vmem %s271, 512
      %v1234 = vld [vmem:[%s1233] sm:$0xf]
      %v1235 = vld [vmem:[%s1233 + $0x4] sm:$0xf]
      %v1236 = vld [vmem:[%s1233 + $0x8] sm:$0xf]
      %v1237 = vld [vmem:[%s1233 + $0xc] sm:$0xf]
      %v1238 = vld [vmem:[%s1233 + $0x10] sm:$0xf]
      %v1239 = vld [vmem:[%s1233 + $0x14] sm:$0xf]
      %v1240 = vld [vmem:[%s1233 + $0x18] sm:$0xf]
      %v1241 = vld [vmem:[%s1233 + $0x1c] sm:$0xf]
      %v1242 = vld [vmem:[%s1233 + $0x20] sm:$0xf]
      %v1243 = vld [vmem:[%s1233 + $0x24] sm:$0xf]
      %v1244 = vld [vmem:[%s1233 + $0x28] sm:$0xf]
      %v1245 = vld [vmem:[%s1233 + $0x2c] sm:$0xf]
      %v1246 = vld [vmem:[%s1233 + $0x30] sm:$0xf]
      %v1247 = vld [vmem:[%s1233 + $0x34] sm:$0xf]
      %v1248 = vld [vmem:[%s1233 + $0x38] sm:$0xf]
      %v1249 = vld [vmem:[%s1233 + $0x3c] sm:$0xf]
      %v1266 = vunpack.c.l.b16 %v1234
      %v1267 = vunpack.c.l.b16 %v1235
      %v1268 = vunpack.c.l.b16 %v1236
      %v1269 = vunpack.c.l.b16 %v1237
      %v1270 = vunpack.c.l.b16 %v1238
      %v1271 = vunpack.c.l.b16 %v1239
      %v1272 = vunpack.c.l.b16 %v1240
      %v1273 = vunpack.c.l.b16 %v1241
      %v1274 = vunpack.c.l.b16 %v1242
      %v1275 = vunpack.c.l.b16 %v1243
      %v1276 = vunpack.c.l.b16 %v1244
      %v1277 = vunpack.c.l.b16 %v1245
      %v1278 = vunpack.c.l.b16 %v1246
      %v1279 = vunpack.c.l.b16 %v1247
      %v1280 = vunpack.c.l.b16 %v1248
      %v1281 = vunpack.c.l.b16 %v1249
      %v1282 = vpack.c.b16 %v1267, %v1266
      %v1283 = vpack.c.b16 %v1269, %v1268
      %v1284 = vpack.c.b16 %v1271, %v1270
      %v1285 = vpack.c.b16 %v1273, %v1272
      %v1286 = vpack.c.b16 %v1275, %v1274
      %v1287 = vpack.c.b16 %v1277, %v1276
      %v1288 = vpack.c.b16 %v1279, %v1278
      %v1289 = vpack.c.b16 %v1281, %v1280
      %1298 = vmatpush.bf16.msra.mxu0 %v1289
      %1299 = vmatpush.bf16.msra.mxu0 %v1288
      %1300 = vmatpush.bf16.msra.mxu0 %v1287
      %1301 = vmatpush.bf16.msra.mxu0 %v1286
      %1302 = vmatpush.bf16.msra.mxu0 %v1285
      %1303 = vmatpush.bf16.msra.mxu0 %v1284
      %1304 = vmatpush.bf16.msra.mxu0 %v1283
      %1305 = vmatpush.bf16.msra.mxu0 %v1282
      %1306 = vmatmul.bf16.gmra.mxu0 %v1229
      %v1307 = vpop.f32.mrf.mxu0
      %v1308 = vadd.f32 0.0, %v1307
      %v1309 = vpop.f32.mrf.mxu0
      %v1310 = vadd.f32 0.0, %v1309
      %1311 = vmatmul.bf16.gmra.mxu0 %v1230
      %v1312 = vpop.f32.mrf.mxu0
      %v1313 = vadd.f32 0.0, %v1312
      %v1314 = vpop.f32.mrf.mxu0
      %v1315 = vadd.f32 0.0, %v1314
      %1316 = vmatmul.bf16.gmra.mxu0 %v1231
      %v1317 = vpop.f32.mrf.mxu0
      %v1318 = vadd.f32 0.0, %v1317
      %v1319 = vpop.f32.mrf.mxu0
      %v1320 = vadd.f32 0.0, %v1319
      %1321 = vmatmul.bf16.gmra.mxu0 %v1232
      %v1322 = vpop.f32.mrf.mxu0
      %v1323 = vadd.f32 0.0, %v1322
      %v1324 = vpop.f32.mrf.mxu0
      %v1325 = vadd.f32 0.0, %v1324
      %1326 = vdwg.mxu0
      %v1327 = vadd.f32 %v1213, %v1308
      %v1328 = vadd.f32 %v1214, %v1310
      %v1329 = vadd.f32 %v1215, %v1313
      %v1330 = vadd.f32 %v1216, %v1315
      %v1331 = vadd.f32 %v1217, %v1318
      %v1332 = vadd.f32 %v1218, %v1320
      %v1333 = vadd.f32 %v1219, %v1323
      %v1334 = vadd.f32 %v1220, %v1325
      %v1335 = vld [vmem:[%s878 + $0x4] sm:$0xff]
      %v1336 = vld [vmem:[%s878 + $0x14] sm:$0xff]
      %v1337 = vld [vmem:[%s878 + $0x24] sm:$0xff]
      %v1338 = vld [vmem:[%s878 + $0x34] sm:$0xff]
      %v1339 = vld [vmem:[%s878 + $0x44] sm:$0xff]
      %v1340 = vld [vmem:[%s878 + $0x54] sm:$0xff]
      %v1341 = vld [vmem:[%s878 + $0x64] sm:$0xff]
      %v1342 = vld [vmem:[%s878 + $0x74] sm:$0xff]
      %v1343 = vpack.c.bf16 %v1336, %v1335
      %v1344 = vpack.c.bf16 %v1338, %v1337
      %v1345 = vpack.c.bf16 %v1340, %v1339
      %v1346 = vpack.c.bf16 %v1342, %v1341
      %s1347 = scalar_lea.vmem %s271, 576
      %v1348 = vld [vmem:[%s1347] sm:$0xf]
      %v1349 = vld [vmem:[%s1347 + $0x4] sm:$0xf]
      %v1350 = vld [vmem:[%s1347 + $0x8] sm:$0xf]
      %v1351 = vld [vmem:[%s1347 + $0xc] sm:$0xf]
      %v1352 = vld [vmem:[%s1347 + $0x10] sm:$0xf]
      %v1353 = vld [vmem:[%s1347 + $0x14] sm:$0xf]
      %v1354 = vld [vmem:[%s1347 + $0x18] sm:$0xf]
      %v1355 = vld [vmem:[%s1347 + $0x1c] sm:$0xf]
      %v1356 = vld [vmem:[%s1347 + $0x20] sm:$0xf]
      %v1357 = vld [vmem:[%s1347 + $0x24] sm:$0xf]
      %v1358 = vld [vmem:[%s1347 + $0x28] sm:$0xf]
      %v1359 = vld [vmem:[%s1347 + $0x2c] sm:$0xf]
      %v1360 = vld [vmem:[%s1347 + $0x30] sm:$0xf]
      %v1361 = vld [vmem:[%s1347 + $0x34] sm:$0xf]
      %v1362 = vld [vmem:[%s1347 + $0x38] sm:$0xf]
      %v1363 = vld [vmem:[%s1347 + $0x3c] sm:$0xf]
      %v1380 = vunpack.c.l.b16 %v1348
      %v1381 = vunpack.c.l.b16 %v1349
      %v1382 = vunpack.c.l.b16 %v1350
      %v1383 = vunpack.c.l.b16 %v1351
      %v1384 = vunpack.c.l.b16 %v1352
      %v1385 = vunpack.c.l.b16 %v1353
      %v1386 = vunpack.c.l.b16 %v1354
      %v1387 = vunpack.c.l.b16 %v1355
      %v1388 = vunpack.c.l.b16 %v1356
      %v1389 = vunpack.c.l.b16 %v1357
      %v1390 = vunpack.c.l.b16 %v1358
      %v1391 = vunpack.c.l.b16 %v1359
      %v1392 = vunpack.c.l.b16 %v1360
      %v1393 = vunpack.c.l.b16 %v1361
      %v1394 = vunpack.c.l.b16 %v1362
      %v1395 = vunpack.c.l.b16 %v1363
      %v1396 = vpack.c.b16 %v1381, %v1380
      %v1397 = vpack.c.b16 %v1383, %v1382
      %v1398 = vpack.c.b16 %v1385, %v1384
      %v1399 = vpack.c.b16 %v1387, %v1386
      %v1400 = vpack.c.b16 %v1389, %v1388
      %v1401 = vpack.c.b16 %v1391, %v1390
      %v1402 = vpack.c.b16 %v1393, %v1392
      %v1403 = vpack.c.b16 %v1395, %v1394
      %1412 = vmatpush.bf16.msra.mxu0 %v1403
      %1413 = vmatpush.bf16.msra.mxu0 %v1402
      %1414 = vmatpush.bf16.msra.mxu0 %v1401
      %1415 = vmatpush.bf16.msra.mxu0 %v1400
      %1416 = vmatpush.bf16.msra.mxu0 %v1399
      %1417 = vmatpush.bf16.msra.mxu0 %v1398
      %1418 = vmatpush.bf16.msra.mxu0 %v1397
      %1419 = vmatpush.bf16.msra.mxu0 %v1396
      %1420 = vmatmul.bf16.gmra.mxu0 %v1343
      %v1421 = vpop.f32.mrf.mxu0
      %v1422 = vadd.f32 0.0, %v1421
      %v1423 = vpop.f32.mrf.mxu0
      %v1424 = vadd.f32 0.0, %v1423
      %1425 = vmatmul.bf16.gmra.mxu0 %v1344
      %v1426 = vpop.f32.mrf.mxu0
      %v1427 = vadd.f32 0.0, %v1426
      %v1428 = vpop.f32.mrf.mxu0
      %v1429 = vadd.f32 0.0, %v1428
      %1430 = vmatmul.bf16.gmra.mxu0 %v1345
      %v1431 = vpop.f32.mrf.mxu0
      %v1432 = vadd.f32 0.0, %v1431
      %v1433 = vpop.f32.mrf.mxu0
      %v1434 = vadd.f32 0.0, %v1433
      %1435 = vmatmul.bf16.gmra.mxu0 %v1346
      %v1436 = vpop.f32.mrf.mxu0
      %v1437 = vadd.f32 0.0, %v1436
      %v1438 = vpop.f32.mrf.mxu0
      %v1439 = vadd.f32 0.0, %v1438
      %1440 = vdwg.mxu0
      %v1441 = vadd.f32 %v1327, %v1422
      %v1442 = vadd.f32 %v1328, %v1424
      %v1443 = vadd.f32 %v1329, %v1427
      %v1444 = vadd.f32 %v1330, %v1429
      %v1445 = vadd.f32 %v1331, %v1432
      %v1446 = vadd.f32 %v1332, %v1434
      %v1447 = vadd.f32 %v1333, %v1437
      %v1448 = vadd.f32 %v1334, %v1439
      %s1449 = scalar_lea.vmem %s265, 32
      %v1450 = vld [vmem:[%s1449] sm:$0xff]
      %v1451 = vld [vmem:[%s1449 + $0x10] sm:$0xff]
      %v1452 = vld [vmem:[%s1449 + $0x20] sm:$0xff]
      %v1453 = vld [vmem:[%s1449 + $0x30] sm:$0xff]
      %v1454 = vld [vmem:[%s1449 + $0x40] sm:$0xff]
      %v1455 = vld [vmem:[%s1449 + $0x50] sm:$0xff]
      %v1456 = vld [vmem:[%s1449 + $0x60] sm:$0xff]
      %v1457 = vld [vmem:[%s1449 + $0x70] sm:$0xff]
      %v1458 = vpack.c.bf16 %v1451, %v1450
      %v1459 = vpack.c.bf16 %v1453, %v1452
      %v1460 = vpack.c.bf16 %v1455, %v1454
      %v1461 = vpack.c.bf16 %v1457, %v1456
      %s1462 = scalar_lea.vmem %s271, 640
      %v1463 = vld [vmem:[%s1462] sm:$0xf]
      %v1464 = vld [vmem:[%s1462 + $0x4] sm:$0xf]
      %v1465 = vld [vmem:[%s1462 + $0x8] sm:$0xf]
      %v1466 = vld [vmem:[%s1462 + $0xc] sm:$0xf]
      %v1467 = vld [vmem:[%s1462 + $0x10] sm:$0xf]
      %v1468 = vld [vmem:[%s1462 + $0x14] sm:$0xf]
      %v1469 = vld [vmem:[%s1462 + $0x18] sm:$0xf]
      %v1470 = vld [vmem:[%s1462 + $0x1c] sm:$0xf]
      %v1471 = vld [vmem:[%s1462 + $0x20] sm:$0xf]
      %v1472 = vld [vmem:[%s1462 + $0x24] sm:$0xf]
      %v1473 = vld [vmem:[%s1462 + $0x28] sm:$0xf]
      %v1474 = vld [vmem:[%s1462 + $0x2c] sm:$0xf]
      %v1475 = vld [vmem:[%s1462 + $0x30] sm:$0xf]
      %v1476 = vld [vmem:[%s1462 + $0x34] sm:$0xf]
      %v1477 = vld [vmem:[%s1462 + $0x38] sm:$0xf]
      %v1478 = vld [vmem:[%s1462 + $0x3c] sm:$0xf]
      %v1495 = vunpack.c.l.b16 %v1463
      %v1496 = vunpack.c.l.b16 %v1464
      %v1497 = vunpack.c.l.b16 %v1465
      %v1498 = vunpack.c.l.b16 %v1466
      %v1499 = vunpack.c.l.b16 %v1467
      %v1500 = vunpack.c.l.b16 %v1468
      %v1501 = vunpack.c.l.b16 %v1469
      %v1502 = vunpack.c.l.b16 %v1470
      %v1503 = vunpack.c.l.b16 %v1471
      %v1504 = vunpack.c.l.b16 %v1472
      %v1505 = vunpack.c.l.b16 %v1473
      %v1506 = vunpack.c.l.b16 %v1474
      %v1507 = vunpack.c.l.b16 %v1475
      %v1508 = vunpack.c.l.b16 %v1476
      %v1509 = vunpack.c.l.b16 %v1477
      %v1510 = vunpack.c.l.b16 %v1478
      %v1511 = vpack.c.b16 %v1496, %v1495
      %v1512 = vpack.c.b16 %v1498, %v1497
      %v1513 = vpack.c.b16 %v1500, %v1499
      %v1514 = vpack.c.b16 %v1502, %v1501
      %v1515 = vpack.c.b16 %v1504, %v1503
      %v1516 = vpack.c.b16 %v1506, %v1505
      %v1517 = vpack.c.b16 %v1508, %v1507
      %v1518 = vpack.c.b16 %v1510, %v1509
      %1527 = vmatpush.bf16.msra.mxu0 %v1518
      %1528 = vmatpush.bf16.msra.mxu0 %v1517
      %1529 = vmatpush.bf16.msra.mxu0 %v1516
      %1530 = vmatpush.bf16.msra.mxu0 %v1515
      %1531 = vmatpush.bf16.msra.mxu0 %v1514
      %1532 = vmatpush.bf16.msra.mxu0 %v1513
      %1533 = vmatpush.bf16.msra.mxu0 %v1512
      %1534 = vmatpush.bf16.msra.mxu0 %v1511
      %1535 = vmatmul.bf16.gmra.mxu0 %v1458
      %v1536 = vpop.f32.mrf.mxu0
      %v1537 = vadd.f32 0.0, %v1536
      %v1538 = vpop.f32.mrf.mxu0
      %v1539 = vadd.f32 0.0, %v1538
      %1540 = vmatmul.bf16.gmra.mxu0 %v1459
      %v1541 = vpop.f32.mrf.mxu0
      %v1542 = vadd.f32 0.0, %v1541
      %v1543 = vpop.f32.mrf.mxu0
      %v1544 = vadd.f32 0.0, %v1543
      %1545 = vmatmul.bf16.gmra.mxu0 %v1460
      %v1546 = vpop.f32.mrf.mxu0
      %v1547 = vadd.f32 0.0, %v1546
      %v1548 = vpop.f32.mrf.mxu0
      %v1549 = vadd.f32 0.0, %v1548
      %1550 = vmatmul.bf16.gmra.mxu0 %v1461
      %v1551 = vpop.f32.mrf.mxu0
      %v1552 = vadd.f32 0.0, %v1551
      %v1553 = vpop.f32.mrf.mxu0
      %v1554 = vadd.f32 0.0, %v1553
      %1555 = vdwg.mxu0
      %v1556 = vadd.f32 %v1441, %v1537
      %v1557 = vadd.f32 %v1442, %v1539
      %v1558 = vadd.f32 %v1443, %v1542
      %v1559 = vadd.f32 %v1444, %v1544
      %v1560 = vadd.f32 %v1445, %v1547
      %v1561 = vadd.f32 %v1446, %v1549
      %v1562 = vadd.f32 %v1447, %v1552
      %v1563 = vadd.f32 %v1448, %v1554
      %v1564 = vld [vmem:[%s1449 + $0x1] sm:$0xff]
      %v1565 = vld [vmem:[%s1449 + $0x11] sm:$0xff]
      %v1566 = vld [vmem:[%s1449 + $0x21] sm:$0xff]
      %v1567 = vld [vmem:[%s1449 + $0x31] sm:$0xff]
      %v1568 = vld [vmem:[%s1449 + $0x41] sm:$0xff]
      %v1569 = vld [vmem:[%s1449 + $0x51] sm:$0xff]
      %v1570 = vld [vmem:[%s1449 + $0x61] sm:$0xff]
      %v1571 = vld [vmem:[%s1449 + $0x71] sm:$0xff]
      %v1572 = vpack.c.bf16 %v1565, %v1564
      %v1573 = vpack.c.bf16 %v1567, %v1566
      %v1574 = vpack.c.bf16 %v1569, %v1568
      %v1575 = vpack.c.bf16 %v1571, %v1570
      %s1576 = scalar_lea.vmem %s271, 704
      %v1577 = vld [vmem:[%s1576] sm:$0xf]
      %v1578 = vld [vmem:[%s1576 + $0x4] sm:$0xf]
      %v1579 = vld [vmem:[%s1576 + $0x8] sm:$0xf]
      %v1580 = vld [vmem:[%s1576 + $0xc] sm:$0xf]
      %v1581 = vld [vmem:[%s1576 + $0x10] sm:$0xf]
      %v1582 = vld [vmem:[%s1576 + $0x14] sm:$0xf]
      %v1583 = vld [vmem:[%s1576 + $0x18] sm:$0xf]
      %v1584 = vld [vmem:[%s1576 + $0x1c] sm:$0xf]
      %v1585 = vld [vmem:[%s1576 + $0x20] sm:$0xf]
      %v1586 = vld [vmem:[%s1576 + $0x24] sm:$0xf]
      %v1587 = vld [vmem:[%s1576 + $0x28] sm:$0xf]
      %v1588 = vld [vmem:[%s1576 + $0x2c] sm:$0xf]
      %v1589 = vld [vmem:[%s1576 + $0x30] sm:$0xf]
      %v1590 = vld [vmem:[%s1576 + $0x34] sm:$0xf]
      %v1591 = vld [vmem:[%s1576 + $0x38] sm:$0xf]
      %v1592 = vld [vmem:[%s1576 + $0x3c] sm:$0xf]
      %v1609 = vunpack.c.l.b16 %v1577
      %v1610 = vunpack.c.l.b16 %v1578
      %v1611 = vunpack.c.l.b16 %v1579
      %v1612 = vunpack.c.l.b16 %v1580
      %v1613 = vunpack.c.l.b16 %v1581
      %v1614 = vunpack.c.l.b16 %v1582
      %v1615 = vunpack.c.l.b16 %v1583
      %v1616 = vunpack.c.l.b16 %v1584
      %v1617 = vunpack.c.l.b16 %v1585
      %v1618 = vunpack.c.l.b16 %v1586
      %v1619 = vunpack.c.l.b16 %v1587
      %v1620 = vunpack.c.l.b16 %v1588
      %v1621 = vunpack.c.l.b16 %v1589
      %v1622 = vunpack.c.l.b16 %v1590
      %v1623 = vunpack.c.l.b16 %v1591
      %v1624 = vunpack.c.l.b16 %v1592
      %v1625 = vpack.c.b16 %v1610, %v1609
      %v1626 = vpack.c.b16 %v1612, %v1611
      %v1627 = vpack.c.b16 %v1614, %v1613
      %v1628 = vpack.c.b16 %v1616, %v1615
      %v1629 = vpack.c.b16 %v1618, %v1617
      %v1630 = vpack.c.b16 %v1620, %v1619
      %v1631 = vpack.c.b16 %v1622, %v1621
      %v1632 = vpack.c.b16 %v1624, %v1623
      %1641 = vmatpush.bf16.msra.mxu0 %v1632
      %1642 = vmatpush.bf16.msra.mxu0 %v1631
      %1643 = vmatpush.bf16.msra.mxu0 %v1630
      %1644 = vmatpush.bf16.msra.mxu0 %v1629
      %1645 = vmatpush.bf16.msra.mxu0 %v1628
      %1646 = vmatpush.bf16.msra.mxu0 %v1627
      %1647 = vmatpush.bf16.msra.mxu0 %v1626
      %1648 = vmatpush.bf16.msra.mxu0 %v1625
      %1649 = vmatmul.bf16.gmra.mxu0 %v1572
      %v1650 = vpop.f32.mrf.mxu0
      %v1651 = vadd.f32 0.0, %v1650
      %v1652 = vpop.f32.mrf.mxu0
      %v1653 = vadd.f32 0.0, %v1652
      %1654 = vmatmul.bf16.gmra.mxu0 %v1573
      %v1655 = vpop.f32.mrf.mxu0
      %v1656 = vadd.f32 0.0, %v1655
      %v1657 = vpop.f32.mrf.mxu0
      %v1658 = vadd.f32 0.0, %v1657
      %1659 = vmatmul.bf16.gmra.mxu0 %v1574
      %v1660 = vpop.f32.mrf.mxu0
      %v1661 = vadd.f32 0.0, %v1660
      %v1662 = vpop.f32.mrf.mxu0
      %v1663 = vadd.f32 0.0, %v1662
      %1664 = vmatmul.bf16.gmra.mxu0 %v1575
      %v1665 = vpop.f32.mrf.mxu0
      %v1666 = vadd.f32 0.0, %v1665
      %v1667 = vpop.f32.mrf.mxu0
      %v1668 = vadd.f32 0.0, %v1667
      %1669 = vdwg.mxu0
      %v1670 = vadd.f32 %v1556, %v1651
      %v1671 = vadd.f32 %v1557, %v1653
      %v1672 = vadd.f32 %v1558, %v1656
      %v1673 = vadd.f32 %v1559, %v1658
      %v1674 = vadd.f32 %v1560, %v1661
      %v1675 = vadd.f32 %v1561, %v1663
      %v1676 = vadd.f32 %v1562, %v1666
      %v1677 = vadd.f32 %v1563, %v1668
      %v1678 = vld [vmem:[%s1449 + $0x2] sm:$0xff]
      %v1679 = vld [vmem:[%s1449 + $0x12] sm:$0xff]
      %v1680 = vld [vmem:[%s1449 + $0x22] sm:$0xff]
      %v1681 = vld [vmem:[%s1449 + $0x32] sm:$0xff]
      %v1682 = vld [vmem:[%s1449 + $0x42] sm:$0xff]
      %v1683 = vld [vmem:[%s1449 + $0x52] sm:$0xff]
      %v1684 = vld [vmem:[%s1449 + $0x62] sm:$0xff]
      %v1685 = vld [vmem:[%s1449 + $0x72] sm:$0xff]
      %v1686 = vpack.c.bf16 %v1679, %v1678
      %v1687 = vpack.c.bf16 %v1681, %v1680
      %v1688 = vpack.c.bf16 %v1683, %v1682
      %v1689 = vpack.c.bf16 %v1685, %v1684
      %s1690 = scalar_lea.vmem %s271, 768
      %v1691 = vld [vmem:[%s1690] sm:$0xf]
      %v1692 = vld [vmem:[%s1690 + $0x4] sm:$0xf]
      %v1693 = vld [vmem:[%s1690 + $0x8] sm:$0xf]
      %v1694 = vld [vmem:[%s1690 + $0xc] sm:$0xf]
      %v1695 = vld [vmem:[%s1690 + $0x10] sm:$0xf]
      %v1696 = vld [vmem:[%s1690 + $0x14] sm:$0xf]
      %v1697 = vld [vmem:[%s1690 + $0x18] sm:$0xf]
      %v1698 = vld [vmem:[%s1690 + $0x1c] sm:$0xf]
      %v1699 = vld [vmem:[%s1690 + $0x20] sm:$0xf]
      %v1700 = vld [vmem:[%s1690 + $0x24] sm:$0xf]
      %v1701 = vld [vmem:[%s1690 + $0x28] sm:$0xf]
      %v1702 = vld [vmem:[%s1690 + $0x2c] sm:$0xf]
      %v1703 = vld [vmem:[%s1690 + $0x30] sm:$0xf]
      %v1704 = vld [vmem:[%s1690 + $0x34] sm:$0xf]
      %v1705 = vld [vmem:[%s1690 + $0x38] sm:$0xf]
      %v1706 = vld [vmem:[%s1690 + $0x3c] sm:$0xf]
      %v1723 = vunpack.c.l.b16 %v1691
      %v1724 = vunpack.c.l.b16 %v1692
      %v1725 = vunpack.c.l.b16 %v1693
      %v1726 = vunpack.c.l.b16 %v1694
      %v1727 = vunpack.c.l.b16 %v1695
      %v1728 = vunpack.c.l.b16 %v1696
      %v1729 = vunpack.c.l.b16 %v1697
      %v1730 = vunpack.c.l.b16 %v1698
      %v1731 = vunpack.c.l.b16 %v1699
      %v1732 = vunpack.c.l.b16 %v1700
      %v1733 = vunpack.c.l.b16 %v1701
      %v1734 = vunpack.c.l.b16 %v1702
      %v1735 = vunpack.c.l.b16 %v1703
      %v1736 = vunpack.c.l.b16 %v1704
      %v1737 = vunpack.c.l.b16 %v1705
      %v1738 = vunpack.c.l.b16 %v1706
      %v1739 = vpack.c.b16 %v1724, %v1723
      %v1740 = vpack.c.b16 %v1726, %v1725
      %v1741 = vpack.c.b16 %v1728, %v1727
      %v1742 = vpack.c.b16 %v1730, %v1729
      %v1743 = vpack.c.b16 %v1732, %v1731
      %v1744 = vpack.c.b16 %v1734, %v1733
      %v1745 = vpack.c.b16 %v1736, %v1735
      %v1746 = vpack.c.b16 %v1738, %v1737
      %1755 = vmatpush.bf16.msra.mxu0 %v1746
      %1756 = vmatpush.bf16.msra.mxu0 %v1745
      %1757 = vmatpush.bf16.msra.mxu0 %v1744
      %1758 = vmatpush.bf16.msra.mxu0 %v1743
      %1759 = vmatpush.bf16.msra.mxu0 %v1742
      %1760 = vmatpush.bf16.msra.mxu0 %v1741
      %1761 = vmatpush.bf16.msra.mxu0 %v1740
      %1762 = vmatpush.bf16.msra.mxu0 %v1739
      %1763 = vmatmul.bf16.gmra.mxu0 %v1686
      %v1764 = vpop.f32.mrf.mxu0
      %v1765 = vadd.f32 0.0, %v1764
      %v1766 = vpop.f32.mrf.mxu0
      %v1767 = vadd.f32 0.0, %v1766
      %1768 = vmatmul.bf16.gmra.mxu0 %v1687
      %v1769 = vpop.f32.mrf.mxu0
      %v1770 = vadd.f32 0.0, %v1769
      %v1771 = vpop.f32.mrf.mxu0
      %v1772 = vadd.f32 0.0, %v1771
      %1773 = vmatmul.bf16.gmra.mxu0 %v1688
      %v1774 = vpop.f32.mrf.mxu0
      %v1775 = vadd.f32 0.0, %v1774
      %v1776 = vpop.f32.mrf.mxu0
      %v1777 = vadd.f32 0.0, %v1776
      %1778 = vmatmul.bf16.gmra.mxu0 %v1689
      %v1779 = vpop.f32.mrf.mxu0
      %v1780 = vadd.f32 0.0, %v1779
      %v1781 = vpop.f32.mrf.mxu0
      %v1782 = vadd.f32 0.0, %v1781
      %1783 = vdwg.mxu0
      %v1784 = vadd.f32 %v1670, %v1765
      %v1785 = vadd.f32 %v1671, %v1767
      %v1786 = vadd.f32 %v1672, %v1770
      %v1787 = vadd.f32 %v1673, %v1772
      %v1788 = vadd.f32 %v1674, %v1775
      %v1789 = vadd.f32 %v1675, %v1777
      %v1790 = vadd.f32 %v1676, %v1780
      %v1791 = vadd.f32 %v1677, %v1782
      %v1792 = vld [vmem:[%s1449 + $0x3] sm:$0xff]
      %v1793 = vld [vmem:[%s1449 + $0x13] sm:$0xff]
      %v1794 = vld [vmem:[%s1449 + $0x23] sm:$0xff]
      %v1795 = vld [vmem:[%s1449 + $0x33] sm:$0xff]
      %v1796 = vld [vmem:[%s1449 + $0x43] sm:$0xff]
      %v1797 = vld [vmem:[%s1449 + $0x53] sm:$0xff]
      %v1798 = vld [vmem:[%s1449 + $0x63] sm:$0xff]
      %v1799 = vld [vmem:[%s1449 + $0x73] sm:$0xff]
      %v1800 = vpack.c.bf16 %v1793, %v1792
      %v1801 = vpack.c.bf16 %v1795, %v1794
      %v1802 = vpack.c.bf16 %v1797, %v1796
      %v1803 = vpack.c.bf16 %v1799, %v1798
      %s1804 = scalar_lea.vmem %s271, 832
      %v1805 = vld [vmem:[%s1804] sm:$0xf]
      %v1806 = vld [vmem:[%s1804 + $0x4] sm:$0xf]
      %v1807 = vld [vmem:[%s1804 + $0x8] sm:$0xf]
      %v1808 = vld [vmem:[%s1804 + $0xc] sm:$0xf]
      %v1809 = vld [vmem:[%s1804 + $0x10] sm:$0xf]
      %v1810 = vld [vmem:[%s1804 + $0x14] sm:$0xf]
      %v1811 = vld [vmem:[%s1804 + $0x18] sm:$0xf]
      %v1812 = vld [vmem:[%s1804 + $0x1c] sm:$0xf]
      %v1813 = vld [vmem:[%s1804 + $0x20] sm:$0xf]
      %v1814 = vld [vmem:[%s1804 + $0x24] sm:$0xf]
      %v1815 = vld [vmem:[%s1804 + $0x28] sm:$0xf]
      %v1816 = vld [vmem:[%s1804 + $0x2c] sm:$0xf]
      %v1817 = vld [vmem:[%s1804 + $0x30] sm:$0xf]
      %v1818 = vld [vmem:[%s1804 + $0x34] sm:$0xf]
      %v1819 = vld [vmem:[%s1804 + $0x38] sm:$0xf]
      %v1820 = vld [vmem:[%s1804 + $0x3c] sm:$0xf]
      %v1837 = vunpack.c.l.b16 %v1805
      %v1838 = vunpack.c.l.b16 %v1806
      %v1839 = vunpack.c.l.b16 %v1807
      %v1840 = vunpack.c.l.b16 %v1808
      %v1841 = vunpack.c.l.b16 %v1809
      %v1842 = vunpack.c.l.b16 %v1810
      %v1843 = vunpack.c.l.b16 %v1811
      %v1844 = vunpack.c.l.b16 %v1812
      %v1845 = vunpack.c.l.b16 %v1813
      %v1846 = vunpack.c.l.b16 %v1814
      %v1847 = vunpack.c.l.b16 %v1815
      %v1848 = vunpack.c.l.b16 %v1816
      %v1849 = vunpack.c.l.b16 %v1817
      %v1850 = vunpack.c.l.b16 %v1818
      %v1851 = vunpack.c.l.b16 %v1819
      %v1852 = vunpack.c.l.b16 %v1820
      %v1853 = vpack.c.b16 %v1838, %v1837
      %v1854 = vpack.c.b16 %v1840, %v1839
      %v1855 = vpack.c.b16 %v1842, %v1841
      %v1856 = vpack.c.b16 %v1844, %v1843
      %v1857 = vpack.c.b16 %v1846, %v1845
      %v1858 = vpack.c.b16 %v1848, %v1847
      %v1859 = vpack.c.b16 %v1850, %v1849
      %v1860 = vpack.c.b16 %v1852, %v1851
      %1869 = vmatpush.bf16.msra.mxu0 %v1860
      %1870 = vmatpush.bf16.msra.mxu0 %v1859
      %1871 = vmatpush.bf16.msra.mxu0 %v1858
      %1872 = vmatpush.bf16.msra.mxu0 %v1857
      %1873 = vmatpush.bf16.msra.mxu0 %v1856
      %1874 = vmatpush.bf16.msra.mxu0 %v1855
      %1875 = vmatpush.bf16.msra.mxu0 %v1854
      %1876 = vmatpush.bf16.msra.mxu0 %v1853
      %1877 = vmatmul.bf16.gmra.mxu0 %v1800
      %v1878 = vpop.f32.mrf.mxu0
      %v1879 = vadd.f32 0.0, %v1878
      %v1880 = vpop.f32.mrf.mxu0
      %v1881 = vadd.f32 0.0, %v1880
      %1882 = vmatmul.bf16.gmra.mxu0 %v1801
      %v1883 = vpop.f32.mrf.mxu0
      %v1884 = vadd.f32 0.0, %v1883
      %v1885 = vpop.f32.mrf.mxu0
      %v1886 = vadd.f32 0.0, %v1885
      %1887 = vmatmul.bf16.gmra.mxu0 %v1802
      %v1888 = vpop.f32.mrf.mxu0
      %v1889 = vadd.f32 0.0, %v1888
      %v1890 = vpop.f32.mrf.mxu0
      %v1891 = vadd.f32 0.0, %v1890
      %1892 = vmatmul.bf16.gmra.mxu0 %v1803
      %v1893 = vpop.f32.mrf.mxu0
      %v1894 = vadd.f32 0.0, %v1893
      %v1895 = vpop.f32.mrf.mxu0
      %v1896 = vadd.f32 0.0, %v1895
      %1897 = vdwg.mxu0
      %v1898 = vadd.f32 %v1784, %v1879
      %v1899 = vadd.f32 %v1785, %v1881
      %v1900 = vadd.f32 %v1786, %v1884
      %v1901 = vadd.f32 %v1787, %v1886
      %v1902 = vadd.f32 %v1788, %v1889
      %v1903 = vadd.f32 %v1789, %v1891
      %v1904 = vadd.f32 %v1790, %v1894
      %v1905 = vadd.f32 %v1791, %v1896
      %v1906 = vld [vmem:[%s1449 + $0x4] sm:$0xff]
      %v1907 = vld [vmem:[%s1449 + $0x14] sm:$0xff]
      %v1908 = vld [vmem:[%s1449 + $0x24] sm:$0xff]
      %v1909 = vld [vmem:[%s1449 + $0x34] sm:$0xff]
      %v1910 = vld [vmem:[%s1449 + $0x44] sm:$0xff]
      %v1911 = vld [vmem:[%s1449 + $0x54] sm:$0xff]
      %v1912 = vld [vmem:[%s1449 + $0x64] sm:$0xff]
      %v1913 = vld [vmem:[%s1449 + $0x74] sm:$0xff]
      %v1914 = vpack.c.bf16 %v1907, %v1906
      %v1915 = vpack.c.bf16 %v1909, %v1908
      %v1916 = vpack.c.bf16 %v1911, %v1910
      %v1917 = vpack.c.bf16 %v1913, %v1912
      %s1918 = scalar_lea.vmem %s271, 896
      %v1919 = vld [vmem:[%s1918] sm:$0xf]
      %v1920 = vld [vmem:[%s1918 + $0x4] sm:$0xf]
      %v1921 = vld [vmem:[%s1918 + $0x8] sm:$0xf]
      %v1922 = vld [vmem:[%s1918 + $0xc] sm:$0xf]
      %v1923 = vld [vmem:[%s1918 + $0x10] sm:$0xf]
      %v1924 = vld [vmem:[%s1918 + $0x14] sm:$0xf]
      %v1925 = vld [vmem:[%s1918 + $0x18] sm:$0xf]
      %v1926 = vld [vmem:[%s1918 + $0x1c] sm:$0xf]
      %v1927 = vld [vmem:[%s1918 + $0x20] sm:$0xf]
      %v1928 = vld [vmem:[%s1918 + $0x24] sm:$0xf]
      %v1929 = vld [vmem:[%s1918 + $0x28] sm:$0xf]
      %v1930 = vld [vmem:[%s1918 + $0x2c] sm:$0xf]
      %v1931 = vld [vmem:[%s1918 + $0x30] sm:$0xf]
      %v1932 = vld [vmem:[%s1918 + $0x34] sm:$0xf]
      %v1933 = vld [vmem:[%s1918 + $0x38] sm:$0xf]
      %v1934 = vld [vmem:[%s1918 + $0x3c] sm:$0xf]
      %v1951 = vunpack.c.l.b16 %v1919
      %v1952 = vunpack.c.l.b16 %v1920
      %v1953 = vunpack.c.l.b16 %v1921
      %v1954 = vunpack.c.l.b16 %v1922
      %v1955 = vunpack.c.l.b16 %v1923
      %v1956 = vunpack.c.l.b16 %v1924
      %v1957 = vunpack.c.l.b16 %v1925
      %v1958 = vunpack.c.l.b16 %v1926
      %v1959 = vunpack.c.l.b16 %v1927
      %v1960 = vunpack.c.l.b16 %v1928
      %v1961 = vunpack.c.l.b16 %v1929
      %v1962 = vunpack.c.l.b16 %v1930
      %v1963 = vunpack.c.l.b16 %v1931
      %v1964 = vunpack.c.l.b16 %v1932
      %v1965 = vunpack.c.l.b16 %v1933
      %v1966 = vunpack.c.l.b16 %v1934
      %v1967 = vpack.c.b16 %v1952, %v1951
      %v1968 = vpack.c.b16 %v1954, %v1953
      %v1969 = vpack.c.b16 %v1956, %v1955
      %v1970 = vpack.c.b16 %v1958, %v1957
      %v1971 = vpack.c.b16 %v1960, %v1959
      %v1972 = vpack.c.b16 %v1962, %v1961
      %v1973 = vpack.c.b16 %v1964, %v1963
      %v1974 = vpack.c.b16 %v1966, %v1965
      %1983 = vmatpush.bf16.msra.mxu0 %v1974
      %1984 = vmatpush.bf16.msra.mxu0 %v1973
      %1985 = vmatpush.bf16.msra.mxu0 %v1972
      %1986 = vmatpush.bf16.msra.mxu0 %v1971
      %1987 = vmatpush.bf16.msra.mxu0 %v1970
      %1988 = vmatpush.bf16.msra.mxu0 %v1969
      %1989 = vmatpush.bf16.msra.mxu0 %v1968
      %1990 = vmatpush.bf16.msra.mxu0 %v1967
      %1991 = vmatmul.bf16.gmra.mxu0 %v1914
      %v1992 = vpop.f32.mrf.mxu0
      %v1993 = vadd.f32 0.0, %v1992
      %v1994 = vpop.f32.mrf.mxu0
      %v1995 = vadd.f32 0.0, %v1994
      %1996 = vmatmul.bf16.gmra.mxu0 %v1915
      %v1997 = vpop.f32.mrf.mxu0
      %v1998 = vadd.f32 0.0, %v1997
      %v1999 = vpop.f32.mrf.mxu0
      %v2000 = vadd.f32 0.0, %v1999
      %2001 = vmatmul.bf16.gmra.mxu0 %v1916
      %v2002 = vpop.f32.mrf.mxu0
      %v2003 = vadd.f32 0.0, %v2002
      %v2004 = vpop.f32.mrf.mxu0
      %v2005 = vadd.f32 0.0, %v2004
      %2006 = vmatmul.bf16.gmra.mxu0 %v1917
      %v2007 = vpop.f32.mrf.mxu0
      %v2008 = vadd.f32 0.0, %v2007
      %v2009 = vpop.f32.mrf.mxu0
      %v2010 = vadd.f32 0.0, %v2009
      %2011 = vdwg.mxu0
      %v2012 = vadd.f32 %v1898, %v1993
      %v2013 = vadd.f32 %v1899, %v1995
      %v2014 = vadd.f32 %v1900, %v1998
      %v2015 = vadd.f32 %v1901, %v2000
      %v2016 = vadd.f32 %v1902, %v2003
      %v2017 = vadd.f32 %v1903, %v2005
      %v2018 = vadd.f32 %v1904, %v2008
      %v2019 = vadd.f32 %v1905, %v2010
      %s2020 = scalar_lea.vmem %s265, 48
      %v2021 = vld [vmem:[%s2020] sm:$0xff]
      %v2022 = vld [vmem:[%s2020 + $0x10] sm:$0xff]
      %v2023 = vld [vmem:[%s2020 + $0x20] sm:$0xff]
      %v2024 = vld [vmem:[%s2020 + $0x30] sm:$0xff]
      %v2025 = vld [vmem:[%s2020 + $0x40] sm:$0xff]
      %v2026 = vld [vmem:[%s2020 + $0x50] sm:$0xff]
      %v2027 = vld [vmem:[%s2020 + $0x60] sm:$0xff]
      %v2028 = vld [vmem:[%s2020 + $0x70] sm:$0xff]
      %v2029 = vpack.c.bf16 %v2022, %v2021
      %v2030 = vpack.c.bf16 %v2024, %v2023
      %v2031 = vpack.c.bf16 %v2026, %v2025
      %v2032 = vpack.c.bf16 %v2028, %v2027
      %s2033 = scalar_lea.vmem %s271, 960
      %v2034 = vld [vmem:[%s2033] sm:$0xf]
      %v2035 = vld [vmem:[%s2033 + $0x4] sm:$0xf]
      %v2036 = vld [vmem:[%s2033 + $0x8] sm:$0xf]
      %v2037 = vld [vmem:[%s2033 + $0xc] sm:$0xf]
      %v2038 = vld [vmem:[%s2033 + $0x10] sm:$0xf]
      %v2039 = vld [vmem:[%s2033 + $0x14] sm:$0xf]
      %v2040 = vld [vmem:[%s2033 + $0x18] sm:$0xf]
      %v2041 = vld [vmem:[%s2033 + $0x1c] sm:$0xf]
      %v2042 = vld [vmem:[%s2033 + $0x20] sm:$0xf]
      %v2043 = vld [vmem:[%s2033 + $0x24] sm:$0xf]
      %v2044 = vld [vmem:[%s2033 + $0x28] sm:$0xf]
      %v2045 = vld [vmem:[%s2033 + $0x2c] sm:$0xf]
      %v2046 = vld [vmem:[%s2033 + $0x30] sm:$0xf]
      %v2047 = vld [vmem:[%s2033 + $0x34] sm:$0xf]
      %v2048 = vld [vmem:[%s2033 + $0x38] sm:$0xf]
      %v2049 = vld [vmem:[%s2033 + $0x3c] sm:$0xf]
      %v2066 = vunpack.c.l.b16 %v2034
      %v2067 = vunpack.c.l.b16 %v2035
      %v2068 = vunpack.c.l.b16 %v2036
      %v2069 = vunpack.c.l.b16 %v2037
      %v2070 = vunpack.c.l.b16 %v2038
      %v2071 = vunpack.c.l.b16 %v2039
      %v2072 = vunpack.c.l.b16 %v2040
      %v2073 = vunpack.c.l.b16 %v2041
      %v2074 = vunpack.c.l.b16 %v2042
      %v2075 = vunpack.c.l.b16 %v2043
      %v2076 = vunpack.c.l.b16 %v2044
      %v2077 = vunpack.c.l.b16 %v2045
      %v2078 = vunpack.c.l.b16 %v2046
      %v2079 = vunpack.c.l.b16 %v2047
      %v2080 = vunpack.c.l.b16 %v2048
      %v2081 = vunpack.c.l.b16 %v2049
      %v2082 = vpack.c.b16 %v2067, %v2066
      %v2083 = vpack.c.b16 %v2069, %v2068
      %v2084 = vpack.c.b16 %v2071, %v2070
      %v2085 = vpack.c.b16 %v2073, %v2072
      %v2086 = vpack.c.b16 %v2075, %v2074
      %v2087 = vpack.c.b16 %v2077, %v2076
      %v2088 = vpack.c.b16 %v2079, %v2078
      %v2089 = vpack.c.b16 %v2081, %v2080
      %2098 = vmatpush.bf16.msra.mxu0 %v2089
      %2099 = vmatpush.bf16.msra.mxu0 %v2088
      %2100 = vmatpush.bf16.msra.mxu0 %v2087
      %2101 = vmatpush.bf16.msra.mxu0 %v2086
      %2102 = vmatpush.bf16.msra.mxu0 %v2085
      %2103 = vmatpush.bf16.msra.mxu0 %v2084
      %2104 = vmatpush.bf16.msra.mxu0 %v2083
      %2105 = vmatpush.bf16.msra.mxu0 %v2082
      %2106 = vmatmul.bf16.gmra.mxu0 %v2029
      %v2107 = vpop.f32.mrf.mxu0
      %v2108 = vadd.f32 0.0, %v2107
      %v2109 = vpop.f32.mrf.mxu0
      %v2110 = vadd.f32 0.0, %v2109
      %2111 = vmatmul.bf16.gmra.mxu0 %v2030
      %v2112 = vpop.f32.mrf.mxu0
      %v2113 = vadd.f32 0.0, %v2112
      %v2114 = vpop.f32.mrf.mxu0
      %v2115 = vadd.f32 0.0, %v2114
      %2116 = vmatmul.bf16.gmra.mxu0 %v2031
      %v2117 = vpop.f32.mrf.mxu0
      %v2118 = vadd.f32 0.0, %v2117
      %v2119 = vpop.f32.mrf.mxu0
      %v2120 = vadd.f32 0.0, %v2119
      %2121 = vmatmul.bf16.gmra.mxu0 %v2032
      %v2122 = vpop.f32.mrf.mxu0
      %v2123 = vadd.f32 0.0, %v2122
      %v2124 = vpop.f32.mrf.mxu0
      %v2125 = vadd.f32 0.0, %v2124
      %2126 = vdwg.mxu0
      %v2127 = vadd.f32 %v2012, %v2108
      %v2128 = vadd.f32 %v2013, %v2110
      %v2129 = vadd.f32 %v2014, %v2113
      %v2130 = vadd.f32 %v2015, %v2115
      %v2131 = vadd.f32 %v2016, %v2118
      %v2132 = vadd.f32 %v2017, %v2120
      %v2133 = vadd.f32 %v2018, %v2123
      %v2134 = vadd.f32 %v2019, %v2125
      %v2135 = vld [vmem:[%s2020 + $0x1] sm:$0xff]
      %v2136 = vld [vmem:[%s2020 + $0x11] sm:$0xff]
      %v2137 = vld [vmem:[%s2020 + $0x21] sm:$0xff]
      %v2138 = vld [vmem:[%s2020 + $0x31] sm:$0xff]
      %v2139 = vld [vmem:[%s2020 + $0x41] sm:$0xff]
      %v2140 = vld [vmem:[%s2020 + $0x51] sm:$0xff]
      %v2141 = vld [vmem:[%s2020 + $0x61] sm:$0xff]
      %v2142 = vld [vmem:[%s2020 + $0x71] sm:$0xff]
      %v2143 = vpack.c.bf16 %v2136, %v2135
      %v2144 = vpack.c.bf16 %v2138, %v2137
      %v2145 = vpack.c.bf16 %v2140, %v2139
      %v2146 = vpack.c.bf16 %v2142, %v2141
      %s2147 = scalar_lea.vmem %s271, 1024
      %v2148 = vld [vmem:[%s2147] sm:$0xf]
      %v2149 = vld [vmem:[%s2147 + $0x4] sm:$0xf]
      %v2150 = vld [vmem:[%s2147 + $0x8] sm:$0xf]
      %v2151 = vld [vmem:[%s2147 + $0xc] sm:$0xf]
      %v2152 = vld [vmem:[%s2147 + $0x10] sm:$0xf]
      %v2153 = vld [vmem:[%s2147 + $0x14] sm:$0xf]
      %v2154 = vld [vmem:[%s2147 + $0x18] sm:$0xf]
      %v2155 = vld [vmem:[%s2147 + $0x1c] sm:$0xf]
      %v2156 = vld [vmem:[%s2147 + $0x20] sm:$0xf]
      %v2157 = vld [vmem:[%s2147 + $0x24] sm:$0xf]
      %v2158 = vld [vmem:[%s2147 + $0x28] sm:$0xf]
      %v2159 = vld [vmem:[%s2147 + $0x2c] sm:$0xf]
      %v2160 = vld [vmem:[%s2147 + $0x30] sm:$0xf]
      %v2161 = vld [vmem:[%s2147 + $0x34] sm:$0xf]
      %v2162 = vld [vmem:[%s2147 + $0x38] sm:$0xf]
      %v2163 = vld [vmem:[%s2147 + $0x3c] sm:$0xf]
      %v2180 = vunpack.c.l.b16 %v2148
      %v2181 = vunpack.c.l.b16 %v2149
      %v2182 = vunpack.c.l.b16 %v2150
      %v2183 = vunpack.c.l.b16 %v2151
      %v2184 = vunpack.c.l.b16 %v2152
      %v2185 = vunpack.c.l.b16 %v2153
      %v2186 = vunpack.c.l.b16 %v2154
      %v2187 = vunpack.c.l.b16 %v2155
      %v2188 = vunpack.c.l.b16 %v2156
      %v2189 = vunpack.c.l.b16 %v2157
      %v2190 = vunpack.c.l.b16 %v2158
      %v2191 = vunpack.c.l.b16 %v2159
      %v2192 = vunpack.c.l.b16 %v2160
      %v2193 = vunpack.c.l.b16 %v2161
      %v2194 = vunpack.c.l.b16 %v2162
      %v2195 = vunpack.c.l.b16 %v2163
      %v2196 = vpack.c.b16 %v2181, %v2180
      %v2197 = vpack.c.b16 %v2183, %v2182
      %v2198 = vpack.c.b16 %v2185, %v2184
      %v2199 = vpack.c.b16 %v2187, %v2186
      %v2200 = vpack.c.b16 %v2189, %v2188
      %v2201 = vpack.c.b16 %v2191, %v2190
      %v2202 = vpack.c.b16 %v2193, %v2192
      %v2203 = vpack.c.b16 %v2195, %v2194
      %2212 = vmatpush.bf16.msra.mxu0 %v2203
      %2213 = vmatpush.bf16.msra.mxu0 %v2202
      %2214 = vmatpush.bf16.msra.mxu0 %v2201
      %2215 = vmatpush.bf16.msra.mxu0 %v2200
      %2216 = vmatpush.bf16.msra.mxu0 %v2199
      %2217 = vmatpush.bf16.msra.mxu0 %v2198
      %2218 = vmatpush.bf16.msra.mxu0 %v2197
      %2219 = vmatpush.bf16.msra.mxu0 %v2196
      %2220 = vmatmul.bf16.gmra.mxu0 %v2143
      %v2221 = vpop.f32.mrf.mxu0
      %v2222 = vadd.f32 0.0, %v2221
      %v2223 = vpop.f32.mrf.mxu0
      %v2224 = vadd.f32 0.0, %v2223
      %2225 = vmatmul.bf16.gmra.mxu0 %v2144
      %v2226 = vpop.f32.mrf.mxu0
      %v2227 = vadd.f32 0.0, %v2226
      %v2228 = vpop.f32.mrf.mxu0
      %v2229 = vadd.f32 0.0, %v2228
      %2230 = vmatmul.bf16.gmra.mxu0 %v2145
      %v2231 = vpop.f32.mrf.mxu0
      %v2232 = vadd.f32 0.0, %v2231
      %v2233 = vpop.f32.mrf.mxu0
      %v2234 = vadd.f32 0.0, %v2233
      %2235 = vmatmul.bf16.gmra.mxu0 %v2146
      %v2236 = vpop.f32.mrf.mxu0
      %v2237 = vadd.f32 0.0, %v2236
      %v2238 = vpop.f32.mrf.mxu0
      %v2239 = vadd.f32 0.0, %v2238
      %2240 = vdwg.mxu0
      %v2241 = vadd.f32 %v2127, %v2222
      %v2242 = vadd.f32 %v2128, %v2224
      %v2243 = vadd.f32 %v2129, %v2227
      %v2244 = vadd.f32 %v2130, %v2229
      %v2245 = vadd.f32 %v2131, %v2232
      %v2246 = vadd.f32 %v2132, %v2234
      %v2247 = vadd.f32 %v2133, %v2237
      %v2248 = vadd.f32 %v2134, %v2239
      %v2249 = vld [vmem:[%s2020 + $0x2] sm:$0xff]
      %v2250 = vld [vmem:[%s2020 + $0x12] sm:$0xff]
      %v2251 = vld [vmem:[%s2020 + $0x22] sm:$0xff]
      %v2252 = vld [vmem:[%s2020 + $0x32] sm:$0xff]
      %v2253 = vld [vmem:[%s2020 + $0x42] sm:$0xff]
      %v2254 = vld [vmem:[%s2020 + $0x52] sm:$0xff]
      %v2255 = vld [vmem:[%s2020 + $0x62] sm:$0xff]
      %v2256 = vld [vmem:[%s2020 + $0x72] sm:$0xff]
      %v2257 = vpack.c.bf16 %v2250, %v2249
      %v2258 = vpack.c.bf16 %v2252, %v2251
      %v2259 = vpack.c.bf16 %v2254, %v2253
      %v2260 = vpack.c.bf16 %v2256, %v2255
      %s2261 = scalar_lea.vmem %s271, 1088
      %v2262 = vld [vmem:[%s2261] sm:$0xf]
      %v2263 = vld [vmem:[%s2261 + $0x4] sm:$0xf]
      %v2264 = vld [vmem:[%s2261 + $0x8] sm:$0xf]
      %v2265 = vld [vmem:[%s2261 + $0xc] sm:$0xf]
      %v2266 = vld [vmem:[%s2261 + $0x10] sm:$0xf]
      %v2267 = vld [vmem:[%s2261 + $0x14] sm:$0xf]
      %v2268 = vld [vmem:[%s2261 + $0x18] sm:$0xf]
      %v2269 = vld [vmem:[%s2261 + $0x1c] sm:$0xf]
      %v2270 = vld [vmem:[%s2261 + $0x20] sm:$0xf]
      %v2271 = vld [vmem:[%s2261 + $0x24] sm:$0xf]
      %v2272 = vld [vmem:[%s2261 + $0x28] sm:$0xf]
      %v2273 = vld [vmem:[%s2261 + $0x2c] sm:$0xf]
      %v2274 = vld [vmem:[%s2261 + $0x30] sm:$0xf]
      %v2275 = vld [vmem:[%s2261 + $0x34] sm:$0xf]
      %v2276 = vld [vmem:[%s2261 + $0x38] sm:$0xf]
      %v2277 = vld [vmem:[%s2261 + $0x3c] sm:$0xf]
      %v2294 = vunpack.c.l.b16 %v2262
      %v2295 = vunpack.c.l.b16 %v2263
      %v2296 = vunpack.c.l.b16 %v2264
      %v2297 = vunpack.c.l.b16 %v2265
      %v2298 = vunpack.c.l.b16 %v2266
      %v2299 = vunpack.c.l.b16 %v2267
      %v2300 = vunpack.c.l.b16 %v2268
      %v2301 = vunpack.c.l.b16 %v2269
      %v2302 = vunpack.c.l.b16 %v2270
      %v2303 = vunpack.c.l.b16 %v2271
      %v2304 = vunpack.c.l.b16 %v2272
      %v2305 = vunpack.c.l.b16 %v2273
      %v2306 = vunpack.c.l.b16 %v2274
      %v2307 = vunpack.c.l.b16 %v2275
      %v2308 = vunpack.c.l.b16 %v2276
      %v2309 = vunpack.c.l.b16 %v2277
      %v2310 = vpack.c.b16 %v2295, %v2294
      %v2311 = vpack.c.b16 %v2297, %v2296
      %v2312 = vpack.c.b16 %v2299, %v2298
      %v2313 = vpack.c.b16 %v2301, %v2300
      %v2314 = vpack.c.b16 %v2303, %v2302
      %v2315 = vpack.c.b16 %v2305, %v2304
      %v2316 = vpack.c.b16 %v2307, %v2306
      %v2317 = vpack.c.b16 %v2309, %v2308
      %2326 = vmatpush.bf16.msra.mxu0 %v2317
      %2327 = vmatpush.bf16.msra.mxu0 %v2316
      %2328 = vmatpush.bf16.msra.mxu0 %v2315
      %2329 = vmatpush.bf16.msra.mxu0 %v2314
      %2330 = vmatpush.bf16.msra.mxu0 %v2313
      %2331 = vmatpush.bf16.msra.mxu0 %v2312
      %2332 = vmatpush.bf16.msra.mxu0 %v2311
      %2333 = vmatpush.bf16.msra.mxu0 %v2310
      %2334 = vmatmul.bf16.gmra.mxu0 %v2257
      %v2335 = vpop.f32.mrf.mxu0
      %v2336 = vadd.f32 0.0, %v2335
      %v2337 = vpop.f32.mrf.mxu0
      %v2338 = vadd.f32 0.0, %v2337
      %2339 = vmatmul.bf16.gmra.mxu0 %v2258
      %v2340 = vpop.f32.mrf.mxu0
      %v2341 = vadd.f32 0.0, %v2340
      %v2342 = vpop.f32.mrf.mxu0
      %v2343 = vadd.f32 0.0, %v2342
      %2344 = vmatmul.bf16.gmra.mxu0 %v2259
      %v2345 = vpop.f32.mrf.mxu0
      %v2346 = vadd.f32 0.0, %v2345
      %v2347 = vpop.f32.mrf.mxu0
      %v2348 = vadd.f32 0.0, %v2347
      %2349 = vmatmul.bf16.gmra.mxu0 %v2260
      %v2350 = vpop.f32.mrf.mxu0
      %v2351 = vadd.f32 0.0, %v2350
      %v2352 = vpop.f32.mrf.mxu0
      %v2353 = vadd.f32 0.0, %v2352
      %2354 = vdwg.mxu0
      %v2355 = vadd.f32 %v2241, %v2336
      %v2356 = vadd.f32 %v2242, %v2338
      %v2357 = vadd.f32 %v2243, %v2341
      %v2358 = vadd.f32 %v2244, %v2343
      %v2359 = vadd.f32 %v2245, %v2346
      %v2360 = vadd.f32 %v2246, %v2348
      %v2361 = vadd.f32 %v2247, %v2351
      %v2362 = vadd.f32 %v2248, %v2353
      %v2363 = vld [vmem:[%s2020 + $0x3] sm:$0xff]
      %v2364 = vld [vmem:[%s2020 + $0x13] sm:$0xff]
      %v2365 = vld [vmem:[%s2020 + $0x23] sm:$0xff]
      %v2366 = vld [vmem:[%s2020 + $0x33] sm:$0xff]
      %v2367 = vld [vmem:[%s2020 + $0x43] sm:$0xff]
      %v2368 = vld [vmem:[%s2020 + $0x53] sm:$0xff]
      %v2369 = vld [vmem:[%s2020 + $0x63] sm:$0xff]
      %v2370 = vld [vmem:[%s2020 + $0x73] sm:$0xff]
      %v2371 = vpack.c.bf16 %v2364, %v2363
      %v2372 = vpack.c.bf16 %v2366, %v2365
      %v2373 = vpack.c.bf16 %v2368, %v2367
      %v2374 = vpack.c.bf16 %v2370, %v2369
      %s2375 = scalar_lea.vmem %s271, 1152
      %v2376 = vld [vmem:[%s2375] sm:$0xf]
      %v2377 = vld [vmem:[%s2375 + $0x4] sm:$0xf]
      %v2378 = vld [vmem:[%s2375 + $0x8] sm:$0xf]
      %v2379 = vld [vmem:[%s2375 + $0xc] sm:$0xf]
      %v2380 = vld [vmem:[%s2375 + $0x10] sm:$0xf]
      %v2381 = vld [vmem:[%s2375 + $0x14] sm:$0xf]
      %v2382 = vld [vmem:[%s2375 + $0x18] sm:$0xf]
      %v2383 = vld [vmem:[%s2375 + $0x1c] sm:$0xf]
      %v2384 = vld [vmem:[%s2375 + $0x20] sm:$0xf]
      %v2385 = vld [vmem:[%s2375 + $0x24] sm:$0xf]
      %v2386 = vld [vmem:[%s2375 + $0x28] sm:$0xf]
      %v2387 = vld [vmem:[%s2375 + $0x2c] sm:$0xf]
      %v2388 = vld [vmem:[%s2375 + $0x30] sm:$0xf]
      %v2389 = vld [vmem:[%s2375 + $0x34] sm:$0xf]
      %v2390 = vld [vmem:[%s2375 + $0x38] sm:$0xf]
      %v2391 = vld [vmem:[%s2375 + $0x3c] sm:$0xf]
      %v2408 = vunpack.c.l.b16 %v2376
      %v2409 = vunpack.c.l.b16 %v2377
      %v2410 = vunpack.c.l.b16 %v2378
      %v2411 = vunpack.c.l.b16 %v2379
      %v2412 = vunpack.c.l.b16 %v2380
      %v2413 = vunpack.c.l.b16 %v2381
      %v2414 = vunpack.c.l.b16 %v2382
      %v2415 = vunpack.c.l.b16 %v2383
      %v2416 = vunpack.c.l.b16 %v2384
      %v2417 = vunpack.c.l.b16 %v2385
      %v2418 = vunpack.c.l.b16 %v2386
      %v2419 = vunpack.c.l.b16 %v2387
      %v2420 = vunpack.c.l.b16 %v2388
      %v2421 = vunpack.c.l.b16 %v2389
      %v2422 = vunpack.c.l.b16 %v2390
      %v2423 = vunpack.c.l.b16 %v2391
      %v2424 = vpack.c.b16 %v2409, %v2408
      %v2425 = vpack.c.b16 %v2411, %v2410
      %v2426 = vpack.c.b16 %v2413, %v2412
      %v2427 = vpack.c.b16 %v2415, %v2414
      %v2428 = vpack.c.b16 %v2417, %v2416
      %v2429 = vpack.c.b16 %v2419, %v2418
      %v2430 = vpack.c.b16 %v2421, %v2420
      %v2431 = vpack.c.b16 %v2423, %v2422
      %2440 = vmatpush.bf16.msra.mxu0 %v2431
      %2441 = vmatpush.bf16.msra.mxu0 %v2430
      %2442 = vmatpush.bf16.msra.mxu0 %v2429
      %2443 = vmatpush.bf16.msra.mxu0 %v2428
      %2444 = vmatpush.bf16.msra.mxu0 %v2427
      %2445 = vmatpush.bf16.msra.mxu0 %v2426
      %2446 = vmatpush.bf16.msra.mxu0 %v2425
      %2447 = vmatpush.bf16.msra.mxu0 %v2424
      %2448 = vmatmul.bf16.gmra.mxu0 %v2371
      %v2449 = vpop.f32.mrf.mxu0
      %v2450 = vadd.f32 0.0, %v2449
      %v2451 = vpop.f32.mrf.mxu0
      %v2452 = vadd.f32 0.0, %v2451
      %2453 = vmatmul.bf16.gmra.mxu0 %v2372
      %v2454 = vpop.f32.mrf.mxu0
      %v2455 = vadd.f32 0.0, %v2454
      %v2456 = vpop.f32.mrf.mxu0
      %v2457 = vadd.f32 0.0, %v2456
      %2458 = vmatmul.bf16.gmra.mxu0 %v2373
      %v2459 = vpop.f32.mrf.mxu0
      %v2460 = vadd.f32 0.0, %v2459
      %v2461 = vpop.f32.mrf.mxu0
      %v2462 = vadd.f32 0.0, %v2461
      %2463 = vmatmul.bf16.gmra.mxu0 %v2374
      %v2464 = vpop.f32.mrf.mxu0
      %v2465 = vadd.f32 0.0, %v2464
      %v2466 = vpop.f32.mrf.mxu0
      %v2467 = vadd.f32 0.0, %v2466
      %2468 = vdwg.mxu0
      %v2469 = vadd.f32 %v2355, %v2450
      %v2470 = vadd.f32 %v2356, %v2452
      %v2471 = vadd.f32 %v2357, %v2455
      %v2472 = vadd.f32 %v2358, %v2457
      %v2473 = vadd.f32 %v2359, %v2460
      %v2474 = vadd.f32 %v2360, %v2462
      %v2475 = vadd.f32 %v2361, %v2465
      %v2476 = vadd.f32 %v2362, %v2467
      %v2477 = vld [vmem:[%s2020 + $0x4] sm:$0xff]
      %v2478 = vld [vmem:[%s2020 + $0x14] sm:$0xff]
      %v2479 = vld [vmem:[%s2020 + $0x24] sm:$0xff]
      %v2480 = vld [vmem:[%s2020 + $0x34] sm:$0xff]
      %v2481 = vld [vmem:[%s2020 + $0x44] sm:$0xff]
      %v2482 = vld [vmem:[%s2020 + $0x54] sm:$0xff]
      %v2483 = vld [vmem:[%s2020 + $0x64] sm:$0xff]
      %v2484 = vld [vmem:[%s2020 + $0x74] sm:$0xff]
      %v2485 = vpack.c.bf16 %v2478, %v2477
      %v2486 = vpack.c.bf16 %v2480, %v2479
      %v2487 = vpack.c.bf16 %v2482, %v2481
      %v2488 = vpack.c.bf16 %v2484, %v2483
      %s2489 = scalar_lea.vmem %s271, 1216
      %v2490 = vld [vmem:[%s2489] sm:$0xf]
      %v2491 = vld [vmem:[%s2489 + $0x4] sm:$0xf]
      %v2492 = vld [vmem:[%s2489 + $0x8] sm:$0xf]
      %v2493 = vld [vmem:[%s2489 + $0xc] sm:$0xf]
      %v2494 = vld [vmem:[%s2489 + $0x10] sm:$0xf]
      %v2495 = vld [vmem:[%s2489 + $0x14] sm:$0xf]
      %v2496 = vld [vmem:[%s2489 + $0x18] sm:$0xf]
      %v2497 = vld [vmem:[%s2489 + $0x1c] sm:$0xf]
      %v2498 = vld [vmem:[%s2489 + $0x20] sm:$0xf]
      %v2499 = vld [vmem:[%s2489 + $0x24] sm:$0xf]
      %v2500 = vld [vmem:[%s2489 + $0x28] sm:$0xf]
      %v2501 = vld [vmem:[%s2489 + $0x2c] sm:$0xf]
      %v2502 = vld [vmem:[%s2489 + $0x30] sm:$0xf]
      %v2503 = vld [vmem:[%s2489 + $0x34] sm:$0xf]
      %v2504 = vld [vmem:[%s2489 + $0x38] sm:$0xf]
      %v2505 = vld [vmem:[%s2489 + $0x3c] sm:$0xf]
      %v2522 = vunpack.c.l.b16 %v2490
      %v2523 = vunpack.c.l.b16 %v2491
      %v2524 = vunpack.c.l.b16 %v2492
      %v2525 = vunpack.c.l.b16 %v2493
      %v2526 = vunpack.c.l.b16 %v2494
      %v2527 = vunpack.c.l.b16 %v2495
      %v2528 = vunpack.c.l.b16 %v2496
      %v2529 = vunpack.c.l.b16 %v2497
      %v2530 = vunpack.c.l.b16 %v2498
      %v2531 = vunpack.c.l.b16 %v2499
      %v2532 = vunpack.c.l.b16 %v2500
      %v2533 = vunpack.c.l.b16 %v2501
      %v2534 = vunpack.c.l.b16 %v2502
      %v2535 = vunpack.c.l.b16 %v2503
      %v2536 = vunpack.c.l.b16 %v2504
      %v2537 = vunpack.c.l.b16 %v2505
      %v2538 = vpack.c.b16 %v2523, %v2522
      %v2539 = vpack.c.b16 %v2525, %v2524
      %v2540 = vpack.c.b16 %v2527, %v2526
      %v2541 = vpack.c.b16 %v2529, %v2528
      %v2542 = vpack.c.b16 %v2531, %v2530
      %v2543 = vpack.c.b16 %v2533, %v2532
      %v2544 = vpack.c.b16 %v2535, %v2534
      %v2545 = vpack.c.b16 %v2537, %v2536
      %2554 = vmatpush.bf16.msra.mxu0 %v2545
      %2555 = vmatpush.bf16.msra.mxu0 %v2544
      %2556 = vmatpush.bf16.msra.mxu0 %v2543
      %2557 = vmatpush.bf16.msra.mxu0 %v2542
      %2558 = vmatpush.bf16.msra.mxu0 %v2541
      %2559 = vmatpush.bf16.msra.mxu0 %v2540
      %2560 = vmatpush.bf16.msra.mxu0 %v2539
      %2561 = vmatpush.bf16.msra.mxu0 %v2538
      %2562 = vmatmul.bf16.gmra.mxu0 %v2485
      %v2563 = vpop.f32.mrf.mxu0
      %v2564 = vadd.f32 0.0, %v2563
      %v2565 = vpop.f32.mrf.mxu0
      %v2566 = vadd.f32 0.0, %v2565
      %2567 = vmatmul.bf16.gmra.mxu0 %v2486
      %v2568 = vpop.f32.mrf.mxu0
      %v2569 = vadd.f32 0.0, %v2568
      %v2570 = vpop.f32.mrf.mxu0
      %v2571 = vadd.f32 0.0, %v2570
      %2572 = vmatmul.bf16.gmra.mxu0 %v2487
      %v2573 = vpop.f32.mrf.mxu0
      %v2574 = vadd.f32 0.0, %v2573
      %v2575 = vpop.f32.mrf.mxu0
      %v2576 = vadd.f32 0.0, %v2575
      %2577 = vmatmul.bf16.gmra.mxu0 %v2488
      %v2578 = vpop.f32.mrf.mxu0
      %v2579 = vadd.f32 0.0, %v2578
      %v2580 = vpop.f32.mrf.mxu0
      %v2581 = vadd.f32 0.0, %v2580
      %2582 = vdwg.mxu0
      %v2583 = vadd.f32 %v2469, %v2564
      %v2584 = vadd.f32 %v2470, %v2566
      %v2585 = vadd.f32 %v2471, %v2569
      %v2586 = vadd.f32 %v2472, %v2571
      %v2587 = vadd.f32 %v2473, %v2574
      %v2588 = vadd.f32 %v2474, %v2576
      %v2589 = vadd.f32 %v2475, %v2579
      %v2590 = vadd.f32 %v2476, %v2581
      %s2591 = scalar_lea.vmem %s265, 64
      %v2592 = vld [vmem:[%s2591] sm:$0xff]
      %v2593 = vld [vmem:[%s2591 + $0x10] sm:$0xff]
      %v2594 = vld [vmem:[%s2591 + $0x20] sm:$0xff]
      %v2595 = vld [vmem:[%s2591 + $0x30] sm:$0xff]
      %v2596 = vld [vmem:[%s2591 + $0x40] sm:$0xff]
      %v2597 = vld [vmem:[%s2591 + $0x50] sm:$0xff]
      %v2598 = vld [vmem:[%s2591 + $0x60] sm:$0xff]
      %v2599 = vld [vmem:[%s2591 + $0x70] sm:$0xff]
      %v2600 = vpack.c.bf16 %v2593, %v2592
      %v2601 = vpack.c.bf16 %v2595, %v2594
      %v2602 = vpack.c.bf16 %v2597, %v2596
      %v2603 = vpack.c.bf16 %v2599, %v2598
      %s2604 = scalar_lea.vmem %s271, 1280
      %v2605 = vld [vmem:[%s2604] sm:$0xf]
      %v2606 = vld [vmem:[%s2604 + $0x4] sm:$0xf]
      %v2607 = vld [vmem:[%s2604 + $0x8] sm:$0xf]
      %v2608 = vld [vmem:[%s2604 + $0xc] sm:$0xf]
      %v2609 = vld [vmem:[%s2604 + $0x10] sm:$0xf]
      %v2610 = vld [vmem:[%s2604 + $0x14] sm:$0xf]
      %v2611 = vld [vmem:[%s2604 + $0x18] sm:$0xf]
      %v2612 = vld [vmem:[%s2604 + $0x1c] sm:$0xf]
      %v2613 = vld [vmem:[%s2604 + $0x20] sm:$0xf]
      %v2614 = vld [vmem:[%s2604 + $0x24] sm:$0xf]
      %v2615 = vld [vmem:[%s2604 + $0x28] sm:$0xf]
      %v2616 = vld [vmem:[%s2604 + $0x2c] sm:$0xf]
      %v2617 = vld [vmem:[%s2604 + $0x30] sm:$0xf]
      %v2618 = vld [vmem:[%s2604 + $0x34] sm:$0xf]
      %v2619 = vld [vmem:[%s2604 + $0x38] sm:$0xf]
      %v2620 = vld [vmem:[%s2604 + $0x3c] sm:$0xf]
      %v2637 = vunpack.c.l.b16 %v2605
      %v2638 = vunpack.c.l.b16 %v2606
      %v2639 = vunpack.c.l.b16 %v2607
      %v2640 = vunpack.c.l.b16 %v2608
      %v2641 = vunpack.c.l.b16 %v2609
      %v2642 = vunpack.c.l.b16 %v2610
      %v2643 = vunpack.c.l.b16 %v2611
      %v2644 = vunpack.c.l.b16 %v2612
      %v2645 = vunpack.c.l.b16 %v2613
      %v2646 = vunpack.c.l.b16 %v2614
      %v2647 = vunpack.c.l.b16 %v2615
      %v2648 = vunpack.c.l.b16 %v2616
      %v2649 = vunpack.c.l.b16 %v2617
      %v2650 = vunpack.c.l.b16 %v2618
      %v2651 = vunpack.c.l.b16 %v2619
      %v2652 = vunpack.c.l.b16 %v2620
      %v2653 = vpack.c.b16 %v2638, %v2637
      %v2654 = vpack.c.b16 %v2640, %v2639
      %v2655 = vpack.c.b16 %v2642, %v2641
      %v2656 = vpack.c.b16 %v2644, %v2643
      %v2657 = vpack.c.b16 %v2646, %v2645
      %v2658 = vpack.c.b16 %v2648, %v2647
      %v2659 = vpack.c.b16 %v2650, %v2649
      %v2660 = vpack.c.b16 %v2652, %v2651
      %2669 = vmatpush.bf16.msra.mxu0 %v2660
      %2670 = vmatpush.bf16.msra.mxu0 %v2659
      %2671 = vmatpush.bf16.msra.mxu0 %v2658
      %2672 = vmatpush.bf16.msra.mxu0 %v2657
      %2673 = vmatpush.bf16.msra.mxu0 %v2656
      %2674 = vmatpush.bf16.msra.mxu0 %v2655
      %2675 = vmatpush.bf16.msra.mxu0 %v2654
      %2676 = vmatpush.bf16.msra.mxu0 %v2653
      %2677 = vmatmul.bf16.gmra.mxu0 %v2600
      %v2678 = vpop.f32.mrf.mxu0
      %v2679 = vadd.f32 0.0, %v2678
      %v2680 = vpop.f32.mrf.mxu0
      %v2681 = vadd.f32 0.0, %v2680
      %2682 = vmatmul.bf16.gmra.mxu0 %v2601
      %v2683 = vpop.f32.mrf.mxu0
      %v2684 = vadd.f32 0.0, %v2683
      %v2685 = vpop.f32.mrf.mxu0
      %v2686 = vadd.f32 0.0, %v2685
      %2687 = vmatmul.bf16.gmra.mxu0 %v2602
      %v2688 = vpop.f32.mrf.mxu0
      %v2689 = vadd.f32 0.0, %v2688
      %v2690 = vpop.f32.mrf.mxu0
      %v2691 = vadd.f32 0.0, %v2690
      %2692 = vmatmul.bf16.gmra.mxu0 %v2603
      %v2693 = vpop.f32.mrf.mxu0
      %v2694 = vadd.f32 0.0, %v2693
      %v2695 = vpop.f32.mrf.mxu0
      %v2696 = vadd.f32 0.0, %v2695
      %2697 = vdwg.mxu0
      %v2698 = vadd.f32 %v2583, %v2679
      %v2699 = vadd.f32 %v2584, %v2681
      %v2700 = vadd.f32 %v2585, %v2684
      %v2701 = vadd.f32 %v2586, %v2686
      %v2702 = vadd.f32 %v2587, %v2689
      %v2703 = vadd.f32 %v2588, %v2691
      %v2704 = vadd.f32 %v2589, %v2694
      %v2705 = vadd.f32 %v2590, %v2696
      %v2706 = vld [vmem:[%s2591 + $0x1] sm:$0xff]
      %v2707 = vld [vmem:[%s2591 + $0x11] sm:$0xff]
      %v2708 = vld [vmem:[%s2591 + $0x21] sm:$0xff]
      %v2709 = vld [vmem:[%s2591 + $0x31] sm:$0xff]
      %v2710 = vld [vmem:[%s2591 + $0x41] sm:$0xff]
      %v2711 = vld [vmem:[%s2591 + $0x51] sm:$0xff]
      %v2712 = vld [vmem:[%s2591 + $0x61] sm:$0xff]
      %v2713 = vld [vmem:[%s2591 + $0x71] sm:$0xff]
      %v2714 = vpack.c.bf16 %v2707, %v2706
      %v2715 = vpack.c.bf16 %v2709, %v2708
      %v2716 = vpack.c.bf16 %v2711, %v2710
      %v2717 = vpack.c.bf16 %v2713, %v2712
      %s2718 = scalar_lea.vmem %s271, 1344
      %v2719 = vld [vmem:[%s2718] sm:$0xf]
      %v2720 = vld [vmem:[%s2718 + $0x4] sm:$0xf]
      %v2721 = vld [vmem:[%s2718 + $0x8] sm:$0xf]
      %v2722 = vld [vmem:[%s2718 + $0xc] sm:$0xf]
      %v2723 = vld [vmem:[%s2718 + $0x10] sm:$0xf]
      %v2724 = vld [vmem:[%s2718 + $0x14] sm:$0xf]
      %v2725 = vld [vmem:[%s2718 + $0x18] sm:$0xf]
      %v2726 = vld [vmem:[%s2718 + $0x1c] sm:$0xf]
      %v2727 = vld [vmem:[%s2718 + $0x20] sm:$0xf]
      %v2728 = vld [vmem:[%s2718 + $0x24] sm:$0xf]
      %v2729 = vld [vmem:[%s2718 + $0x28] sm:$0xf]
      %v2730 = vld [vmem:[%s2718 + $0x2c] sm:$0xf]
      %v2731 = vld [vmem:[%s2718 + $0x30] sm:$0xf]
      %v2732 = vld [vmem:[%s2718 + $0x34] sm:$0xf]
      %v2733 = vld [vmem:[%s2718 + $0x38] sm:$0xf]
      %v2734 = vld [vmem:[%s2718 + $0x3c] sm:$0xf]
      %v2751 = vunpack.c.l.b16 %v2719
      %v2752 = vunpack.c.l.b16 %v2720
      %v2753 = vunpack.c.l.b16 %v2721
      %v2754 = vunpack.c.l.b16 %v2722
      %v2755 = vunpack.c.l.b16 %v2723
      %v2756 = vunpack.c.l.b16 %v2724
      %v2757 = vunpack.c.l.b16 %v2725
      %v2758 = vunpack.c.l.b16 %v2726
      %v2759 = vunpack.c.l.b16 %v2727
      %v2760 = vunpack.c.l.b16 %v2728
      %v2761 = vunpack.c.l.b16 %v2729
      %v2762 = vunpack.c.l.b16 %v2730
      %v2763 = vunpack.c.l.b16 %v2731
      %v2764 = vunpack.c.l.b16 %v2732
      %v2765 = vunpack.c.l.b16 %v2733
      %v2766 = vunpack.c.l.b16 %v2734
      %v2767 = vpack.c.b16 %v2752, %v2751
      %v2768 = vpack.c.b16 %v2754, %v2753
      %v2769 = vpack.c.b16 %v2756, %v2755
      %v2770 = vpack.c.b16 %v2758, %v2757
      %v2771 = vpack.c.b16 %v2760, %v2759
      %v2772 = vpack.c.b16 %v2762, %v2761
      %v2773 = vpack.c.b16 %v2764, %v2763
      %v2774 = vpack.c.b16 %v2766, %v2765
      %2783 = vmatpush.bf16.msra.mxu0 %v2774
      %2784 = vmatpush.bf16.msra.mxu0 %v2773
      %2785 = vmatpush.bf16.msra.mxu0 %v2772
      %2786 = vmatpush.bf16.msra.mxu0 %v2771
      %2787 = vmatpush.bf16.msra.mxu0 %v2770
      %2788 = vmatpush.bf16.msra.mxu0 %v2769
      %2789 = vmatpush.bf16.msra.mxu0 %v2768
      %2790 = vmatpush.bf16.msra.mxu0 %v2767
      %2791 = vmatmul.bf16.gmra.mxu0 %v2714
      %v2792 = vpop.f32.mrf.mxu0
      %v2793 = vadd.f32 0.0, %v2792
      %v2794 = vpop.f32.mrf.mxu0
      %v2795 = vadd.f32 0.0, %v2794
      %2796 = vmatmul.bf16.gmra.mxu0 %v2715
      %v2797 = vpop.f32.mrf.mxu0
      %v2798 = vadd.f32 0.0, %v2797
      %v2799 = vpop.f32.mrf.mxu0
      %v2800 = vadd.f32 0.0, %v2799
      %2801 = vmatmul.bf16.gmra.mxu0 %v2716
      %v2802 = vpop.f32.mrf.mxu0
      %v2803 = vadd.f32 0.0, %v2802
      %v2804 = vpop.f32.mrf.mxu0
      %v2805 = vadd.f32 0.0, %v2804
      %2806 = vmatmul.bf16.gmra.mxu0 %v2717
      %v2807 = vpop.f32.mrf.mxu0
      %v2808 = vadd.f32 0.0, %v2807
      %v2809 = vpop.f32.mrf.mxu0
      %v2810 = vadd.f32 0.0, %v2809
      %2811 = vdwg.mxu0
      %v2812 = vadd.f32 %v2698, %v2793
      %v2813 = vadd.f32 %v2699, %v2795
      %v2814 = vadd.f32 %v2700, %v2798
      %v2815 = vadd.f32 %v2701, %v2800
      %v2816 = vadd.f32 %v2702, %v2803
      %v2817 = vadd.f32 %v2703, %v2805
      %v2818 = vadd.f32 %v2704, %v2808
      %v2819 = vadd.f32 %v2705, %v2810
      %v2820 = vld [vmem:[%s2591 + $0x2] sm:$0xff]
      %v2821 = vld [vmem:[%s2591 + $0x12] sm:$0xff]
      %v2822 = vld [vmem:[%s2591 + $0x22] sm:$0xff]
      %v2823 = vld [vmem:[%s2591 + $0x32] sm:$0xff]
      %v2824 = vld [vmem:[%s2591 + $0x42] sm:$0xff]
      %v2825 = vld [vmem:[%s2591 + $0x52] sm:$0xff]
      %v2826 = vld [vmem:[%s2591 + $0x62] sm:$0xff]
      %v2827 = vld [vmem:[%s2591 + $0x72] sm:$0xff]
      %v2828 = vpack.c.bf16 %v2821, %v2820
      %v2829 = vpack.c.bf16 %v2823, %v2822
      %v2830 = vpack.c.bf16 %v2825, %v2824
      %v2831 = vpack.c.bf16 %v2827, %v2826
      %s2832 = scalar_lea.vmem %s271, 1408
      %v2833 = vld [vmem:[%s2832] sm:$0xf]
      %v2834 = vld [vmem:[%s2832 + $0x4] sm:$0xf]
      %v2835 = vld [vmem:[%s2832 + $0x8] sm:$0xf]
      %v2836 = vld [vmem:[%s2832 + $0xc] sm:$0xf]
      %v2837 = vld [vmem:[%s2832 + $0x10] sm:$0xf]
      %v2838 = vld [vmem:[%s2832 + $0x14] sm:$0xf]
      %v2839 = vld [vmem:[%s2832 + $0x18] sm:$0xf]
      %v2840 = vld [vmem:[%s2832 + $0x1c] sm:$0xf]
      %v2841 = vld [vmem:[%s2832 + $0x20] sm:$0xf]
      %v2842 = vld [vmem:[%s2832 + $0x24] sm:$0xf]
      %v2843 = vld [vmem:[%s2832 + $0x28] sm:$0xf]
      %v2844 = vld [vmem:[%s2832 + $0x2c] sm:$0xf]
      %v2845 = vld [vmem:[%s2832 + $0x30] sm:$0xf]
      %v2846 = vld [vmem:[%s2832 + $0x34] sm:$0xf]
      %v2847 = vld [vmem:[%s2832 + $0x38] sm:$0xf]
      %v2848 = vld [vmem:[%s2832 + $0x3c] sm:$0xf]
      %v2865 = vunpack.c.l.b16 %v2833
      %v2866 = vunpack.c.l.b16 %v2834
      %v2867 = vunpack.c.l.b16 %v2835
      %v2868 = vunpack.c.l.b16 %v2836
      %v2869 = vunpack.c.l.b16 %v2837
      %v2870 = vunpack.c.l.b16 %v2838
      %v2871 = vunpack.c.l.b16 %v2839
      %v2872 = vunpack.c.l.b16 %v2840
      %v2873 = vunpack.c.l.b16 %v2841
      %v2874 = vunpack.c.l.b16 %v2842
      %v2875 = vunpack.c.l.b16 %v2843
      %v2876 = vunpack.c.l.b16 %v2844
      %v2877 = vunpack.c.l.b16 %v2845
      %v2878 = vunpack.c.l.b16 %v2846
      %v2879 = vunpack.c.l.b16 %v2847
      %v2880 = vunpack.c.l.b16 %v2848
      %v2881 = vpack.c.b16 %v2866, %v2865
      %v2882 = vpack.c.b16 %v2868, %v2867
      %v2883 = vpack.c.b16 %v2870, %v2869
      %v2884 = vpack.c.b16 %v2872, %v2871
      %v2885 = vpack.c.b16 %v2874, %v2873
      %v2886 = vpack.c.b16 %v2876, %v2875
      %v2887 = vpack.c.b16 %v2878, %v2877
      %v2888 = vpack.c.b16 %v2880, %v2879
      %2897 = vmatpush.bf16.msra.mxu0 %v2888
      %2898 = vmatpush.bf16.msra.mxu0 %v2887
      %2899 = vmatpush.bf16.msra.mxu0 %v2886
      %2900 = vmatpush.bf16.msra.mxu0 %v2885
      %2901 = vmatpush.bf16.msra.mxu0 %v2884
      %2902 = vmatpush.bf16.msra.mxu0 %v2883
      %2903 = vmatpush.bf16.msra.mxu0 %v2882
      %2904 = vmatpush.bf16.msra.mxu0 %v2881
      %2905 = vmatmul.bf16.gmra.mxu0 %v2828
      %v2906 = vpop.f32.mrf.mxu0
      %v2907 = vadd.f32 0.0, %v2906
      %v2908 = vpop.f32.mrf.mxu0
      %v2909 = vadd.f32 0.0, %v2908
      %2910 = vmatmul.bf16.gmra.mxu0 %v2829
      %v2911 = vpop.f32.mrf.mxu0
      %v2912 = vadd.f32 0.0, %v2911
      %v2913 = vpop.f32.mrf.mxu0
      %v2914 = vadd.f32 0.0, %v2913
      %2915 = vmatmul.bf16.gmra.mxu0 %v2830
      %v2916 = vpop.f32.mrf.mxu0
      %v2917 = vadd.f32 0.0, %v2916
      %v2918 = vpop.f32.mrf.mxu0
      %v2919 = vadd.f32 0.0, %v2918
      %2920 = vmatmul.bf16.gmra.mxu0 %v2831
      %v2921 = vpop.f32.mrf.mxu0
      %v2922 = vadd.f32 0.0, %v2921
      %v2923 = vpop.f32.mrf.mxu0
      %v2924 = vadd.f32 0.0, %v2923
      %2925 = vdwg.mxu0
      %v2926 = vadd.f32 %v2812, %v2907
      %v2927 = vadd.f32 %v2813, %v2909
      %v2928 = vadd.f32 %v2814, %v2912
      %v2929 = vadd.f32 %v2815, %v2914
      %v2930 = vadd.f32 %v2816, %v2917
      %v2931 = vadd.f32 %v2817, %v2919
      %v2932 = vadd.f32 %v2818, %v2922
      %v2933 = vadd.f32 %v2819, %v2924
      %v2934 = vld [vmem:[%s2591 + $0x3] sm:$0xff]
      %v2935 = vld [vmem:[%s2591 + $0x13] sm:$0xff]
      %v2936 = vld [vmem:[%s2591 + $0x23] sm:$0xff]
      %v2937 = vld [vmem:[%s2591 + $0x33] sm:$0xff]
      %v2938 = vld [vmem:[%s2591 + $0x43] sm:$0xff]
      %v2939 = vld [vmem:[%s2591 + $0x53] sm:$0xff]
      %v2940 = vld [vmem:[%s2591 + $0x63] sm:$0xff]
      %v2941 = vld [vmem:[%s2591 + $0x73] sm:$0xff]
      %v2942 = vpack.c.bf16 %v2935, %v2934
      %v2943 = vpack.c.bf16 %v2937, %v2936
      %v2944 = vpack.c.bf16 %v2939, %v2938
      %v2945 = vpack.c.bf16 %v2941, %v2940
      %s2946 = scalar_lea.vmem %s271, 1472
      %v2947 = vld [vmem:[%s2946] sm:$0xf]
      %v2948 = vld [vmem:[%s2946 + $0x4] sm:$0xf]
      %v2949 = vld [vmem:[%s2946 + $0x8] sm:$0xf]
      %v2950 = vld [vmem:[%s2946 + $0xc] sm:$0xf]
      %v2951 = vld [vmem:[%s2946 + $0x10] sm:$0xf]
      %v2952 = vld [vmem:[%s2946 + $0x14] sm:$0xf]
      %v2953 = vld [vmem:[%s2946 + $0x18] sm:$0xf]
      %v2954 = vld [vmem:[%s2946 + $0x1c] sm:$0xf]
      %v2955 = vld [vmem:[%s2946 + $0x20] sm:$0xf]
      %v2956 = vld [vmem:[%s2946 + $0x24] sm:$0xf]
      %v2957 = vld [vmem:[%s2946 + $0x28] sm:$0xf]
      %v2958 = vld [vmem:[%s2946 + $0x2c] sm:$0xf]
      %v2959 = vld [vmem:[%s2946 + $0x30] sm:$0xf]
      %v2960 = vld [vmem:[%s2946 + $0x34] sm:$0xf]
      %v2961 = vld [vmem:[%s2946 + $0x38] sm:$0xf]
      %v2962 = vld [vmem:[%s2946 + $0x3c] sm:$0xf]
      %v2979 = vunpack.c.l.b16 %v2947
      %v2980 = vunpack.c.l.b16 %v2948
      %v2981 = vunpack.c.l.b16 %v2949
      %v2982 = vunpack.c.l.b16 %v2950
      %v2983 = vunpack.c.l.b16 %v2951
      %v2984 = vunpack.c.l.b16 %v2952
      %v2985 = vunpack.c.l.b16 %v2953
      %v2986 = vunpack.c.l.b16 %v2954
      %v2987 = vunpack.c.l.b16 %v2955
      %v2988 = vunpack.c.l.b16 %v2956
      %v2989 = vunpack.c.l.b16 %v2957
      %v2990 = vunpack.c.l.b16 %v2958
      %v2991 = vunpack.c.l.b16 %v2959
      %v2992 = vunpack.c.l.b16 %v2960
      %v2993 = vunpack.c.l.b16 %v2961
      %v2994 = vunpack.c.l.b16 %v2962
      %v2995 = vpack.c.b16 %v2980, %v2979
      %v2996 = vpack.c.b16 %v2982, %v2981
      %v2997 = vpack.c.b16 %v2984, %v2983
      %v2998 = vpack.c.b16 %v2986, %v2985
      %v2999 = vpack.c.b16 %v2988, %v2987
      %v3000 = vpack.c.b16 %v2990, %v2989
      %v3001 = vpack.c.b16 %v2992, %v2991
      %v3002 = vpack.c.b16 %v2994, %v2993
      %3011 = vmatpush.bf16.msra.mxu0 %v3002
      %3012 = vmatpush.bf16.msra.mxu0 %v3001
      %3013 = vmatpush.bf16.msra.mxu0 %v3000
      %3014 = vmatpush.bf16.msra.mxu0 %v2999
      %3015 = vmatpush.bf16.msra.mxu0 %v2998
      %3016 = vmatpush.bf16.msra.mxu0 %v2997
      %3017 = vmatpush.bf16.msra.mxu0 %v2996
      %3018 = vmatpush.bf16.msra.mxu0 %v2995
      %3019 = vmatmul.bf16.gmra.mxu0 %v2942
      %v3020 = vpop.f32.mrf.mxu0
      %v3021 = vadd.f32 0.0, %v3020
      %v3022 = vpop.f32.mrf.mxu0
      %v3023 = vadd.f32 0.0, %v3022
      %3024 = vmatmul.bf16.gmra.mxu0 %v2943
      %v3025 = vpop.f32.mrf.mxu0
      %v3026 = vadd.f32 0.0, %v3025
      %v3027 = vpop.f32.mrf.mxu0
      %v3028 = vadd.f32 0.0, %v3027
      %3029 = vmatmul.bf16.gmra.mxu0 %v2944
      %v3030 = vpop.f32.mrf.mxu0
      %v3031 = vadd.f32 0.0, %v3030
      %v3032 = vpop.f32.mrf.mxu0
      %v3033 = vadd.f32 0.0, %v3032
      %3034 = vmatmul.bf16.gmra.mxu0 %v2945
      %v3035 = vpop.f32.mrf.mxu0
      %v3036 = vadd.f32 0.0, %v3035
      %v3037 = vpop.f32.mrf.mxu0
      %v3038 = vadd.f32 0.0, %v3037
      %3039 = vdwg.mxu0
      %v3040 = vadd.f32 %v2926, %v3021
      %v3041 = vadd.f32 %v2927, %v3023
      %v3042 = vadd.f32 %v2928, %v3026
      %v3043 = vadd.f32 %v2929, %v3028
      %v3044 = vadd.f32 %v2930, %v3031
      %v3045 = vadd.f32 %v2931, %v3033
      %v3046 = vadd.f32 %v2932, %v3036
      %v3047 = vadd.f32 %v2933, %v3038
      %v3048 = vld [vmem:[%s2591 + $0x4] sm:$0xff]
      %v3049 = vld [vmem:[%s2591 + $0x14] sm:$0xff]
      %v3050 = vld [vmem:[%s2591 + $0x24] sm:$0xff]
      %v3051 = vld [vmem:[%s2591 + $0x34] sm:$0xff]
      %v3052 = vld [vmem:[%s2591 + $0x44] sm:$0xff]
      %v3053 = vld [vmem:[%s2591 + $0x54] sm:$0xff]
      %v3054 = vld [vmem:[%s2591 + $0x64] sm:$0xff]
      %v3055 = vld [vmem:[%s2591 + $0x74] sm:$0xff]
      %v3056 = vpack.c.bf16 %v3049, %v3048
      %v3057 = vpack.c.bf16 %v3051, %v3050
      %v3058 = vpack.c.bf16 %v3053, %v3052
      %v3059 = vpack.c.bf16 %v3055, %v3054
      %s3060 = scalar_lea.vmem %s271, 1536
      %v3061 = vld [vmem:[%s3060] sm:$0xf]
      %v3062 = vld [vmem:[%s3060 + $0x4] sm:$0xf]
      %v3063 = vld [vmem:[%s3060 + $0x8] sm:$0xf]
      %v3064 = vld [vmem:[%s3060 + $0xc] sm:$0xf]
      %v3065 = vld [vmem:[%s3060 + $0x10] sm:$0xf]
      %v3066 = vld [vmem:[%s3060 + $0x14] sm:$0xf]
      %v3067 = vld [vmem:[%s3060 + $0x18] sm:$0xf]
      %v3068 = vld [vmem:[%s3060 + $0x1c] sm:$0xf]
      %v3069 = vld [vmem:[%s3060 + $0x20] sm:$0xf]
      %v3070 = vld [vmem:[%s3060 + $0x24] sm:$0xf]
      %v3071 = vld [vmem:[%s3060 + $0x28] sm:$0xf]
      %v3072 = vld [vmem:[%s3060 + $0x2c] sm:$0xf]
      %v3073 = vld [vmem:[%s3060 + $0x30] sm:$0xf]
      %v3074 = vld [vmem:[%s3060 + $0x34] sm:$0xf]
      %v3075 = vld [vmem:[%s3060 + $0x38] sm:$0xf]
      %v3076 = vld [vmem:[%s3060 + $0x3c] sm:$0xf]
      %v3093 = vunpack.c.l.b16 %v3061
      %v3094 = vunpack.c.l.b16 %v3062
      %v3095 = vunpack.c.l.b16 %v3063
      %v3096 = vunpack.c.l.b16 %v3064
      %v3097 = vunpack.c.l.b16 %v3065
      %v3098 = vunpack.c.l.b16 %v3066
      %v3099 = vunpack.c.l.b16 %v3067
      %v3100 = vunpack.c.l.b16 %v3068
      %v3101 = vunpack.c.l.b16 %v3069
      %v3102 = vunpack.c.l.b16 %v3070
      %v3103 = vunpack.c.l.b16 %v3071
      %v3104 = vunpack.c.l.b16 %v3072
      %v3105 = vunpack.c.l.b16 %v3073
      %v3106 = vunpack.c.l.b16 %v3074
      %v3107 = vunpack.c.l.b16 %v3075
      %v3108 = vunpack.c.l.b16 %v3076
      %v3109 = vpack.c.b16 %v3094, %v3093
      %v3110 = vpack.c.b16 %v3096, %v3095
      %v3111 = vpack.c.b16 %v3098, %v3097
      %v3112 = vpack.c.b16 %v3100, %v3099
      %v3113 = vpack.c.b16 %v3102, %v3101
      %v3114 = vpack.c.b16 %v3104, %v3103
      %v3115 = vpack.c.b16 %v3106, %v3105
      %v3116 = vpack.c.b16 %v3108, %v3107
      %3125 = vmatpush.bf16.msra.mxu0 %v3116
      %3126 = vmatpush.bf16.msra.mxu0 %v3115
      %3127 = vmatpush.bf16.msra.mxu0 %v3114
      %3128 = vmatpush.bf16.msra.mxu0 %v3113
      %3129 = vmatpush.bf16.msra.mxu0 %v3112
      %3130 = vmatpush.bf16.msra.mxu0 %v3111
      %3131 = vmatpush.bf16.msra.mxu0 %v3110
      %3132 = vmatpush.bf16.msra.mxu0 %v3109
      %3133 = vmatmul.bf16.gmra.mxu0 %v3056
      %v3134 = vpop.f32.mrf.mxu0
      %v3135 = vadd.f32 0.0, %v3134
      %v3136 = vpop.f32.mrf.mxu0
      %v3137 = vadd.f32 0.0, %v3136
      %3138 = vmatmul.bf16.gmra.mxu0 %v3057
      %v3139 = vpop.f32.mrf.mxu0
      %v3140 = vadd.f32 0.0, %v3139
      %v3141 = vpop.f32.mrf.mxu0
      %v3142 = vadd.f32 0.0, %v3141
      %3143 = vmatmul.bf16.gmra.mxu0 %v3058
      %v3144 = vpop.f32.mrf.mxu0
      %v3145 = vadd.f32 0.0, %v3144
      %v3146 = vpop.f32.mrf.mxu0
      %v3147 = vadd.f32 0.0, %v3146
      %3148 = vmatmul.bf16.gmra.mxu0 %v3059
      %v3149 = vpop.f32.mrf.mxu0
      %v3150 = vadd.f32 0.0, %v3149
      %v3151 = vpop.f32.mrf.mxu0
      %v3152 = vadd.f32 0.0, %v3151
      %3153 = vdwg.mxu0
      %v3154 = vadd.f32 %v3040, %v3135
      %v3155 = vadd.f32 %v3041, %v3137
      %v3156 = vadd.f32 %v3042, %v3140
      %v3157 = vadd.f32 %v3043, %v3142
      %v3158 = vadd.f32 %v3044, %v3145
      %v3159 = vadd.f32 %v3045, %v3147
      %v3160 = vadd.f32 %v3046, %v3150
      %v3161 = vadd.f32 %v3047, %v3152
      %3162 = vst [vmem:[#allocation2] sm:$0xff] %v3154
      %3163 = vst [vmem:[#allocation2 + $0x8] sm:$0xff] %v3155
      %3164 = vst [vmem:[#allocation2 + $0x10] sm:$0xff] %v3156
      %3165 = vst [vmem:[#allocation2 + $0x18] sm:$0xff] %v3157
      %3166 = vst [vmem:[#allocation2 + $0x20] sm:$0xff] %v3158
      %3167 = vst [vmem:[#allocation2 + $0x28] sm:$0xff] %v3159
      %3168 = vst [vmem:[#allocation2 + $0x30] sm:$0xff] %v3160
      %3169 = vst [vmem:[#allocation2 + $0x38] sm:$0xff] %v3161
      %p3170 = scmp.eq.s32.totalorder %s23, 4
      // Predicated region
      $region37: #{_lambda_.6} parent=31 // pred_check
        %p3171 = pneg %p3170
      $region38: #{_lambda_.6} parent=31 // pred_check_branch
        %3173 = sbr.rel (%p3171) target = $region40
      $region39: #{_lambda_.6} parent=31 // pred_region
        %v3174 = vld [vmem:[#allocation2] sm:$0xff]
        %v3175 = vld [vmem:[#allocation2 + $0x8] sm:$0xff]
        %v3176 = vld [vmem:[#allocation2 + $0x10] sm:$0xff]
        %v3177 = vld [vmem:[#allocation2 + $0x18] sm:$0xff]
        %v3178 = vld [vmem:[#allocation2 + $0x20] sm:$0xff]
        %v3179 = vld [vmem:[#allocation2 + $0x28] sm:$0xff]
        %v3180 = vld [vmem:[#allocation2 + $0x30] sm:$0xff]
        %v3181 = vld [vmem:[#allocation2 + $0x38] sm:$0xff]
        %v3182 = vld [vmem:[%s2] sm:$0x1]
        %v3184 = vperm.slane %v3182, 0
        %v3186 = vadd.f32 %v3174, %v3184
        %v3187 = vadd.f32 %v3175, %v3184
        %v3188 = vadd.f32 %v3176, %v3184
        %v3189 = vadd.f32 %v3177, %v3184
        %v3190 = vadd.f32 %v3178, %v3184
        %v3191 = vadd.f32 %v3179, %v3184
        %v3192 = vadd.f32 %v3180, %v3184
        %v3193 = vadd.f32 %v3181, %v3184
        %3194 = vst [vmem:[%s280] sm:$0xff] %v3186
        %3195 = vst [vmem:[%s280 + $0x8] sm:$0xff] %v3187
        %3196 = vst [vmem:[%s280 + $0x10] sm:$0xff] %v3188
        %3197 = vst [vmem:[%s280 + $0x18] sm:$0xff] %v3189
        %3198 = vst [vmem:[%s280 + $0x20] sm:$0xff] %v3190
        %3199 = vst [vmem:[%s280 + $0x28] sm:$0xff] %v3191
        %3200 = vst [vmem:[%s280 + $0x30] sm:$0xff] %v3192
        %3201 = vst [vmem:[%s280 + $0x38] sm:$0xff] %v3193
        %v3202 = vadd.f32 %v3186, %v3187
        %v3203 = vadd.f32 %v3202, %v3188
        %v3204 = vadd.f32 %v3203, %v3189
        %v3205 = vadd.f32 %v3204, %v3190
        %v3206 = vadd.f32 %v3205, %v3191
        %v3207 = vadd.f32 %v3206, %v3192
        %v3208 = vadd.f32 %v3207, %v3193
        %v3209 = vrot.slane %v3208, 4
        %v3210 = vadd.f32 %v3208, %v3209
        %v3211 = vrot.slane %v3210, 2
        %v3212 = vadd.f32 %v3210, %v3211
        %v3213 = vrot.slane %v3212, 1
        %v3214 = vadd.f32 %v3212, %v3213
        %v3215 = vmul.f32 %v3186, %v3186
        %v3216 = vmul.f32 %v3187, %v3187
        %v3217 = vmul.f32 %v3188, %v3188
        %v3218 = vmul.f32 %v3189, %v3189
        %v3219 = vmul.f32 %v3190, %v3190
        %v3220 = vmul.f32 %v3191, %v3191
        %v3221 = vmul.f32 %v3192, %v3192
        %v3222 = vmul.f32 %v3193, %v3193
        %v3223 = vadd.f32 %v3215, %v3216
        %v3224 = vadd.f32 %v3223, %v3217
        %v3225 = vadd.f32 %v3224, %v3218
        %v3226 = vadd.f32 %v3225, %v3219
        %v3227 = vadd.f32 %v3226, %v3220
        %v3228 = vadd.f32 %v3227, %v3221
        %v3229 = vadd.f32 %v3228, %v3222
        %v3230 = vrot.slane %v3229, 4
        %v3231 = vadd.f32 %v3229, %v3230
        %v3232 = vrot.slane %v3231, 2
        %v3233 = vadd.f32 %v3231, %v3232
        %v3234 = vrot.slane %v3233, 1
        %v3235 = vadd.f32 %v3233, %v3234
        %vm3236 = vcmask 1040384
        %v3237 = vsel %vm3236, %v3214, %v3235
        %3238 = vst [vmem:[%s288] sm:$0x3] %v3237
      $region40: #{_lambda_.6} parent=31 // pred_fallthru
        _
      %p3239 = scmp.lt.s32.totalorder %s21, 1
      %s3240 = scalar_select %p3239, %s21, 1
      %p3241 = scmp.lt.s32.totalorder %s22, 7
      %s3242 = scalar_select %p3241, %s22, 7
      %s3243 = smul.addr %s3242, 8
      %s3244 = smul.addr %s3240, 64
      %s3245 = sadd.s32 %s3243, %s3244
      %s3246 = smul.addr %s3245, 8
      %s3247 = scalar_lea.vmem %s3, %s3246
      %p3248 = scmp.lt.s32.totalorder %s21, 1
      %s3249 = scalar_select %p3248, %s21, 1
      %p3250 = scmp.lt.s32.totalorder %s22, 7
      %s3251 = scalar_select %p3250, %s22, 7
      %s3252 = smul.addr %s3249, 8
      %s3253 = sadd.s32 %s3251, %s3252
      %s3254 = smul.addr %s3253, 2
      %s3255 = scalar_lea.vmem %s4, %s3254
      // Predicated region
      $region41: #{_lambda_.6} parent=31 // pred_check
        %p3256 = pneg %p132
      $region42: #{_lambda_.6} parent=31 // pred_check_branch
        %3258 = sbr.rel (%p3256) target = $region44
      $region43: #{_lambda_.6} parent=31 // pred_region
        _
      $region44: #{_lambda_.6} parent=31 // pred_fallthru
        _
      // Predicated region
      $region45: #{_lambda_.6} parent=31 // pred_check
        %p3259 = pneg %p160
      $region46: #{_lambda_.6} parent=31 // pred_check_branch
        %3261 = sbr.rel (%p3259) target = $region48
      $region47: #{_lambda_.6} parent=31 // pred_region
        _
      $region48: #{_lambda_.6} parent=31 // pred_fallthru
        _
    $region32: #{_lambda_.6} parent=5 // pred_fallthru
      _
    %p3262 = scmp.le.s32.totalorder 2, %s11
    // Predicated region
    $region49: #{_lambda_.6} parent=5 // pred_check
      %p3263 = pneg %p3262
    $region50: #{_lambda_.6} parent=5 // pred_check_branch
      %3265 = sbr.rel (%p3263) target = $region52
    $region51: #{_lambda_.6} parent=5 // pred_region
      %s3266 = ssub.s32 %s11, 2
      // Predicated region
      $region53: #{_lambda_.6} parent=51 // pred_check
        %p3267 = pneg %p138
      $region54: #{_lambda_.6} parent=51 // pred_check_branch
        %3269 = sbr.rel (%p3267) target = $region56
      $region55: #{_lambda_.6} parent=51 // pred_region
        %p3270 = scmp.lt.s32.totalorder %s24, 1
        %s3271 = scalar_select %p3270, %s24, 1
        %p3272 = scmp.lt.s32.totalorder %s25, 7
        %s3273 = scalar_select %p3272, %s25, 7
        %s3274 = smul.addr %s3273, 8
        %s3275 = smul.addr %s3271, 64
        %s3276 = sadd.s32 %s3274, %s3275
        %s3277 = smul.addr %s3276, 8
        %s3278 = scalar_lea.vmem %s3, %s3277
      $region56: #{_lambda_.6} parent=51 // pred_fallthru
        _
      // Predicated region
      $region57: #{_lambda_.6} parent=51 // pred_check
        %p3279 = pneg %p166
      $region58: #{_lambda_.6} parent=51 // pred_check_branch
        %3281 = sbr.rel (%p3279) target = $region60
      $region59: #{_lambda_.6} parent=51 // pred_region
        %p3282 = scmp.lt.s32.totalorder %s24, 1
        %s3283 = scalar_select %p3282, %s24, 1
        %p3284 = scmp.lt.s32.totalorder %s25, 7
        %s3285 = scalar_select %p3284, %s25, 7
        %s3286 = smul.addr %s3283, 8
        %s3287 = sadd.s32 %s3285, %s3286
        %s3288 = smul.addr %s3287, 2
        %s3289 = scalar_lea.vmem %s4, %s3288
      $region60: #{_lambda_.6} parent=51 // pred_fallthru
        _
    $region52: #{_lambda_.6} parent=5 // pred_fallthru
      _
  $region6: #{_lambda_.6} parent=0 // loop_footer
    %s15 = sadd.s32 1, %s11
  $region7: #{_lambda_.6} parent=0 // loop_footer_branch
    %10 = sbr.rel target = $region3
  $region8: #{_lambda_.6} parent=0 // loop_exit
    _

</llo_original>
